<compile_context>
chip_gen: v6e
topology: v6e:2x2x1
jax: 0.10.0
libtpu: 0.0.40
codegen_flags: <defaults>
</compile_context>

<pallas_src>
import functools

import jax
import jax.numpy as jnp
from jax import lax
from jax.experimental import pallas as pl
from jax.experimental.pallas import tpu as pltpu

VMEM_LIMIT_BYTES = 32 * 1024 * 1024  # <= default scoped limit on v6e/v7x, raises v5e


# ----------------------------------------------------------------------------
# Fused whole-network kernel (one grid step == one batch sample)
# ----------------------------------------------------------------------------
def rir_kernel(x_ref,                                    # (1, h+2, w+2, c) padded NHWC
               w1_ref, b1_ref, w2_ref, b2_ref,           # per-block convs, stacked (G*B, ...)
               aw1_ref, ab1_ref, aw2_ref, ab2_ref,       # per-block attention, stacked
               gw_ref, gb_ref,                           # per-group conv, stacked (G, ...)
               fw_ref, fb_ref,                           # final conv
               o_ref,                                    # (1, h, w, c)
               act_ref, tmp_ref, gres_ref, im_ref,       # VMEM scratch
               *, h, w, c, n_groups, n_blocks):
    hw = h * w

    def conv3x3(src_ref, wmat, bias):
        """3x3 conv (stride 1, pad 1) as a single MXU dot.

        src_ref: zero-padded (h+2, w+2, c) VMEM ref.  The nine shifted views
        are packed into the (h*w, 9c) im2col scratch (VMEM only), then one
        (h*w, 9c) @ (9c, cout) contraction with f32 accumulation.
        """
        for dy in range(3):
            for dx in range(3):
                t = dy * 3 + dx
                patch = src_ref[dy:dy + h, dx:dx + w, :]
                im_ref[:, t * c:(t + 1) * c] = patch.reshape(hw, c)
        return jnp.dot(im_ref[...], wmat,
                       preferred_element_type=jnp.float32) + bias

    # Bring the padded sample into VMEM; zero the intermediate buffer's border
    # once (only interiors are written afterwards, borders stay zero).
    act_ref[...] = x_ref[0, :, :, :].astype(jnp.float32)
    tmp_ref[...] = jnp.zeros_like(tmp_ref)

    # ---------------- residual groups ----------------
    def group_body(g, carry):
        gres_ref[...] = act_ref[...]                     # group input for residual

        def block_body(b, inner):
            layer = g * n_blocks + b
            # fe1: conv3x3 + ReLU -> conv3x3
            a1 = conv3x3(act_ref, w1_ref[layer, :, :],
                         b1_ref[pl.ds(layer, 1), :])
            a1 = jnp.maximum(a1, 0.0)
            tmp_ref[1:h + 1, 1:w + 1, :] = a1.reshape(h, w, c)
            m = conv3x3(tmp_ref, w2_ref[layer, :, :],
                        b2_ref[pl.ds(layer, 1), :])      # (h*w, c)

            # attention: global avg pool -> 1x1 conv -> sigmoid -> 1x1 conv -> ReLU
            pooled = jnp.mean(m, axis=0, keepdims=True)  # (1, c)
            z1 = jnp.dot(pooled, aw1_ref[layer, :, :],
                         preferred_element_type=jnp.float32) + ab1_ref[pl.ds(layer, 1), :]
            gate = 1.0 / (1.0 + jnp.exp(-z1))            # sigmoid (EUP)
            z2 = jnp.dot(gate, aw2_ref[layer, :, :],
                         preferred_element_type=jnp.float32) + ab2_ref[pl.ds(layer, 1), :]
            s = jnp.maximum(z2, 0.0)                     # (1, c)

            act_ref[1:h + 1, 1:w + 1, :] = (m * s).reshape(h, w, c)
            return inner

        lax.fori_loop(0, n_blocks, block_body, 0)

        # group closure: x + conv3x3(blocks(x))
        y = conv3x3(act_ref, gw_ref[g, :, :], gb_ref[pl.ds(g, 1), :])
        act_ref[1:h + 1, 1:w + 1, :] = (y.reshape(h, w, c)
                                        + gres_ref[1:h + 1, 1:w + 1, :])
        return carry

    lax.fori_loop(0, n_groups, group_body, 0)

    # ---------------- outermost: x + conv3x3(groups(x)) ----------------
    y = conv3x3(act_ref, fw_ref[...], fb_ref[...])
    res = x_ref[0, 1:h + 1, 1:w + 1, :].astype(jnp.float32)
    o_ref[0, :, :, :] = (y.reshape(h, w, c) + res).astype(o_ref.dtype)


# ----------------------------------------------------------------------------
# pallas_call wrapper
# ----------------------------------------------------------------------------
def _full_spec(a):
    zeros = (0,) * a.ndim
    return pl.BlockSpec(a.shape, lambda i: zeros)        # VMEM-resident weight


def rir_pallas(x_pad, p):
    n, hp, wp, c = x_pad.shape
    h, w = hp - 2, wp - 2
    n_groups = p["gw"].shape[0]
    n_blocks = p["w1"].shape[0] // n_groups

    kern = functools.partial(rir_kernel, h=h, w=w, c=c,
                             n_groups=n_groups, n_blocks=n_blocks)
    weights = (p["w1"], p["b1"], p["w2"], p["b2"],
               p["aw1"], p["ab1"], p["aw2"], p["ab2"],
               p["gw"], p["gb"], p["fw"], p["fb"])

    in_spec = pl.BlockSpec((1, hp, wp, c), lambda i: (i, 0, 0, 0))
    out_spec = pl.BlockSpec((1, h, w, c), lambda i: (i, 0, 0, 0))

    return pl.pallas_call(
        kern,
        out_shape=jax.ShapeDtypeStruct((n, h, w, c), x_pad.dtype),
        grid_spec=pltpu.PrefetchScalarGridSpec(
            num_scalar_prefetch=0,
            grid=(n,),
            in_specs=[in_spec] + [_full_spec(a) for a in weights],
            out_specs=out_spec,
            scratch_shapes=[
                pltpu.VMEM((hp, wp, c), jnp.float32),      # current activation (padded)
                pltpu.VMEM((hp, wp, c), jnp.float32),      # conv1 intermediate (padded)
                pltpu.VMEM((hp, wp, c), jnp.float32),      # group residual
                pltpu.VMEM((h * w, 9 * c), jnp.float32),   # im2col
            ]),
        compiler_params=pltpu.CompilerParams(
            dimension_semantics=("parallel",),
            vmem_limit_bytes=VMEM_LIMIT_BYTES),
    )(x_pad, *weights)


# ----------------------------------------------------------------------------
# One-time weight re-layout (runs once inside the jitted forward)
# ----------------------------------------------------------------------------
def _prep_conv_w(wgt):
    """(..., Cout, Cin, 3, 3) -> (..., 9*Cin, Cout), taps-major, f32."""
    nd = wgt.ndim
    co, ci = wgt.shape[-4], wgt.shape[-3]
    perm = tuple(range(nd - 4)) + (nd - 2, nd - 1, nd - 3, nd - 4)
    wt = jnp.transpose(wgt, perm)                        # (..., 3, 3, Cin, Cout)
    return wt.reshape(wgt.shape[:-4] + (9 * ci, co)).astype(jnp.float32)


def _prep_1x1_w(wgt):
    """(..., Cout, Cin, 1, 1) -> (..., Cin, Cout) f32."""
    return jnp.swapaxes(wgt[..., 0, 0], -1, -2).astype(jnp.float32)


def _flat2(a):
    """Merge the leading (n_groups, n_blocks) axes into one layer axis."""
    return a.reshape((-1,) + a.shape[2:])


def prepare_params(params):
    g = params["groups"]
    blk = g["blocks"]
    return {
        "w1": _flat2(_prep_conv_w(blk["w1"])),           # (G*B, 9c, c)
        "b1": _flat2(blk["b1"]).astype(jnp.float32),     # (G*B, c)
        "w2": _flat2(_prep_conv_w(blk["w2"])),
        "b2": _flat2(blk["b2"]).astype(jnp.float32),
        "aw1": _flat2(_prep_1x1_w(blk["aw1"])),          # (G*B, c, c//2)
        "ab1": _flat2(blk["ab1"]).astype(jnp.float32),   # (G*B, c//2)
        "aw2": _flat2(_prep_1x1_w(blk["aw2"])),          # (G*B, c//2, c)
        "ab2": _flat2(blk["ab2"]).astype(jnp.float32),   # (G*B, c)
        "gw": _prep_conv_w(g["cw"]),                     # (G, 9c, c)
        "gb": g["cb"].astype(jnp.float32),               # (G, c)
        "fw": _prep_conv_w(params["cw"]),                # (9c, c)
        "fb": params["cb"][None, :].astype(jnp.float32), # (1, c)
    }


@jax.jit
def rir_forward(x_nchw, params):
    p = prepare_params(params)                           # one-time weight re-layout
    n, c, h, w = x_nchw.shape
    x = jnp.transpose(x_nchw, (0, 2, 3, 1))              # NCHW -> NHWC (once)
    x_pad = jnp.pad(x, ((0, 0), (1, 1), (1, 1), (0, 0))) # pad once
    y = rir_pallas(x_pad, p)                             # (n, h, w, c)
    return jnp.transpose(y, (0, 3, 1, 2))                # NHWC -> NCHW (once)


# ----------------------------------------------------------------------------
# Deterministic parameter initialization (synthetic; shapes match the module)
# ----------------------------------------------------------------------------
def init_params(key, base_ch, n_groups=10, n_blocks=20):
    red = base_ch // 2
    ks = jax.random.split(key, 12)
    scale = 0.05

    def nrm(k, shape):
        return jax.random.normal(k, shape, jnp.float32) * scale

    blocks = {
        "w1": nrm(ks[0], (n_groups, n_blocks, base_ch, base_ch, 3, 3)),
        "b1": nrm(ks[1], (n_groups, n_blocks, base_ch)),
        "w2": nrm(ks[2], (n_groups, n_blocks, base_ch, base_ch, 3, 3)),
        "b2": nrm(ks[3], (n_groups, n_blocks, base_ch)),
        "aw1": nrm(ks[4], (n_groups, n_blocks, red, base_ch, 1, 1)),
        "ab1": nrm(ks[5], (n_groups, n_blocks, red)),
        "aw2": nrm(ks[6], (n_groups, n_blocks, base_ch, red, 1, 1)),
        "ab2": nrm(ks[7], (n_groups, n_blocks, base_ch)),
    }
    groups = {
        "blocks": blocks,
        "cw": nrm(ks[8], (n_groups, base_ch, base_ch, 3, 3)),
        "cb": nrm(ks[9], (n_groups, base_ch)),
    }
    return {
        "groups": groups,
        "cw": nrm(ks[10], (base_ch, base_ch, 3, 3)),
        "cb": nrm(ks[11], (base_ch,)),
    }


if __name__ == "__main__":
    base_ch = 4
    key = jax.random.PRNGKey(0)
    k_x, k_p = jax.random.split(key)
    x = jax.random.normal(k_x, (2, base_ch, 16, 16), jnp.float32)   # NCHW like PyTorch
    params = init_params(k_p, base_ch)

    y = rir_forward(x, params)
    y = jax.block_until_ready(y)

    assert y.shape == x.shape and y.dtype == x.dtype
    assert bool(jnp.all(jnp.isfinite(y)))
    print("KERNEL_OK")
</pallas_src>

<mosaic_0001>
module attributes {stable_mosaic.version = 11 : i64} {
  func.func @rir_kernel(%arg0: i32, %arg1: memref<1x18x18x4xf32, #tpu.memory_space<vmem>>, %arg2: memref<200x36x4xf32, #tpu.memory_space<vmem>>, %arg3: memref<200x4xf32, #tpu.memory_space<vmem>>, %arg4: memref<200x36x4xf32, #tpu.memory_space<vmem>>, %arg5: memref<200x4xf32, #tpu.memory_space<vmem>>, %arg6: memref<200x4x2xf32, #tpu.memory_space<vmem>>, %arg7: memref<200x2xf32, #tpu.memory_space<vmem>>, %arg8: memref<200x2x4xf32, #tpu.memory_space<vmem>>, %arg9: memref<200x4xf32, #tpu.memory_space<vmem>>, %arg10: memref<10x36x4xf32, #tpu.memory_space<vmem>>, %arg11: memref<10x4xf32, #tpu.memory_space<vmem>>, %arg12: memref<36x4xf32, #tpu.memory_space<vmem>>, %arg13: memref<1x4xf32, #tpu.memory_space<vmem>>, %arg14: memref<1x16x16x4xf32, #tpu.memory_space<vmem>>, %arg15: memref<18x18x4xf32, #tpu.memory_space<vmem>>, %arg16: memref<18x18x4xf32, #tpu.memory_space<vmem>>, %arg17: memref<18x18x4xf32, #tpu.memory_space<vmem>>, %arg18: memref<256x36xf32, #tpu.memory_space<vmem>>) attributes {dimension_semantics = [#tpu.dimension_semantics<parallel>], iteration_bounds = array<i64: 2>, scalar_prefetch = 0 : i64, scratch_operands = 4 : i64, tpu.core_type = #tpu.core_type<tc>, window_params = [{transform_indices = @transform_0, window_bounds = array<i64: 1, 18, 18, 4>}, {pipeline_mode = #tpu.pipeline_mode<synchronous>, transform_indices = @transform_1, window_bounds = array<i64: 200, 36, 4>}, {pipeline_mode = #tpu.pipeline_mode<synchronous>, transform_indices = @transform_2, window_bounds = array<i64: 200, 4>}, {pipeline_mode = #tpu.pipeline_mode<synchronous>, transform_indices = @transform_3, window_bounds = array<i64: 200, 36, 4>}, {pipeline_mode = #tpu.pipeline_mode<synchronous>, transform_indices = @transform_4, window_bounds = array<i64: 200, 4>}, {pipeline_mode = #tpu.pipeline_mode<synchronous>, transform_indices = @transform_5, window_bounds = array<i64: 200, 4, 2>}, {pipeline_mode = #tpu.pipeline_mode<synchronous>, transform_indices = @transform_6, window_bounds = array<i64: 200, 2>}, {pipeline_mode = #tpu.pipeline_mode<synchronous>, transform_indices = @transform_7, window_bounds = array<i64: 200, 2, 4>}, {pipeline_mode = #tpu.pipeline_mode<synchronous>, transform_indices = @transform_8, window_bounds = array<i64: 200, 4>}, {pipeline_mode = #tpu.pipeline_mode<synchronous>, transform_indices = @transform_9, window_bounds = array<i64: 10, 36, 4>}, {pipeline_mode = #tpu.pipeline_mode<synchronous>, transform_indices = @transform_10, window_bounds = array<i64: 10, 4>}, {pipeline_mode = #tpu.pipeline_mode<synchronous>, transform_indices = @transform_11, window_bounds = array<i64: 36, 4>}, {pipeline_mode = #tpu.pipeline_mode<synchronous>, transform_indices = @transform_12, window_bounds = array<i64: 1, 4>}, {transform_indices = @transform_13, window_bounds = array<i64: 1, 16, 16, 4>}]} {
    %c0 = arith.constant 0 : index
    %c0_0 = arith.constant 0 : index
    %c0_1 = arith.constant 0 : index
    %c0_2 = arith.constant 0 : index
    %0 = vector.load %arg1[%c0, %c0_0, %c0_1, %c0_2] : memref<1x18x18x4xf32, #tpu.memory_space<vmem>>, vector<1x18x18x4xf32>
    %1 = vector.shape_cast %0 : vector<1x18x18x4xf32> to vector<18x18x4xf32>
    %c0_3 = arith.constant 0 : index
    %c0_4 = arith.constant 0 : index
    %c0_5 = arith.constant 0 : index
    %2 = vector.load %arg15[%c0_3, %c0_4, %c0_5] : memref<18x18x4xf32, #tpu.memory_space<vmem>>, vector<18x18x4xf32>
    tpu.vector_store %arg15[%c0_3, %c0_4, %c0_5], %1 {strides = array<i32>} : memref<18x18x4xf32, #tpu.memory_space<vmem>>, vector<18x18x4xf32>,
    %cst = arith.constant 0.000000e+00 : f32
    %3 = vector.broadcast %cst : f32 to vector<18x18x4xf32>
    %c0_6 = arith.constant 0 : index
    %c0_7 = arith.constant 0 : index
    %c0_8 = arith.constant 0 : index
    %4 = vector.load %arg16[%c0_6, %c0_7, %c0_8] : memref<18x18x4xf32, #tpu.memory_space<vmem>>, vector<18x18x4xf32>
    tpu.vector_store %arg16[%c0_6, %c0_7, %c0_8], %3 {strides = array<i32>} : memref<18x18x4xf32, #tpu.memory_space<vmem>>, vector<18x18x4xf32>,
    %c0_i32 = arith.constant 0 : i32
    %c10_i32 = arith.constant 10 : i32
    %5 = arith.addi %c0_i32, %c10_i32 : i32
    %c1_i32 = arith.constant 1 : i32
    scf.for %arg19 = %c0_i32 to %5 step %c1_i32  : i32 {
      %c0_60 = arith.constant 0 : index
      %c0_61 = arith.constant 0 : index
      %c0_62 = arith.constant 0 : index
      %46 = vector.load %arg15[%c0_60, %c0_61, %c0_62] : memref<18x18x4xf32, #tpu.memory_space<vmem>>, vector<18x18x4xf32>
      %c0_63 = arith.constant 0 : index
      %c0_64 = arith.constant 0 : index
      %c0_65 = arith.constant 0 : index
      %47 = vector.load %arg17[%c0_63, %c0_64, %c0_65] : memref<18x18x4xf32, #tpu.memory_space<vmem>>, vector<18x18x4xf32>
      tpu.vector_store %arg17[%c0_63, %c0_64, %c0_65], %46 {strides = array<i32>} : memref<18x18x4xf32, #tpu.memory_space<vmem>>, vector<18x18x4xf32>,
      %c0_i32_66 = arith.constant 0 : i32
      %c20_i32 = arith.constant 20 : i32
      %48 = arith.addi %c0_i32_66, %c20_i32 : i32
      %c1_i32_67 = arith.constant 1 : i32
      scf.for %arg20 = %c0_i32_66 to %48 step %c1_i32_67  : i32 {
        %c20_i32_126 = arith.constant 20 : i32
        %89 = arith.muli %arg19, %c20_i32_126 : i32
        %90 = arith.addi %89, %arg20 : i32
        %91 = arith.index_cast %90 : i32 to index
        %c0_127 = arith.constant 0 : index
        %c0_128 = arith.constant 0 : index
        %92 = vector.load %arg2[%91, %c0_127, %c0_128] : memref<200x36x4xf32, #tpu.memory_space<vmem>>, vector<1x36x4xf32>
        %93 = vector.shape_cast %92 : vector<1x36x4xf32> to vector<36x4xf32>
        %94 = arith.index_cast %90 : i32 to index
        %c0_129 = arith.constant 0 : index
        %95 = vector.load %arg3[%94, %c0_129] : memref<200x4xf32, #tpu.memory_space<vmem>>, vector<1x4xf32>
        %c0_130 = arith.constant 0 : index
        %c0_131 = arith.constant 0 : index
        %c0_132 = arith.constant 0 : index
        %96 = vector.load %arg15[%c0_130, %c0_131, %c0_132] : memref<18x18x4xf32, #tpu.memory_space<vmem>>, vector<16x16x4xf32>
        %97 = vector.shape_cast %96 : vector<16x16x4xf32> to vector<256x4xf32>
        %c0_133 = arith.constant 0 : index
        %c0_134 = arith.constant 0 : index
        %98 = vector.load %arg18[%c0_133, %c0_134] : memref<256x36xf32, #tpu.memory_space<vmem>>, vector<256x4xf32>
        tpu.vector_store %arg18[%c0_133, %c0_134], %97 {strides = array<i32>} : memref<256x36xf32, #tpu.memory_space<vmem>>, vector<256x4xf32>,
        %c0_135 = arith.constant 0 : index
        %c1_136 = arith.constant 1 : index
        %c0_137 = arith.constant 0 : index
        %99 = vector.load %arg15[%c0_135, %c1_136, %c0_137] : memref<18x18x4xf32, #tpu.memory_space<vmem>>, vector<16x16x4xf32>
        %100 = vector.shape_cast %99 : vector<16x16x4xf32> to vector<256x4xf32>
        %c0_138 = arith.constant 0 : index
        %c4_139 = arith.constant 4 : index
        %101 = vector.load %arg18[%c0_138, %c4_139] : memref<256x36xf32, #tpu.memory_space<vmem>>, vector<256x4xf32>
        tpu.vector_store %arg18[%c0_138, %c4_139], %100 {strides = array<i32>} : memref<256x36xf32, #tpu.memory_space<vmem>>, vector<256x4xf32>,
        %c0_140 = arith.constant 0 : index
        %c2_141 = arith.constant 2 : index
        %c0_142 = arith.constant 0 : index
        %102 = vector.load %arg15[%c0_140, %c2_141, %c0_142] : memref<18x18x4xf32, #tpu.memory_space<vmem>>, vector<16x16x4xf32>
        %103 = vector.shape_cast %102 : vector<16x16x4xf32> to vector<256x4xf32>
        %c0_143 = arith.constant 0 : index
        %c8_144 = arith.constant 8 : index
        %104 = vector.load %arg18[%c0_143, %c8_144] : memref<256x36xf32, #tpu.memory_space<vmem>>, vector<256x4xf32>
        tpu.vector_store %arg18[%c0_143, %c8_144], %103 {strides = array<i32>} : memref<256x36xf32, #tpu.memory_space<vmem>>, vector<256x4xf32>,
        %c1_145 = arith.constant 1 : index
        %c0_146 = arith.constant 0 : index
        %c0_147 = arith.constant 0 : index
        %105 = vector.load %arg15[%c1_145, %c0_146, %c0_147] : memref<18x18x4xf32, #tpu.memory_space<vmem>>, vector<16x16x4xf32>
        %106 = vector.shape_cast %105 : vector<16x16x4xf32> to vector<256x4xf32>
        %c0_148 = arith.constant 0 : index
        %c12_149 = arith.constant 12 : index
        %107 = vector.load %arg18[%c0_148, %c12_149] : memref<256x36xf32, #tpu.memory_space<vmem>>, vector<256x4xf32>
        tpu.vector_store %arg18[%c0_148, %c12_149], %106 {strides = array<i32>} : memref<256x36xf32, #tpu.memory_space<vmem>>, vector<256x4xf32>,
        %c1_150 = arith.constant 1 : index
        %c1_151 = arith.constant 1 : index
        %c0_152 = arith.constant 0 : index
        %108 = vector.load %arg15[%c1_150, %c1_151, %c0_152] : memref<18x18x4xf32, #tpu.memory_space<vmem>>, vector<16x16x4xf32>
        %109 = vector.shape_cast %108 : vector<16x16x4xf32> to vector<256x4xf32>
        %c0_153 = arith.constant 0 : index
        %c16_154 = arith.constant 16 : index
        %110 = vector.load %arg18[%c0_153, %c16_154] : memref<256x36xf32, #tpu.memory_space<vmem>>, vector<256x4xf32>
        tpu.vector_store %arg18[%c0_153, %c16_154], %109 {strides = array<i32>} : memref<256x36xf32, #tpu.memory_space<vmem>>, vector<256x4xf32>,
        %c1_155 = arith.constant 1 : index
        %c2_156 = arith.constant 2 : index
        %c0_157 = arith.constant 0 : index
        %111 = vector.load %arg15[%c1_155, %c2_156, %c0_157] : memref<18x18x4xf32, #tpu.memory_space<vmem>>, vector<16x16x4xf32>
        %112 = vector.shape_cast %111 : vector<16x16x4xf32> to vector<256x4xf32>
        %c0_158 = arith.constant 0 : index
        %c20_159 = arith.constant 20 : index
        %113 = vector.load %arg18[%c0_158, %c20_159] : memref<256x36xf32, #tpu.memory_space<vmem>>, vector<256x4xf32>
        tpu.vector_store %arg18[%c0_158, %c20_159], %112 {strides = array<i32>} : memref<256x36xf32, #tpu.memory_space<vmem>>, vector<256x4xf32>,
        %c2_160 = arith.constant 2 : index
        %c0_161 = arith.constant 0 : index
        %c0_162 = arith.constant 0 : index
        %114 = vector.load %arg15[%c2_160, %c0_161, %c0_162] : memref<18x18x4xf32, #tpu.memory_space<vmem>>, vector<16x16x4xf32>
        %115 = vector.shape_cast %114 : vector<16x16x4xf32> to vector<256x4xf32>
        %c0_163 = arith.constant 0 : index
        %c24_164 = arith.constant 24 : index
        %116 = vector.load %arg18[%c0_163, %c24_164] : memref<256x36xf32, #tpu.memory_space<vmem>>, vector<256x4xf32>
        tpu.vector_store %arg18[%c0_163, %c24_164], %115 {strides = array<i32>} : memref<256x36xf32, #tpu.memory_space<vmem>>, vector<256x4xf32>,
        %c2_165 = arith.constant 2 : index
        %c1_166 = arith.constant 1 : index
        %c0_167 = arith.constant 0 : index
        %117 = vector.load %arg15[%c2_165, %c1_166, %c0_167] : memref<18x18x4xf32, #tpu.memory_space<vmem>>, vector<16x16x4xf32>
        %118 = vector.shape_cast %117 : vector<16x16x4xf32> to vector<256x4xf32>
        %c0_168 = arith.constant 0 : index
        %c28_169 = arith.constant 28 : index
        %119 = vector.load %arg18[%c0_168, %c28_169] : memref<256x36xf32, #tpu.memory_space<vmem>>, vector<256x4xf32>
        tpu.vector_store %arg18[%c0_168, %c28_169], %118 {strides = array<i32>} : memref<256x36xf32, #tpu.memory_space<vmem>>, vector<256x4xf32>,
        %c2_170 = arith.constant 2 : index
        %c2_171 = arith.constant 2 : index
        %c0_172 = arith.constant 0 : index
        %120 = vector.load %arg15[%c2_170, %c2_171, %c0_172] : memref<18x18x4xf32, #tpu.memory_space<vmem>>, vector<16x16x4xf32>
        %121 = vector.shape_cast %120 : vector<16x16x4xf32> to vector<256x4xf32>
        %c0_173 = arith.constant 0 : index
        %c32_174 = arith.constant 32 : index
        %122 = vector.load %arg18[%c0_173, %c32_174] : memref<256x36xf32, #tpu.memory_space<vmem>>, vector<256x4xf32>
        tpu.vector_store %arg18[%c0_173, %c32_174], %121 {strides = array<i32>} : memref<256x36xf32, #tpu.memory_space<vmem>>, vector<256x4xf32>,
        %c0_175 = arith.constant 0 : index
        %c0_176 = arith.constant 0 : index
        %123 = vector.load %arg18[%c0_175, %c0_176] : memref<256x36xf32, #tpu.memory_space<vmem>>, vector<256x36xf32>
        %cst_177 = arith.constant dense<0.000000e+00> : vector<256x4xf32>
        %124 = tpu.matmul %123, %93, %cst_177 {dimension_numbers = #tpu.dot_dimension_numbers<[1], [0], [0], [1], [0, 0, 1, 1], [], []>} : vector<256x36xf32>, vector<36x4xf32>, vector<256x4xf32> -> vector<256x4xf32>
        %125 = vector.broadcast %95 : vector<1x4xf32> to vector<256x4xf32>
        %126 = arith.addf %124, %125 : vector<256x4xf32>
        %cst_178 = arith.constant 0.000000e+00 : f32
        %127 = vector.broadcast %cst_178 : f32 to vector<256x4xf32>
        %128 = arith.maximumf %126, %127 : vector<256x4xf32>
        %129 = vector.shape_cast %128 : vector<256x4xf32> to vector<16x16x4xf32>
        %c1_179 = arith.constant 1 : index
        %c1_180 = arith.constant 1 : index
        %c0_181 = arith.constant 0 : index
        %130 = vector.load %arg16[%c1_179, %c1_180, %c0_181] : memref<18x18x4xf32, #tpu.memory_space<vmem>>, vector<16x16x4xf32>
        tpu.vector_store %arg16[%c1_179, %c1_180, %c0_181], %129 {strides = array<i32>} : memref<18x18x4xf32, #tpu.memory_space<vmem>>, vector<16x16x4xf32>,
        %131 = arith.index_cast %90 : i32 to index
        %c0_182 = arith.constant 0 : index
        %c0_183 = arith.constant 0 : index
        %132 = vector.load %arg4[%131, %c0_182, %c0_183] : memref<200x36x4xf32, #tpu.memory_space<vmem>>, vector<1x36x4xf32>
        %133 = vector.shape_cast %132 : vector<1x36x4xf32> to vector<36x4xf32>
        %134 = arith.index_cast %90 : i32 to index
        %c0_184 = arith.constant 0 : index
        %135 = vector.load %arg5[%134, %c0_184] : memref<200x4xf32, #tpu.memory_space<vmem>>, vector<1x4xf32>
        %c0_185 = arith.constant 0 : index
        %c0_186 = arith.constant 0 : index
        %c0_187 = arith.constant 0 : index
        %136 = vector.load %arg16[%c0_185, %c0_186, %c0_187] : memref<18x18x4xf32, #tpu.memory_space<vmem>>, vector<16x16x4xf32>
        %137 = vector.shape_cast %136 : vector<16x16x4xf32> to vector<256x4xf32>
        %c0_188 = arith.constant 0 : index
        %c0_189 = arith.constant 0 : index
        %138 = vector.load %arg18[%c0_188, %c0_189] : memref<256x36xf32, #tpu.memory_space<vmem>>, vector<256x4xf32>
        tpu.vector_store %arg18[%c0_188, %c0_189], %137 {strides = array<i32>} : memref<256x36xf32, #tpu.memory_space<vmem>>, vector<256x4xf32>,
        %c0_190 = arith.constant 0 : index
        %c1_191 = arith.constant 1 : index
        %c0_192 = arith.constant 0 : index
        %139 = vector.load %arg16[%c0_190, %c1_191, %c0_192] : memref<18x18x4xf32, #tpu.memory_space<vmem>>, vector<16x16x4xf32>
        %140 = vector.shape_cast %139 : vector<16x16x4xf32> to vector<256x4xf32>
        %c0_193 = arith.constant 0 : index
        %c4_194 = arith.constant 4 : index
        %141 = vector.load %arg18[%c0_193, %c4_194] : memref<256x36xf32, #tpu.memory_space<vmem>>, vector<256x4xf32>
        tpu.vector_store %arg18[%c0_193, %c4_194], %140 {strides = array<i32>} : memref<256x36xf32, #tpu.memory_space<vmem>>, vector<256x4xf32>,
        %c0_195 = arith.constant 0 : index
        %c2_196 = arith.constant 2 : index
        %c0_197 = arith.constant 0 : index
        %142 = vector.load %arg16[%c0_195, %c2_196, %c0_197] : memref<18x18x4xf32, #tpu.memory_space<vmem>>, vector<16x16x4xf32>
        %143 = vector.shape_cast %142 : vector<16x16x4xf32> to vector<256x4xf32>
        %c0_198 = arith.constant 0 : index
        %c8_199 = arith.constant 8 : index
        %144 = vector.load %arg18[%c0_198, %c8_199] : memref<256x36xf32, #tpu.memory_space<vmem>>, vector<256x4xf32>
        tpu.vector_store %arg18[%c0_198, %c8_199], %143 {strides = array<i32>} : memref<256x36xf32, #tpu.memory_space<vmem>>, vector<256x4xf32>,
        %c1_200 = arith.constant 1 : index
        %c0_201 = arith.constant 0 : index
        %c0_202 = arith.constant 0 : index
        %145 = vector.load %arg16[%c1_200, %c0_201, %c0_202] : memref<18x18x4xf32, #tpu.memory_space<vmem>>, vector<16x16x4xf32>
        %146 = vector.shape_cast %145 : vector<16x16x4xf32> to vector<256x4xf32>
        %c0_203 = arith.constant 0 : index
        %c12_204 = arith.constant 12 : index
        %147 = vector.load %arg18[%c0_203, %c12_204] : memref<256x36xf32, #tpu.memory_space<vmem>>, vector<256x4xf32>
        tpu.vector_store %arg18[%c0_203, %c12_204], %146 {strides = array<i32>} : memref<256x36xf32, #tpu.memory_space<vmem>>, vector<256x4xf32>,
        %c1_205 = arith.constant 1 : index
        %c1_206 = arith.constant 1 : index
        %c0_207 = arith.constant 0 : index
        %148 = vector.load %arg16[%c1_205, %c1_206, %c0_207] : memref<18x18x4xf32, #tpu.memory_space<vmem>>, vector<16x16x4xf32>
        %149 = vector.shape_cast %148 : vector<16x16x4xf32> to vector<256x4xf32>
        %c0_208 = arith.constant 0 : index
        %c16_209 = arith.constant 16 : index
        %150 = vector.load %arg18[%c0_208, %c16_209] : memref<256x36xf32, #tpu.memory_space<vmem>>, vector<256x4xf32>
        tpu.vector_store %arg18[%c0_208, %c16_209], %149 {strides = array<i32>} : memref<256x36xf32, #tpu.memory_space<vmem>>, vector<256x4xf32>,
        %c1_210 = arith.constant 1 : index
        %c2_211 = arith.constant 2 : index
        %c0_212 = arith.constant 0 : index
        %151 = vector.load %arg16[%c1_210, %c2_211, %c0_212] : memref<18x18x4xf32, #tpu.memory_space<vmem>>, vector<16x16x4xf32>
        %152 = vector.shape_cast %151 : vector<16x16x4xf32> to vector<256x4xf32>
        %c0_213 = arith.constant 0 : index
        %c20_214 = arith.constant 20 : index
        %153 = vector.load %arg18[%c0_213, %c20_214] : memref<256x36xf32, #tpu.memory_space<vmem>>, vector<256x4xf32>
        tpu.vector_store %arg18[%c0_213, %c20_214], %152 {strides = array<i32>} : memref<256x36xf32, #tpu.memory_space<vmem>>, vector<256x4xf32>,
        %c2_215 = arith.constant 2 : index
        %c0_216 = arith.constant 0 : index
        %c0_217 = arith.constant 0 : index
        %154 = vector.load %arg16[%c2_215, %c0_216, %c0_217] : memref<18x18x4xf32, #tpu.memory_space<vmem>>, vector<16x16x4xf32>
        %155 = vector.shape_cast %154 : vector<16x16x4xf32> to vector<256x4xf32>
        %c0_218 = arith.constant 0 : index
        %c24_219 = arith.constant 24 : index
        %156 = vector.load %arg18[%c0_218, %c24_219] : memref<256x36xf32, #tpu.memory_space<vmem>>, vector<256x4xf32>
        tpu.vector_store %arg18[%c0_218, %c24_219], %155 {strides = array<i32>} : memref<256x36xf32, #tpu.memory_space<vmem>>, vector<256x4xf32>,
        %c2_220 = arith.constant 2 : index
        %c1_221 = arith.constant 1 : index
        %c0_222 = arith.constant 0 : index
        %157 = vector.load %arg16[%c2_220, %c1_221, %c0_222] : memref<18x18x4xf32, #tpu.memory_space<vmem>>, vector<16x16x4xf32>
        %158 = vector.shape_cast %157 : vector<16x16x4xf32> to vector<256x4xf32>
        %c0_223 = arith.constant 0 : index
        %c28_224 = arith.constant 28 : index
        %159 = vector.load %arg18[%c0_223, %c28_224] : memref<256x36xf32, #tpu.memory_space<vmem>>, vector<256x4xf32>
        tpu.vector_store %arg18[%c0_223, %c28_224], %158 {strides = array<i32>} : memref<256x36xf32, #tpu.memory_space<vmem>>, vector<256x4xf32>,
        %c2_225 = arith.constant 2 : index
        %c2_226 = arith.constant 2 : index
        %c0_227 = arith.constant 0 : index
        %160 = vector.load %arg16[%c2_225, %c2_226, %c0_227] : memref<18x18x4xf32, #tpu.memory_space<vmem>>, vector<16x16x4xf32>
        %161 = vector.shape_cast %160 : vector<16x16x4xf32> to vector<256x4xf32>
        %c0_228 = arith.constant 0 : index
        %c32_229 = arith.constant 32 : index
        %162 = vector.load %arg18[%c0_228, %c32_229] : memref<256x36xf32, #tpu.memory_space<vmem>>, vector<256x4xf32>
        tpu.vector_store %arg18[%c0_228, %c32_229], %161 {strides = array<i32>} : memref<256x36xf32, #tpu.memory_space<vmem>>, vector<256x4xf32>,
        %c0_230 = arith.constant 0 : index
        %c0_231 = arith.constant 0 : index
        %163 = vector.load %arg18[%c0_230, %c0_231] : memref<256x36xf32, #tpu.memory_space<vmem>>, vector<256x36xf32>
        %cst_232 = arith.constant dense<0.000000e+00> : vector<256x4xf32>
        %164 = tpu.matmul %163, %133, %cst_232 {dimension_numbers = #tpu.dot_dimension_numbers<[1], [0], [0], [1], [0, 0, 1, 1], [], []>} : vector<256x36xf32>, vector<36x4xf32>, vector<256x4xf32> -> vector<256x4xf32>
        %165 = vector.broadcast %135 : vector<1x4xf32> to vector<256x4xf32>
        %166 = arith.addf %164, %165 : vector<256x4xf32>
        %cst_233 = arith.constant dense<0.000000e+00> : vector<4xf32>
        %167 = vector.multi_reduction <add>, %166, %cst_233 [0] : vector<256x4xf32> to vector<4xf32>
        %168 = vector.shape_cast %167 : vector<4xf32> to vector<1x4xf32>
        %cst_234 = arith.constant 2.560000e+02 : f32
        %169 = vector.broadcast %cst_234 : f32 to vector<1x4xf32>
        %170 = arith.divf %168, %169 : vector<1x4xf32>
        %171 = arith.index_cast %90 : i32 to index
        %c0_235 = arith.constant 0 : index
        %c0_236 = arith.constant 0 : index
        %172 = vector.load %arg6[%171, %c0_235, %c0_236] : memref<200x4x2xf32, #tpu.memory_space<vmem>>, vector<1x4x2xf32>
        %173 = vector.shape_cast %172 : vector<1x4x2xf32> to vector<4x2xf32>
        %cst_237 = arith.constant dense<0.000000e+00> : vector<1x2xf32>
        %174 = tpu.matmul %170, %173, %cst_237 {dimension_numbers = #tpu.dot_dimension_numbers<[1], [0], [0], [1], [0, 0, 1, 1], [], []>} : vector<1x4xf32>, vector<4x2xf32>, vector<1x2xf32> -> vector<1x2xf32>
        %175 = arith.index_cast %90 : i32 to index
        %c0_238 = arith.constant 0 : index
        %176 = vector.load %arg7[%175, %c0_238] : memref<200x2xf32, #tpu.memory_space<vmem>>, vector<1x2xf32>
        %177 = arith.addf %174, %176 : vector<1x2xf32>
        %cst_239 = arith.constant 0.000000e+00 : f32
        %178 = vector.broadcast %cst_239 : f32 to vector<1x2xf32>
        %179 = arith.subf %178, %177 : vector<1x2xf32>
        %180 = math.exp %179 : vector<1x2xf32>
        %cst_240 = arith.constant 1.000000e+00 : f32
        %181 = vector.broadcast %cst_240 : f32 to vector<1x2xf32>
        %182 = arith.addf %181, %180 : vector<1x2xf32>
        %cst_241 = arith.constant 1.000000e+00 : f32
        %183 = vector.broadcast %cst_241 : f32 to vector<1x2xf32>
        %184 = arith.divf %183, %182 : vector<1x2xf32>
        %185 = arith.index_cast %90 : i32 to index
        %c0_242 = arith.constant 0 : index
        %c0_243 = arith.constant 0 : index
        %186 = vector.load %arg8[%185, %c0_242, %c0_243] : memref<200x2x4xf32, #tpu.memory_space<vmem>>, vector<1x2x4xf32>
        %187 = vector.shape_cast %186 : vector<1x2x4xf32> to vector<2x4xf32>
        %cst_244 = arith.constant dense<0.000000e+00> : vector<1x4xf32>
        %188 = tpu.matmul %184, %187, %cst_244 {dimension_numbers = #tpu.dot_dimension_numbers<[1], [0], [0], [1], [0, 0, 1, 1], [], []>} : vector<1x2xf32>, vector<2x4xf32>, vector<1x4xf32> -> vector<1x4xf32>
        %189 = arith.index_cast %90 : i32 to index
        %c0_245 = arith.constant 0 : index
        %190 = vector.load %arg9[%189, %c0_245] : memref<200x4xf32, #tpu.memory_space<vmem>>, vector<1x4xf32>
        %191 = arith.addf %188, %190 : vector<1x4xf32>
        %cst_246 = arith.constant 0.000000e+00 : f32
        %192 = vector.broadcast %cst_246 : f32 to vector<1x4xf32>
        %193 = arith.maximumf %191, %192 : vector<1x4xf32>
        %194 = vector.broadcast %193 : vector<1x4xf32> to vector<256x4xf32>
        %195 = arith.mulf %166, %194 : vector<256x4xf32>
        %196 = vector.shape_cast %195 : vector<256x4xf32> to vector<16x16x4xf32>
        %c1_247 = arith.constant 1 : index
        %c1_248 = arith.constant 1 : index
        %c0_249 = arith.constant 0 : index
        %197 = vector.load %arg15[%c1_247, %c1_248, %c0_249] : memref<18x18x4xf32, #tpu.memory_space<vmem>>, vector<16x16x4xf32>
        tpu.vector_store %arg15[%c1_247, %c1_248, %c0_249], %196 {strides = array<i32>} : memref<18x18x4xf32, #tpu.memory_space<vmem>>, vector<16x16x4xf32>,
      }
      %c20_i32_68 = arith.constant 20 : i32
      %49 = arith.index_cast %arg19 : i32 to index
      %c0_69 = arith.constant 0 : index
      %c0_70 = arith.constant 0 : index
      %50 = vector.load %arg10[%49, %c0_69, %c0_70] : memref<10x36x4xf32, #tpu.memory_space<vmem>>, vector<1x36x4xf32>
      %51 = vector.shape_cast %50 : vector<1x36x4xf32> to vector<36x4xf32>
      %52 = arith.index_cast %arg19 : i32 to index
      %c0_71 = arith.constant 0 : index
      %53 = vector.load %arg11[%52, %c0_71] : memref<10x4xf32, #tpu.memory_space<vmem>>, vector<1x4xf32>
      %c0_72 = arith.constant 0 : index
      %c0_73 = arith.constant 0 : index
      %c0_74 = arith.constant 0 : index
      %54 = vector.load %arg15[%c0_72, %c0_73, %c0_74] : memref<18x18x4xf32, #tpu.memory_space<vmem>>, vector<16x16x4xf32>
      %55 = vector.shape_cast %54 : vector<16x16x4xf32> to vector<256x4xf32>
      %c0_75 = arith.constant 0 : index
      %c0_76 = arith.constant 0 : index
      %56 = vector.load %arg18[%c0_75, %c0_76] : memref<256x36xf32, #tpu.memory_space<vmem>>, vector<256x4xf32>
      tpu.vector_store %arg18[%c0_75, %c0_76], %55 {strides = array<i32>} : memref<256x36xf32, #tpu.memory_space<vmem>>, vector<256x4xf32>,
      %c0_77 = arith.constant 0 : index
      %c1_78 = arith.constant 1 : index
      %c0_79 = arith.constant 0 : index
      %57 = vector.load %arg15[%c0_77, %c1_78, %c0_79] : memref<18x18x4xf32, #tpu.memory_space<vmem>>, vector<16x16x4xf32>
      %58 = vector.shape_cast %57 : vector<16x16x4xf32> to vector<256x4xf32>
      %c0_80 = arith.constant 0 : index
      %c4_81 = arith.constant 4 : index
      %59 = vector.load %arg18[%c0_80, %c4_81] : memref<256x36xf32, #tpu.memory_space<vmem>>, vector<256x4xf32>
      tpu.vector_store %arg18[%c0_80, %c4_81], %58 {strides = array<i32>} : memref<256x36xf32, #tpu.memory_space<vmem>>, vector<256x4xf32>,
      %c0_82 = arith.constant 0 : index
      %c2_83 = arith.constant 2 : index
      %c0_84 = arith.constant 0 : index
      %60 = vector.load %arg15[%c0_82, %c2_83, %c0_84] : memref<18x18x4xf32, #tpu.memory_space<vmem>>, vector<16x16x4xf32>
      %61 = vector.shape_cast %60 : vector<16x16x4xf32> to vector<256x4xf32>
      %c0_85 = arith.constant 0 : index
      %c8_86 = arith.constant 8 : index
      %62 = vector.load %arg18[%c0_85, %c8_86] : memref<256x36xf32, #tpu.memory_space<vmem>>, vector<256x4xf32>
      tpu.vector_store %arg18[%c0_85, %c8_86], %61 {strides = array<i32>} : memref<256x36xf32, #tpu.memory_space<vmem>>, vector<256x4xf32>,
      %c1_87 = arith.constant 1 : index
      %c0_88 = arith.constant 0 : index
      %c0_89 = arith.constant 0 : index
      %63 = vector.load %arg15[%c1_87, %c0_88, %c0_89] : memref<18x18x4xf32, #tpu.memory_space<vmem>>, vector<16x16x4xf32>
      %64 = vector.shape_cast %63 : vector<16x16x4xf32> to vector<256x4xf32>
      %c0_90 = arith.constant 0 : index
      %c12_91 = arith.constant 12 : index
      %65 = vector.load %arg18[%c0_90, %c12_91] : memref<256x36xf32, #tpu.memory_space<vmem>>, vector<256x4xf32>
      tpu.vector_store %arg18[%c0_90, %c12_91], %64 {strides = array<i32>} : memref<256x36xf32, #tpu.memory_space<vmem>>, vector<256x4xf32>,
      %c1_92 = arith.constant 1 : index
      %c1_93 = arith.constant 1 : index
      %c0_94 = arith.constant 0 : index
      %66 = vector.load %arg15[%c1_92, %c1_93, %c0_94] : memref<18x18x4xf32, #tpu.memory_space<vmem>>, vector<16x16x4xf32>
      %67 = vector.shape_cast %66 : vector<16x16x4xf32> to vector<256x4xf32>
      %c0_95 = arith.constant 0 : index
      %c16_96 = arith.constant 16 : index
      %68 = vector.load %arg18[%c0_95, %c16_96] : memref<256x36xf32, #tpu.memory_space<vmem>>, vector<256x4xf32>
      tpu.vector_store %arg18[%c0_95, %c16_96], %67 {strides = array<i32>} : memref<256x36xf32, #tpu.memory_space<vmem>>, vector<256x4xf32>,
      %c1_97 = arith.constant 1 : index
      %c2_98 = arith.constant 2 : index
      %c0_99 = arith.constant 0 : index
      %69 = vector.load %arg15[%c1_97, %c2_98, %c0_99] : memref<18x18x4xf32, #tpu.memory_space<vmem>>, vector<16x16x4xf32>
      %70 = vector.shape_cast %69 : vector<16x16x4xf32> to vector<256x4xf32>
      %c0_100 = arith.constant 0 : index
      %c20_101 = arith.constant 20 : index
      %71 = vector.load %arg18[%c0_100, %c20_101] : memref<256x36xf32, #tpu.memory_space<vmem>>, vector<256x4xf32>
      tpu.vector_store %arg18[%c0_100, %c20_101], %70 {strides = array<i32>} : memref<256x36xf32, #tpu.memory_space<vmem>>, vector<256x4xf32>,
      %c2_102 = arith.constant 2 : index
      %c0_103 = arith.constant 0 : index
      %c0_104 = arith.constant 0 : index
      %72 = vector.load %arg15[%c2_102, %c0_103, %c0_104] : memref<18x18x4xf32, #tpu.memory_space<vmem>>, vector<16x16x4xf32>
      %73 = vector.shape_cast %72 : vector<16x16x4xf32> to vector<256x4xf32>
      %c0_105 = arith.constant 0 : index
      %c24_106 = arith.constant 24 : index
      %74 = vector.load %arg18[%c0_105, %c24_106] : memref<256x36xf32, #tpu.memory_space<vmem>>, vector<256x4xf32>
      tpu.vector_store %arg18[%c0_105, %c24_106], %73 {strides = array<i32>} : memref<256x36xf32, #tpu.memory_space<vmem>>, vector<256x4xf32>,
      %c2_107 = arith.constant 2 : index
      %c1_108 = arith.constant 1 : index
      %c0_109 = arith.constant 0 : index
      %75 = vector.load %arg15[%c2_107, %c1_108, %c0_109] : memref<18x18x4xf32, #tpu.memory_space<vmem>>, vector<16x16x4xf32>
      %76 = vector.shape_cast %75 : vector<16x16x4xf32> to vector<256x4xf32>
      %c0_110 = arith.constant 0 : index
      %c28_111 = arith.constant 28 : index
      %77 = vector.load %arg18[%c0_110, %c28_111] : memref<256x36xf32, #tpu.memory_space<vmem>>, vector<256x4xf32>
      tpu.vector_store %arg18[%c0_110, %c28_111], %76 {strides = array<i32>} : memref<256x36xf32, #tpu.memory_space<vmem>>, vector<256x4xf32>,
      %c2_112 = arith.constant 2 : index
      %c2_113 = arith.constant 2 : index
      %c0_114 = arith.constant 0 : index
      %78 = vector.load %arg15[%c2_112, %c2_113, %c0_114] : memref<18x18x4xf32, #tpu.memory_space<vmem>>, vector<16x16x4xf32>
      %79 = vector.shape_cast %78 : vector<16x16x4xf32> to vector<256x4xf32>
      %c0_115 = arith.constant 0 : index
      %c32_116 = arith.constant 32 : index
      %80 = vector.load %arg18[%c0_115, %c32_116] : memref<256x36xf32, #tpu.memory_space<vmem>>, vector<256x4xf32>
      tpu.vector_store %arg18[%c0_115, %c32_116], %79 {strides = array<i32>} : memref<256x36xf32, #tpu.memory_space<vmem>>, vector<256x4xf32>,
      %c0_117 = arith.constant 0 : index
      %c0_118 = arith.constant 0 : index
      %81 = vector.load %arg18[%c0_117, %c0_118] : memref<256x36xf32, #tpu.memory_space<vmem>>, vector<256x36xf32>
      %cst_119 = arith.constant dense<0.000000e+00> : vector<256x4xf32>
      %82 = tpu.matmul %81, %51, %cst_119 {dimension_numbers = #tpu.dot_dimension_numbers<[1], [0], [0], [1], [0, 0, 1, 1], [], []>} : vector<256x36xf32>, vector<36x4xf32>, vector<256x4xf32> -> vector<256x4xf32>
      %83 = vector.broadcast %53 : vector<1x4xf32> to vector<256x4xf32>
      %84 = arith.addf %82, %83 : vector<256x4xf32>
      %85 = vector.shape_cast %84 : vector<256x4xf32> to vector<16x16x4xf32>
      %c1_120 = arith.constant 1 : index
      %c1_121 = arith.constant 1 : index
      %c0_122 = arith.constant 0 : index
      %86 = vector.load %arg17[%c1_120, %c1_121, %c0_122] : memref<18x18x4xf32, #tpu.memory_space<vmem>>, vector<16x16x4xf32>
      %87 = arith.addf %85, %86 : vector<16x16x4xf32>
      %c1_123 = arith.constant 1 : index
      %c1_124 = arith.constant 1 : index
      %c0_125 = arith.constant 0 : index
      %88 = vector.load %arg15[%c1_123, %c1_124, %c0_125] : memref<18x18x4xf32, #tpu.memory_space<vmem>>, vector<16x16x4xf32>
      tpu.vector_store %arg15[%c1_123, %c1_124, %c0_125], %87 {strides = array<i32>} : memref<18x18x4xf32, #tpu.memory_space<vmem>>, vector<16x16x4xf32>,
    }
    %c10_i32_9 = arith.constant 10 : i32
    %c0_10 = arith.constant 0 : index
    %c0_11 = arith.constant 0 : index
    %6 = vector.load %arg12[%c0_10, %c0_11] : memref<36x4xf32, #tpu.memory_space<vmem>>, vector<36x4xf32>
    %c0_12 = arith.constant 0 : index
    %c0_13 = arith.constant 0 : index
    %7 = vector.load %arg13[%c0_12, %c0_13] : memref<1x4xf32, #tpu.memory_space<vmem>>, vector<1x4xf32>
    %c0_14 = arith.constant 0 : index
    %c0_15 = arith.constant 0 : index
    %c0_16 = arith.constant 0 : index
    %8 = vector.load %arg15[%c0_14, %c0_15, %c0_16] : memref<18x18x4xf32, #tpu.memory_space<vmem>>, vector<16x16x4xf32>
    %9 = vector.shape_cast %8 : vector<16x16x4xf32> to vector<256x4xf32>
    %c0_17 = arith.constant 0 : index
    %c0_18 = arith.constant 0 : index
    %10 = vector.load %arg18[%c0_17, %c0_18] : memref<256x36xf32, #tpu.memory_space<vmem>>, vector<256x4xf32>
    tpu.vector_store %arg18[%c0_17, %c0_18], %9 {strides = array<i32>} : memref<256x36xf32, #tpu.memory_space<vmem>>, vector<256x4xf32>,
    %c0_19 = arith.constant 0 : index
    %c1 = arith.constant 1 : index
    %c0_20 = arith.constant 0 : index
    %11 = vector.load %arg15[%c0_19, %c1, %c0_20] : memref<18x18x4xf32, #tpu.memory_space<vmem>>, vector<16x16x4xf32>
    %12 = vector.shape_cast %11 : vector<16x16x4xf32> to vector<256x4xf32>
    %c0_21 = arith.constant 0 : index
    %c4 = arith.constant 4 : index
    %13 = vector.load %arg18[%c0_21, %c4] : memref<256x36xf32, #tpu.memory_space<vmem>>, vector<256x4xf32>
    tpu.vector_store %arg18[%c0_21, %c4], %12 {strides = array<i32>} : memref<256x36xf32, #tpu.memory_space<vmem>>, vector<256x4xf32>,
    %c0_22 = arith.constant 0 : index
    %c2 = arith.constant 2 : index
    %c0_23 = arith.constant 0 : index
    %14 = vector.load %arg15[%c0_22, %c2, %c0_23] : memref<18x18x4xf32, #tpu.memory_space<vmem>>, vector<16x16x4xf32>
    %15 = vector.shape_cast %14 : vector<16x16x4xf32> to vector<256x4xf32>
    %c0_24 = arith.constant 0 : index
    %c8 = arith.constant 8 : index
    %16 = vector.load %arg18[%c0_24, %c8] : memref<256x36xf32, #tpu.memory_space<vmem>>, vector<256x4xf32>
    tpu.vector_store %arg18[%c0_24, %c8], %15 {strides = array<i32>} : memref<256x36xf32, #tpu.memory_space<vmem>>, vector<256x4xf32>,
    %c1_25 = arith.constant 1 : index
    %c0_26 = arith.constant 0 : index
    %c0_27 = arith.constant 0 : index
    %17 = vector.load %arg15[%c1_25, %c0_26, %c0_27] : memref<18x18x4xf32, #tpu.memory_space<vmem>>, vector<16x16x4xf32>
    %18 = vector.shape_cast %17 : vector<16x16x4xf32> to vector<256x4xf32>
    %c0_28 = arith.constant 0 : index
    %c12 = arith.constant 12 : index
    %19 = vector.load %arg18[%c0_28, %c12] : memref<256x36xf32, #tpu.memory_space<vmem>>, vector<256x4xf32>
    tpu.vector_store %arg18[%c0_28, %c12], %18 {strides = array<i32>} : memref<256x36xf32, #tpu.memory_space<vmem>>, vector<256x4xf32>,
    %c1_29 = arith.constant 1 : index
    %c1_30 = arith.constant 1 : index
    %c0_31 = arith.constant 0 : index
    %20 = vector.load %arg15[%c1_29, %c1_30, %c0_31] : memref<18x18x4xf32, #tpu.memory_space<vmem>>, vector<16x16x4xf32>
    %21 = vector.shape_cast %20 : vector<16x16x4xf32> to vector<256x4xf32>
    %c0_32 = arith.constant 0 : index
    %c16 = arith.constant 16 : index
    %22 = vector.load %arg18[%c0_32, %c16] : memref<256x36xf32, #tpu.memory_space<vmem>>, vector<256x4xf32>
    tpu.vector_store %arg18[%c0_32, %c16], %21 {strides = array<i32>} : memref<256x36xf32, #tpu.memory_space<vmem>>, vector<256x4xf32>,
    %c1_33 = arith.constant 1 : index
    %c2_34 = arith.constant 2 : index
    %c0_35 = arith.constant 0 : index
    %23 = vector.load %arg15[%c1_33, %c2_34, %c0_35] : memref<18x18x4xf32, #tpu.memory_space<vmem>>, vector<16x16x4xf32>
    %24 = vector.shape_cast %23 : vector<16x16x4xf32> to vector<256x4xf32>
    %c0_36 = arith.constant 0 : index
    %c20 = arith.constant 20 : index
    %25 = vector.load %arg18[%c0_36, %c20] : memref<256x36xf32, #tpu.memory_space<vmem>>, vector<256x4xf32>
    tpu.vector_store %arg18[%c0_36, %c20], %24 {strides = array<i32>} : memref<256x36xf32, #tpu.memory_space<vmem>>, vector<256x4xf32>,
    %c2_37 = arith.constant 2 : index
    %c0_38 = arith.constant 0 : index
    %c0_39 = arith.constant 0 : index
    %26 = vector.load %arg15[%c2_37, %c0_38, %c0_39] : memref<18x18x4xf32, #tpu.memory_space<vmem>>, vector<16x16x4xf32>
    %27 = vector.shape_cast %26 : vector<16x16x4xf32> to vector<256x4xf32>
    %c0_40 = arith.constant 0 : index
    %c24 = arith.constant 24 : index
    %28 = vector.load %arg18[%c0_40, %c24] : memref<256x36xf32, #tpu.memory_space<vmem>>, vector<256x4xf32>
    tpu.vector_store %arg18[%c0_40, %c24], %27 {strides = array<i32>} : memref<256x36xf32, #tpu.memory_space<vmem>>, vector<256x4xf32>,
    %c2_41 = arith.constant 2 : index
    %c1_42 = arith.constant 1 : index
    %c0_43 = arith.constant 0 : index
    %29 = vector.load %arg15[%c2_41, %c1_42, %c0_43] : memref<18x18x4xf32, #tpu.memory_space<vmem>>, vector<16x16x4xf32>
    %30 = vector.shape_cast %29 : vector<16x16x4xf32> to vector<256x4xf32>
    %c0_44 = arith.constant 0 : index
    %c28 = arith.constant 28 : index
    %31 = vector.load %arg18[%c0_44, %c28] : memref<256x36xf32, #tpu.memory_space<vmem>>, vector<256x4xf32>
    tpu.vector_store %arg18[%c0_44, %c28], %30 {strides = array<i32>} : memref<256x36xf32, #tpu.memory_space<vmem>>, vector<256x4xf32>,
    %c2_45 = arith.constant 2 : index
    %c2_46 = arith.constant 2 : index
    %c0_47 = arith.constant 0 : index
    %32 = vector.load %arg15[%c2_45, %c2_46, %c0_47] : memref<18x18x4xf32, #tpu.memory_space<vmem>>, vector<16x16x4xf32>
    %33 = vector.shape_cast %32 : vector<16x16x4xf32> to vector<256x4xf32>
    %c0_48 = arith.constant 0 : index
    %c32 = arith.constant 32 : index
    %34 = vector.load %arg18[%c0_48, %c32] : memref<256x36xf32, #tpu.memory_space<vmem>>, vector<256x4xf32>
    tpu.vector_store %arg18[%c0_48, %c32], %33 {strides = array<i32>} : memref<256x36xf32, #tpu.memory_space<vmem>>, vector<256x4xf32>,
    %c0_49 = arith.constant 0 : index
    %c0_50 = arith.constant 0 : index
    %35 = vector.load %arg18[%c0_49, %c0_50] : memref<256x36xf32, #tpu.memory_space<vmem>>, vector<256x36xf32>
    %cst_51 = arith.constant dense<0.000000e+00> : vector<256x4xf32>
    %36 = tpu.matmul %35, %6, %cst_51 {dimension_numbers = #tpu.dot_dimension_numbers<[1], [0], [0], [1], [0, 0, 1, 1], [], []>} : vector<256x36xf32>, vector<36x4xf32>, vector<256x4xf32> -> vector<256x4xf32>
    %37 = vector.broadcast %7 : vector<1x4xf32> to vector<256x4xf32>
    %38 = arith.addf %36, %37 : vector<256x4xf32>
    %c0_52 = arith.constant 0 : index
    %c1_53 = arith.constant 1 : index
    %c1_54 = arith.constant 1 : index
    %c0_55 = arith.constant 0 : index
    %39 = vector.load %arg1[%c0_52, %c1_53, %c1_54, %c0_55] : memref<1x18x18x4xf32, #tpu.memory_space<vmem>>, vector<1x16x16x4xf32>
    %40 = vector.shape_cast %39 : vector<1x16x16x4xf32> to vector<16x16x4xf32>
    %41 = vector.shape_cast %38 : vector<256x4xf32> to vector<16x16x4xf32>
    %42 = arith.addf %41, %40 : vector<16x16x4xf32>
    %c0_56 = arith.constant 0 : index
    %c0_57 = arith.constant 0 : index
    %c0_58 = arith.constant 0 : index
    %c0_59 = arith.constant 0 : index
    %43 = vector.load %arg14[%c0_56, %c0_57, %c0_58, %c0_59] : memref<1x16x16x4xf32, #tpu.memory_space<vmem>>, vector<1x16x16x4xf32>
    %44 = vector.shape_cast %43 : vector<1x16x16x4xf32> to vector<16x16x4xf32>
    %45 = vector.shape_cast %42 : vector<16x16x4xf32> to vector<1x16x16x4xf32>
    tpu.vector_store %arg14[%c0_56, %c0_57, %c0_58, %c0_59], %45 {strides = array<i32>} : memref<1x16x16x4xf32, #tpu.memory_space<vmem>>, vector<1x16x16x4xf32>,
    return
  }
  func.func @transform_0(%arg0: i32) -> (i32, i32, i32, i32) {
    %c0_i32 = arith.constant 0 : i32
    %c0_i32_0 = arith.constant 0 : i32
    %c0_i32_1 = arith.constant 0 : i32
    %c0_i32_2 = arith.constant 0 : i32
    return %arg0, %c0_i32, %c0_i32_0, %c0_i32_1 : i32, i32, i32, i32
  }
  func.func @transform_1(%arg0: i32) -> (i32, i32, i32) {
    %c0_i32 = arith.constant 0 : i32
    %c0_i32_0 = arith.constant 0 : i32
    %c0_i32_1 = arith.constant 0 : i32
    %c0_i32_2 = arith.constant 0 : i32
    return %c0_i32, %c0_i32_0, %c0_i32_1 : i32, i32, i32
  }
  func.func @transform_2(%arg0: i32) -> (i32, i32) {
    %c0_i32 = arith.constant 0 : i32
    %c0_i32_0 = arith.constant 0 : i32
    %c0_i32_1 = arith.constant 0 : i32
    return %c0_i32, %c0_i32_0 : i32, i32
  }
  func.func @transform_3(%arg0: i32) -> (i32, i32, i32) {
    %c0_i32 = arith.constant 0 : i32
    %c0_i32_0 = arith.constant 0 : i32
    %c0_i32_1 = arith.constant 0 : i32
    %c0_i32_2 = arith.constant 0 : i32
    return %c0_i32, %c0_i32_0, %c0_i32_1 : i32, i32, i32
  }
  func.func @transform_4(%arg0: i32) -> (i32, i32) {
    %c0_i32 = arith.constant 0 : i32
    %c0_i32_0 = arith.constant 0 : i32
    %c0_i32_1 = arith.constant 0 : i32
    return %c0_i32, %c0_i32_0 : i32, i32
  }
  func.func @transform_5(%arg0: i32) -> (i32, i32, i32) {
    %c0_i32 = arith.constant 0 : i32
    %c0_i32_0 = arith.constant 0 : i32
    %c0_i32_1 = arith.constant 0 : i32
    %c0_i32_2 = arith.constant 0 : i32
    return %c0_i32, %c0_i32_0, %c0_i32_1 : i32, i32, i32
  }
  func.func @transform_6(%arg0: i32) -> (i32, i32) {
    %c0_i32 = arith.constant 0 : i32
    %c0_i32_0 = arith.constant 0 : i32
    %c0_i32_1 = arith.constant 0 : i32
    return %c0_i32, %c0_i32_0 : i32, i32
  }
  func.func @transform_7(%arg0: i32) -> (i32, i32, i32) {
    %c0_i32 = arith.constant 0 : i32
    %c0_i32_0 = arith.constant 0 : i32
    %c0_i32_1 = arith.constant 0 : i32
    %c0_i32_2 = arith.constant 0 : i32
    return %c0_i32, %c0_i32_0, %c0_i32_1 : i32, i32, i32
  }
  func.func @transform_8(%arg0: i32) -> (i32, i32) {
    %c0_i32 = arith.constant 0 : i32
    %c0_i32_0 = arith.constant 0 : i32
    %c0_i32_1 = arith.constant 0 : i32
    return %c0_i32, %c0_i32_0 : i32, i32
  }
  func.func @transform_9(%arg0: i32) -> (i32, i32, i32) {
    %c0_i32 = arith.constant 0 : i32
    %c0_i32_0 = arith.constant 0 : i32
    %c0_i32_1 = arith.constant 0 : i32
    %c0_i32_2 = arith.constant 0 : i32
    return %c0_i32, %c0_i32_0, %c0_i32_1 : i32, i32, i32
  }
  func.func @transform_10(%arg0: i32) -> (i32, i32) {
    %c0_i32 = arith.constant 0 : i32
    %c0_i32_0 = arith.constant 0 : i32
    %c0_i32_1 = arith.constant 0 : i32
    return %c0_i32, %c0_i32_0 : i32, i32
  }
  func.func @transform_11(%arg0: i32) -> (i32, i32) {
    %c0_i32 = arith.constant 0 : i32
    %c0_i32_0 = arith.constant 0 : i32
    %c0_i32_1 = arith.constant 0 : i32
    return %c0_i32, %c0_i32_0 : i32, i32
  }
  func.func @transform_12(%arg0: i32) -> (i32, i32) {
    %c0_i32 = arith.constant 0 : i32
    %c0_i32_0 = arith.constant 0 : i32
    %c0_i32_1 = arith.constant 0 : i32
    return %c0_i32, %c0_i32_0 : i32, i32
  }
  func.func @transform_13(%arg0: i32) -> (i32, i32, i32, i32) {
    %c0_i32 = arith.constant 0 : i32
    %c0_i32_0 = arith.constant 0 : i32
    %c0_i32_1 = arith.constant 0 : i32
    %c0_i32_2 = arith.constant 0 : i32
    return %arg0, %c0_i32, %c0_i32_0, %c0_i32_1 : i32, i32, i32, i32
  }
}

</mosaic_0001>

<llo_original>
// kernel: rir_forward.1
$region0: #{rir_forward.1}
  #allocation0 [shape = 'u32[]', space=smem, size = 0x4, offset = 0x4, fixed_abs, tag = 'smem constant byte address 0x4 - core index']
  #allocation1 [shape = 'u32[144,128]{1,0:T(1,128)}', space=vmem, size = 0x12000, scoped, tag = 'internal scratch']
  #allocation2 [shape = 'f32[18,18,4]{2,1,0:T(8,128)}', space=vmem, size = 0x36000, scoped, tag = 'scratch operand']
  #allocation3 [shape = 'f32[18,18,4]{2,1,0:T(8,128)}', space=vmem, size = 0x36000, scoped, tag = 'scratch operand']
  #allocation4 [shape = 'f32[18,18,4]{2,1,0:T(8,128)}', space=vmem, size = 0x36000, scoped, tag = 'scratch operand']
  #allocation5 [shape = 'f32[256,36]{1,0:T(8,128)}', space=vmem, size = 0x20000, scoped, tag = 'scratch operand']
  %s0 = inlined_call_operand.vmem [shape: f32[2,18,18,4], index: 0, kind: input, shape index: {}]
  %s1 = inlined_call_operand.vmem [shape: f32[200,36,4], index: 1, kind: input, shape index: {}]
  %s2 = inlined_call_operand.vmem [shape: f32[200,4], index: 2, kind: input, shape index: {}]
  %s3 = inlined_call_operand.vmem [shape: f32[200,36,4], index: 3, kind: input, shape index: {}]
  %s4 = inlined_call_operand.vmem [shape: f32[200,4], index: 4, kind: input, shape index: {}]
  %s5 = inlined_call_operand.vmem [shape: f32[200,4,2], index: 5, kind: input, shape index: {}]
  %s6 = inlined_call_operand.vmem [shape: f32[200,2], index: 6, kind: input, shape index: {}]
  %s7 = inlined_call_operand.vmem [shape: f32[200,2,4], index: 7, kind: input, shape index: {}]
  %s8 = inlined_call_operand.vmem [shape: f32[200,4], index: 8, kind: input, shape index: {}]
  %s9 = inlined_call_operand.vmem [shape: f32[10,36,4], index: 9, kind: input, shape index: {}]
  %s10 = inlined_call_operand.vmem [shape: f32[10,4], index: 10, kind: input, shape index: {}]
  %s11 = inlined_call_operand.vmem [shape: f32[36,4], index: 11, kind: input, shape index: {}]
  %s12 = inlined_call_operand.vmem [shape: f32[1,4], index: 12, kind: input, shape index: {}]
  %s13 = inlined_call_operand.vmem [shape: f32[2,16,16,4], index: 13, kind: output, shape index: {}]
  %s14 = sld [smem:[#allocation0]]
  $region99: #{rir_forward.1} parent=0
    _
  %s16 = ssub.s32 1, %s14
  %s17 = scalar_select 0, %s16, %s14
  loop: start=0, step=1, limit=4
  $region2: #{rir_forward.1} parent=0 // loop_pre_header
    _
  $region3: #{rir_forward.1} parent=0 // loop_header
    %s19 = sphi 0, %s23
    %p20 = scmp.ge.s32.totalorder %s19, 4
    %s29 = sphi 0, %s31
    %s32 = sphi 0, %s29
    %s33 = sphi 0, %s32
    %s49 = sphi 0, %s33
    %s53 = sphi 0, %s53
    %s55 = sphi 0, %s53
    %s56 = sphi 0, %s55
    %s70 = sphi 0, %s56
    %s74 = sphi 0, %s74
    %s76 = sphi 0, %s74
    %s77 = sphi 0, %s76
    %s91 = sphi 0, %s77
    %s95 = sphi 0, %s95
    %s97 = sphi 0, %s95
    %s98 = sphi 0, %s97
    %s112 = sphi 0, %s98
    %s116 = sphi 0, %s116
    %s118 = sphi 0, %s116
    %s119 = sphi 0, %s118
    %s133 = sphi 0, %s119
    %s137 = sphi 0, %s137
    %s139 = sphi 0, %s137
    %s140 = sphi 0, %s139
    %s154 = sphi 0, %s140
    %s158 = sphi 0, %s158
    %s160 = sphi 0, %s158
    %s161 = sphi 0, %s160
    %s175 = sphi 0, %s161
    %s179 = sphi 0, %s179
    %s181 = sphi 0, %s179
    %s182 = sphi 0, %s181
    %s196 = sphi 0, %s182
    %s200 = sphi 0, %s200
    %s202 = sphi 0, %s200
    %s203 = sphi 0, %s202
    %s217 = sphi 0, %s203
    %s221 = sphi 0, %s221
    %s223 = sphi 0, %s221
    %s224 = sphi 0, %s223
    %s238 = sphi 0, %s224
    %s242 = sphi 0, %s242
    %s244 = sphi 0, %s242
    %s245 = sphi 0, %s244
    %s259 = sphi 0, %s245
    %s263 = sphi 0, %s263
    %s265 = sphi 0, %s263
    %s266 = sphi 0, %s265
    %s280 = sphi 0, %s266
    %s284 = sphi 0, %s284
    %s286 = sphi 0, %s284
    %s287 = sphi 0, %s286
    %s301 = sphi 0, %s287
    %s307 = sphi 0, %s309
    %s310 = sphi 0, %s307
    %s311 = sphi 0, %s310
    %s327 = sphi 0, %s311
  $region4: #{rir_forward.1} parent=0 // loop_header_branch
    %22 = sbr.rel (%p20) target = $region8
  $region5: #{rir_forward.1} parent=0 // loop_body
    %s24 = ssub.s32 %s19, 1
    %s25 = ssub.s32 %s19, 2
    %s26 = sadd.s32 %s19, 1
    %s27 = ssub.s32 %s19, %s26
    %p28 = scmp.eq.s32.totalorder %s27, 0
    %s30 = sadd.s32 %s29, 1
    %s31 = scalar_select %p28, %s29, %s30
    %p34 = pneg %p28
    %p35 = scmp.eq.s32.totalorder %s19, 1
    %p36 = por %p34, %p35
    %p37 = scmp.ne.s32.totalorder %s29, %s32
    %p38 = scmp.eq.s32.totalorder %s19, 0
    %p39 = por %p37, %p38
    %p40 = scmp.ne.s32.totalorder %s29, %s32
    %p41 = scmp.eq.s32.totalorder %s24, 1
    %p42 = por %p40, %p41
    %p43 = scmp.ne.s32.totalorder %s32, %s33
    %p44 = scmp.eq.s32.totalorder %s24, 0
    %p45 = por %p43, %p44
    %p46 = scmp.ne.s32.totalorder %s32, %s33
    %p47 = scmp.eq.s32.totalorder %s25, 1
    %p48 = por %p46, %p47
    %p50 = scmp.ne.s32.totalorder %s33, %s49
    %p51 = scmp.eq.s32.totalorder %s25, 0
    %p52 = por %p50, %p51
    %s54 = sadd.s32 %s53, 1
    %p57 = scmp.eq.s32.totalorder %s19, 1
    %p58 = scmp.ne.s32.totalorder %s53, %s55
    %p59 = scmp.eq.s32.totalorder %s19, 0
    %p60 = por %p58, %p59
    %p61 = scmp.ne.s32.totalorder %s53, %s55
    %p62 = scmp.eq.s32.totalorder %s24, 1
    %p63 = por %p61, %p62
    %p64 = scmp.ne.s32.totalorder %s55, %s56
    %p65 = scmp.eq.s32.totalorder %s24, 0
    %p66 = por %p64, %p65
    %p67 = scmp.ne.s32.totalorder %s55, %s56
    %p68 = scmp.eq.s32.totalorder %s25, 1
    %p69 = por %p67, %p68
    %p71 = scmp.ne.s32.totalorder %s56, %s70
    %p72 = scmp.eq.s32.totalorder %s25, 0
    %p73 = por %p71, %p72
    %s75 = sadd.s32 %s74, 1
    %p78 = scmp.eq.s32.totalorder %s19, 1
    %p79 = scmp.ne.s32.totalorder %s74, %s76
    %p80 = scmp.eq.s32.totalorder %s19, 0
    %p81 = por %p79, %p80
    %p82 = scmp.ne.s32.totalorder %s74, %s76
    %p83 = scmp.eq.s32.totalorder %s24, 1
    %p84 = por %p82, %p83
    %p85 = scmp.ne.s32.totalorder %s76, %s77
    %p86 = scmp.eq.s32.totalorder %s24, 0
    %p87 = por %p85, %p86
    %p88 = scmp.ne.s32.totalorder %s76, %s77
    %p89 = scmp.eq.s32.totalorder %s25, 1
    %p90 = por %p88, %p89
    %p92 = scmp.ne.s32.totalorder %s77, %s91
    %p93 = scmp.eq.s32.totalorder %s25, 0
    %p94 = por %p92, %p93
    %s96 = sadd.s32 %s95, 1
    %p99 = scmp.eq.s32.totalorder %s19, 1
    %p100 = scmp.ne.s32.totalorder %s95, %s97
    %p101 = scmp.eq.s32.totalorder %s19, 0
    %p102 = por %p100, %p101
    %p103 = scmp.ne.s32.totalorder %s95, %s97
    %p104 = scmp.eq.s32.totalorder %s24, 1
    %p105 = por %p103, %p104
    %p106 = scmp.ne.s32.totalorder %s97, %s98
    %p107 = scmp.eq.s32.totalorder %s24, 0
    %p108 = por %p106, %p107
    %p109 = scmp.ne.s32.totalorder %s97, %s98
    %p110 = scmp.eq.s32.totalorder %s25, 1
    %p111 = por %p109, %p110
    %p113 = scmp.ne.s32.totalorder %s98, %s112
    %p114 = scmp.eq.s32.totalorder %s25, 0
    %p115 = por %p113, %p114
    %s117 = sadd.s32 %s116, 1
    %p120 = scmp.eq.s32.totalorder %s19, 1
    %p121 = scmp.ne.s32.totalorder %s116, %s118
    %p122 = scmp.eq.s32.totalorder %s19, 0
    %p123 = por %p121, %p122
    %p124 = scmp.ne.s32.totalorder %s116, %s118
    %p125 = scmp.eq.s32.totalorder %s24, 1
    %p126 = por %p124, %p125
    %p127 = scmp.ne.s32.totalorder %s118, %s119
    %p128 = scmp.eq.s32.totalorder %s24, 0
    %p129 = por %p127, %p128
    %p130 = scmp.ne.s32.totalorder %s118, %s119
    %p131 = scmp.eq.s32.totalorder %s25, 1
    %p132 = por %p130, %p131
    %p134 = scmp.ne.s32.totalorder %s119, %s133
    %p135 = scmp.eq.s32.totalorder %s25, 0
    %p136 = por %p134, %p135
    %s138 = sadd.s32 %s137, 1
    %p141 = scmp.eq.s32.totalorder %s19, 1
    %p142 = scmp.ne.s32.totalorder %s137, %s139
    %p143 = scmp.eq.s32.totalorder %s19, 0
    %p144 = por %p142, %p143
    %p145 = scmp.ne.s32.totalorder %s137, %s139
    %p146 = scmp.eq.s32.totalorder %s24, 1
    %p147 = por %p145, %p146
    %p148 = scmp.ne.s32.totalorder %s139, %s140
    %p149 = scmp.eq.s32.totalorder %s24, 0
    %p150 = por %p148, %p149
    %p151 = scmp.ne.s32.totalorder %s139, %s140
    %p152 = scmp.eq.s32.totalorder %s25, 1
    %p153 = por %p151, %p152
    %p155 = scmp.ne.s32.totalorder %s140, %s154
    %p156 = scmp.eq.s32.totalorder %s25, 0
    %p157 = por %p155, %p156
    %s159 = sadd.s32 %s158, 1
    %p162 = scmp.eq.s32.totalorder %s19, 1
    %p163 = scmp.ne.s32.totalorder %s158, %s160
    %p164 = scmp.eq.s32.totalorder %s19, 0
    %p165 = por %p163, %p164
    %p166 = scmp.ne.s32.totalorder %s158, %s160
    %p167 = scmp.eq.s32.totalorder %s24, 1
    %p168 = por %p166, %p167
    %p169 = scmp.ne.s32.totalorder %s160, %s161
    %p170 = scmp.eq.s32.totalorder %s24, 0
    %p171 = por %p169, %p170
    %p172 = scmp.ne.s32.totalorder %s160, %s161
    %p173 = scmp.eq.s32.totalorder %s25, 1
    %p174 = por %p172, %p173
    %p176 = scmp.ne.s32.totalorder %s161, %s175
    %p177 = scmp.eq.s32.totalorder %s25, 0
    %p178 = por %p176, %p177
    %s180 = sadd.s32 %s179, 1
    %p183 = scmp.eq.s32.totalorder %s19, 1
    %p184 = scmp.ne.s32.totalorder %s179, %s181
    %p185 = scmp.eq.s32.totalorder %s19, 0
    %p186 = por %p184, %p185
    %p187 = scmp.ne.s32.totalorder %s179, %s181
    %p188 = scmp.eq.s32.totalorder %s24, 1
    %p189 = por %p187, %p188
    %p190 = scmp.ne.s32.totalorder %s181, %s182
    %p191 = scmp.eq.s32.totalorder %s24, 0
    %p192 = por %p190, %p191
    %p193 = scmp.ne.s32.totalorder %s181, %s182
    %p194 = scmp.eq.s32.totalorder %s25, 1
    %p195 = por %p193, %p194
    %p197 = scmp.ne.s32.totalorder %s182, %s196
    %p198 = scmp.eq.s32.totalorder %s25, 0
    %p199 = por %p197, %p198
    %s201 = sadd.s32 %s200, 1
    %p204 = scmp.eq.s32.totalorder %s19, 1
    %p205 = scmp.ne.s32.totalorder %s200, %s202
    %p206 = scmp.eq.s32.totalorder %s19, 0
    %p207 = por %p205, %p206
    %p208 = scmp.ne.s32.totalorder %s200, %s202
    %p209 = scmp.eq.s32.totalorder %s24, 1
    %p210 = por %p208, %p209
    %p211 = scmp.ne.s32.totalorder %s202, %s203
    %p212 = scmp.eq.s32.totalorder %s24, 0
    %p213 = por %p211, %p212
    %p214 = scmp.ne.s32.totalorder %s202, %s203
    %p215 = scmp.eq.s32.totalorder %s25, 1
    %p216 = por %p214, %p215
    %p218 = scmp.ne.s32.totalorder %s203, %s217
    %p219 = scmp.eq.s32.totalorder %s25, 0
    %p220 = por %p218, %p219
    %s222 = sadd.s32 %s221, 1
    %p225 = scmp.eq.s32.totalorder %s19, 1
    %p226 = scmp.ne.s32.totalorder %s221, %s223
    %p227 = scmp.eq.s32.totalorder %s19, 0
    %p228 = por %p226, %p227
    %p229 = scmp.ne.s32.totalorder %s221, %s223
    %p230 = scmp.eq.s32.totalorder %s24, 1
    %p231 = por %p229, %p230
    %p232 = scmp.ne.s32.totalorder %s223, %s224
    %p233 = scmp.eq.s32.totalorder %s24, 0
    %p234 = por %p232, %p233
    %p235 = scmp.ne.s32.totalorder %s223, %s224
    %p236 = scmp.eq.s32.totalorder %s25, 1
    %p237 = por %p235, %p236
    %p239 = scmp.ne.s32.totalorder %s224, %s238
    %p240 = scmp.eq.s32.totalorder %s25, 0
    %p241 = por %p239, %p240
    %s243 = sadd.s32 %s242, 1
    %p246 = scmp.eq.s32.totalorder %s19, 1
    %p247 = scmp.ne.s32.totalorder %s242, %s244
    %p248 = scmp.eq.s32.totalorder %s19, 0
    %p249 = por %p247, %p248
    %p250 = scmp.ne.s32.totalorder %s242, %s244
    %p251 = scmp.eq.s32.totalorder %s24, 1
    %p252 = por %p250, %p251
    %p253 = scmp.ne.s32.totalorder %s244, %s245
    %p254 = scmp.eq.s32.totalorder %s24, 0
    %p255 = por %p253, %p254
    %p256 = scmp.ne.s32.totalorder %s244, %s245
    %p257 = scmp.eq.s32.totalorder %s25, 1
    %p258 = por %p256, %p257
    %p260 = scmp.ne.s32.totalorder %s245, %s259
    %p261 = scmp.eq.s32.totalorder %s25, 0
    %p262 = por %p260, %p261
    %s264 = sadd.s32 %s263, 1
    %p267 = scmp.eq.s32.totalorder %s19, 1
    %p268 = scmp.ne.s32.totalorder %s263, %s265
    %p269 = scmp.eq.s32.totalorder %s19, 0
    %p270 = por %p268, %p269
    %p271 = scmp.ne.s32.totalorder %s263, %s265
    %p272 = scmp.eq.s32.totalorder %s24, 1
    %p273 = por %p271, %p272
    %p274 = scmp.ne.s32.totalorder %s265, %s266
    %p275 = scmp.eq.s32.totalorder %s24, 0
    %p276 = por %p274, %p275
    %p277 = scmp.ne.s32.totalorder %s265, %s266
    %p278 = scmp.eq.s32.totalorder %s25, 1
    %p279 = por %p277, %p278
    %p281 = scmp.ne.s32.totalorder %s266, %s280
    %p282 = scmp.eq.s32.totalorder %s25, 0
    %p283 = por %p281, %p282
    %s285 = sadd.s32 %s284, 1
    %p288 = scmp.eq.s32.totalorder %s19, 1
    %p289 = scmp.ne.s32.totalorder %s284, %s286
    %p290 = scmp.eq.s32.totalorder %s19, 0
    %p291 = por %p289, %p290
    %p292 = scmp.ne.s32.totalorder %s284, %s286
    %p293 = scmp.eq.s32.totalorder %s24, 1
    %p294 = por %p292, %p293
    %p295 = scmp.ne.s32.totalorder %s286, %s287
    %p296 = scmp.eq.s32.totalorder %s24, 0
    %p297 = por %p295, %p296
    %p298 = scmp.ne.s32.totalorder %s286, %s287
    %p299 = scmp.eq.s32.totalorder %s25, 1
    %p300 = por %p298, %p299
    %p302 = scmp.ne.s32.totalorder %s287, %s301
    %p303 = scmp.eq.s32.totalorder %s25, 0
    %p304 = por %p302, %p303
    %s305 = ssub.s32 %s19, %s26
    %p306 = scmp.eq.s32.totalorder %s305, 0
    %s308 = sadd.s32 %s307, 1
    %s309 = scalar_select %p306, %s307, %s308
    %p312 = pneg %p306
    %p313 = scmp.eq.s32.totalorder %s19, 1
    %p314 = por %p312, %p313
    %p315 = scmp.ne.s32.totalorder %s307, %s310
    %p316 = scmp.eq.s32.totalorder %s19, 0
    %p317 = por %p315, %p316
    %p318 = scmp.ne.s32.totalorder %s307, %s310
    %p319 = scmp.eq.s32.totalorder %s24, 1
    %p320 = por %p318, %p319
    %p321 = scmp.ne.s32.totalorder %s310, %s311
    %p322 = scmp.eq.s32.totalorder %s24, 0
    %p323 = por %p321, %p322
    %p324 = scmp.ne.s32.totalorder %s310, %s311
    %p325 = scmp.eq.s32.totalorder %s25, 1
    %p326 = por %p324, %p325
    %p328 = scmp.ne.s32.totalorder %s311, %s327
    %p329 = scmp.eq.s32.totalorder %s25, 0
    %p330 = por %p328, %p329
    %p331 = scmp.le.s32.totalorder 1, %s19
    %p332 = scmp.lt.s32.totalorder %s19, 3
    %p333 = pnand %p331, %p332
    %p334 = pneg %p333
    // Predicated region
    $region9: #{rir_forward.1} parent=5 // pred_check
      _
    $region10: #{rir_forward.1} parent=5 // pred_check_branch
      %336 = sbr.rel (%p333) target = $region12
    $region11: #{rir_forward.1} parent=5 // pred_region
      %s337 = ssub.s32 %s19, 1
      // Predicated region
      $region13: #{rir_forward.1} parent=11 // pred_check
        %p338 = pneg %p66
      $region14: #{rir_forward.1} parent=11 // pred_check_branch
        %340 = sbr.rel (%p338) target = $region16
      $region15: #{rir_forward.1} parent=11 // pred_region
        _
      $region16: #{rir_forward.1} parent=11 // pred_fallthru
        _
      // Predicated region
      $region17: #{rir_forward.1} parent=11 // pred_check
        %p341 = pneg %p87
      $region18: #{rir_forward.1} parent=11 // pred_check_branch
        %343 = sbr.rel (%p341) target = $region20
      $region19: #{rir_forward.1} parent=11 // pred_region
        _
      $region20: #{rir_forward.1} parent=11 // pred_fallthru
        _
      // Predicated region
      $region21: #{rir_forward.1} parent=11 // pred_check
        %p344 = pneg %p108
      $region22: #{rir_forward.1} parent=11 // pred_check_branch
        %346 = sbr.rel (%p344) target = $region24
      $region23: #{rir_forward.1} parent=11 // pred_region
        _
      $region24: #{rir_forward.1} parent=11 // pred_fallthru
        _
      // Predicated region
      $region25: #{rir_forward.1} parent=11 // pred_check
        %p347 = pneg %p129
      $region26: #{rir_forward.1} parent=11 // pred_check_branch
        %349 = sbr.rel (%p347) target = $region28
      $region27: #{rir_forward.1} parent=11 // pred_region
        _
      $region28: #{rir_forward.1} parent=11 // pred_fallthru
        _
      // Predicated region
      $region29: #{rir_forward.1} parent=11 // pred_check
        %p350 = pneg %p150
      $region30: #{rir_forward.1} parent=11 // pred_check_branch
        %352 = sbr.rel (%p350) target = $region32
      $region31: #{rir_forward.1} parent=11 // pred_region
        _
      $region32: #{rir_forward.1} parent=11 // pred_fallthru
        _
      // Predicated region
      $region33: #{rir_forward.1} parent=11 // pred_check
        %p353 = pneg %p171
      $region34: #{rir_forward.1} parent=11 // pred_check_branch
        %355 = sbr.rel (%p353) target = $region36
      $region35: #{rir_forward.1} parent=11 // pred_region
        _
      $region36: #{rir_forward.1} parent=11 // pred_fallthru
        _
      // Predicated region
      $region37: #{rir_forward.1} parent=11 // pred_check
        %p356 = pneg %p192
      $region38: #{rir_forward.1} parent=11 // pred_check_branch
        %358 = sbr.rel (%p356) target = $region40
      $region39: #{rir_forward.1} parent=11 // pred_region
        _
      $region40: #{rir_forward.1} parent=11 // pred_fallthru
        _
      // Predicated region
      $region41: #{rir_forward.1} parent=11 // pred_check
        %p359 = pneg %p213
      $region42: #{rir_forward.1} parent=11 // pred_check_branch
        %361 = sbr.rel (%p359) target = $region44
      $region43: #{rir_forward.1} parent=11 // pred_region
        _
      $region44: #{rir_forward.1} parent=11 // pred_fallthru
        _
      // Predicated region
      $region45: #{rir_forward.1} parent=11 // pred_check
        %p362 = pneg %p234
      $region46: #{rir_forward.1} parent=11 // pred_check_branch
        %364 = sbr.rel (%p362) target = $region48
      $region47: #{rir_forward.1} parent=11 // pred_region
        _
      $region48: #{rir_forward.1} parent=11 // pred_fallthru
        _
      // Predicated region
      $region49: #{rir_forward.1} parent=11 // pred_check
        %p365 = pneg %p255
      $region50: #{rir_forward.1} parent=11 // pred_check_branch
        %367 = sbr.rel (%p365) target = $region52
      $region51: #{rir_forward.1} parent=11 // pred_region
        _
      $region52: #{rir_forward.1} parent=11 // pred_fallthru
        _
      // Predicated region
      $region53: #{rir_forward.1} parent=11 // pred_check
        %p368 = pneg %p276
      $region54: #{rir_forward.1} parent=11 // pred_check_branch
        %370 = sbr.rel (%p368) target = $region56
      $region55: #{rir_forward.1} parent=11 // pred_region
        _
      $region56: #{rir_forward.1} parent=11 // pred_fallthru
        _
      // Predicated region
      $region57: #{rir_forward.1} parent=11 // pred_check
        %p371 = pneg %p297
      $region58: #{rir_forward.1} parent=11 // pred_check_branch
        %373 = sbr.rel (%p371) target = $region60
      $region59: #{rir_forward.1} parent=11 // pred_region
        _
      $region60: #{rir_forward.1} parent=11 // pred_fallthru
        _
    $region12: #{rir_forward.1} parent=5 // pred_fallthru
      _
    %p374 = scmp.lt.s32.totalorder %s19, 2
    // Predicated region
    $region61: #{rir_forward.1} parent=5 // pred_check
      %p375 = pneg %p374
    $region62: #{rir_forward.1} parent=5 // pred_check_branch
      %377 = sbr.rel (%p375) target = $region64
    $region63: #{rir_forward.1} parent=5 // pred_region
      // Predicated region
      $region65: #{rir_forward.1} parent=63 // pred_check
        %p378 = pneg %p39
      $region66: #{rir_forward.1} parent=63 // pred_check_branch
        %380 = sbr.rel (%p378) target = $region68
      $region67: #{rir_forward.1} parent=63 // pred_region
        %p381 = scmp.lt.s32.totalorder %s19, 1
        %s382 = scalar_select %p381, %s19, 1
        %s383 = smul.addr %s382, 54
        %s384 = smul.addr %s383, 8
        %s385 = scalar_lea.vmem %s0, %s384
      $region68: #{rir_forward.1} parent=63 // pred_fallthru
        _
    $region64: #{rir_forward.1} parent=5 // pred_fallthru
      _
    %p386 = scmp.le.s32.totalorder 1, %s19
    %p387 = scmp.lt.s32.totalorder %s19, 3
    %p388 = pnand %p386, %p387
    %p389 = pneg %p388
    // Predicated region
    $region69: #{rir_forward.1} parent=5 // pred_check
      _
    $region70: #{rir_forward.1} parent=5 // pred_check_branch
      %391 = sbr.rel (%p388) target = $region72
    $region71: #{rir_forward.1} parent=5 // pred_region
      %s392 = ssub.s32 %s19, 1
      %p393 = scmp.lt.s32.totalorder %s24, 1
      %s394 = scalar_select %p393, %s24, 1
      %s395 = smul.addr %s394, 54
      %s396 = smul.addr %s395, 8
      %s397 = scalar_lea.vmem %s0, %s396
      %p398 = pneg %p45
      %p399 = pneg %p42
      %p400 = pneg %p66
      %p401 = pneg %p63
      %p402 = pneg %p87
      %p403 = pneg %p84
      %p404 = pneg %p108
      %p405 = pneg %p105
      %p406 = pneg %p129
      %p407 = pneg %p126
      %p408 = pneg %p150
      %p409 = pneg %p147
      %p410 = pneg %p171
      %p411 = pneg %p168
      %p412 = pneg %p192
      %p413 = pneg %p189
      %p414 = pneg %p213
      %p415 = pneg %p210
      %p416 = pneg %p234
      %p417 = pneg %p231
      %p418 = pneg %p255
      %p419 = pneg %p252
      %p420 = pneg %p276
      %p421 = pneg %p273
      %p422 = pneg %p297
      %p423 = pneg %p294
      %p424 = pneg %p323
      %p425 = pneg %p320
      %p426 = scmp.lt.s32.totalorder %s24, 1
      %s427 = scalar_select %p426, %s24, 1
      %s428 = smul.addr %s427, 32
      %s429 = smul.addr %s428, 8
      %s430 = scalar_lea.vmem %s13, %s429
      %p431 = scmp.lt.s32.totalorder %s24, 1
      %s432 = scalar_select %p431, %s24, 1
      %s433 = smul.addr %s432, 54
      %s434 = smul.addr %s433, 8
      %s435 = scalar_lea.vmem %s0, %s434
      %p436 = scmp.lt.s32.totalorder %s24, 1
      %s437 = scalar_select %p436, %s24, 1
      %s438 = smul.addr %s437, 32
      %s439 = smul.addr %s438, 8
      %s440 = scalar_lea.vmem %s13, %s439
      %v441 = vld [vmem:[%s435] sm:$0xff]
      %v442 = vld [vmem:[%s435 + $0x8] sm:$0xff]
      %v443 = vld [vmem:[%s435 + $0x10] sm:$0x3]
      %v444 = vld [vmem:[%s435 + $0x18] sm:$0xff]
      %v445 = vld [vmem:[%s435 + $0x20] sm:$0xff]
      %v446 = vld [vmem:[%s435 + $0x28] sm:$0x3]
      %v447 = vld [vmem:[%s435 + $0x30] sm:$0xff]
      %v448 = vld [vmem:[%s435 + $0x38] sm:$0xff]
      %v449 = vld [vmem:[%s435 + $0x40] sm:$0x3]
      %v450 = vld [vmem:[%s435 + $0x48] sm:$0xff]
      %v451 = vld [vmem:[%s435 + $0x50] sm:$0xff]
      %v452 = vld [vmem:[%s435 + $0x58] sm:$0x3]
      %v453 = vld [vmem:[%s435 + $0x60] sm:$0xff]
      %v454 = vld [vmem:[%s435 + $0x68] sm:$0xff]
      %v455 = vld [vmem:[%s435 + $0x70] sm:$0x3]
      %v456 = vld [vmem:[%s435 + $0x78] sm:$0xff]
      %v457 = vld [vmem:[%s435 + $0x80] sm:$0xff]
      %v458 = vld [vmem:[%s435 + $0x88] sm:$0x3]
      %v459 = vld [vmem:[%s435 + $0x90] sm:$0xff]
      %v460 = vld [vmem:[%s435 + $0x98] sm:$0xff]
      %v461 = vld [vmem:[%s435 + $0xa0] sm:$0x3]
      %v462 = vld [vmem:[%s435 + $0xa8] sm:$0xff]
      %v463 = vld [vmem:[%s435 + $0xb0] sm:$0xff]
      %v464 = vld [vmem:[%s435 + $0xb8] sm:$0x3]
      %v465 = vld [vmem:[%s435 + $0xc0] sm:$0xff]
      %v466 = vld [vmem:[%s435 + $0xc8] sm:$0xff]
      %v467 = vld [vmem:[%s435 + $0xd0] sm:$0x3]
      %v468 = vld [vmem:[%s435 + $0xd8] sm:$0xff]
      %v469 = vld [vmem:[%s435 + $0xe0] sm:$0xff]
      %v470 = vld [vmem:[%s435 + $0xe8] sm:$0x3]
      %v471 = vld [vmem:[%s435 + $0xf0] sm:$0xff]
      %v472 = vld [vmem:[%s435 + $0xf8] sm:$0xff]
      %v473 = vld [vmem:[%s435 + $0x100] sm:$0x3]
      %v474 = vld [vmem:[%s435 + $0x108] sm:$0xff]
      %v475 = vld [vmem:[%s435 + $0x110] sm:$0xff]
      %v476 = vld [vmem:[%s435 + $0x118] sm:$0x3]
      %v477 = vld [vmem:[%s435 + $0x120] sm:$0xff]
      %v478 = vld [vmem:[%s435 + $0x128] sm:$0xff]
      %v479 = vld [vmem:[%s435 + $0x130] sm:$0x3]
      %v480 = vld [vmem:[%s435 + $0x138] sm:$0xff]
      %v481 = vld [vmem:[%s435 + $0x140] sm:$0xff]
      %v482 = vld [vmem:[%s435 + $0x148] sm:$0x3]
      %v483 = vld [vmem:[%s435 + $0x150] sm:$0xff]
      %v484 = vld [vmem:[%s435 + $0x158] sm:$0xff]
      %v485 = vld [vmem:[%s435 + $0x160] sm:$0x3]
      %v486 = vld [vmem:[%s435 + $0x168] sm:$0xff]
      %v487 = vld [vmem:[%s435 + $0x170] sm:$0xff]
      %v488 = vld [vmem:[%s435 + $0x178] sm:$0x3]
      %v489 = vld [vmem:[%s435 + $0x180] sm:$0xff]
      %v490 = vld [vmem:[%s435 + $0x188] sm:$0xff]
      %v491 = vld [vmem:[%s435 + $0x190] sm:$0x3]
      %v492 = vld [vmem:[%s435 + $0x198] sm:$0xff]
      %v493 = vld [vmem:[%s435 + $0x1a0] sm:$0xff]
      %v494 = vld [vmem:[%s435 + $0x1a8] sm:$0x3]
      %vm495 = vcmask 31744
      %496 = vst.msk [vmem:[#allocation2] sm:$0xff] %vm495, %v441
      %497 = vst.msk [vmem:[#allocation2 + $0x8] sm:$0xff] %vm495, %v442
      %vm498 = vcmask 25600
      %499 = vst.msk [vmem:[#allocation2 + $0x10] sm:$0x3] %vm498, %v443
      %500 = vst.msk [vmem:[#allocation2 + $0x18] sm:$0xff] %vm495, %v444
      %501 = vst.msk [vmem:[#allocation2 + $0x20] sm:$0xff] %vm495, %v445
      %502 = vst.msk [vmem:[#allocation2 + $0x28] sm:$0x3] %vm498, %v446
      %503 = vst.msk [vmem:[#allocation2 + $0x30] sm:$0xff] %vm495, %v447
      %504 = vst.msk [vmem:[#allocation2 + $0x38] sm:$0xff] %vm495, %v448
      %505 = vst.msk [vmem:[#allocation2 + $0x40] sm:$0x3] %vm498, %v449
      %506 = vst.msk [vmem:[#allocation2 + $0x48] sm:$0xff] %vm495, %v450
      %507 = vst.msk [vmem:[#allocation2 + $0x50] sm:$0xff] %vm495, %v451
      %508 = vst.msk [vmem:[#allocation2 + $0x58] sm:$0x3] %vm498, %v452
      %509 = vst.msk [vmem:[#allocation2 + $0x60] sm:$0xff] %vm495, %v453
      %510 = vst.msk [vmem:[#allocation2 + $0x68] sm:$0xff] %vm495, %v454
      %511 = vst.msk [vmem:[#allocation2 + $0x70] sm:$0x3] %vm498, %v455
      %512 = vst.msk [vmem:[#allocation2 + $0x78] sm:$0xff] %vm495, %v456
      %513 = vst.msk [vmem:[#allocation2 + $0x80] sm:$0xff] %vm495, %v457
      %514 = vst.msk [vmem:[#allocation2 + $0x88] sm:$0x3] %vm498, %v458
      %515 = vst.msk [vmem:[#allocation2 + $0x90] sm:$0xff] %vm495, %v459
      %516 = vst.msk [vmem:[#allocation2 + $0x98] sm:$0xff] %vm495, %v460
      %517 = vst.msk [vmem:[#allocation2 + $0xa0] sm:$0x3] %vm498, %v461
      %518 = vst.msk [vmem:[#allocation2 + $0xa8] sm:$0xff] %vm495, %v462
      %519 = vst.msk [vmem:[#allocation2 + $0xb0] sm:$0xff] %vm495, %v463
      %520 = vst.msk [vmem:[#allocation2 + $0xb8] sm:$0x3] %vm498, %v464
      %521 = vst.msk [vmem:[#allocation2 + $0xc0] sm:$0xff] %vm495, %v465
      %522 = vst.msk [vmem:[#allocation2 + $0xc8] sm:$0xff] %vm495, %v466
      %523 = vst.msk [vmem:[#allocation2 + $0xd0] sm:$0x3] %vm498, %v467
      %524 = vst.msk [vmem:[#allocation2 + $0xd8] sm:$0xff] %vm495, %v468
      %525 = vst.msk [vmem:[#allocation2 + $0xe0] sm:$0xff] %vm495, %v469
      %526 = vst.msk [vmem:[#allocation2 + $0xe8] sm:$0x3] %vm498, %v470
      %527 = vst.msk [vmem:[#allocation2 + $0xf0] sm:$0xff] %vm495, %v471
      %528 = vst.msk [vmem:[#allocation2 + $0xf8] sm:$0xff] %vm495, %v472
      %529 = vst.msk [vmem:[#allocation2 + $0x100] sm:$0x3] %vm498, %v473
      %530 = vst.msk [vmem:[#allocation2 + $0x108] sm:$0xff] %vm495, %v474
      %531 = vst.msk [vmem:[#allocation2 + $0x110] sm:$0xff] %vm495, %v475
      %532 = vst.msk [vmem:[#allocation2 + $0x118] sm:$0x3] %vm498, %v476
      %533 = vst.msk [vmem:[#allocation2 + $0x120] sm:$0xff] %vm495, %v477
      %534 = vst.msk [vmem:[#allocation2 + $0x128] sm:$0xff] %vm495, %v478
      %535 = vst.msk [vmem:[#allocation2 + $0x130] sm:$0x3] %vm498, %v479
      %536 = vst.msk [vmem:[#allocation2 + $0x138] sm:$0xff] %vm495, %v480
      %537 = vst.msk [vmem:[#allocation2 + $0x140] sm:$0xff] %vm495, %v481
      %538 = vst.msk [vmem:[#allocation2 + $0x148] sm:$0x3] %vm498, %v482
      %539 = vst.msk [vmem:[#allocation2 + $0x150] sm:$0xff] %vm495, %v483
      %540 = vst.msk [vmem:[#allocation2 + $0x158] sm:$0xff] %vm495, %v484
      %541 = vst.msk [vmem:[#allocation2 + $0x160] sm:$0x3] %vm498, %v485
      %542 = vst.msk [vmem:[#allocation2 + $0x168] sm:$0xff] %vm495, %v486
      %543 = vst.msk [vmem:[#allocation2 + $0x170] sm:$0xff] %vm495, %v487
      %544 = vst.msk [vmem:[#allocation2 + $0x178] sm:$0x3] %vm498, %v488
      %545 = vst.msk [vmem:[#allocation2 + $0x180] sm:$0xff] %vm495, %v489
      %546 = vst.msk [vmem:[#allocation2 + $0x188] sm:$0xff] %vm495, %v490
      %547 = vst.msk [vmem:[#allocation2 + $0x190] sm:$0x3] %vm498, %v491
      %548 = vst.msk [vmem:[#allocation2 + $0x198] sm:$0xff] %vm495, %v492
      %549 = vst.msk [vmem:[#allocation2 + $0x1a0] sm:$0xff] %vm495, %v493
      %550 = vst.msk [vmem:[#allocation2 + $0x1a8] sm:$0x3] %vm498, %v494
      %551 = vst.msk [vmem:[#allocation3] sm:$0xff] %vm495, 0.0
      %552 = vst.msk [vmem:[#allocation3 + $0x8] sm:$0xff] %vm495, 0.0
      %553 = vst.msk [vmem:[#allocation3 + $0x10] sm:$0x3] %vm498, 0.0
      %554 = vst.msk [vmem:[#allocation3 + $0x18] sm:$0xff] %vm495, 0.0
      %555 = vst.msk [vmem:[#allocation3 + $0x20] sm:$0xff] %vm495, 0.0
      %556 = vst.msk [vmem:[#allocation3 + $0x28] sm:$0x3] %vm498, 0.0
      %557 = vst.msk [vmem:[#allocation3 + $0x30] sm:$0xff] %vm495, 0.0
      %558 = vst.msk [vmem:[#allocation3 + $0x38] sm:$0xff] %vm495, 0.0
      %559 = vst.msk [vmem:[#allocation3 + $0x40] sm:$0x3] %vm498, 0.0
      %560 = vst.msk [vmem:[#allocation3 + $0x48] sm:$0xff] %vm495, 0.0
      %561 = vst.msk [vmem:[#allocation3 + $0x50] sm:$0xff] %vm495, 0.0
      %562 = vst.msk [vmem:[#allocation3 + $0x58] sm:$0x3] %vm498, 0.0
      %563 = vst.msk [vmem:[#allocation3 + $0x60] sm:$0xff] %vm495, 0.0
      %564 = vst.msk [vmem:[#allocation3 + $0x68] sm:$0xff] %vm495, 0.0
      %565 = vst.msk [vmem:[#allocation3 + $0x70] sm:$0x3] %vm498, 0.0
      %566 = vst.msk [vmem:[#allocation3 + $0x78] sm:$0xff] %vm495, 0.0
      %567 = vst.msk [vmem:[#allocation3 + $0x80] sm:$0xff] %vm495, 0.0
      %568 = vst.msk [vmem:[#allocation3 + $0x88] sm:$0x3] %vm498, 0.0
      %569 = vst.msk [vmem:[#allocation3 + $0x90] sm:$0xff] %vm495, 0.0
      %570 = vst.msk [vmem:[#allocation3 + $0x98] sm:$0xff] %vm495, 0.0
      %571 = vst.msk [vmem:[#allocation3 + $0xa0] sm:$0x3] %vm498, 0.0
      %572 = vst.msk [vmem:[#allocation3 + $0xa8] sm:$0xff] %vm495, 0.0
      %573 = vst.msk [vmem:[#allocation3 + $0xb0] sm:$0xff] %vm495, 0.0
      %574 = vst.msk [vmem:[#allocation3 + $0xb8] sm:$0x3] %vm498, 0.0
      %575 = vst.msk [vmem:[#allocation3 + $0xc0] sm:$0xff] %vm495, 0.0
      %576 = vst.msk [vmem:[#allocation3 + $0xc8] sm:$0xff] %vm495, 0.0
      %577 = vst.msk [vmem:[#allocation3 + $0xd0] sm:$0x3] %vm498, 0.0
      %578 = vst.msk [vmem:[#allocation3 + $0xd8] sm:$0xff] %vm495, 0.0
      %579 = vst.msk [vmem:[#allocation3 + $0xe0] sm:$0xff] %vm495, 0.0
      %580 = vst.msk [vmem:[#allocation3 + $0xe8] sm:$0x3] %vm498, 0.0
      %581 = vst.msk [vmem:[#allocation3 + $0xf0] sm:$0xff] %vm495, 0.0
      %582 = vst.msk [vmem:[#allocation3 + $0xf8] sm:$0xff] %vm495, 0.0
      %583 = vst.msk [vmem:[#allocation3 + $0x100] sm:$0x3] %vm498, 0.0
      %584 = vst.msk [vmem:[#allocation3 + $0x108] sm:$0xff] %vm495, 0.0
      %585 = vst.msk [vmem:[#allocation3 + $0x110] sm:$0xff] %vm495, 0.0
      %586 = vst.msk [vmem:[#allocation3 + $0x118] sm:$0x3] %vm498, 0.0
      %587 = vst.msk [vmem:[#allocation3 + $0x120] sm:$0xff] %vm495, 0.0
      %588 = vst.msk [vmem:[#allocation3 + $0x128] sm:$0xff] %vm495, 0.0
      %589 = vst.msk [vmem:[#allocation3 + $0x130] sm:$0x3] %vm498, 0.0
      %590 = vst.msk [vmem:[#allocation3 + $0x138] sm:$0xff] %vm495, 0.0
      %591 = vst.msk [vmem:[#allocation3 + $0x140] sm:$0xff] %vm495, 0.0
      %592 = vst.msk [vmem:[#allocation3 + $0x148] sm:$0x3] %vm498, 0.0
      %593 = vst.msk [vmem:[#allocation3 + $0x150] sm:$0xff] %vm495, 0.0
      %594 = vst.msk [vmem:[#allocation3 + $0x158] sm:$0xff] %vm495, 0.0
      %595 = vst.msk [vmem:[#allocation3 + $0x160] sm:$0x3] %vm498, 0.0
      %596 = vst.msk [vmem:[#allocation3 + $0x168] sm:$0xff] %vm495, 0.0
      %597 = vst.msk [vmem:[#allocation3 + $0x170] sm:$0xff] %vm495, 0.0
      %598 = vst.msk [vmem:[#allocation3 + $0x178] sm:$0x3] %vm498, 0.0
      %599 = vst.msk [vmem:[#allocation3 + $0x180] sm:$0xff] %vm495, 0.0
      %600 = vst.msk [vmem:[#allocation3 + $0x188] sm:$0xff] %vm495, 0.0
      %601 = vst.msk [vmem:[#allocation3 + $0x190] sm:$0x3] %vm498, 0.0
      %602 = vst.msk [vmem:[#allocation3 + $0x198] sm:$0xff] %vm495, 0.0
      %603 = vst.msk [vmem:[#allocation3 + $0x1a0] sm:$0xff] %vm495, 0.0
      %604 = vst.msk [vmem:[#allocation3 + $0x1a8] sm:$0x3] %vm498, 0.0
      loop: start=0, step=1, limit=10
      $region73: #{rir_forward.1} parent=71 // loop_pre_header
        _
      $region74: #{rir_forward.1} parent=71 // loop_header
        %s606 = sphi 0, %s610
        %p607 = scmp.ge.s32.totalorder %s606, 10
      $region75: #{rir_forward.1} parent=71 // loop_header_branch
        %609 = sbr.rel (%p607) target = $region79
      $region76: #{rir_forward.1} parent=71 // loop_body
        %v611 = vld [vmem:[#allocation2] sm:$0xff]
        %v612 = vld [vmem:[#allocation2 + $0x8] sm:$0xff]
        %v613 = vld [vmem:[#allocation2 + $0x10] sm:$0x3]
        %v614 = vld [vmem:[#allocation2 + $0x18] sm:$0xff]
        %v615 = vld [vmem:[#allocation2 + $0x20] sm:$0xff]
        %v616 = vld [vmem:[#allocation2 + $0x28] sm:$0x3]
        %v617 = vld [vmem:[#allocation2 + $0x30] sm:$0xff]
        %v618 = vld [vmem:[#allocation2 + $0x38] sm:$0xff]
        %v619 = vld [vmem:[#allocation2 + $0x40] sm:$0x3]
        %v620 = vld [vmem:[#allocation2 + $0x48] sm:$0xff]
        %v621 = vld [vmem:[#allocation2 + $0x50] sm:$0xff]
        %v622 = vld [vmem:[#allocation2 + $0x58] sm:$0x3]
        %v623 = vld [vmem:[#allocation2 + $0x60] sm:$0xff]
        %v624 = vld [vmem:[#allocation2 + $0x68] sm:$0xff]
        %v625 = vld [vmem:[#allocation2 + $0x70] sm:$0x3]
        %v626 = vld [vmem:[#allocation2 + $0x78] sm:$0xff]
        %v627 = vld [vmem:[#allocation2 + $0x80] sm:$0xff]
        %v628 = vld [vmem:[#allocation2 + $0x88] sm:$0x3]
        %v629 = vld [vmem:[#allocation2 + $0x90] sm:$0xff]
        %v630 = vld [vmem:[#allocation2 + $0x98] sm:$0xff]
        %v631 = vld [vmem:[#allocation2 + $0xa0] sm:$0x3]
        %v632 = vld [vmem:[#allocation2 + $0xa8] sm:$0xff]
        %v633 = vld [vmem:[#allocation2 + $0xb0] sm:$0xff]
        %v634 = vld [vmem:[#allocation2 + $0xb8] sm:$0x3]
        %v635 = vld [vmem:[#allocation2 + $0xc0] sm:$0xff]
        %v636 = vld [vmem:[#allocation2 + $0xc8] sm:$0xff]
        %v637 = vld [vmem:[#allocation2 + $0xd0] sm:$0x3]
        %v638 = vld [vmem:[#allocation2 + $0xd8] sm:$0xff]
        %v639 = vld [vmem:[#allocation2 + $0xe0] sm:$0xff]
        %v640 = vld [vmem:[#allocation2 + $0xe8] sm:$0x3]
        %v641 = vld [vmem:[#allocation2 + $0xf0] sm:$0xff]
        %v642 = vld [vmem:[#allocation2 + $0xf8] sm:$0xff]
        %v643 = vld [vmem:[#allocation2 + $0x100] sm:$0x3]
        %v644 = vld [vmem:[#allocation2 + $0x108] sm:$0xff]
        %v645 = vld [vmem:[#allocation2 + $0x110] sm:$0xff]
        %v646 = vld [vmem:[#allocation2 + $0x118] sm:$0x3]
        %v647 = vld [vmem:[#allocation2 + $0x120] sm:$0xff]
        %v648 = vld [vmem:[#allocation2 + $0x128] sm:$0xff]
        %v649 = vld [vmem:[#allocation2 + $0x130] sm:$0x3]
        %v650 = vld [vmem:[#allocation2 + $0x138] sm:$0xff]
        %v651 = vld [vmem:[#allocation2 + $0x140] sm:$0xff]
        %v652 = vld [vmem:[#allocation2 + $0x148] sm:$0x3]
        %v653 = vld [vmem:[#allocation2 + $0x150] sm:$0xff]
        %v654 = vld [vmem:[#allocation2 + $0x158] sm:$0xff]
        %v655 = vld [vmem:[#allocation2 + $0x160] sm:$0x3]
        %v656 = vld [vmem:[#allocation2 + $0x168] sm:$0xff]
        %v657 = vld [vmem:[#allocation2 + $0x170] sm:$0xff]
        %v658 = vld [vmem:[#allocation2 + $0x178] sm:$0x3]
        %v659 = vld [vmem:[#allocation2 + $0x180] sm:$0xff]
        %v660 = vld [vmem:[#allocation2 + $0x188] sm:$0xff]
        %v661 = vld [vmem:[#allocation2 + $0x190] sm:$0x3]
        %v662 = vld [vmem:[#allocation2 + $0x198] sm:$0xff]
        %v663 = vld [vmem:[#allocation2 + $0x1a0] sm:$0xff]
        %v664 = vld [vmem:[#allocation2 + $0x1a8] sm:$0x3]
        %665 = vst.msk [vmem:[#allocation4] sm:$0xff] %vm495, %v611
        %666 = vst.msk [vmem:[#allocation4 + $0x8] sm:$0xff] %vm495, %v612
        %667 = vst.msk [vmem:[#allocation4 + $0x10] sm:$0x3] %vm498, %v613
        %668 = vst.msk [vmem:[#allocation4 + $0x18] sm:$0xff] %vm495, %v614
        %669 = vst.msk [vmem:[#allocation4 + $0x20] sm:$0xff] %vm495, %v615
        %670 = vst.msk [vmem:[#allocation4 + $0x28] sm:$0x3] %vm498, %v616
        %671 = vst.msk [vmem:[#allocation4 + $0x30] sm:$0xff] %vm495, %v617
        %672 = vst.msk [vmem:[#allocation4 + $0x38] sm:$0xff] %vm495, %v618
        %673 = vst.msk [vmem:[#allocation4 + $0x40] sm:$0x3] %vm498, %v619
        %674 = vst.msk [vmem:[#allocation4 + $0x48] sm:$0xff] %vm495, %v620
        %675 = vst.msk [vmem:[#allocation4 + $0x50] sm:$0xff] %vm495, %v621
        %676 = vst.msk [vmem:[#allocation4 + $0x58] sm:$0x3] %vm498, %v622
        %677 = vst.msk [vmem:[#allocation4 + $0x60] sm:$0xff] %vm495, %v623
        %678 = vst.msk [vmem:[#allocation4 + $0x68] sm:$0xff] %vm495, %v624
        %679 = vst.msk [vmem:[#allocation4 + $0x70] sm:$0x3] %vm498, %v625
        %680 = vst.msk [vmem:[#allocation4 + $0x78] sm:$0xff] %vm495, %v626
        %681 = vst.msk [vmem:[#allocation4 + $0x80] sm:$0xff] %vm495, %v627
        %682 = vst.msk [vmem:[#allocation4 + $0x88] sm:$0x3] %vm498, %v628
        %683 = vst.msk [vmem:[#allocation4 + $0x90] sm:$0xff] %vm495, %v629
        %684 = vst.msk [vmem:[#allocation4 + $0x98] sm:$0xff] %vm495, %v630
        %685 = vst.msk [vmem:[#allocation4 + $0xa0] sm:$0x3] %vm498, %v631
        %686 = vst.msk [vmem:[#allocation4 + $0xa8] sm:$0xff] %vm495, %v632
        %687 = vst.msk [vmem:[#allocation4 + $0xb0] sm:$0xff] %vm495, %v633
        %688 = vst.msk [vmem:[#allocation4 + $0xb8] sm:$0x3] %vm498, %v634
        %689 = vst.msk [vmem:[#allocation4 + $0xc0] sm:$0xff] %vm495, %v635
        %690 = vst.msk [vmem:[#allocation4 + $0xc8] sm:$0xff] %vm495, %v636
        %691 = vst.msk [vmem:[#allocation4 + $0xd0] sm:$0x3] %vm498, %v637
        %692 = vst.msk [vmem:[#allocation4 + $0xd8] sm:$0xff] %vm495, %v638
        %693 = vst.msk [vmem:[#allocation4 + $0xe0] sm:$0xff] %vm495, %v639
        %694 = vst.msk [vmem:[#allocation4 + $0xe8] sm:$0x3] %vm498, %v640
        %695 = vst.msk [vmem:[#allocation4 + $0xf0] sm:$0xff] %vm495, %v641
        %696 = vst.msk [vmem:[#allocation4 + $0xf8] sm:$0xff] %vm495, %v642
        %697 = vst.msk [vmem:[#allocation4 + $0x100] sm:$0x3] %vm498, %v643
        %698 = vst.msk [vmem:[#allocation4 + $0x108] sm:$0xff] %vm495, %v644
        %699 = vst.msk [vmem:[#allocation4 + $0x110] sm:$0xff] %vm495, %v645
        %700 = vst.msk [vmem:[#allocation4 + $0x118] sm:$0x3] %vm498, %v646
        %701 = vst.msk [vmem:[#allocation4 + $0x120] sm:$0xff] %vm495, %v647
        %702 = vst.msk [vmem:[#allocation4 + $0x128] sm:$0xff] %vm495, %v648
        %703 = vst.msk [vmem:[#allocation4 + $0x130] sm:$0x3] %vm498, %v649
        %704 = vst.msk [vmem:[#allocation4 + $0x138] sm:$0xff] %vm495, %v650
        %705 = vst.msk [vmem:[#allocation4 + $0x140] sm:$0xff] %vm495, %v651
        %706 = vst.msk [vmem:[#allocation4 + $0x148] sm:$0x3] %vm498, %v652
        %707 = vst.msk [vmem:[#allocation4 + $0x150] sm:$0xff] %vm495, %v653
        %708 = vst.msk [vmem:[#allocation4 + $0x158] sm:$0xff] %vm495, %v654
        %709 = vst.msk [vmem:[#allocation4 + $0x160] sm:$0x3] %vm498, %v655
        %710 = vst.msk [vmem:[#allocation4 + $0x168] sm:$0xff] %vm495, %v656
        %711 = vst.msk [vmem:[#allocation4 + $0x170] sm:$0xff] %vm495, %v657
        %712 = vst.msk [vmem:[#allocation4 + $0x178] sm:$0x3] %vm498, %v658
        %713 = vst.msk [vmem:[#allocation4 + $0x180] sm:$0xff] %vm495, %v659
        %714 = vst.msk [vmem:[#allocation4 + $0x188] sm:$0xff] %vm495, %v660
        %715 = vst.msk [vmem:[#allocation4 + $0x190] sm:$0x3] %vm498, %v661
        %716 = vst.msk [vmem:[#allocation4 + $0x198] sm:$0xff] %vm495, %v662
        %717 = vst.msk [vmem:[#allocation4 + $0x1a0] sm:$0xff] %vm495, %v663
        %718 = vst.msk [vmem:[#allocation4 + $0x1a8] sm:$0x3] %vm498, %v664
        loop: start=0, step=1, limit=20
        $region80: #{rir_forward.1} parent=76 // loop_pre_header
          _
        $region81: #{rir_forward.1} parent=76 // loop_header
          %s720 = sphi 0, %s724
          %p721 = scmp.ge.s32.totalorder %s720, 20
        $region82: #{rir_forward.1} parent=76 // loop_header_branch
          %723 = sbr.rel (%p721) target = $region86
        $region83: #{rir_forward.1} parent=76 // loop_body
          %s725 = smul.u32 %s606, 20
          %s726 = sadd.s32 %s725, %s720
          %s727 = smul.u32 %s726, 40
          %s728 = scalar_lea.vmem %s1, %s727
          %v729 = vld [vmem:[%s728] sm:$0xff]
          %v730 = vld [vmem:[%s728 + $0x8] sm:$0xff]
          %v731 = vld [vmem:[%s728 + $0x10] sm:$0xff]
          %v732 = vld [vmem:[%s728 + $0x18] sm:$0xff]
          %v733 = vld [vmem:[%s728 + $0x20] sm:$0xf]
          %s734 = scalar_lea.vmem %s2, %s726
          %v735 = vld [vmem:[%s734] sm:$0x1]
          %v736 = vld [vmem:[#allocation2] sm:$0xff]
          %v737 = vld [vmem:[#allocation2 + $0x8] sm:$0xff]
          %v738 = vld [vmem:[#allocation2 + $0x18] sm:$0xff]
          %v739 = vld [vmem:[#allocation2 + $0x20] sm:$0xff]
          %v740 = vld [vmem:[#allocation2 + $0x30] sm:$0xff]
          %v741 = vld [vmem:[#allocation2 + $0x38] sm:$0xff]
          %v742 = vld [vmem:[#allocation2 + $0x48] sm:$0xff]
          %v743 = vld [vmem:[#allocation2 + $0x50] sm:$0xff]
          %v744 = vld [vmem:[#allocation2 + $0x60] sm:$0xff]
          %v745 = vld [vmem:[#allocation2 + $0x68] sm:$0xff]
          %v746 = vld [vmem:[#allocation2 + $0x78] sm:$0xff]
          %v747 = vld [vmem:[#allocation2 + $0x80] sm:$0xff]
          %v748 = vld [vmem:[#allocation2 + $0x90] sm:$0xff]
          %v749 = vld [vmem:[#allocation2 + $0x98] sm:$0xff]
          %v750 = vld [vmem:[#allocation2 + $0xa8] sm:$0xff]
          %v751 = vld [vmem:[#allocation2 + $0xb0] sm:$0xff]
          %v752 = vld [vmem:[#allocation2 + $0xc0] sm:$0xff]
          %v753 = vld [vmem:[#allocation2 + $0xc8] sm:$0xff]
          %v754 = vld [vmem:[#allocation2 + $0xd8] sm:$0xff]
          %v755 = vld [vmem:[#allocation2 + $0xe0] sm:$0xff]
          %v756 = vld [vmem:[#allocation2 + $0xf0] sm:$0xff]
          %v757 = vld [vmem:[#allocation2 + $0xf8] sm:$0xff]
          %v758 = vld [vmem:[#allocation2 + $0x108] sm:$0xff]
          %v759 = vld [vmem:[#allocation2 + $0x110] sm:$0xff]
          %v760 = vld [vmem:[#allocation2 + $0x120] sm:$0xff]
          %v761 = vld [vmem:[#allocation2 + $0x128] sm:$0xff]
          %v762 = vld [vmem:[#allocation2 + $0x138] sm:$0xff]
          %v763 = vld [vmem:[#allocation2 + $0x140] sm:$0xff]
          %v764 = vld [vmem:[#allocation2 + $0x150] sm:$0xff]
          %v765 = vld [vmem:[#allocation2 + $0x158] sm:$0xff]
          %v766 = vld [vmem:[#allocation2 + $0x168] sm:$0xff]
          %v767 = vld [vmem:[#allocation2 + $0x170] sm:$0xff]
          %768 = vst.msk [vmem:[#allocation5] sm:$0xff] %vm495, %v736
          %769 = vst.msk [vmem:[#allocation5 + $0x8] sm:$0xff] %vm495, %v737
          %770 = vst.msk [vmem:[#allocation5 + $0x10] sm:$0xff] %vm495, %v738
          %771 = vst.msk [vmem:[#allocation5 + $0x18] sm:$0xff] %vm495, %v739
          %772 = vst.msk [vmem:[#allocation5 + $0x20] sm:$0xff] %vm495, %v740
          %773 = vst.msk [vmem:[#allocation5 + $0x28] sm:$0xff] %vm495, %v741
          %774 = vst.msk [vmem:[#allocation5 + $0x30] sm:$0xff] %vm495, %v742
          %775 = vst.msk [vmem:[#allocation5 + $0x38] sm:$0xff] %vm495, %v743
          %776 = vst.msk [vmem:[#allocation5 + $0x40] sm:$0xff] %vm495, %v744
          %777 = vst.msk [vmem:[#allocation5 + $0x48] sm:$0xff] %vm495, %v745
          %778 = vst.msk [vmem:[#allocation5 + $0x50] sm:$0xff] %vm495, %v746
          %779 = vst.msk [vmem:[#allocation5 + $0x58] sm:$0xff] %vm495, %v747
          %780 = vst.msk [vmem:[#allocation5 + $0x60] sm:$0xff] %vm495, %v748
          %781 = vst.msk [vmem:[#allocation5 + $0x68] sm:$0xff] %vm495, %v749
          %782 = vst.msk [vmem:[#allocation5 + $0x70] sm:$0xff] %vm495, %v750
          %783 = vst.msk [vmem:[#allocation5 + $0x78] sm:$0xff] %vm495, %v751
          %784 = vst.msk [vmem:[#allocation5 + $0x80] sm:$0xff] %vm495, %v752
          %785 = vst.msk [vmem:[#allocation5 + $0x88] sm:$0xff] %vm495, %v753
          %786 = vst.msk [vmem:[#allocation5 + $0x90] sm:$0xff] %vm495, %v754
          %787 = vst.msk [vmem:[#allocation5 + $0x98] sm:$0xff] %vm495, %v755
          %788 = vst.msk [vmem:[#allocation5 + $0xa0] sm:$0xff] %vm495, %v756
          %789 = vst.msk [vmem:[#allocation5 + $0xa8] sm:$0xff] %vm495, %v757
          %790 = vst.msk [vmem:[#allocation5 + $0xb0] sm:$0xff] %vm495, %v758
          %791 = vst.msk [vmem:[#allocation5 + $0xb8] sm:$0xff] %vm495, %v759
          %792 = vst.msk [vmem:[#allocation5 + $0xc0] sm:$0xff] %vm495, %v760
          %793 = vst.msk [vmem:[#allocation5 + $0xc8] sm:$0xff] %vm495, %v761
          %794 = vst.msk [vmem:[#allocation5 + $0xd0] sm:$0xff] %vm495, %v762
          %795 = vst.msk [vmem:[#allocation5 + $0xd8] sm:$0xff] %vm495, %v763
          %796 = vst.msk [vmem:[#allocation5 + $0xe0] sm:$0xff] %vm495, %v764
          %797 = vst.msk [vmem:[#allocation5 + $0xe8] sm:$0xff] %vm495, %v765
          %798 = vst.msk [vmem:[#allocation5 + $0xf0] sm:$0xff] %vm495, %v766
          %799 = vst.msk [vmem:[#allocation5 + $0xf8] sm:$0xff] %vm495, %v767
          %v800 = vld [vmem:[#allocation2 + $0x1] sm:$0xff]
          %v801 = vld [vmem:[#allocation2 + $0x9] sm:$0xff]
          %v802 = vld [vmem:[#allocation2 + $0x19] sm:$0xff]
          %v803 = vld [vmem:[#allocation2 + $0x21] sm:$0xff]
          %v804 = vld [vmem:[#allocation2 + $0x31] sm:$0xff]
          %v805 = vld [vmem:[#allocation2 + $0x39] sm:$0xff]
          %v806 = vld [vmem:[#allocation2 + $0x49] sm:$0xff]
          %v807 = vld [vmem:[#allocation2 + $0x51] sm:$0xff]
          %v808 = vld [vmem:[#allocation2 + $0x61] sm:$0xff]
          %v809 = vld [vmem:[#allocation2 + $0x69] sm:$0xff]
          %v810 = vld [vmem:[#allocation2 + $0x79] sm:$0xff]
          %v811 = vld [vmem:[#allocation2 + $0x81] sm:$0xff]
          %v812 = vld [vmem:[#allocation2 + $0x91] sm:$0xff]
          %v813 = vld [vmem:[#allocation2 + $0x99] sm:$0xff]
          %v814 = vld [vmem:[#allocation2 + $0xa9] sm:$0xff]
          %v815 = vld [vmem:[#allocation2 + $0xb1] sm:$0xff]
          %v816 = vld [vmem:[#allocation2 + $0xc1] sm:$0xff]
          %v817 = vld [vmem:[#allocation2 + $0xc9] sm:$0xff]
          %v818 = vld [vmem:[#allocation2 + $0xd9] sm:$0xff]
          %v819 = vld [vmem:[#allocation2 + $0xe1] sm:$0xff]
          %v820 = vld [vmem:[#allocation2 + $0xf1] sm:$0xff]
          %v821 = vld [vmem:[#allocation2 + $0xf9] sm:$0xff]
          %v822 = vld [vmem:[#allocation2 + $0x109] sm:$0xff]
          %v823 = vld [vmem:[#allocation2 + $0x111] sm:$0xff]
          %v824 = vld [vmem:[#allocation2 + $0x121] sm:$0xff]
          %v825 = vld [vmem:[#allocation2 + $0x129] sm:$0xff]
          %v826 = vld [vmem:[#allocation2 + $0x139] sm:$0xff]
          %v827 = vld [vmem:[#allocation2 + $0x141] sm:$0xff]
          %v828 = vld [vmem:[#allocation2 + $0x151] sm:$0xff]
          %v829 = vld [vmem:[#allocation2 + $0x159] sm:$0xff]
          %v830 = vld [vmem:[#allocation2 + $0x169] sm:$0xff]
          %v831 = vld [vmem:[#allocation2 + $0x171] sm:$0xff]
          %864 = vrot.lane.b32.xlu0 %v800, 4
          %v865 = vpop.permute.xlu0 %864
          %866 = vrot.lane.b32.xlu0 %v801, 4
          %v867 = vpop.permute.xlu0 %866
          %868 = vrot.lane.b32.xlu0 %v802, 4
          %v869 = vpop.permute.xlu0 %868
          %870 = vrot.lane.b32.xlu0 %v803, 4
          %v871 = vpop.permute.xlu0 %870
          %872 = vrot.lane.b32.xlu0 %v804, 4
          %v873 = vpop.permute.xlu0 %872
          %874 = vrot.lane.b32.xlu0 %v805, 4
          %v875 = vpop.permute.xlu0 %874
          %876 = vrot.lane.b32.xlu0 %v806, 4
          %v877 = vpop.permute.xlu0 %876
          %878 = vrot.lane.b32.xlu0 %v807, 4
          %v879 = vpop.permute.xlu0 %878
          %880 = vrot.lane.b32.xlu0 %v808, 4
          %v881 = vpop.permute.xlu0 %880
          %882 = vrot.lane.b32.xlu0 %v809, 4
          %v883 = vpop.permute.xlu0 %882
          %884 = vrot.lane.b32.xlu0 %v810, 4
          %v885 = vpop.permute.xlu0 %884
          %886 = vrot.lane.b32.xlu0 %v811, 4
          %v887 = vpop.permute.xlu0 %886
          %888 = vrot.lane.b32.xlu0 %v812, 4
          %v889 = vpop.permute.xlu0 %888
          %890 = vrot.lane.b32.xlu0 %v813, 4
          %v891 = vpop.permute.xlu0 %890
          %892 = vrot.lane.b32.xlu0 %v814, 4
          %v893 = vpop.permute.xlu0 %892
          %894 = vrot.lane.b32.xlu0 %v815, 4
          %v895 = vpop.permute.xlu0 %894
          %896 = vrot.lane.b32.xlu0 %v816, 4
          %v897 = vpop.permute.xlu0 %896
          %898 = vrot.lane.b32.xlu0 %v817, 4
          %v899 = vpop.permute.xlu0 %898
          %900 = vrot.lane.b32.xlu0 %v818, 4
          %v901 = vpop.permute.xlu0 %900
          %902 = vrot.lane.b32.xlu0 %v819, 4
          %v903 = vpop.permute.xlu0 %902
          %904 = vrot.lane.b32.xlu0 %v820, 4
          %v905 = vpop.permute.xlu0 %904
          %906 = vrot.lane.b32.xlu0 %v821, 4
          %v907 = vpop.permute.xlu0 %906
          %908 = vrot.lane.b32.xlu0 %v822, 4
          %v909 = vpop.permute.xlu0 %908
          %910 = vrot.lane.b32.xlu0 %v823, 4
          %v911 = vpop.permute.xlu0 %910
          %912 = vrot.lane.b32.xlu0 %v824, 4
          %v913 = vpop.permute.xlu0 %912
          %914 = vrot.lane.b32.xlu0 %v825, 4
          %v915 = vpop.permute.xlu0 %914
          %916 = vrot.lane.b32.xlu0 %v826, 4
          %v917 = vpop.permute.xlu0 %916
          %918 = vrot.lane.b32.xlu0 %v827, 4
          %v919 = vpop.permute.xlu0 %918
          %920 = vrot.lane.b32.xlu0 %v828, 4
          %v921 = vpop.permute.xlu0 %920
          %922 = vrot.lane.b32.xlu0 %v829, 4
          %v923 = vpop.permute.xlu0 %922
          %924 = vrot.lane.b32.xlu0 %v830, 4
          %v925 = vpop.permute.xlu0 %924
          %926 = vrot.lane.b32.xlu0 %v831, 4
          %v927 = vpop.permute.xlu0 %926
          %vm960 = vcmask 64544
          %961 = vst.msk [vmem:[#allocation5] sm:$0xff] %vm960, %v865
          %962 = vst.msk [vmem:[#allocation5 + $0x8] sm:$0xff] %vm960, %v867
          %963 = vst.msk [vmem:[#allocation5 + $0x10] sm:$0xff] %vm960, %v869
          %964 = vst.msk [vmem:[#allocation5 + $0x18] sm:$0xff] %vm960, %v871
          %965 = vst.msk [vmem:[#allocation5 + $0x20] sm:$0xff] %vm960, %v873
          %966 = vst.msk [vmem:[#allocation5 + $0x28] sm:$0xff] %vm960, %v875
          %967 = vst.msk [vmem:[#allocation5 + $0x30] sm:$0xff] %vm960, %v877
          %968 = vst.msk [vmem:[#allocation5 + $0x38] sm:$0xff] %vm960, %v879
          %969 = vst.msk [vmem:[#allocation5 + $0x40] sm:$0xff] %vm960, %v881
          %970 = vst.msk [vmem:[#allocation5 + $0x48] sm:$0xff] %vm960, %v883
          %971 = vst.msk [vmem:[#allocation5 + $0x50] sm:$0xff] %vm960, %v885
          %972 = vst.msk [vmem:[#allocation5 + $0x58] sm:$0xff] %vm960, %v887
          %973 = vst.msk [vmem:[#allocation5 + $0x60] sm:$0xff] %vm960, %v889
          %974 = vst.msk [vmem:[#allocation5 + $0x68] sm:$0xff] %vm960, %v891
          %975 = vst.msk [vmem:[#allocation5 + $0x70] sm:$0xff] %vm960, %v893
          %976 = vst.msk [vmem:[#allocation5 + $0x78] sm:$0xff] %vm960, %v895
          %977 = vst.msk [vmem:[#allocation5 + $0x80] sm:$0xff] %vm960, %v897
          %978 = vst.msk [vmem:[#allocation5 + $0x88] sm:$0xff] %vm960, %v899
          %979 = vst.msk [vmem:[#allocation5 + $0x90] sm:$0xff] %vm960, %v901
          %980 = vst.msk [vmem:[#allocation5 + $0x98] sm:$0xff] %vm960, %v903
          %981 = vst.msk [vmem:[#allocation5 + $0xa0] sm:$0xff] %vm960, %v905
          %982 = vst.msk [vmem:[#allocation5 + $0xa8] sm:$0xff] %vm960, %v907
          %983 = vst.msk [vmem:[#allocation5 + $0xb0] sm:$0xff] %vm960, %v909
          %984 = vst.msk [vmem:[#allocation5 + $0xb8] sm:$0xff] %vm960, %v911
          %985 = vst.msk [vmem:[#allocation5 + $0xc0] sm:$0xff] %vm960, %v913
          %986 = vst.msk [vmem:[#allocation5 + $0xc8] sm:$0xff] %vm960, %v915
          %987 = vst.msk [vmem:[#allocation5 + $0xd0] sm:$0xff] %vm960, %v917
          %988 = vst.msk [vmem:[#allocation5 + $0xd8] sm:$0xff] %vm960, %v919
          %989 = vst.msk [vmem:[#allocation5 + $0xe0] sm:$0xff] %vm960, %v921
          %990 = vst.msk [vmem:[#allocation5 + $0xe8] sm:$0xff] %vm960, %v923
          %991 = vst.msk [vmem:[#allocation5 + $0xf0] sm:$0xff] %vm960, %v925
          %992 = vst.msk [vmem:[#allocation5 + $0xf8] sm:$0xff] %vm960, %v927
          %v993 = vld [vmem:[#allocation2 + $0x2] sm:$0xff]
          %v994 = vld [vmem:[#allocation2 + $0xa] sm:$0xff]
          %v995 = vld [vmem:[#allocation2 + $0x1a] sm:$0xff]
          %v996 = vld [vmem:[#allocation2 + $0x22] sm:$0xff]
          %v997 = vld [vmem:[#allocation2 + $0x32] sm:$0xff]
          %v998 = vld [vmem:[#allocation2 + $0x3a] sm:$0xff]
          %v999 = vld [vmem:[#allocation2 + $0x4a] sm:$0xff]
          %v1000 = vld [vmem:[#allocation2 + $0x52] sm:$0xff]
          %v1001 = vld [vmem:[#allocation2 + $0x62] sm:$0xff]
          %v1002 = vld [vmem:[#allocation2 + $0x6a] sm:$0xff]
          %v1003 = vld [vmem:[#allocation2 + $0x7a] sm:$0xff]
          %v1004 = vld [vmem:[#allocation2 + $0x82] sm:$0xff]
          %v1005 = vld [vmem:[#allocation2 + $0x92] sm:$0xff]
          %v1006 = vld [vmem:[#allocation2 + $0x9a] sm:$0xff]
          %v1007 = vld [vmem:[#allocation2 + $0xaa] sm:$0xff]
          %v1008 = vld [vmem:[#allocation2 + $0xb2] sm:$0xff]
          %v1009 = vld [vmem:[#allocation2 + $0xc2] sm:$0xff]
          %v1010 = vld [vmem:[#allocation2 + $0xca] sm:$0xff]
          %v1011 = vld [vmem:[#allocation2 + $0xda] sm:$0xff]
          %v1012 = vld [vmem:[#allocation2 + $0xe2] sm:$0xff]
          %v1013 = vld [vmem:[#allocation2 + $0xf2] sm:$0xff]
          %v1014 = vld [vmem:[#allocation2 + $0xfa] sm:$0xff]
          %v1015 = vld [vmem:[#allocation2 + $0x10a] sm:$0xff]
          %v1016 = vld [vmem:[#allocation2 + $0x112] sm:$0xff]
          %v1017 = vld [vmem:[#allocation2 + $0x122] sm:$0xff]
          %v1018 = vld [vmem:[#allocation2 + $0x12a] sm:$0xff]
          %v1019 = vld [vmem:[#allocation2 + $0x13a] sm:$0xff]
          %v1020 = vld [vmem:[#allocation2 + $0x142] sm:$0xff]
          %v1021 = vld [vmem:[#allocation2 + $0x152] sm:$0xff]
          %v1022 = vld [vmem:[#allocation2 + $0x15a] sm:$0xff]
          %v1023 = vld [vmem:[#allocation2 + $0x16a] sm:$0xff]
          %v1024 = vld [vmem:[#allocation2 + $0x172] sm:$0xff]
          %1057 = vrot.lane.b32.xlu0 %v993, 8
          %v1058 = vpop.permute.xlu0 %1057
          %1059 = vrot.lane.b32.xlu0 %v994, 8
          %v1060 = vpop.permute.xlu0 %1059
          %1061 = vrot.lane.b32.xlu0 %v995, 8
          %v1062 = vpop.permute.xlu0 %1061
          %1063 = vrot.lane.b32.xlu0 %v996, 8
          %v1064 = vpop.permute.xlu0 %1063
          %1065 = vrot.lane.b32.xlu0 %v997, 8
          %v1066 = vpop.permute.xlu0 %1065
          %1067 = vrot.lane.b32.xlu0 %v998, 8
          %v1068 = vpop.permute.xlu0 %1067
          %1069 = vrot.lane.b32.xlu0 %v999, 8
          %v1070 = vpop.permute.xlu0 %1069
          %1071 = vrot.lane.b32.xlu0 %v1000, 8
          %v1072 = vpop.permute.xlu0 %1071
          %1073 = vrot.lane.b32.xlu0 %v1001, 8
          %v1074 = vpop.permute.xlu0 %1073
          %1075 = vrot.lane.b32.xlu0 %v1002, 8
          %v1076 = vpop.permute.xlu0 %1075
          %1077 = vrot.lane.b32.xlu0 %v1003, 8
          %v1078 = vpop.permute.xlu0 %1077
          %1079 = vrot.lane.b32.xlu0 %v1004, 8
          %v1080 = vpop.permute.xlu0 %1079
          %1081 = vrot.lane.b32.xlu0 %v1005, 8
          %v1082 = vpop.permute.xlu0 %1081
          %1083 = vrot.lane.b32.xlu0 %v1006, 8
          %v1084 = vpop.permute.xlu0 %1083
          %1085 = vrot.lane.b32.xlu0 %v1007, 8
          %v1086 = vpop.permute.xlu0 %1085
          %1087 = vrot.lane.b32.xlu0 %v1008, 8
          %v1088 = vpop.permute.xlu0 %1087
          %1089 = vrot.lane.b32.xlu0 %v1009, 8
          %v1090 = vpop.permute.xlu0 %1089
          %1091 = vrot.lane.b32.xlu0 %v1010, 8
          %v1092 = vpop.permute.xlu0 %1091
          %1093 = vrot.lane.b32.xlu0 %v1011, 8
          %v1094 = vpop.permute.xlu0 %1093
          %1095 = vrot.lane.b32.xlu0 %v1012, 8
          %v1096 = vpop.permute.xlu0 %1095
          %1097 = vrot.lane.b32.xlu0 %v1013, 8
          %v1098 = vpop.permute.xlu0 %1097
          %1099 = vrot.lane.b32.xlu0 %v1014, 8
          %v1100 = vpop.permute.xlu0 %1099
          %1101 = vrot.lane.b32.xlu0 %v1015, 8
          %v1102 = vpop.permute.xlu0 %1101
          %1103 = vrot.lane.b32.xlu0 %v1016, 8
          %v1104 = vpop.permute.xlu0 %1103
          %1105 = vrot.lane.b32.xlu0 %v1017, 8
          %v1106 = vpop.permute.xlu0 %1105
          %1107 = vrot.lane.b32.xlu0 %v1018, 8
          %v1108 = vpop.permute.xlu0 %1107
          %1109 = vrot.lane.b32.xlu0 %v1019, 8
          %v1110 = vpop.permute.xlu0 %1109
          %1111 = vrot.lane.b32.xlu0 %v1020, 8
          %v1112 = vpop.permute.xlu0 %1111
          %1113 = vrot.lane.b32.xlu0 %v1021, 8
          %v1114 = vpop.permute.xlu0 %1113
          %1115 = vrot.lane.b32.xlu0 %v1022, 8
          %v1116 = vpop.permute.xlu0 %1115
          %1117 = vrot.lane.b32.xlu0 %v1023, 8
          %v1118 = vpop.permute.xlu0 %1117
          %1119 = vrot.lane.b32.xlu0 %v1024, 8
          %v1120 = vpop.permute.xlu0 %1119
          %vm1153 = vcmask 97344
          %1154 = vst.msk [vmem:[#allocation5] sm:$0xff] %vm1153, %v1058
          %1155 = vst.msk [vmem:[#allocation5 + $0x8] sm:$0xff] %vm1153, %v1060
          %1156 = vst.msk [vmem:[#allocation5 + $0x10] sm:$0xff] %vm1153, %v1062
          %1157 = vst.msk [vmem:[#allocation5 + $0x18] sm:$0xff] %vm1153, %v1064
          %1158 = vst.msk [vmem:[#allocation5 + $0x20] sm:$0xff] %vm1153, %v1066
          %1159 = vst.msk [vmem:[#allocation5 + $0x28] sm:$0xff] %vm1153, %v1068
          %1160 = vst.msk [vmem:[#allocation5 + $0x30] sm:$0xff] %vm1153, %v1070
          %1161 = vst.msk [vmem:[#allocation5 + $0x38] sm:$0xff] %vm1153, %v1072
          %1162 = vst.msk [vmem:[#allocation5 + $0x40] sm:$0xff] %vm1153, %v1074
          %1163 = vst.msk [vmem:[#allocation5 + $0x48] sm:$0xff] %vm1153, %v1076
          %1164 = vst.msk [vmem:[#allocation5 + $0x50] sm:$0xff] %vm1153, %v1078
          %1165 = vst.msk [vmem:[#allocation5 + $0x58] sm:$0xff] %vm1153, %v1080
          %1166 = vst.msk [vmem:[#allocation5 + $0x60] sm:$0xff] %vm1153, %v1082
          %1167 = vst.msk [vmem:[#allocation5 + $0x68] sm:$0xff] %vm1153, %v1084
          %1168 = vst.msk [vmem:[#allocation5 + $0x70] sm:$0xff] %vm1153, %v1086
          %1169 = vst.msk [vmem:[#allocation5 + $0x78] sm:$0xff] %vm1153, %v1088
          %1170 = vst.msk [vmem:[#allocation5 + $0x80] sm:$0xff] %vm1153, %v1090
          %1171 = vst.msk [vmem:[#allocation5 + $0x88] sm:$0xff] %vm1153, %v1092
          %1172 = vst.msk [vmem:[#allocation5 + $0x90] sm:$0xff] %vm1153, %v1094
          %1173 = vst.msk [vmem:[#allocation5 + $0x98] sm:$0xff] %vm1153, %v1096
          %1174 = vst.msk [vmem:[#allocation5 + $0xa0] sm:$0xff] %vm1153, %v1098
          %1175 = vst.msk [vmem:[#allocation5 + $0xa8] sm:$0xff] %vm1153, %v1100
          %1176 = vst.msk [vmem:[#allocation5 + $0xb0] sm:$0xff] %vm1153, %v1102
          %1177 = vst.msk [vmem:[#allocation5 + $0xb8] sm:$0xff] %vm1153, %v1104
          %1178 = vst.msk [vmem:[#allocation5 + $0xc0] sm:$0xff] %vm1153, %v1106
          %1179 = vst.msk [vmem:[#allocation5 + $0xc8] sm:$0xff] %vm1153, %v1108
          %1180 = vst.msk [vmem:[#allocation5 + $0xd0] sm:$0xff] %vm1153, %v1110
          %1181 = vst.msk [vmem:[#allocation5 + $0xd8] sm:$0xff] %vm1153, %v1112
          %1182 = vst.msk [vmem:[#allocation5 + $0xe0] sm:$0xff] %vm1153, %v1114
          %1183 = vst.msk [vmem:[#allocation5 + $0xe8] sm:$0xff] %vm1153, %v1116
          %1184 = vst.msk [vmem:[#allocation5 + $0xf0] sm:$0xff] %vm1153, %v1118
          %1185 = vst.msk [vmem:[#allocation5 + $0xf8] sm:$0xff] %vm1153, %v1120
          %s1186 = scalar_lea.vmem [#allocation2], 24
          %v1187 = vld [vmem:[%s1186] sm:$0xff]
          %v1188 = vld [vmem:[%s1186 + $0x8] sm:$0xff]
          %v1189 = vld [vmem:[%s1186 + $0x18] sm:$0xff]
          %v1190 = vld [vmem:[%s1186 + $0x20] sm:$0xff]
          %v1191 = vld [vmem:[%s1186 + $0x30] sm:$0xff]
          %v1192 = vld [vmem:[%s1186 + $0x38] sm:$0xff]
          %v1193 = vld [vmem:[%s1186 + $0x48] sm:$0xff]
          %v1194 = vld [vmem:[%s1186 + $0x50] sm:$0xff]
          %v1195 = vld [vmem:[%s1186 + $0x60] sm:$0xff]
          %v1196 = vld [vmem:[%s1186 + $0x68] sm:$0xff]
          %v1197 = vld [vmem:[%s1186 + $0x78] sm:$0xff]
          %v1198 = vld [vmem:[%s1186 + $0x80] sm:$0xff]
          %v1199 = vld [vmem:[%s1186 + $0x90] sm:$0xff]
          %v1200 = vld [vmem:[%s1186 + $0x98] sm:$0xff]
          %v1201 = vld [vmem:[%s1186 + $0xa8] sm:$0xff]
          %v1202 = vld [vmem:[%s1186 + $0xb0] sm:$0xff]
          %v1203 = vld [vmem:[%s1186 + $0xc0] sm:$0xff]
          %v1204 = vld [vmem:[%s1186 + $0xc8] sm:$0xff]
          %v1205 = vld [vmem:[%s1186 + $0xd8] sm:$0xff]
          %v1206 = vld [vmem:[%s1186 + $0xe0] sm:$0xff]
          %v1207 = vld [vmem:[%s1186 + $0xf0] sm:$0xff]
          %v1208 = vld [vmem:[%s1186 + $0xf8] sm:$0xff]
          %v1209 = vld [vmem:[%s1186 + $0x108] sm:$0xff]
          %v1210 = vld [vmem:[%s1186 + $0x110] sm:$0xff]
          %v1211 = vld [vmem:[%s1186 + $0x120] sm:$0xff]
          %v1212 = vld [vmem:[%s1186 + $0x128] sm:$0xff]
          %v1213 = vld [vmem:[%s1186 + $0x138] sm:$0xff]
          %v1214 = vld [vmem:[%s1186 + $0x140] sm:$0xff]
          %v1215 = vld [vmem:[%s1186 + $0x150] sm:$0xff]
          %v1216 = vld [vmem:[%s1186 + $0x158] sm:$0xff]
          %v1217 = vld [vmem:[%s1186 + $0x168] sm:$0xff]
          %v1218 = vld [vmem:[%s1186 + $0x170] sm:$0xff]
          %1251 = vrot.lane.b32.xlu0 %v1187, 12
          %v1252 = vpop.permute.xlu0 %1251
          %1253 = vrot.lane.b32.xlu0 %v1188, 12
          %v1254 = vpop.permute.xlu0 %1253
          %1255 = vrot.lane.b32.xlu0 %v1189, 12
          %v1256 = vpop.permute.xlu0 %1255
          %1257 = vrot.lane.b32.xlu0 %v1190, 12
          %v1258 = vpop.permute.xlu0 %1257
          %1259 = vrot.lane.b32.xlu0 %v1191, 12
          %v1260 = vpop.permute.xlu0 %1259
          %1261 = vrot.lane.b32.xlu0 %v1192, 12
          %v1262 = vpop.permute.xlu0 %1261
          %1263 = vrot.lane.b32.xlu0 %v1193, 12
          %v1264 = vpop.permute.xlu0 %1263
          %1265 = vrot.lane.b32.xlu0 %v1194, 12
          %v1266 = vpop.permute.xlu0 %1265
          %1267 = vrot.lane.b32.xlu0 %v1195, 12
          %v1268 = vpop.permute.xlu0 %1267
          %1269 = vrot.lane.b32.xlu0 %v1196, 12
          %v1270 = vpop.permute.xlu0 %1269
          %1271 = vrot.lane.b32.xlu0 %v1197, 12
          %v1272 = vpop.permute.xlu0 %1271
          %1273 = vrot.lane.b32.xlu0 %v1198, 12
          %v1274 = vpop.permute.xlu0 %1273
          %1275 = vrot.lane.b32.xlu0 %v1199, 12
          %v1276 = vpop.permute.xlu0 %1275
          %1277 = vrot.lane.b32.xlu0 %v1200, 12
          %v1278 = vpop.permute.xlu0 %1277
          %1279 = vrot.lane.b32.xlu0 %v1201, 12
          %v1280 = vpop.permute.xlu0 %1279
          %1281 = vrot.lane.b32.xlu0 %v1202, 12
          %v1282 = vpop.permute.xlu0 %1281
          %1283 = vrot.lane.b32.xlu0 %v1203, 12
          %v1284 = vpop.permute.xlu0 %1283
          %1285 = vrot.lane.b32.xlu0 %v1204, 12
          %v1286 = vpop.permute.xlu0 %1285
          %1287 = vrot.lane.b32.xlu0 %v1205, 12
          %v1288 = vpop.permute.xlu0 %1287
          %1289 = vrot.lane.b32.xlu0 %v1206, 12
          %v1290 = vpop.permute.xlu0 %1289
          %1291 = vrot.lane.b32.xlu0 %v1207, 12
          %v1292 = vpop.permute.xlu0 %1291
          %1293 = vrot.lane.b32.xlu0 %v1208, 12
          %v1294 = vpop.permute.xlu0 %1293
          %1295 = vrot.lane.b32.xlu0 %v1209, 12
          %v1296 = vpop.permute.xlu0 %1295
          %1297 = vrot.lane.b32.xlu0 %v1210, 12
          %v1298 = vpop.permute.xlu0 %1297
          %1299 = vrot.lane.b32.xlu0 %v1211, 12
          %v1300 = vpop.permute.xlu0 %1299
          %1301 = vrot.lane.b32.xlu0 %v1212, 12
          %v1302 = vpop.permute.xlu0 %1301
          %1303 = vrot.lane.b32.xlu0 %v1213, 12
          %v1304 = vpop.permute.xlu0 %1303
          %1305 = vrot.lane.b32.xlu0 %v1214, 12
          %v1306 = vpop.permute.xlu0 %1305
          %1307 = vrot.lane.b32.xlu0 %v1215, 12
          %v1308 = vpop.permute.xlu0 %1307
          %1309 = vrot.lane.b32.xlu0 %v1216, 12
          %v1310 = vpop.permute.xlu0 %1309
          %1311 = vrot.lane.b32.xlu0 %v1217, 12
          %v1312 = vpop.permute.xlu0 %1311
          %1313 = vrot.lane.b32.xlu0 %v1218, 12
          %v1314 = vpop.permute.xlu0 %1313
          %vm1347 = vcmask 130144
          %1348 = vst.msk [vmem:[#allocation5] sm:$0xff] %vm1347, %v1252
          %1349 = vst.msk [vmem:[#allocation5 + $0x8] sm:$0xff] %vm1347, %v1254
          %1350 = vst.msk [vmem:[#allocation5 + $0x10] sm:$0xff] %vm1347, %v1256
          %1351 = vst.msk [vmem:[#allocation5 + $0x18] sm:$0xff] %vm1347, %v1258
          %1352 = vst.msk [vmem:[#allocation5 + $0x20] sm:$0xff] %vm1347, %v1260
          %1353 = vst.msk [vmem:[#allocation5 + $0x28] sm:$0xff] %vm1347, %v1262
          %1354 = vst.msk [vmem:[#allocation5 + $0x30] sm:$0xff] %vm1347, %v1264
          %1355 = vst.msk [vmem:[#allocation5 + $0x38] sm:$0xff] %vm1347, %v1266
          %1356 = vst.msk [vmem:[#allocation5 + $0x40] sm:$0xff] %vm1347, %v1268
          %1357 = vst.msk [vmem:[#allocation5 + $0x48] sm:$0xff] %vm1347, %v1270
          %1358 = vst.msk [vmem:[#allocation5 + $0x50] sm:$0xff] %vm1347, %v1272
          %1359 = vst.msk [vmem:[#allocation5 + $0x58] sm:$0xff] %vm1347, %v1274
          %1360 = vst.msk [vmem:[#allocation5 + $0x60] sm:$0xff] %vm1347, %v1276
          %1361 = vst.msk [vmem:[#allocation5 + $0x68] sm:$0xff] %vm1347, %v1278
          %1362 = vst.msk [vmem:[#allocation5 + $0x70] sm:$0xff] %vm1347, %v1280
          %1363 = vst.msk [vmem:[#allocation5 + $0x78] sm:$0xff] %vm1347, %v1282
          %1364 = vst.msk [vmem:[#allocation5 + $0x80] sm:$0xff] %vm1347, %v1284
          %1365 = vst.msk [vmem:[#allocation5 + $0x88] sm:$0xff] %vm1347, %v1286
          %1366 = vst.msk [vmem:[#allocation5 + $0x90] sm:$0xff] %vm1347, %v1288
          %1367 = vst.msk [vmem:[#allocation5 + $0x98] sm:$0xff] %vm1347, %v1290
          %1368 = vst.msk [vmem:[#allocation5 + $0xa0] sm:$0xff] %vm1347, %v1292
          %1369 = vst.msk [vmem:[#allocation5 + $0xa8] sm:$0xff] %vm1347, %v1294
          %1370 = vst.msk [vmem:[#allocation5 + $0xb0] sm:$0xff] %vm1347, %v1296
          %1371 = vst.msk [vmem:[#allocation5 + $0xb8] sm:$0xff] %vm1347, %v1298
          %1372 = vst.msk [vmem:[#allocation5 + $0xc0] sm:$0xff] %vm1347, %v1300
          %1373 = vst.msk [vmem:[#allocation5 + $0xc8] sm:$0xff] %vm1347, %v1302
          %1374 = vst.msk [vmem:[#allocation5 + $0xd0] sm:$0xff] %vm1347, %v1304
          %1375 = vst.msk [vmem:[#allocation5 + $0xd8] sm:$0xff] %vm1347, %v1306
          %1376 = vst.msk [vmem:[#allocation5 + $0xe0] sm:$0xff] %vm1347, %v1308
          %1377 = vst.msk [vmem:[#allocation5 + $0xe8] sm:$0xff] %vm1347, %v1310
          %1378 = vst.msk [vmem:[#allocation5 + $0xf0] sm:$0xff] %vm1347, %v1312
          %1379 = vst.msk [vmem:[#allocation5 + $0xf8] sm:$0xff] %vm1347, %v1314
          %v1380 = vld [vmem:[%s1186 + $0x1] sm:$0xff]
          %v1381 = vld [vmem:[%s1186 + $0x9] sm:$0xff]
          %v1382 = vld [vmem:[%s1186 + $0x19] sm:$0xff]
          %v1383 = vld [vmem:[%s1186 + $0x21] sm:$0xff]
          %v1384 = vld [vmem:[%s1186 + $0x31] sm:$0xff]
          %v1385 = vld [vmem:[%s1186 + $0x39] sm:$0xff]
          %v1386 = vld [vmem:[%s1186 + $0x49] sm:$0xff]
          %v1387 = vld [vmem:[%s1186 + $0x51] sm:$0xff]
          %v1388 = vld [vmem:[%s1186 + $0x61] sm:$0xff]
          %v1389 = vld [vmem:[%s1186 + $0x69] sm:$0xff]
          %v1390 = vld [vmem:[%s1186 + $0x79] sm:$0xff]
          %v1391 = vld [vmem:[%s1186 + $0x81] sm:$0xff]
          %v1392 = vld [vmem:[%s1186 + $0x91] sm:$0xff]
          %v1393 = vld [vmem:[%s1186 + $0x99] sm:$0xff]
          %v1394 = vld [vmem:[%s1186 + $0xa9] sm:$0xff]
          %v1395 = vld [vmem:[%s1186 + $0xb1] sm:$0xff]
          %v1396 = vld [vmem:[%s1186 + $0xc1] sm:$0xff]
          %v1397 = vld [vmem:[%s1186 + $0xc9] sm:$0xff]
          %v1398 = vld [vmem:[%s1186 + $0xd9] sm:$0xff]
          %v1399 = vld [vmem:[%s1186 + $0xe1] sm:$0xff]
          %v1400 = vld [vmem:[%s1186 + $0xf1] sm:$0xff]
          %v1401 = vld [vmem:[%s1186 + $0xf9] sm:$0xff]
          %v1402 = vld [vmem:[%s1186 + $0x109] sm:$0xff]
          %v1403 = vld [vmem:[%s1186 + $0x111] sm:$0xff]
          %v1404 = vld [vmem:[%s1186 + $0x121] sm:$0xff]
          %v1405 = vld [vmem:[%s1186 + $0x129] sm:$0xff]
          %v1406 = vld [vmem:[%s1186 + $0x139] sm:$0xff]
          %v1407 = vld [vmem:[%s1186 + $0x141] sm:$0xff]
          %v1408 = vld [vmem:[%s1186 + $0x151] sm:$0xff]
          %v1409 = vld [vmem:[%s1186 + $0x159] sm:$0xff]
          %v1410 = vld [vmem:[%s1186 + $0x169] sm:$0xff]
          %v1411 = vld [vmem:[%s1186 + $0x171] sm:$0xff]
          %1444 = vrot.lane.b32.xlu0 %v1380, 16
          %v1445 = vpop.permute.xlu0 %1444
          %1446 = vrot.lane.b32.xlu0 %v1381, 16
          %v1447 = vpop.permute.xlu0 %1446
          %1448 = vrot.lane.b32.xlu0 %v1382, 16
          %v1449 = vpop.permute.xlu0 %1448
          %1450 = vrot.lane.b32.xlu0 %v1383, 16
          %v1451 = vpop.permute.xlu0 %1450
          %1452 = vrot.lane.b32.xlu0 %v1384, 16
          %v1453 = vpop.permute.xlu0 %1452
          %1454 = vrot.lane.b32.xlu0 %v1385, 16
          %v1455 = vpop.permute.xlu0 %1454
          %1456 = vrot.lane.b32.xlu0 %v1386, 16
          %v1457 = vpop.permute.xlu0 %1456
          %1458 = vrot.lane.b32.xlu0 %v1387, 16
          %v1459 = vpop.permute.xlu0 %1458
          %1460 = vrot.lane.b32.xlu0 %v1388, 16
          %v1461 = vpop.permute.xlu0 %1460
          %1462 = vrot.lane.b32.xlu0 %v1389, 16
          %v1463 = vpop.permute.xlu0 %1462
          %1464 = vrot.lane.b32.xlu0 %v1390, 16
          %v1465 = vpop.permute.xlu0 %1464
          %1466 = vrot.lane.b32.xlu0 %v1391, 16
          %v1467 = vpop.permute.xlu0 %1466
          %1468 = vrot.lane.b32.xlu0 %v1392, 16
          %v1469 = vpop.permute.xlu0 %1468
          %1470 = vrot.lane.b32.xlu0 %v1393, 16
          %v1471 = vpop.permute.xlu0 %1470
          %1472 = vrot.lane.b32.xlu0 %v1394, 16
          %v1473 = vpop.permute.xlu0 %1472
          %1474 = vrot.lane.b32.xlu0 %v1395, 16
          %v1475 = vpop.permute.xlu0 %1474
          %1476 = vrot.lane.b32.xlu0 %v1396, 16
          %v1477 = vpop.permute.xlu0 %1476
          %1478 = vrot.lane.b32.xlu0 %v1397, 16
          %v1479 = vpop.permute.xlu0 %1478
          %1480 = vrot.lane.b32.xlu0 %v1398, 16
          %v1481 = vpop.permute.xlu0 %1480
          %1482 = vrot.lane.b32.xlu0 %v1399, 16
          %v1483 = vpop.permute.xlu0 %1482
          %1484 = vrot.lane.b32.xlu0 %v1400, 16
          %v1485 = vpop.permute.xlu0 %1484
          %1486 = vrot.lane.b32.xlu0 %v1401, 16
          %v1487 = vpop.permute.xlu0 %1486
          %1488 = vrot.lane.b32.xlu0 %v1402, 16
          %v1489 = vpop.permute.xlu0 %1488
          %1490 = vrot.lane.b32.xlu0 %v1403, 16
          %v1491 = vpop.permute.xlu0 %1490
          %1492 = vrot.lane.b32.xlu0 %v1404, 16
          %v1493 = vpop.permute.xlu0 %1492
          %1494 = vrot.lane.b32.xlu0 %v1405, 16
          %v1495 = vpop.permute.xlu0 %1494
          %1496 = vrot.lane.b32.xlu0 %v1406, 16
          %v1497 = vpop.permute.xlu0 %1496
          %1498 = vrot.lane.b32.xlu0 %v1407, 16
          %v1499 = vpop.permute.xlu0 %1498
          %1500 = vrot.lane.b32.xlu0 %v1408, 16
          %v1501 = vpop.permute.xlu0 %1500
          %1502 = vrot.lane.b32.xlu0 %v1409, 16
          %v1503 = vpop.permute.xlu0 %1502
          %1504 = vrot.lane.b32.xlu0 %v1410, 16
          %v1505 = vpop.permute.xlu0 %1504
          %1506 = vrot.lane.b32.xlu0 %v1411, 16
          %v1507 = vpop.permute.xlu0 %1506
          %vm1540 = vcmask 162944
          %1541 = vst.msk [vmem:[#allocation5] sm:$0xff] %vm1540, %v1445
          %1542 = vst.msk [vmem:[#allocation5 + $0x8] sm:$0xff] %vm1540, %v1447
          %1543 = vst.msk [vmem:[#allocation5 + $0x10] sm:$0xff] %vm1540, %v1449
          %1544 = vst.msk [vmem:[#allocation5 + $0x18] sm:$0xff] %vm1540, %v1451
          %1545 = vst.msk [vmem:[#allocation5 + $0x20] sm:$0xff] %vm1540, %v1453
          %1546 = vst.msk [vmem:[#allocation5 + $0x28] sm:$0xff] %vm1540, %v1455
          %1547 = vst.msk [vmem:[#allocation5 + $0x30] sm:$0xff] %vm1540, %v1457
          %1548 = vst.msk [vmem:[#allocation5 + $0x38] sm:$0xff] %vm1540, %v1459
          %1549 = vst.msk [vmem:[#allocation5 + $0x40] sm:$0xff] %vm1540, %v1461
          %1550 = vst.msk [vmem:[#allocation5 + $0x48] sm:$0xff] %vm1540, %v1463
          %1551 = vst.msk [vmem:[#allocation5 + $0x50] sm:$0xff] %vm1540, %v1465
          %1552 = vst.msk [vmem:[#allocation5 + $0x58] sm:$0xff] %vm1540, %v1467
          %1553 = vst.msk [vmem:[#allocation5 + $0x60] sm:$0xff] %vm1540, %v1469
          %1554 = vst.msk [vmem:[#allocation5 + $0x68] sm:$0xff] %vm1540, %v1471
          %1555 = vst.msk [vmem:[#allocation5 + $0x70] sm:$0xff] %vm1540, %v1473
          %1556 = vst.msk [vmem:[#allocation5 + $0x78] sm:$0xff] %vm1540, %v1475
          %1557 = vst.msk [vmem:[#allocation5 + $0x80] sm:$0xff] %vm1540, %v1477
          %1558 = vst.msk [vmem:[#allocation5 + $0x88] sm:$0xff] %vm1540, %v1479
          %1559 = vst.msk [vmem:[#allocation5 + $0x90] sm:$0xff] %vm1540, %v1481
          %1560 = vst.msk [vmem:[#allocation5 + $0x98] sm:$0xff] %vm1540, %v1483
          %1561 = vst.msk [vmem:[#allocation5 + $0xa0] sm:$0xff] %vm1540, %v1485
          %1562 = vst.msk [vmem:[#allocation5 + $0xa8] sm:$0xff] %vm1540, %v1487
          %1563 = vst.msk [vmem:[#allocation5 + $0xb0] sm:$0xff] %vm1540, %v1489
          %1564 = vst.msk [vmem:[#allocation5 + $0xb8] sm:$0xff] %vm1540, %v1491
          %1565 = vst.msk [vmem:[#allocation5 + $0xc0] sm:$0xff] %vm1540, %v1493
          %1566 = vst.msk [vmem:[#allocation5 + $0xc8] sm:$0xff] %vm1540, %v1495
          %1567 = vst.msk [vmem:[#allocation5 + $0xd0] sm:$0xff] %vm1540, %v1497
          %1568 = vst.msk [vmem:[#allocation5 + $0xd8] sm:$0xff] %vm1540, %v1499
          %1569 = vst.msk [vmem:[#allocation5 + $0xe0] sm:$0xff] %vm1540, %v1501
          %1570 = vst.msk [vmem:[#allocation5 + $0xe8] sm:$0xff] %vm1540, %v1503
          %1571 = vst.msk [vmem:[#allocation5 + $0xf0] sm:$0xff] %vm1540, %v1505
          %1572 = vst.msk [vmem:[#allocation5 + $0xf8] sm:$0xff] %vm1540, %v1507
          %v1573 = vld [vmem:[%s1186 + $0x2] sm:$0xff]
          %v1574 = vld [vmem:[%s1186 + $0xa] sm:$0xff]
          %v1575 = vld [vmem:[%s1186 + $0x1a] sm:$0xff]
          %v1576 = vld [vmem:[%s1186 + $0x22] sm:$0xff]
          %v1577 = vld [vmem:[%s1186 + $0x32] sm:$0xff]
          %v1578 = vld [vmem:[%s1186 + $0x3a] sm:$0xff]
          %v1579 = vld [vmem:[%s1186 + $0x4a] sm:$0xff]
          %v1580 = vld [vmem:[%s1186 + $0x52] sm:$0xff]
          %v1581 = vld [vmem:[%s1186 + $0x62] sm:$0xff]
          %v1582 = vld [vmem:[%s1186 + $0x6a] sm:$0xff]
          %v1583 = vld [vmem:[%s1186 + $0x7a] sm:$0xff]
          %v1584 = vld [vmem:[%s1186 + $0x82] sm:$0xff]
          %v1585 = vld [vmem:[%s1186 + $0x92] sm:$0xff]
          %v1586 = vld [vmem:[%s1186 + $0x9a] sm:$0xff]
          %v1587 = vld [vmem:[%s1186 + $0xaa] sm:$0xff]
          %v1588 = vld [vmem:[%s1186 + $0xb2] sm:$0xff]
          %v1589 = vld [vmem:[%s1186 + $0xc2] sm:$0xff]
          %v1590 = vld [vmem:[%s1186 + $0xca] sm:$0xff]
          %v1591 = vld [vmem:[%s1186 + $0xda] sm:$0xff]
          %v1592 = vld [vmem:[%s1186 + $0xe2] sm:$0xff]
          %v1593 = vld [vmem:[%s1186 + $0xf2] sm:$0xff]
          %v1594 = vld [vmem:[%s1186 + $0xfa] sm:$0xff]
          %v1595 = vld [vmem:[%s1186 + $0x10a] sm:$0xff]
          %v1596 = vld [vmem:[%s1186 + $0x112] sm:$0xff]
          %v1597 = vld [vmem:[%s1186 + $0x122] sm:$0xff]
          %v1598 = vld [vmem:[%s1186 + $0x12a] sm:$0xff]
          %v1599 = vld [vmem:[%s1186 + $0x13a] sm:$0xff]
          %v1600 = vld [vmem:[%s1186 + $0x142] sm:$0xff]
          %v1601 = vld [vmem:[%s1186 + $0x152] sm:$0xff]
          %v1602 = vld [vmem:[%s1186 + $0x15a] sm:$0xff]
          %v1603 = vld [vmem:[%s1186 + $0x16a] sm:$0xff]
          %v1604 = vld [vmem:[%s1186 + $0x172] sm:$0xff]
          %1637 = vrot.lane.b32.xlu0 %v1573, 20
          %v1638 = vpop.permute.xlu0 %1637
          %1639 = vrot.lane.b32.xlu0 %v1574, 20
          %v1640 = vpop.permute.xlu0 %1639
          %1641 = vrot.lane.b32.xlu0 %v1575, 20
          %v1642 = vpop.permute.xlu0 %1641
          %1643 = vrot.lane.b32.xlu0 %v1576, 20
          %v1644 = vpop.permute.xlu0 %1643
          %1645 = vrot.lane.b32.xlu0 %v1577, 20
          %v1646 = vpop.permute.xlu0 %1645
          %1647 = vrot.lane.b32.xlu0 %v1578, 20
          %v1648 = vpop.permute.xlu0 %1647
          %1649 = vrot.lane.b32.xlu0 %v1579, 20
          %v1650 = vpop.permute.xlu0 %1649
          %1651 = vrot.lane.b32.xlu0 %v1580, 20
          %v1652 = vpop.permute.xlu0 %1651
          %1653 = vrot.lane.b32.xlu0 %v1581, 20
          %v1654 = vpop.permute.xlu0 %1653
          %1655 = vrot.lane.b32.xlu0 %v1582, 20
          %v1656 = vpop.permute.xlu0 %1655
          %1657 = vrot.lane.b32.xlu0 %v1583, 20
          %v1658 = vpop.permute.xlu0 %1657
          %1659 = vrot.lane.b32.xlu0 %v1584, 20
          %v1660 = vpop.permute.xlu0 %1659
          %1661 = vrot.lane.b32.xlu0 %v1585, 20
          %v1662 = vpop.permute.xlu0 %1661
          %1663 = vrot.lane.b32.xlu0 %v1586, 20
          %v1664 = vpop.permute.xlu0 %1663
          %1665 = vrot.lane.b32.xlu0 %v1587, 20
          %v1666 = vpop.permute.xlu0 %1665
          %1667 = vrot.lane.b32.xlu0 %v1588, 20
          %v1668 = vpop.permute.xlu0 %1667
          %1669 = vrot.lane.b32.xlu0 %v1589, 20
          %v1670 = vpop.permute.xlu0 %1669
          %1671 = vrot.lane.b32.xlu0 %v1590, 20
          %v1672 = vpop.permute.xlu0 %1671
          %1673 = vrot.lane.b32.xlu0 %v1591, 20
          %v1674 = vpop.permute.xlu0 %1673
          %1675 = vrot.lane.b32.xlu0 %v1592, 20
          %v1676 = vpop.permute.xlu0 %1675
          %1677 = vrot.lane.b32.xlu0 %v1593, 20
          %v1678 = vpop.permute.xlu0 %1677
          %1679 = vrot.lane.b32.xlu0 %v1594, 20
          %v1680 = vpop.permute.xlu0 %1679
          %1681 = vrot.lane.b32.xlu0 %v1595, 20
          %v1682 = vpop.permute.xlu0 %1681
          %1683 = vrot.lane.b32.xlu0 %v1596, 20
          %v1684 = vpop.permute.xlu0 %1683
          %1685 = vrot.lane.b32.xlu0 %v1597, 20
          %v1686 = vpop.permute.xlu0 %1685
          %1687 = vrot.lane.b32.xlu0 %v1598, 20
          %v1688 = vpop.permute.xlu0 %1687
          %1689 = vrot.lane.b32.xlu0 %v1599, 20
          %v1690 = vpop.permute.xlu0 %1689
          %1691 = vrot.lane.b32.xlu0 %v1600, 20
          %v1692 = vpop.permute.xlu0 %1691
          %1693 = vrot.lane.b32.xlu0 %v1601, 20
          %v1694 = vpop.permute.xlu0 %1693
          %1695 = vrot.lane.b32.xlu0 %v1602, 20
          %v1696 = vpop.permute.xlu0 %1695
          %1697 = vrot.lane.b32.xlu0 %v1603, 20
          %v1698 = vpop.permute.xlu0 %1697
          %1699 = vrot.lane.b32.xlu0 %v1604, 20
          %v1700 = vpop.permute.xlu0 %1699
          %vm1733 = vcmask 195744
          %1734 = vst.msk [vmem:[#allocation5] sm:$0xff] %vm1733, %v1638
          %1735 = vst.msk [vmem:[#allocation5 + $0x8] sm:$0xff] %vm1733, %v1640
          %1736 = vst.msk [vmem:[#allocation5 + $0x10] sm:$0xff] %vm1733, %v1642
          %1737 = vst.msk [vmem:[#allocation5 + $0x18] sm:$0xff] %vm1733, %v1644
          %1738 = vst.msk [vmem:[#allocation5 + $0x20] sm:$0xff] %vm1733, %v1646
          %1739 = vst.msk [vmem:[#allocation5 + $0x28] sm:$0xff] %vm1733, %v1648
          %1740 = vst.msk [vmem:[#allocation5 + $0x30] sm:$0xff] %vm1733, %v1650
          %1741 = vst.msk [vmem:[#allocation5 + $0x38] sm:$0xff] %vm1733, %v1652
          %1742 = vst.msk [vmem:[#allocation5 + $0x40] sm:$0xff] %vm1733, %v1654
          %1743 = vst.msk [vmem:[#allocation5 + $0x48] sm:$0xff] %vm1733, %v1656
          %1744 = vst.msk [vmem:[#allocation5 + $0x50] sm:$0xff] %vm1733, %v1658
          %1745 = vst.msk [vmem:[#allocation5 + $0x58] sm:$0xff] %vm1733, %v1660
          %1746 = vst.msk [vmem:[#allocation5 + $0x60] sm:$0xff] %vm1733, %v1662
          %1747 = vst.msk [vmem:[#allocation5 + $0x68] sm:$0xff] %vm1733, %v1664
          %1748 = vst.msk [vmem:[#allocation5 + $0x70] sm:$0xff] %vm1733, %v1666
          %1749 = vst.msk [vmem:[#allocation5 + $0x78] sm:$0xff] %vm1733, %v1668
          %1750 = vst.msk [vmem:[#allocation5 + $0x80] sm:$0xff] %vm1733, %v1670
          %1751 = vst.msk [vmem:[#allocation5 + $0x88] sm:$0xff] %vm1733, %v1672
          %1752 = vst.msk [vmem:[#allocation5 + $0x90] sm:$0xff] %vm1733, %v1674
          %1753 = vst.msk [vmem:[#allocation5 + $0x98] sm:$0xff] %vm1733, %v1676
          %1754 = vst.msk [vmem:[#allocation5 + $0xa0] sm:$0xff] %vm1733, %v1678
          %1755 = vst.msk [vmem:[#allocation5 + $0xa8] sm:$0xff] %vm1733, %v1680
          %1756 = vst.msk [vmem:[#allocation5 + $0xb0] sm:$0xff] %vm1733, %v1682
          %1757 = vst.msk [vmem:[#allocation5 + $0xb8] sm:$0xff] %vm1733, %v1684
          %1758 = vst.msk [vmem:[#allocation5 + $0xc0] sm:$0xff] %vm1733, %v1686
          %1759 = vst.msk [vmem:[#allocation5 + $0xc8] sm:$0xff] %vm1733, %v1688
          %1760 = vst.msk [vmem:[#allocation5 + $0xd0] sm:$0xff] %vm1733, %v1690
          %1761 = vst.msk [vmem:[#allocation5 + $0xd8] sm:$0xff] %vm1733, %v1692
          %1762 = vst.msk [vmem:[#allocation5 + $0xe0] sm:$0xff] %vm1733, %v1694
          %1763 = vst.msk [vmem:[#allocation5 + $0xe8] sm:$0xff] %vm1733, %v1696
          %1764 = vst.msk [vmem:[#allocation5 + $0xf0] sm:$0xff] %vm1733, %v1698
          %1765 = vst.msk [vmem:[#allocation5 + $0xf8] sm:$0xff] %vm1733, %v1700
          %s1766 = scalar_lea.vmem [#allocation2], 48
          %v1767 = vld [vmem:[%s1766] sm:$0xff]
          %v1768 = vld [vmem:[%s1766 + $0x8] sm:$0xff]
          %v1769 = vld [vmem:[%s1766 + $0x18] sm:$0xff]
          %v1770 = vld [vmem:[%s1766 + $0x20] sm:$0xff]
          %v1771 = vld [vmem:[%s1766 + $0x30] sm:$0xff]
          %v1772 = vld [vmem:[%s1766 + $0x38] sm:$0xff]
          %v1773 = vld [vmem:[%s1766 + $0x48] sm:$0xff]
          %v1774 = vld [vmem:[%s1766 + $0x50] sm:$0xff]
          %v1775 = vld [vmem:[%s1766 + $0x60] sm:$0xff]
          %v1776 = vld [vmem:[%s1766 + $0x68] sm:$0xff]
          %v1777 = vld [vmem:[%s1766 + $0x78] sm:$0xff]
          %v1778 = vld [vmem:[%s1766 + $0x80] sm:$0xff]
          %v1779 = vld [vmem:[%s1766 + $0x90] sm:$0xff]
          %v1780 = vld [vmem:[%s1766 + $0x98] sm:$0xff]
          %v1781 = vld [vmem:[%s1766 + $0xa8] sm:$0xff]
          %v1782 = vld [vmem:[%s1766 + $0xb0] sm:$0xff]
          %v1783 = vld [vmem:[%s1766 + $0xc0] sm:$0xff]
          %v1784 = vld [vmem:[%s1766 + $0xc8] sm:$0xff]
          %v1785 = vld [vmem:[%s1766 + $0xd8] sm:$0xff]
          %v1786 = vld [vmem:[%s1766 + $0xe0] sm:$0xff]
          %v1787 = vld [vmem:[%s1766 + $0xf0] sm:$0xff]
          %v1788 = vld [vmem:[%s1766 + $0xf8] sm:$0xff]
          %v1789 = vld [vmem:[%s1766 + $0x108] sm:$0xff]
          %v1790 = vld [vmem:[%s1766 + $0x110] sm:$0xff]
          %v1791 = vld [vmem:[%s1766 + $0x120] sm:$0xff]
          %v1792 = vld [vmem:[%s1766 + $0x128] sm:$0xff]
          %v1793 = vld [vmem:[%s1766 + $0x138] sm:$0xff]
          %v1794 = vld [vmem:[%s1766 + $0x140] sm:$0xff]
          %v1795 = vld [vmem:[%s1766 + $0x150] sm:$0xff]
          %v1796 = vld [vmem:[%s1766 + $0x158] sm:$0xff]
          %v1797 = vld [vmem:[%s1766 + $0x168] sm:$0xff]
          %v1798 = vld [vmem:[%s1766 + $0x170] sm:$0xff]
          %1831 = vrot.lane.b32.xlu0 %v1767, 24
          %v1832 = vpop.permute.xlu0 %1831
          %1833 = vrot.lane.b32.xlu0 %v1768, 24
          %v1834 = vpop.permute.xlu0 %1833
          %1835 = vrot.lane.b32.xlu0 %v1769, 24
          %v1836 = vpop.permute.xlu0 %1835
          %1837 = vrot.lane.b32.xlu0 %v1770, 24
          %v1838 = vpop.permute.xlu0 %1837
          %1839 = vrot.lane.b32.xlu0 %v1771, 24
          %v1840 = vpop.permute.xlu0 %1839
          %1841 = vrot.lane.b32.xlu0 %v1772, 24
          %v1842 = vpop.permute.xlu0 %1841
          %1843 = vrot.lane.b32.xlu0 %v1773, 24
          %v1844 = vpop.permute.xlu0 %1843
          %1845 = vrot.lane.b32.xlu0 %v1774, 24
          %v1846 = vpop.permute.xlu0 %1845
          %1847 = vrot.lane.b32.xlu0 %v1775, 24
          %v1848 = vpop.permute.xlu0 %1847
          %1849 = vrot.lane.b32.xlu0 %v1776, 24
          %v1850 = vpop.permute.xlu0 %1849
          %1851 = vrot.lane.b32.xlu0 %v1777, 24
          %v1852 = vpop.permute.xlu0 %1851
          %1853 = vrot.lane.b32.xlu0 %v1778, 24
          %v1854 = vpop.permute.xlu0 %1853
          %1855 = vrot.lane.b32.xlu0 %v1779, 24
          %v1856 = vpop.permute.xlu0 %1855
          %1857 = vrot.lane.b32.xlu0 %v1780, 24
          %v1858 = vpop.permute.xlu0 %1857
          %1859 = vrot.lane.b32.xlu0 %v1781, 24
          %v1860 = vpop.permute.xlu0 %1859
          %1861 = vrot.lane.b32.xlu0 %v1782, 24
          %v1862 = vpop.permute.xlu0 %1861
          %1863 = vrot.lane.b32.xlu0 %v1783, 24
          %v1864 = vpop.permute.xlu0 %1863
          %1865 = vrot.lane.b32.xlu0 %v1784, 24
          %v1866 = vpop.permute.xlu0 %1865
          %1867 = vrot.lane.b32.xlu0 %v1785, 24
          %v1868 = vpop.permute.xlu0 %1867
          %1869 = vrot.lane.b32.xlu0 %v1786, 24
          %v1870 = vpop.permute.xlu0 %1869
          %1871 = vrot.lane.b32.xlu0 %v1787, 24
          %v1872 = vpop.permute.xlu0 %1871
          %1873 = vrot.lane.b32.xlu0 %v1788, 24
          %v1874 = vpop.permute.xlu0 %1873
          %1875 = vrot.lane.b32.xlu0 %v1789, 24
          %v1876 = vpop.permute.xlu0 %1875
          %1877 = vrot.lane.b32.xlu0 %v1790, 24
          %v1878 = vpop.permute.xlu0 %1877
          %1879 = vrot.lane.b32.xlu0 %v1791, 24
          %v1880 = vpop.permute.xlu0 %1879
          %1881 = vrot.lane.b32.xlu0 %v1792, 24
          %v1882 = vpop.permute.xlu0 %1881
          %1883 = vrot.lane.b32.xlu0 %v1793, 24
          %v1884 = vpop.permute.xlu0 %1883
          %1885 = vrot.lane.b32.xlu0 %v1794, 24
          %v1886 = vpop.permute.xlu0 %1885
          %1887 = vrot.lane.b32.xlu0 %v1795, 24
          %v1888 = vpop.permute.xlu0 %1887
          %1889 = vrot.lane.b32.xlu0 %v1796, 24
          %v1890 = vpop.permute.xlu0 %1889
          %1891 = vrot.lane.b32.xlu0 %v1797, 24
          %v1892 = vpop.permute.xlu0 %1891
          %1893 = vrot.lane.b32.xlu0 %v1798, 24
          %v1894 = vpop.permute.xlu0 %1893
          %vm1927 = vcmask 228544
          %1928 = vst.msk [vmem:[#allocation5] sm:$0xff] %vm1927, %v1832
          %1929 = vst.msk [vmem:[#allocation5 + $0x8] sm:$0xff] %vm1927, %v1834
          %1930 = vst.msk [vmem:[#allocation5 + $0x10] sm:$0xff] %vm1927, %v1836
          %1931 = vst.msk [vmem:[#allocation5 + $0x18] sm:$0xff] %vm1927, %v1838
          %1932 = vst.msk [vmem:[#allocation5 + $0x20] sm:$0xff] %vm1927, %v1840
          %1933 = vst.msk [vmem:[#allocation5 + $0x28] sm:$0xff] %vm1927, %v1842
          %1934 = vst.msk [vmem:[#allocation5 + $0x30] sm:$0xff] %vm1927, %v1844
          %1935 = vst.msk [vmem:[#allocation5 + $0x38] sm:$0xff] %vm1927, %v1846
          %1936 = vst.msk [vmem:[#allocation5 + $0x40] sm:$0xff] %vm1927, %v1848
          %1937 = vst.msk [vmem:[#allocation5 + $0x48] sm:$0xff] %vm1927, %v1850
          %1938 = vst.msk [vmem:[#allocation5 + $0x50] sm:$0xff] %vm1927, %v1852
          %1939 = vst.msk [vmem:[#allocation5 + $0x58] sm:$0xff] %vm1927, %v1854
          %1940 = vst.msk [vmem:[#allocation5 + $0x60] sm:$0xff] %vm1927, %v1856
          %1941 = vst.msk [vmem:[#allocation5 + $0x68] sm:$0xff] %vm1927, %v1858
          %1942 = vst.msk [vmem:[#allocation5 + $0x70] sm:$0xff] %vm1927, %v1860
          %1943 = vst.msk [vmem:[#allocation5 + $0x78] sm:$0xff] %vm1927, %v1862
          %1944 = vst.msk [vmem:[#allocation5 + $0x80] sm:$0xff] %vm1927, %v1864
          %1945 = vst.msk [vmem:[#allocation5 + $0x88] sm:$0xff] %vm1927, %v1866
          %1946 = vst.msk [vmem:[#allocation5 + $0x90] sm:$0xff] %vm1927, %v1868
          %1947 = vst.msk [vmem:[#allocation5 + $0x98] sm:$0xff] %vm1927, %v1870
          %1948 = vst.msk [vmem:[#allocation5 + $0xa0] sm:$0xff] %vm1927, %v1872
          %1949 = vst.msk [vmem:[#allocation5 + $0xa8] sm:$0xff] %vm1927, %v1874
          %1950 = vst.msk [vmem:[#allocation5 + $0xb0] sm:$0xff] %vm1927, %v1876
          %1951 = vst.msk [vmem:[#allocation5 + $0xb8] sm:$0xff] %vm1927, %v1878
          %1952 = vst.msk [vmem:[#allocation5 + $0xc0] sm:$0xff] %vm1927, %v1880
          %1953 = vst.msk [vmem:[#allocation5 + $0xc8] sm:$0xff] %vm1927, %v1882
          %1954 = vst.msk [vmem:[#allocation5 + $0xd0] sm:$0xff] %vm1927, %v1884
          %1955 = vst.msk [vmem:[#allocation5 + $0xd8] sm:$0xff] %vm1927, %v1886
          %1956 = vst.msk [vmem:[#allocation5 + $0xe0] sm:$0xff] %vm1927, %v1888
          %1957 = vst.msk [vmem:[#allocation5 + $0xe8] sm:$0xff] %vm1927, %v1890
          %1958 = vst.msk [vmem:[#allocation5 + $0xf0] sm:$0xff] %vm1927, %v1892
          %1959 = vst.msk [vmem:[#allocation5 + $0xf8] sm:$0xff] %vm1927, %v1894
          %v1960 = vld [vmem:[%s1766 + $0x1] sm:$0xff]
          %v1961 = vld [vmem:[%s1766 + $0x9] sm:$0xff]
          %v1962 = vld [vmem:[%s1766 + $0x19] sm:$0xff]
          %v1963 = vld [vmem:[%s1766 + $0x21] sm:$0xff]
          %v1964 = vld [vmem:[%s1766 + $0x31] sm:$0xff]
          %v1965 = vld [vmem:[%s1766 + $0x39] sm:$0xff]
          %v1966 = vld [vmem:[%s1766 + $0x49] sm:$0xff]
          %v1967 = vld [vmem:[%s1766 + $0x51] sm:$0xff]
          %v1968 = vld [vmem:[%s1766 + $0x61] sm:$0xff]
          %v1969 = vld [vmem:[%s1766 + $0x69] sm:$0xff]
          %v1970 = vld [vmem:[%s1766 + $0x79] sm:$0xff]
          %v1971 = vld [vmem:[%s1766 + $0x81] sm:$0xff]
          %v1972 = vld [vmem:[%s1766 + $0x91] sm:$0xff]
          %v1973 = vld [vmem:[%s1766 + $0x99] sm:$0xff]
          %v1974 = vld [vmem:[%s1766 + $0xa9] sm:$0xff]
          %v1975 = vld [vmem:[%s1766 + $0xb1] sm:$0xff]
          %v1976 = vld [vmem:[%s1766 + $0xc1] sm:$0xff]
          %v1977 = vld [vmem:[%s1766 + $0xc9] sm:$0xff]
          %v1978 = vld [vmem:[%s1766 + $0xd9] sm:$0xff]
          %v1979 = vld [vmem:[%s1766 + $0xe1] sm:$0xff]
          %v1980 = vld [vmem:[%s1766 + $0xf1] sm:$0xff]
          %v1981 = vld [vmem:[%s1766 + $0xf9] sm:$0xff]
          %v1982 = vld [vmem:[%s1766 + $0x109] sm:$0xff]
          %v1983 = vld [vmem:[%s1766 + $0x111] sm:$0xff]
          %v1984 = vld [vmem:[%s1766 + $0x121] sm:$0xff]
          %v1985 = vld [vmem:[%s1766 + $0x129] sm:$0xff]
          %v1986 = vld [vmem:[%s1766 + $0x139] sm:$0xff]
          %v1987 = vld [vmem:[%s1766 + $0x141] sm:$0xff]
          %v1988 = vld [vmem:[%s1766 + $0x151] sm:$0xff]
          %v1989 = vld [vmem:[%s1766 + $0x159] sm:$0xff]
          %v1990 = vld [vmem:[%s1766 + $0x169] sm:$0xff]
          %v1991 = vld [vmem:[%s1766 + $0x171] sm:$0xff]
          %2024 = vrot.lane.b32.xlu0 %v1960, 28
          %v2025 = vpop.permute.xlu0 %2024
          %2026 = vrot.lane.b32.xlu0 %v1961, 28
          %v2027 = vpop.permute.xlu0 %2026
          %2028 = vrot.lane.b32.xlu0 %v1962, 28
          %v2029 = vpop.permute.xlu0 %2028
          %2030 = vrot.lane.b32.xlu0 %v1963, 28
          %v2031 = vpop.permute.xlu0 %2030
          %2032 = vrot.lane.b32.xlu0 %v1964, 28
          %v2033 = vpop.permute.xlu0 %2032
          %2034 = vrot.lane.b32.xlu0 %v1965, 28
          %v2035 = vpop.permute.xlu0 %2034
          %2036 = vrot.lane.b32.xlu0 %v1966, 28
          %v2037 = vpop.permute.xlu0 %2036
          %2038 = vrot.lane.b32.xlu0 %v1967, 28
          %v2039 = vpop.permute.xlu0 %2038
          %2040 = vrot.lane.b32.xlu0 %v1968, 28
          %v2041 = vpop.permute.xlu0 %2040
          %2042 = vrot.lane.b32.xlu0 %v1969, 28
          %v2043 = vpop.permute.xlu0 %2042
          %2044 = vrot.lane.b32.xlu0 %v1970, 28
          %v2045 = vpop.permute.xlu0 %2044
          %2046 = vrot.lane.b32.xlu0 %v1971, 28
          %v2047 = vpop.permute.xlu0 %2046
          %2048 = vrot.lane.b32.xlu0 %v1972, 28
          %v2049 = vpop.permute.xlu0 %2048
          %2050 = vrot.lane.b32.xlu0 %v1973, 28
          %v2051 = vpop.permute.xlu0 %2050
          %2052 = vrot.lane.b32.xlu0 %v1974, 28
          %v2053 = vpop.permute.xlu0 %2052
          %2054 = vrot.lane.b32.xlu0 %v1975, 28
          %v2055 = vpop.permute.xlu0 %2054
          %2056 = vrot.lane.b32.xlu0 %v1976, 28
          %v2057 = vpop.permute.xlu0 %2056
          %2058 = vrot.lane.b32.xlu0 %v1977, 28
          %v2059 = vpop.permute.xlu0 %2058
          %2060 = vrot.lane.b32.xlu0 %v1978, 28
          %v2061 = vpop.permute.xlu0 %2060
          %2062 = vrot.lane.b32.xlu0 %v1979, 28
          %v2063 = vpop.permute.xlu0 %2062
          %2064 = vrot.lane.b32.xlu0 %v1980, 28
          %v2065 = vpop.permute.xlu0 %2064
          %2066 = vrot.lane.b32.xlu0 %v1981, 28
          %v2067 = vpop.permute.xlu0 %2066
          %2068 = vrot.lane.b32.xlu0 %v1982, 28
          %v2069 = vpop.permute.xlu0 %2068
          %2070 = vrot.lane.b32.xlu0 %v1983, 28
          %v2071 = vpop.permute.xlu0 %2070
          %2072 = vrot.lane.b32.xlu0 %v1984, 28
          %v2073 = vpop.permute.xlu0 %2072
          %2074 = vrot.lane.b32.xlu0 %v1985, 28
          %v2075 = vpop.permute.xlu0 %2074
          %2076 = vrot.lane.b32.xlu0 %v1986, 28
          %v2077 = vpop.permute.xlu0 %2076
          %2078 = vrot.lane.b32.xlu0 %v1987, 28
          %v2079 = vpop.permute.xlu0 %2078
          %2080 = vrot.lane.b32.xlu0 %v1988, 28
          %v2081 = vpop.permute.xlu0 %2080
          %2082 = vrot.lane.b32.xlu0 %v1989, 28
          %v2083 = vpop.permute.xlu0 %2082
          %2084 = vrot.lane.b32.xlu0 %v1990, 28
          %v2085 = vpop.permute.xlu0 %2084
          %2086 = vrot.lane.b32.xlu0 %v1991, 28
          %v2087 = vpop.permute.xlu0 %2086
          %vm2120 = vcmask 261344
          %2121 = vst.msk [vmem:[#allocation5] sm:$0xff] %vm2120, %v2025
          %2122 = vst.msk [vmem:[#allocation5 + $0x8] sm:$0xff] %vm2120, %v2027
          %2123 = vst.msk [vmem:[#allocation5 + $0x10] sm:$0xff] %vm2120, %v2029
          %2124 = vst.msk [vmem:[#allocation5 + $0x18] sm:$0xff] %vm2120, %v2031
          %2125 = vst.msk [vmem:[#allocation5 + $0x20] sm:$0xff] %vm2120, %v2033
          %2126 = vst.msk [vmem:[#allocation5 + $0x28] sm:$0xff] %vm2120, %v2035
          %2127 = vst.msk [vmem:[#allocation5 + $0x30] sm:$0xff] %vm2120, %v2037
          %2128 = vst.msk [vmem:[#allocation5 + $0x38] sm:$0xff] %vm2120, %v2039
          %2129 = vst.msk [vmem:[#allocation5 + $0x40] sm:$0xff] %vm2120, %v2041
          %2130 = vst.msk [vmem:[#allocation5 + $0x48] sm:$0xff] %vm2120, %v2043
          %2131 = vst.msk [vmem:[#allocation5 + $0x50] sm:$0xff] %vm2120, %v2045
          %2132 = vst.msk [vmem:[#allocation5 + $0x58] sm:$0xff] %vm2120, %v2047
          %2133 = vst.msk [vmem:[#allocation5 + $0x60] sm:$0xff] %vm2120, %v2049
          %2134 = vst.msk [vmem:[#allocation5 + $0x68] sm:$0xff] %vm2120, %v2051
          %2135 = vst.msk [vmem:[#allocation5 + $0x70] sm:$0xff] %vm2120, %v2053
          %2136 = vst.msk [vmem:[#allocation5 + $0x78] sm:$0xff] %vm2120, %v2055
          %2137 = vst.msk [vmem:[#allocation5 + $0x80] sm:$0xff] %vm2120, %v2057
          %2138 = vst.msk [vmem:[#allocation5 + $0x88] sm:$0xff] %vm2120, %v2059
          %2139 = vst.msk [vmem:[#allocation5 + $0x90] sm:$0xff] %vm2120, %v2061
          %2140 = vst.msk [vmem:[#allocation5 + $0x98] sm:$0xff] %vm2120, %v2063
          %2141 = vst.msk [vmem:[#allocation5 + $0xa0] sm:$0xff] %vm2120, %v2065
          %2142 = vst.msk [vmem:[#allocation5 + $0xa8] sm:$0xff] %vm2120, %v2067
          %2143 = vst.msk [vmem:[#allocation5 + $0xb0] sm:$0xff] %vm2120, %v2069
          %2144 = vst.msk [vmem:[#allocation5 + $0xb8] sm:$0xff] %vm2120, %v2071
          %2145 = vst.msk [vmem:[#allocation5 + $0xc0] sm:$0xff] %vm2120, %v2073
          %2146 = vst.msk [vmem:[#allocation5 + $0xc8] sm:$0xff] %vm2120, %v2075
          %2147 = vst.msk [vmem:[#allocation5 + $0xd0] sm:$0xff] %vm2120, %v2077
          %2148 = vst.msk [vmem:[#allocation5 + $0xd8] sm:$0xff] %vm2120, %v2079
          %2149 = vst.msk [vmem:[#allocation5 + $0xe0] sm:$0xff] %vm2120, %v2081
          %2150 = vst.msk [vmem:[#allocation5 + $0xe8] sm:$0xff] %vm2120, %v2083
          %2151 = vst.msk [vmem:[#allocation5 + $0xf0] sm:$0xff] %vm2120, %v2085
          %2152 = vst.msk [vmem:[#allocation5 + $0xf8] sm:$0xff] %vm2120, %v2087
          %v2153 = vld [vmem:[%s1766 + $0x2] sm:$0xff]
          %v2154 = vld [vmem:[%s1766 + $0xa] sm:$0xff]
          %v2155 = vld [vmem:[%s1766 + $0x1a] sm:$0xff]
          %v2156 = vld [vmem:[%s1766 + $0x22] sm:$0xff]
          %v2157 = vld [vmem:[%s1766 + $0x32] sm:$0xff]
          %v2158 = vld [vmem:[%s1766 + $0x3a] sm:$0xff]
          %v2159 = vld [vmem:[%s1766 + $0x4a] sm:$0xff]
          %v2160 = vld [vmem:[%s1766 + $0x52] sm:$0xff]
          %v2161 = vld [vmem:[%s1766 + $0x62] sm:$0xff]
          %v2162 = vld [vmem:[%s1766 + $0x6a] sm:$0xff]
          %v2163 = vld [vmem:[%s1766 + $0x7a] sm:$0xff]
          %v2164 = vld [vmem:[%s1766 + $0x82] sm:$0xff]
          %v2165 = vld [vmem:[%s1766 + $0x92] sm:$0xff]
          %v2166 = vld [vmem:[%s1766 + $0x9a] sm:$0xff]
          %v2167 = vld [vmem:[%s1766 + $0xaa] sm:$0xff]
          %v2168 = vld [vmem:[%s1766 + $0xb2] sm:$0xff]
          %v2169 = vld [vmem:[%s1766 + $0xc2] sm:$0xff]
          %v2170 = vld [vmem:[%s1766 + $0xca] sm:$0xff]
          %v2171 = vld [vmem:[%s1766 + $0xda] sm:$0xff]
          %v2172 = vld [vmem:[%s1766 + $0xe2] sm:$0xff]
          %v2173 = vld [vmem:[%s1766 + $0xf2] sm:$0xff]
          %v2174 = vld [vmem:[%s1766 + $0xfa] sm:$0xff]
          %v2175 = vld [vmem:[%s1766 + $0x10a] sm:$0xff]
          %v2176 = vld [vmem:[%s1766 + $0x112] sm:$0xff]
          %v2177 = vld [vmem:[%s1766 + $0x122] sm:$0xff]
          %v2178 = vld [vmem:[%s1766 + $0x12a] sm:$0xff]
          %v2179 = vld [vmem:[%s1766 + $0x13a] sm:$0xff]
          %v2180 = vld [vmem:[%s1766 + $0x142] sm:$0xff]
          %v2181 = vld [vmem:[%s1766 + $0x152] sm:$0xff]
          %v2182 = vld [vmem:[%s1766 + $0x15a] sm:$0xff]
          %v2183 = vld [vmem:[%s1766 + $0x16a] sm:$0xff]
          %v2184 = vld [vmem:[%s1766 + $0x172] sm:$0xff]
          %2217 = vrot.lane.b32.xlu0 %v2153, 32
          %v2218 = vpop.permute.xlu0 %2217
          %2219 = vrot.lane.b32.xlu0 %v2154, 32
          %v2220 = vpop.permute.xlu0 %2219
          %2221 = vrot.lane.b32.xlu0 %v2155, 32
          %v2222 = vpop.permute.xlu0 %2221
          %2223 = vrot.lane.b32.xlu0 %v2156, 32
          %v2224 = vpop.permute.xlu0 %2223
          %2225 = vrot.lane.b32.xlu0 %v2157, 32
          %v2226 = vpop.permute.xlu0 %2225
          %2227 = vrot.lane.b32.xlu0 %v2158, 32
          %v2228 = vpop.permute.xlu0 %2227
          %2229 = vrot.lane.b32.xlu0 %v2159, 32
          %v2230 = vpop.permute.xlu0 %2229
          %2231 = vrot.lane.b32.xlu0 %v2160, 32
          %v2232 = vpop.permute.xlu0 %2231
          %2233 = vrot.lane.b32.xlu0 %v2161, 32
          %v2234 = vpop.permute.xlu0 %2233
          %2235 = vrot.lane.b32.xlu0 %v2162, 32
          %v2236 = vpop.permute.xlu0 %2235
          %2237 = vrot.lane.b32.xlu0 %v2163, 32
          %v2238 = vpop.permute.xlu0 %2237
          %2239 = vrot.lane.b32.xlu0 %v2164, 32
          %v2240 = vpop.permute.xlu0 %2239
          %2241 = vrot.lane.b32.xlu0 %v2165, 32
          %v2242 = vpop.permute.xlu0 %2241
          %2243 = vrot.lane.b32.xlu0 %v2166, 32
          %v2244 = vpop.permute.xlu0 %2243
          %2245 = vrot.lane.b32.xlu0 %v2167, 32
          %v2246 = vpop.permute.xlu0 %2245
          %2247 = vrot.lane.b32.xlu0 %v2168, 32
          %v2248 = vpop.permute.xlu0 %2247
          %2249 = vrot.lane.b32.xlu0 %v2169, 32
          %v2250 = vpop.permute.xlu0 %2249
          %2251 = vrot.lane.b32.xlu0 %v2170, 32
          %v2252 = vpop.permute.xlu0 %2251
          %2253 = vrot.lane.b32.xlu0 %v2171, 32
          %v2254 = vpop.permute.xlu0 %2253
          %2255 = vrot.lane.b32.xlu0 %v2172, 32
          %v2256 = vpop.permute.xlu0 %2255
          %2257 = vrot.lane.b32.xlu0 %v2173, 32
          %v2258 = vpop.permute.xlu0 %2257
          %2259 = vrot.lane.b32.xlu0 %v2174, 32
          %v2260 = vpop.permute.xlu0 %2259
          %2261 = vrot.lane.b32.xlu0 %v2175, 32
          %v2262 = vpop.permute.xlu0 %2261
          %2263 = vrot.lane.b32.xlu0 %v2176, 32
          %v2264 = vpop.permute.xlu0 %2263
          %2265 = vrot.lane.b32.xlu0 %v2177, 32
          %v2266 = vpop.permute.xlu0 %2265
          %2267 = vrot.lane.b32.xlu0 %v2178, 32
          %v2268 = vpop.permute.xlu0 %2267
          %2269 = vrot.lane.b32.xlu0 %v2179, 32
          %v2270 = vpop.permute.xlu0 %2269
          %2271 = vrot.lane.b32.xlu0 %v2180, 32
          %v2272 = vpop.permute.xlu0 %2271
          %2273 = vrot.lane.b32.xlu0 %v2181, 32
          %v2274 = vpop.permute.xlu0 %2273
          %2275 = vrot.lane.b32.xlu0 %v2182, 32
          %v2276 = vpop.permute.xlu0 %2275
          %2277 = vrot.lane.b32.xlu0 %v2183, 32
          %v2278 = vpop.permute.xlu0 %2277
          %2279 = vrot.lane.b32.xlu0 %v2184, 32
          %v2280 = vpop.permute.xlu0 %2279
          %vm2313 = vcmask 294144
          %2314 = vst.msk [vmem:[#allocation5] sm:$0xff] %vm2313, %v2218
          %2315 = vst.msk [vmem:[#allocation5 + $0x8] sm:$0xff] %vm2313, %v2220
          %2316 = vst.msk [vmem:[#allocation5 + $0x10] sm:$0xff] %vm2313, %v2222
          %2317 = vst.msk [vmem:[#allocation5 + $0x18] sm:$0xff] %vm2313, %v2224
          %2318 = vst.msk [vmem:[#allocation5 + $0x20] sm:$0xff] %vm2313, %v2226
          %2319 = vst.msk [vmem:[#allocation5 + $0x28] sm:$0xff] %vm2313, %v2228
          %2320 = vst.msk [vmem:[#allocation5 + $0x30] sm:$0xff] %vm2313, %v2230
          %2321 = vst.msk [vmem:[#allocation5 + $0x38] sm:$0xff] %vm2313, %v2232
          %2322 = vst.msk [vmem:[#allocation5 + $0x40] sm:$0xff] %vm2313, %v2234
          %2323 = vst.msk [vmem:[#allocation5 + $0x48] sm:$0xff] %vm2313, %v2236
          %2324 = vst.msk [vmem:[#allocation5 + $0x50] sm:$0xff] %vm2313, %v2238
          %2325 = vst.msk [vmem:[#allocation5 + $0x58] sm:$0xff] %vm2313, %v2240
          %2326 = vst.msk [vmem:[#allocation5 + $0x60] sm:$0xff] %vm2313, %v2242
          %2327 = vst.msk [vmem:[#allocation5 + $0x68] sm:$0xff] %vm2313, %v2244
          %2328 = vst.msk [vmem:[#allocation5 + $0x70] sm:$0xff] %vm2313, %v2246
          %2329 = vst.msk [vmem:[#allocation5 + $0x78] sm:$0xff] %vm2313, %v2248
          %2330 = vst.msk [vmem:[#allocation5 + $0x80] sm:$0xff] %vm2313, %v2250
          %2331 = vst.msk [vmem:[#allocation5 + $0x88] sm:$0xff] %vm2313, %v2252
          %2332 = vst.msk [vmem:[#allocation5 + $0x90] sm:$0xff] %vm2313, %v2254
          %2333 = vst.msk [vmem:[#allocation5 + $0x98] sm:$0xff] %vm2313, %v2256
          %2334 = vst.msk [vmem:[#allocation5 + $0xa0] sm:$0xff] %vm2313, %v2258
          %2335 = vst.msk [vmem:[#allocation5 + $0xa8] sm:$0xff] %vm2313, %v2260
          %2336 = vst.msk [vmem:[#allocation5 + $0xb0] sm:$0xff] %vm2313, %v2262
          %2337 = vst.msk [vmem:[#allocation5 + $0xb8] sm:$0xff] %vm2313, %v2264
          %2338 = vst.msk [vmem:[#allocation5 + $0xc0] sm:$0xff] %vm2313, %v2266
          %2339 = vst.msk [vmem:[#allocation5 + $0xc8] sm:$0xff] %vm2313, %v2268
          %2340 = vst.msk [vmem:[#allocation5 + $0xd0] sm:$0xff] %vm2313, %v2270
          %2341 = vst.msk [vmem:[#allocation5 + $0xd8] sm:$0xff] %vm2313, %v2272
          %2342 = vst.msk [vmem:[#allocation5 + $0xe0] sm:$0xff] %vm2313, %v2274
          %2343 = vst.msk [vmem:[#allocation5 + $0xe8] sm:$0xff] %vm2313, %v2276
          %2344 = vst.msk [vmem:[#allocation5 + $0xf0] sm:$0xff] %vm2313, %v2278
          %2345 = vst.msk [vmem:[#allocation5 + $0xf8] sm:$0xff] %vm2313, %v2280
          %v2346 = vld [vmem:[#allocation5] sm:$0xff]
          %v2347 = vld [vmem:[#allocation5 + $0x8] sm:$0xff]
          %v2348 = vld [vmem:[#allocation5 + $0x10] sm:$0xff]
          %v2349 = vld [vmem:[#allocation5 + $0x18] sm:$0xff]
          %v2350 = vld [vmem:[#allocation5 + $0x20] sm:$0xff]
          %v2351 = vld [vmem:[#allocation5 + $0x28] sm:$0xff]
          %v2352 = vld [vmem:[#allocation5 + $0x30] sm:$0xff]
          %v2353 = vld [vmem:[#allocation5 + $0x38] sm:$0xff]
          %v2354 = vld [vmem:[#allocation5 + $0x40] sm:$0xff]
          %v2355 = vld [vmem:[#allocation5 + $0x48] sm:$0xff]
          %v2356 = vld [vmem:[#allocation5 + $0x50] sm:$0xff]
          %v2357 = vld [vmem:[#allocation5 + $0x58] sm:$0xff]
          %v2358 = vld [vmem:[#allocation5 + $0x60] sm:$0xff]
          %v2359 = vld [vmem:[#allocation5 + $0x68] sm:$0xff]
          %v2360 = vld [vmem:[#allocation5 + $0x70] sm:$0xff]
          %v2361 = vld [vmem:[#allocation5 + $0x78] sm:$0xff]
          %v2362 = vld [vmem:[#allocation5 + $0x80] sm:$0xff]
          %v2363 = vld [vmem:[#allocation5 + $0x88] sm:$0xff]
          %v2364 = vld [vmem:[#allocation5 + $0x90] sm:$0xff]
          %v2365 = vld [vmem:[#allocation5 + $0x98] sm:$0xff]
          %v2366 = vld [vmem:[#allocation5 + $0xa0] sm:$0xff]
          %v2367 = vld [vmem:[#allocation5 + $0xa8] sm:$0xff]
          %v2368 = vld [vmem:[#allocation5 + $0xb0] sm:$0xff]
          %v2369 = vld [vmem:[#allocation5 + $0xb8] sm:$0xff]
          %v2370 = vld [vmem:[#allocation5 + $0xc0] sm:$0xff]
          %v2371 = vld [vmem:[#allocation5 + $0xc8] sm:$0xff]
          %v2372 = vld [vmem:[#allocation5 + $0xd0] sm:$0xff]
          %v2373 = vld [vmem:[#allocation5 + $0xd8] sm:$0xff]
          %v2374 = vld [vmem:[#allocation5 + $0xe0] sm:$0xff]
          %v2375 = vld [vmem:[#allocation5 + $0xe8] sm:$0xff]
          %v2376 = vld [vmem:[#allocation5 + $0xf0] sm:$0xff]
          %v2377 = vld [vmem:[#allocation5 + $0xf8] sm:$0xff]
          %v2378 = vlaneseq
          %v2379 = vshrl.u32 %v2378, 7
          %v2380 = vsub.s32 0, %v2379
          %v2381 = vrot.slane %v735, %v2380
          %vm2382 = vcmask 293888
          %v2384 = vsel %vm2382, %v2346, 0
          %v2387 = vsel %vm2382, %v2347, 0
          %v2390 = vsel %vm2382, %v2348, 0
          %v2393 = vsel %vm2382, %v2349, 0
          %v2396 = vsel %vm2382, %v2350, 0
          %v2399 = vsel %vm2382, %v2351, 0
          %v2402 = vsel %vm2382, %v2352, 0
          %v2405 = vsel %vm2382, %v2353, 0
          %v2408 = vsel %vm2382, %v2354, 0
          %v2411 = vsel %vm2382, %v2355, 0
          %v2414 = vsel %vm2382, %v2356, 0
          %v2417 = vsel %vm2382, %v2357, 0
          %v2420 = vsel %vm2382, %v2358, 0
          %v2423 = vsel %vm2382, %v2359, 0
          %v2426 = vsel %vm2382, %v2360, 0
          %v2429 = vsel %vm2382, %v2361, 0
          %v2432 = vsel %vm2382, %v2362, 0
          %v2435 = vsel %vm2382, %v2363, 0
          %v2438 = vsel %vm2382, %v2364, 0
          %v2441 = vsel %vm2382, %v2365, 0
          %v2444 = vsel %vm2382, %v2366, 0
          %v2447 = vsel %vm2382, %v2367, 0
          %v2450 = vsel %vm2382, %v2368, 0
          %v2453 = vsel %vm2382, %v2369, 0
          %v2456 = vsel %vm2382, %v2370, 0
          %v2459 = vsel %vm2382, %v2371, 0
          %v2462 = vsel %vm2382, %v2372, 0
          %v2465 = vsel %vm2382, %v2373, 0
          %v2468 = vsel %vm2382, %v2374, 0
          %v2471 = vsel %vm2382, %v2375, 0
          %v2474 = vsel %vm2382, %v2376, 0
          %v2477 = vsel %vm2382, %v2377, 0
          %vm2479 = vcmask 1043456
          %v2481 = vsel %vm2479, %v733, 0
          %2483 = vmatprep.subr.mxu0 0.0
          %2484 = vmatpush1.msra.mxu0 0.0
          %2485 = vmatprep.subr.mxu0 0.0
          %2486 = vmatpush1.msra.mxu0 0.0
          %2487 = vmatprep.subr.mxu0 0.0
          %2488 = vmatpush1.msra.mxu0 0.0
          %2489 = vmatprep.subr.mxu0 0.0
          %2490 = vmatpush1.msra.mxu0 0.0
          %2491 = vmatprep.subr.mxu0 0.0
          %2492 = vmatpush1.msra.mxu0 0.0
          %2493 = vmatprep.subr.mxu0 0.0
          %2494 = vmatpush1.msra.mxu0 0.0
          %2495 = vmatprep.subr.mxu0 0.0
          %2496 = vmatpush1.msra.mxu0 0.0
          %2497 = vmatprep.subr.mxu0 0.0
          %2498 = vmatpush1.msra.mxu0 0.0
          %2499 = vmatprep.subr.mxu0 0.0
          %2500 = vmatpush1.msra.mxu0 0.0
          %2501 = vmatprep.subr.mxu0 0.0
          %2502 = vmatpush1.msra.mxu0 0.0
          %2503 = vmatprep.subr.mxu0 0.0
          %2504 = vmatpush1.msra.mxu0 0.0
          %2505 = vmatprep.subr.mxu0 0.0
          %2506 = vmatpush1.msra.mxu0 %v2481
          %2507 = vmatprep.subr.mxu0 0.0
          %2508 = vmatpush1.msra.mxu0 %v732
          %2509 = vmatprep.subr.mxu0 0.0
          %2510 = vmatpush1.msra.mxu0 %v731
          %2511 = vmatprep.subr.mxu0 0.0
          %2512 = vmatpush1.msra.mxu0 %v730
          %2513 = vmatprep.subr.mxu0 0.0
          %2514 = vmatpush1.msra.mxu0 %v729
          %2515 = vmatprep.subr.mxu0 0.0
          %2516 = vmatpush2.msra.mxu0 0.0
          %2517 = vmatprep.subr.mxu0 0.0
          %2518 = vmatpush2.msra.mxu0 0.0
          %2519 = vmatprep.subr.mxu0 0.0
          %2520 = vmatpush2.msra.mxu0 0.0
          %2521 = vmatprep.subr.mxu0 0.0
          %2522 = vmatpush2.msra.mxu0 0.0
          %2523 = vmatprep.subr.mxu0 0.0
          %2524 = vmatpush2.msra.mxu0 0.0
          %2525 = vmatprep.subr.mxu0 0.0
          %2526 = vmatpush2.msra.mxu0 0.0
          %2527 = vmatprep.subr.mxu0 0.0
          %2528 = vmatpush2.msra.mxu0 0.0
          %2529 = vmatprep.subr.mxu0 0.0
          %2530 = vmatpush2.msra.mxu0 0.0
          %2531 = vmatprep.subr.mxu0 0.0
          %2532 = vmatpush2.msra.mxu0 0.0
          %2533 = vmatprep.subr.mxu0 0.0
          %2534 = vmatpush2.msra.mxu0 0.0
          %2535 = vmatprep.subr.mxu0 0.0
          %2536 = vmatpush2.msra.mxu0 0.0
          %2537 = vmatprep.subr.mxu0 0.0
          %2538 = vmatpush2.msra.mxu0 0.0
          %2539 = vmatprep.subr.mxu0 0.0
          %2540 = vmatpush2.msra.mxu0 0.0
          %2541 = vmatprep.subr.mxu0 0.0
          %2542 = vmatpush2.msra.mxu0 0.0
          %2543 = vmatprep.subr.mxu0 0.0
          %2544 = vmatpush2.msra.mxu0 0.0
          %2545 = vmatprep.subr.mxu0 0.0
          %2546 = vmatpush2.msra.mxu0 0.0
          %2547 = vmatprep.mubr.f32.mxu0 0.0
          %2548 = vmatmul.mubr.f32.gmra.mxu0 %v2384
          %v2549 = vpop.f32.mrf.mxu0
          %v2550 = vadd.f32 %v2381, %v2549
          %v2551 = vpop.f32.mrf.mxu0
          %2552 = vmatprep.mubr.f32.mxu0 0.0
          %2553 = vmatmul.mubr.f32.gmra.mxu0 %v2387
          %v2554 = vpop.f32.mrf.mxu0
          %v2555 = vadd.f32 %v2381, %v2554
          %v2556 = vpop.f32.mrf.mxu0
          %2557 = vmatprep.mubr.f32.mxu0 0.0
          %2558 = vmatmul.mubr.f32.gmra.mxu0 %v2390
          %v2559 = vpop.f32.mrf.mxu0
          %v2560 = vadd.f32 %v2381, %v2559
          %v2561 = vpop.f32.mrf.mxu0
          %2562 = vmatprep.mubr.f32.mxu0 0.0
          %2563 = vmatmul.mubr.f32.gmra.mxu0 %v2393
          %v2564 = vpop.f32.mrf.mxu0
          %v2565 = vadd.f32 %v2381, %v2564
          %v2566 = vpop.f32.mrf.mxu0
          %2567 = vmatprep.mubr.f32.mxu0 0.0
          %2568 = vmatmul.mubr.f32.gmra.mxu0 %v2396
          %v2569 = vpop.f32.mrf.mxu0
          %v2570 = vadd.f32 %v2381, %v2569
          %v2571 = vpop.f32.mrf.mxu0
          %2572 = vmatprep.mubr.f32.mxu0 0.0
          %2573 = vmatmul.mubr.f32.gmra.mxu0 %v2399
          %v2574 = vpop.f32.mrf.mxu0
          %v2575 = vadd.f32 %v2381, %v2574
          %v2576 = vpop.f32.mrf.mxu0
          %2577 = vmatprep.mubr.f32.mxu0 0.0
          %2578 = vmatmul.mubr.f32.gmra.mxu0 %v2402
          %v2579 = vpop.f32.mrf.mxu0
          %v2580 = vadd.f32 %v2381, %v2579
          %v2581 = vpop.f32.mrf.mxu0
          %2582 = vmatprep.mubr.f32.mxu0 0.0
          %2583 = vmatmul.mubr.f32.gmra.mxu0 %v2405
          %v2584 = vpop.f32.mrf.mxu0
          %v2585 = vadd.f32 %v2381, %v2584
          %v2586 = vpop.f32.mrf.mxu0
          %2587 = vmatprep.mubr.f32.mxu0 0.0
          %2588 = vmatmul.mubr.f32.gmra.mxu0 %v2408
          %v2589 = vpop.f32.mrf.mxu0
          %v2590 = vadd.f32 %v2381, %v2589
          %v2591 = vpop.f32.mrf.mxu0
          %2592 = vmatprep.mubr.f32.mxu0 0.0
          %2593 = vmatmul.mubr.f32.gmra.mxu0 %v2411
          %v2594 = vpop.f32.mrf.mxu0
          %v2595 = vadd.f32 %v2381, %v2594
          %v2596 = vpop.f32.mrf.mxu0
          %2597 = vmatprep.mubr.f32.mxu0 0.0
          %2598 = vmatmul.mubr.f32.gmra.mxu0 %v2414
          %v2599 = vpop.f32.mrf.mxu0
          %v2600 = vadd.f32 %v2381, %v2599
          %v2601 = vpop.f32.mrf.mxu0
          %2602 = vmatprep.mubr.f32.mxu0 0.0
          %2603 = vmatmul.mubr.f32.gmra.mxu0 %v2417
          %v2604 = vpop.f32.mrf.mxu0
          %v2605 = vadd.f32 %v2381, %v2604
          %v2606 = vpop.f32.mrf.mxu0
          %2607 = vmatprep.mubr.f32.mxu0 0.0
          %2608 = vmatmul.mubr.f32.gmra.mxu0 %v2420
          %v2609 = vpop.f32.mrf.mxu0
          %v2610 = vadd.f32 %v2381, %v2609
          %v2611 = vpop.f32.mrf.mxu0
          %2612 = vmatprep.mubr.f32.mxu0 0.0
          %2613 = vmatmul.mubr.f32.gmra.mxu0 %v2423
          %v2614 = vpop.f32.mrf.mxu0
          %v2615 = vadd.f32 %v2381, %v2614
          %v2616 = vpop.f32.mrf.mxu0
          %2617 = vmatprep.mubr.f32.mxu0 0.0
          %2618 = vmatmul.mubr.f32.gmra.mxu0 %v2426
          %v2619 = vpop.f32.mrf.mxu0
          %v2620 = vadd.f32 %v2381, %v2619
          %v2621 = vpop.f32.mrf.mxu0
          %2622 = vmatprep.mubr.f32.mxu0 0.0
          %2623 = vmatmul.mubr.f32.gmra.mxu0 %v2429
          %v2624 = vpop.f32.mrf.mxu0
          %v2625 = vadd.f32 %v2381, %v2624
          %v2626 = vpop.f32.mrf.mxu0
          %2627 = vmatprep.mubr.f32.mxu0 0.0
          %2628 = vmatmul.mubr.f32.gmra.mxu0 %v2432
          %v2629 = vpop.f32.mrf.mxu0
          %v2630 = vadd.f32 %v2381, %v2629
          %v2631 = vpop.f32.mrf.mxu0
          %2632 = vmatprep.mubr.f32.mxu0 0.0
          %2633 = vmatmul.mubr.f32.gmra.mxu0 %v2435
          %v2634 = vpop.f32.mrf.mxu0
          %v2635 = vadd.f32 %v2381, %v2634
          %v2636 = vpop.f32.mrf.mxu0
          %2637 = vmatprep.mubr.f32.mxu0 0.0
          %2638 = vmatmul.mubr.f32.gmra.mxu0 %v2438
          %v2639 = vpop.f32.mrf.mxu0
          %v2640 = vadd.f32 %v2381, %v2639
          %v2641 = vpop.f32.mrf.mxu0
          %2642 = vmatprep.mubr.f32.mxu0 0.0
          %2643 = vmatmul.mubr.f32.gmra.mxu0 %v2441
          %v2644 = vpop.f32.mrf.mxu0
          %v2645 = vadd.f32 %v2381, %v2644
          %v2646 = vpop.f32.mrf.mxu0
          %2647 = vmatprep.mubr.f32.mxu0 0.0
          %2648 = vmatmul.mubr.f32.gmra.mxu0 %v2444
          %v2649 = vpop.f32.mrf.mxu0
          %v2650 = vadd.f32 %v2381, %v2649
          %v2651 = vpop.f32.mrf.mxu0
          %2652 = vmatprep.mubr.f32.mxu0 0.0
          %2653 = vmatmul.mubr.f32.gmra.mxu0 %v2447
          %v2654 = vpop.f32.mrf.mxu0
          %v2655 = vadd.f32 %v2381, %v2654
          %v2656 = vpop.f32.mrf.mxu0
          %2657 = vmatprep.mubr.f32.mxu0 0.0
          %2658 = vmatmul.mubr.f32.gmra.mxu0 %v2450
          %v2659 = vpop.f32.mrf.mxu0
          %v2660 = vadd.f32 %v2381, %v2659
          %v2661 = vpop.f32.mrf.mxu0
          %2662 = vmatprep.mubr.f32.mxu0 0.0
          %2663 = vmatmul.mubr.f32.gmra.mxu0 %v2453
          %v2664 = vpop.f32.mrf.mxu0
          %v2665 = vadd.f32 %v2381, %v2664
          %v2666 = vpop.f32.mrf.mxu0
          %2667 = vmatprep.mubr.f32.mxu0 0.0
          %2668 = vmatmul.mubr.f32.gmra.mxu0 %v2456
          %v2669 = vpop.f32.mrf.mxu0
          %v2670 = vadd.f32 %v2381, %v2669
          %v2671 = vpop.f32.mrf.mxu0
          %2672 = vmatprep.mubr.f32.mxu0 0.0
          %2673 = vmatmul.mubr.f32.gmra.mxu0 %v2459
          %v2674 = vpop.f32.mrf.mxu0
          %v2675 = vadd.f32 %v2381, %v2674
          %v2676 = vpop.f32.mrf.mxu0
          %2677 = vmatprep.mubr.f32.mxu0 0.0
          %2678 = vmatmul.mubr.f32.gmra.mxu0 %v2462
          %v2679 = vpop.f32.mrf.mxu0
          %v2680 = vadd.f32 %v2381, %v2679
          %v2681 = vpop.f32.mrf.mxu0
          %2682 = vmatprep.mubr.f32.mxu0 0.0
          %2683 = vmatmul.mubr.f32.gmra.mxu0 %v2465
          %v2684 = vpop.f32.mrf.mxu0
          %v2685 = vadd.f32 %v2381, %v2684
          %v2686 = vpop.f32.mrf.mxu0
          %2687 = vmatprep.mubr.f32.mxu0 0.0
          %2688 = vmatmul.mubr.f32.gmra.mxu0 %v2468
          %v2689 = vpop.f32.mrf.mxu0
          %v2690 = vadd.f32 %v2381, %v2689
          %v2691 = vpop.f32.mrf.mxu0
          %2692 = vmatprep.mubr.f32.mxu0 0.0
          %2693 = vmatmul.mubr.f32.gmra.mxu0 %v2471
          %v2694 = vpop.f32.mrf.mxu0
          %v2695 = vadd.f32 %v2381, %v2694
          %v2696 = vpop.f32.mrf.mxu0
          %2697 = vmatprep.mubr.f32.mxu0 0.0
          %2698 = vmatmul.mubr.f32.gmra.mxu0 %v2474
          %v2699 = vpop.f32.mrf.mxu0
          %v2700 = vadd.f32 %v2381, %v2699
          %v2701 = vpop.f32.mrf.mxu0
          %2702 = vmatprep.mubr.f32.mxu0 0.0
          %2703 = vmatmul.mubr.f32.gmra.mxu0 %v2477
          %v2704 = vpop.f32.mrf.mxu0
          %v2705 = vadd.f32 %v2381, %v2704
          %v2706 = vpop.f32.mrf.mxu0
          %2707 = vdwg.mxu0
          %v2708 = vmax.f32 %v2550, 0.0
          %v2709 = vmax.f32 %v2555, 0.0
          %v2710 = vmax.f32 %v2560, 0.0
          %v2711 = vmax.f32 %v2565, 0.0
          %v2712 = vmax.f32 %v2570, 0.0
          %v2713 = vmax.f32 %v2575, 0.0
          %v2714 = vmax.f32 %v2580, 0.0
          %v2715 = vmax.f32 %v2585, 0.0
          %v2716 = vmax.f32 %v2590, 0.0
          %v2717 = vmax.f32 %v2595, 0.0
          %v2718 = vmax.f32 %v2600, 0.0
          %v2719 = vmax.f32 %v2605, 0.0
          %v2720 = vmax.f32 %v2610, 0.0
          %v2721 = vmax.f32 %v2615, 0.0
          %v2722 = vmax.f32 %v2620, 0.0
          %v2723 = vmax.f32 %v2625, 0.0
          %v2724 = vmax.f32 %v2630, 0.0
          %v2725 = vmax.f32 %v2635, 0.0
          %v2726 = vmax.f32 %v2640, 0.0
          %v2727 = vmax.f32 %v2645, 0.0
          %v2728 = vmax.f32 %v2650, 0.0
          %v2729 = vmax.f32 %v2655, 0.0
          %v2730 = vmax.f32 %v2660, 0.0
          %v2731 = vmax.f32 %v2665, 0.0
          %v2732 = vmax.f32 %v2670, 0.0
          %v2733 = vmax.f32 %v2675, 0.0
          %v2734 = vmax.f32 %v2680, 0.0
          %v2735 = vmax.f32 %v2685, 0.0
          %v2736 = vmax.f32 %v2690, 0.0
          %v2737 = vmax.f32 %v2695, 0.0
          %v2738 = vmax.f32 %v2700, 0.0
          %v2739 = vmax.f32 %v2705, 0.0
          %s2740 = scalar_lea.vmem [#allocation3], 24
          %2741 = vst.msk [vmem:[%s2740 + $0x1] sm:$0xff] %vm495, %v2708
          %2742 = vst.msk [vmem:[%s2740 + $0x9] sm:$0xff] %vm495, %v2709
          %2743 = vst.msk [vmem:[%s2740 + $0x19] sm:$0xff] %vm495, %v2710
          %2744 = vst.msk [vmem:[%s2740 + $0x21] sm:$0xff] %vm495, %v2711
          %2745 = vst.msk [vmem:[%s2740 + $0x31] sm:$0xff] %vm495, %v2712
          %2746 = vst.msk [vmem:[%s2740 + $0x39] sm:$0xff] %vm495, %v2713
          %2747 = vst.msk [vmem:[%s2740 + $0x49] sm:$0xff] %vm495, %v2714
          %2748 = vst.msk [vmem:[%s2740 + $0x51] sm:$0xff] %vm495, %v2715
          %2749 = vst.msk [vmem:[%s2740 + $0x61] sm:$0xff] %vm495, %v2716
          %2750 = vst.msk [vmem:[%s2740 + $0x69] sm:$0xff] %vm495, %v2717
          %2751 = vst.msk [vmem:[%s2740 + $0x79] sm:$0xff] %vm495, %v2718
          %2752 = vst.msk [vmem:[%s2740 + $0x81] sm:$0xff] %vm495, %v2719
          %2753 = vst.msk [vmem:[%s2740 + $0x91] sm:$0xff] %vm495, %v2720
          %2754 = vst.msk [vmem:[%s2740 + $0x99] sm:$0xff] %vm495, %v2721
          %2755 = vst.msk [vmem:[%s2740 + $0xa9] sm:$0xff] %vm495, %v2722
          %2756 = vst.msk [vmem:[%s2740 + $0xb1] sm:$0xff] %vm495, %v2723
          %2757 = vst.msk [vmem:[%s2740 + $0xc1] sm:$0xff] %vm495, %v2724
          %2758 = vst.msk [vmem:[%s2740 + $0xc9] sm:$0xff] %vm495, %v2725
          %2759 = vst.msk [vmem:[%s2740 + $0xd9] sm:$0xff] %vm495, %v2726
          %2760 = vst.msk [vmem:[%s2740 + $0xe1] sm:$0xff] %vm495, %v2727
          %2761 = vst.msk [vmem:[%s2740 + $0xf1] sm:$0xff] %vm495, %v2728
          %2762 = vst.msk [vmem:[%s2740 + $0xf9] sm:$0xff] %vm495, %v2729
          %2763 = vst.msk [vmem:[%s2740 + $0x109] sm:$0xff] %vm495, %v2730
          %2764 = vst.msk [vmem:[%s2740 + $0x111] sm:$0xff] %vm495, %v2731
          %2765 = vst.msk [vmem:[%s2740 + $0x121] sm:$0xff] %vm495, %v2732
          %2766 = vst.msk [vmem:[%s2740 + $0x129] sm:$0xff] %vm495, %v2733
          %2767 = vst.msk [vmem:[%s2740 + $0x139] sm:$0xff] %vm495, %v2734
          %2768 = vst.msk [vmem:[%s2740 + $0x141] sm:$0xff] %vm495, %v2735
          %2769 = vst.msk [vmem:[%s2740 + $0x151] sm:$0xff] %vm495, %v2736
          %2770 = vst.msk [vmem:[%s2740 + $0x159] sm:$0xff] %vm495, %v2737
          %2771 = vst.msk [vmem:[%s2740 + $0x169] sm:$0xff] %vm495, %v2738
          %2772 = vst.msk [vmem:[%s2740 + $0x171] sm:$0xff] %vm495, %v2739
          %s2773 = scalar_lea.vmem %s3, %s727
          %v2774 = vld [vmem:[%s2773] sm:$0xff]
          %v2775 = vld [vmem:[%s2773 + $0x8] sm:$0xff]
          %v2776 = vld [vmem:[%s2773 + $0x10] sm:$0xff]
          %v2777 = vld [vmem:[%s2773 + $0x18] sm:$0xff]
          %v2778 = vld [vmem:[%s2773 + $0x20] sm:$0xf]
          %s2779 = scalar_lea.vmem %s4, %s726
          %v2780 = vld [vmem:[%s2779] sm:$0x1]
          %v2781 = vld [vmem:[#allocation3] sm:$0xff]
          %v2782 = vld [vmem:[#allocation3 + $0x8] sm:$0xff]
          %v2783 = vld [vmem:[#allocation3 + $0x18] sm:$0xff]
          %v2784 = vld [vmem:[#allocation3 + $0x20] sm:$0xff]
          %v2785 = vld [vmem:[#allocation3 + $0x30] sm:$0xff]
          %v2786 = vld [vmem:[#allocation3 + $0x38] sm:$0xff]
          %v2787 = vld [vmem:[#allocation3 + $0x48] sm:$0xff]
          %v2788 = vld [vmem:[#allocation3 + $0x50] sm:$0xff]
          %v2789 = vld [vmem:[#allocation3 + $0x60] sm:$0xff]
          %v2790 = vld [vmem:[#allocation3 + $0x68] sm:$0xff]
          %v2791 = vld [vmem:[#allocation3 + $0x78] sm:$0xff]
          %v2792 = vld [vmem:[#allocation3 + $0x80] sm:$0xff]
          %v2793 = vld [vmem:[#allocation3 + $0x90] sm:$0xff]
          %v2794 = vld [vmem:[#allocation3 + $0x98] sm:$0xff]
          %v2795 = vld [vmem:[#allocation3 + $0xa8] sm:$0xff]
          %v2796 = vld [vmem:[#allocation3 + $0xb0] sm:$0xff]
          %v2797 = vld [vmem:[#allocation3 + $0xc0] sm:$0xff]
          %v2798 = vld [vmem:[#allocation3 + $0xc8] sm:$0xff]
          %v2799 = vld [vmem:[#allocation3 + $0xd8] sm:$0xff]
          %v2800 = vld [vmem:[#allocation3 + $0xe0] sm:$0xff]
          %v2801 = vld [vmem:[#allocation3 + $0xf0] sm:$0xff]
          %v2802 = vld [vmem:[#allocation3 + $0xf8] sm:$0xff]
          %v2803 = vld [vmem:[#allocation3 + $0x108] sm:$0xff]
          %v2804 = vld [vmem:[#allocation3 + $0x110] sm:$0xff]
          %v2805 = vld [vmem:[#allocation3 + $0x120] sm:$0xff]
          %v2806 = vld [vmem:[#allocation3 + $0x128] sm:$0xff]
          %v2807 = vld [vmem:[#allocation3 + $0x138] sm:$0xff]
          %v2808 = vld [vmem:[#allocation3 + $0x140] sm:$0xff]
          %v2809 = vld [vmem:[#allocation3 + $0x150] sm:$0xff]
          %v2810 = vld [vmem:[#allocation3 + $0x158] sm:$0xff]
          %v2811 = vld [vmem:[#allocation3 + $0x168] sm:$0xff]
          %v2812 = vld [vmem:[#allocation3 + $0x170] sm:$0xff]
          %2813 = vst.msk [vmem:[#allocation5] sm:$0xff] %vm495, %v2781
          %2814 = vst.msk [vmem:[#allocation5 + $0x8] sm:$0xff] %vm495, %v2782
          %2815 = vst.msk [vmem:[#allocation5 + $0x10] sm:$0xff] %vm495, %v2783
          %2816 = vst.msk [vmem:[#allocation5 + $0x18] sm:$0xff] %vm495, %v2784
          %2817 = vst.msk [vmem:[#allocation5 + $0x20] sm:$0xff] %vm495, %v2785
          %2818 = vst.msk [vmem:[#allocation5 + $0x28] sm:$0xff] %vm495, %v2786
          %2819 = vst.msk [vmem:[#allocation5 + $0x30] sm:$0xff] %vm495, %v2787
          %2820 = vst.msk [vmem:[#allocation5 + $0x38] sm:$0xff] %vm495, %v2788
          %2821 = vst.msk [vmem:[#allocation5 + $0x40] sm:$0xff] %vm495, %v2789
          %2822 = vst.msk [vmem:[#allocation5 + $0x48] sm:$0xff] %vm495, %v2790
          %2823 = vst.msk [vmem:[#allocation5 + $0x50] sm:$0xff] %vm495, %v2791
          %2824 = vst.msk [vmem:[#allocation5 + $0x58] sm:$0xff] %vm495, %v2792
          %2825 = vst.msk [vmem:[#allocation5 + $0x60] sm:$0xff] %vm495, %v2793
          %2826 = vst.msk [vmem:[#allocation5 + $0x68] sm:$0xff] %vm495, %v2794
          %2827 = vst.msk [vmem:[#allocation5 + $0x70] sm:$0xff] %vm495, %v2795
          %2828 = vst.msk [vmem:[#allocation5 + $0x78] sm:$0xff] %vm495, %v2796
          %2829 = vst.msk [vmem:[#allocation5 + $0x80] sm:$0xff] %vm495, %v2797
          %2830 = vst.msk [vmem:[#allocation5 + $0x88] sm:$0xff] %vm495, %v2798
          %2831 = vst.msk [vmem:[#allocation5 + $0x90] sm:$0xff] %vm495, %v2799
          %2832 = vst.msk [vmem:[#allocation5 + $0x98] sm:$0xff] %vm495, %v2800
          %2833 = vst.msk [vmem:[#allocation5 + $0xa0] sm:$0xff] %vm495, %v2801
          %2834 = vst.msk [vmem:[#allocation5 + $0xa8] sm:$0xff] %vm495, %v2802
          %2835 = vst.msk [vmem:[#allocation5 + $0xb0] sm:$0xff] %vm495, %v2803
          %2836 = vst.msk [vmem:[#allocation5 + $0xb8] sm:$0xff] %vm495, %v2804
          %2837 = vst.msk [vmem:[#allocation5 + $0xc0] sm:$0xff] %vm495, %v2805
          %2838 = vst.msk [vmem:[#allocation5 + $0xc8] sm:$0xff] %vm495, %v2806
          %2839 = vst.msk [vmem:[#allocation5 + $0xd0] sm:$0xff] %vm495, %v2807
          %2840 = vst.msk [vmem:[#allocation5 + $0xd8] sm:$0xff] %vm495, %v2808
          %2841 = vst.msk [vmem:[#allocation5 + $0xe0] sm:$0xff] %vm495, %v2809
          %2842 = vst.msk [vmem:[#allocation5 + $0xe8] sm:$0xff] %vm495, %v2810
          %2843 = vst.msk [vmem:[#allocation5 + $0xf0] sm:$0xff] %vm495, %v2811
          %2844 = vst.msk [vmem:[#allocation5 + $0xf8] sm:$0xff] %vm495, %v2812
          %v2845 = vld [vmem:[#allocation3 + $0x1] sm:$0xff]
          %v2846 = vld [vmem:[#allocation3 + $0x9] sm:$0xff]
          %v2847 = vld [vmem:[#allocation3 + $0x19] sm:$0xff]
          %v2848 = vld [vmem:[#allocation3 + $0x21] sm:$0xff]
          %v2849 = vld [vmem:[#allocation3 + $0x31] sm:$0xff]
          %v2850 = vld [vmem:[#allocation3 + $0x39] sm:$0xff]
          %v2851 = vld [vmem:[#allocation3 + $0x49] sm:$0xff]
          %v2852 = vld [vmem:[#allocation3 + $0x51] sm:$0xff]
          %v2853 = vld [vmem:[#allocation3 + $0x61] sm:$0xff]
          %v2854 = vld [vmem:[#allocation3 + $0x69] sm:$0xff]
          %v2855 = vld [vmem:[#allocation3 + $0x79] sm:$0xff]
          %v2856 = vld [vmem:[#allocation3 + $0x81] sm:$0xff]
          %v2857 = vld [vmem:[#allocation3 + $0x91] sm:$0xff]
          %v2858 = vld [vmem:[#allocation3 + $0x99] sm:$0xff]
          %v2859 = vld [vmem:[#allocation3 + $0xa9] sm:$0xff]
          %v2860 = vld [vmem:[#allocation3 + $0xb1] sm:$0xff]
          %v2861 = vld [vmem:[#allocation3 + $0xc1] sm:$0xff]
          %v2862 = vld [vmem:[#allocation3 + $0xc9] sm:$0xff]
          %v2863 = vld [vmem:[#allocation3 + $0xd9] sm:$0xff]
          %v2864 = vld [vmem:[#allocation3 + $0xe1] sm:$0xff]
          %v2865 = vld [vmem:[#allocation3 + $0xf1] sm:$0xff]
          %v2866 = vld [vmem:[#allocation3 + $0xf9] sm:$0xff]
          %v2867 = vld [vmem:[#allocation3 + $0x109] sm:$0xff]
          %v2868 = vld [vmem:[#allocation3 + $0x111] sm:$0xff]
          %v2869 = vld [vmem:[#allocation3 + $0x121] sm:$0xff]
          %v2870 = vld [vmem:[#allocation3 + $0x129] sm:$0xff]
          %v2871 = vld [vmem:[#allocation3 + $0x139] sm:$0xff]
          %v2872 = vld [vmem:[#allocation3 + $0x141] sm:$0xff]
          %v2873 = vld [vmem:[#allocation3 + $0x151] sm:$0xff]
          %v2874 = vld [vmem:[#allocation3 + $0x159] sm:$0xff]
          %v2875 = vld [vmem:[#allocation3 + $0x169] sm:$0xff]
          %v2876 = vld [vmem:[#allocation3 + $0x171] sm:$0xff]
          %2909 = vrot.lane.b32.xlu0 %v2845, 4
          %v2910 = vpop.permute.xlu0 %2909
          %2911 = vrot.lane.b32.xlu0 %v2846, 4
          %v2912 = vpop.permute.xlu0 %2911
          %2913 = vrot.lane.b32.xlu0 %v2847, 4
          %v2914 = vpop.permute.xlu0 %2913
          %2915 = vrot.lane.b32.xlu0 %v2848, 4
          %v2916 = vpop.permute.xlu0 %2915
          %2917 = vrot.lane.b32.xlu0 %v2849, 4
          %v2918 = vpop.permute.xlu0 %2917
          %2919 = vrot.lane.b32.xlu0 %v2850, 4
          %v2920 = vpop.permute.xlu0 %2919
          %2921 = vrot.lane.b32.xlu0 %v2851, 4
          %v2922 = vpop.permute.xlu0 %2921
          %2923 = vrot.lane.b32.xlu0 %v2852, 4
          %v2924 = vpop.permute.xlu0 %2923
          %2925 = vrot.lane.b32.xlu0 %v2853, 4
          %v2926 = vpop.permute.xlu0 %2925
          %2927 = vrot.lane.b32.xlu0 %v2854, 4
          %v2928 = vpop.permute.xlu0 %2927
          %2929 = vrot.lane.b32.xlu0 %v2855, 4
          %v2930 = vpop.permute.xlu0 %2929
          %2931 = vrot.lane.b32.xlu0 %v2856, 4
          %v2932 = vpop.permute.xlu0 %2931
          %2933 = vrot.lane.b32.xlu0 %v2857, 4
          %v2934 = vpop.permute.xlu0 %2933
          %2935 = vrot.lane.b32.xlu0 %v2858, 4
          %v2936 = vpop.permute.xlu0 %2935
          %2937 = vrot.lane.b32.xlu0 %v2859, 4
          %v2938 = vpop.permute.xlu0 %2937
          %2939 = vrot.lane.b32.xlu0 %v2860, 4
          %v2940 = vpop.permute.xlu0 %2939
          %2941 = vrot.lane.b32.xlu0 %v2861, 4
          %v2942 = vpop.permute.xlu0 %2941
          %2943 = vrot.lane.b32.xlu0 %v2862, 4
          %v2944 = vpop.permute.xlu0 %2943
          %2945 = vrot.lane.b32.xlu0 %v2863, 4
          %v2946 = vpop.permute.xlu0 %2945
          %2947 = vrot.lane.b32.xlu0 %v2864, 4
          %v2948 = vpop.permute.xlu0 %2947
          %2949 = vrot.lane.b32.xlu0 %v2865, 4
          %v2950 = vpop.permute.xlu0 %2949
          %2951 = vrot.lane.b32.xlu0 %v2866, 4
          %v2952 = vpop.permute.xlu0 %2951
          %2953 = vrot.lane.b32.xlu0 %v2867, 4
          %v2954 = vpop.permute.xlu0 %2953
          %2955 = vrot.lane.b32.xlu0 %v2868, 4
          %v2956 = vpop.permute.xlu0 %2955
          %2957 = vrot.lane.b32.xlu0 %v2869, 4
          %v2958 = vpop.permute.xlu0 %2957
          %2959 = vrot.lane.b32.xlu0 %v2870, 4
          %v2960 = vpop.permute.xlu0 %2959
          %2961 = vrot.lane.b32.xlu0 %v2871, 4
          %v2962 = vpop.permute.xlu0 %2961
          %2963 = vrot.lane.b32.xlu0 %v2872, 4
          %v2964 = vpop.permute.xlu0 %2963
          %2965 = vrot.lane.b32.xlu0 %v2873, 4
          %v2966 = vpop.permute.xlu0 %2965
          %2967 = vrot.lane.b32.xlu0 %v2874, 4
          %v2968 = vpop.permute.xlu0 %2967
          %2969 = vrot.lane.b32.xlu0 %v2875, 4
          %v2970 = vpop.permute.xlu0 %2969
          %2971 = vrot.lane.b32.xlu0 %v2876, 4
          %v2972 = vpop.permute.xlu0 %2971
          %3005 = vst.msk [vmem:[#allocation5] sm:$0xff] %vm960, %v2910
          %3006 = vst.msk [vmem:[#allocation5 + $0x8] sm:$0xff] %vm960, %v2912
          %3007 = vst.msk [vmem:[#allocation5 + $0x10] sm:$0xff] %vm960, %v2914
          %3008 = vst.msk [vmem:[#allocation5 + $0x18] sm:$0xff] %vm960, %v2916
          %3009 = vst.msk [vmem:[#allocation5 + $0x20] sm:$0xff] %vm960, %v2918
          %3010 = vst.msk [vmem:[#allocation5 + $0x28] sm:$0xff] %vm960, %v2920
          %3011 = vst.msk [vmem:[#allocation5 + $0x30] sm:$0xff] %vm960, %v2922
          %3012 = vst.msk [vmem:[#allocation5 + $0x38] sm:$0xff] %vm960, %v2924
          %3013 = vst.msk [vmem:[#allocation5 + $0x40] sm:$0xff] %vm960, %v2926
          %3014 = vst.msk [vmem:[#allocation5 + $0x48] sm:$0xff] %vm960, %v2928
          %3015 = vst.msk [vmem:[#allocation5 + $0x50] sm:$0xff] %vm960, %v2930
          %3016 = vst.msk [vmem:[#allocation5 + $0x58] sm:$0xff] %vm960, %v2932
          %3017 = vst.msk [vmem:[#allocation5 + $0x60] sm:$0xff] %vm960, %v2934
          %3018 = vst.msk [vmem:[#allocation5 + $0x68] sm:$0xff] %vm960, %v2936
          %3019 = vst.msk [vmem:[#allocation5 + $0x70] sm:$0xff] %vm960, %v2938
          %3020 = vst.msk [vmem:[#allocation5 + $0x78] sm:$0xff] %vm960, %v2940
          %3021 = vst.msk [vmem:[#allocation5 + $0x80] sm:$0xff] %vm960, %v2942
          %3022 = vst.msk [vmem:[#allocation5 + $0x88] sm:$0xff] %vm960, %v2944
          %3023 = vst.msk [vmem:[#allocation5 + $0x90] sm:$0xff] %vm960, %v2946
          %3024 = vst.msk [vmem:[#allocation5 + $0x98] sm:$0xff] %vm960, %v2948
          %3025 = vst.msk [vmem:[#allocation5 + $0xa0] sm:$0xff] %vm960, %v2950
          %3026 = vst.msk [vmem:[#allocation5 + $0xa8] sm:$0xff] %vm960, %v2952
          %3027 = vst.msk [vmem:[#allocation5 + $0xb0] sm:$0xff] %vm960, %v2954
          %3028 = vst.msk [vmem:[#allocation5 + $0xb8] sm:$0xff] %vm960, %v2956
          %3029 = vst.msk [vmem:[#allocation5 + $0xc0] sm:$0xff] %vm960, %v2958
          %3030 = vst.msk [vmem:[#allocation5 + $0xc8] sm:$0xff] %vm960, %v2960
          %3031 = vst.msk [vmem:[#allocation5 + $0xd0] sm:$0xff] %vm960, %v2962
          %3032 = vst.msk [vmem:[#allocation5 + $0xd8] sm:$0xff] %vm960, %v2964
          %3033 = vst.msk [vmem:[#allocation5 + $0xe0] sm:$0xff] %vm960, %v2966
          %3034 = vst.msk [vmem:[#allocation5 + $0xe8] sm:$0xff] %vm960, %v2968
          %3035 = vst.msk [vmem:[#allocation5 + $0xf0] sm:$0xff] %vm960, %v2970
          %3036 = vst.msk [vmem:[#allocation5 + $0xf8] sm:$0xff] %vm960, %v2972
          %v3037 = vld [vmem:[#allocation3 + $0x2] sm:$0xff]
          %v3038 = vld [vmem:[#allocation3 + $0xa] sm:$0xff]
          %v3039 = vld [vmem:[#allocation3 + $0x1a] sm:$0xff]
          %v3040 = vld [vmem:[#allocation3 + $0x22] sm:$0xff]
          %v3041 = vld [vmem:[#allocation3 + $0x32] sm:$0xff]
          %v3042 = vld [vmem:[#allocation3 + $0x3a] sm:$0xff]
          %v3043 = vld [vmem:[#allocation3 + $0x4a] sm:$0xff]
          %v3044 = vld [vmem:[#allocation3 + $0x52] sm:$0xff]
          %v3045 = vld [vmem:[#allocation3 + $0x62] sm:$0xff]
          %v3046 = vld [vmem:[#allocation3 + $0x6a] sm:$0xff]
          %v3047 = vld [vmem:[#allocation3 + $0x7a] sm:$0xff]
          %v3048 = vld [vmem:[#allocation3 + $0x82] sm:$0xff]
          %v3049 = vld [vmem:[#allocation3 + $0x92] sm:$0xff]
          %v3050 = vld [vmem:[#allocation3 + $0x9a] sm:$0xff]
          %v3051 = vld [vmem:[#allocation3 + $0xaa] sm:$0xff]
          %v3052 = vld [vmem:[#allocation3 + $0xb2] sm:$0xff]
          %v3053 = vld [vmem:[#allocation3 + $0xc2] sm:$0xff]
          %v3054 = vld [vmem:[#allocation3 + $0xca] sm:$0xff]
          %v3055 = vld [vmem:[#allocation3 + $0xda] sm:$0xff]
          %v3056 = vld [vmem:[#allocation3 + $0xe2] sm:$0xff]
          %v3057 = vld [vmem:[#allocation3 + $0xf2] sm:$0xff]
          %v3058 = vld [vmem:[#allocation3 + $0xfa] sm:$0xff]
          %v3059 = vld [vmem:[#allocation3 + $0x10a] sm:$0xff]
          %v3060 = vld [vmem:[#allocation3 + $0x112] sm:$0xff]
          %v3061 = vld [vmem:[#allocation3 + $0x122] sm:$0xff]
          %v3062 = vld [vmem:[#allocation3 + $0x12a] sm:$0xff]
          %v3063 = vld [vmem:[#allocation3 + $0x13a] sm:$0xff]
          %v3064 = vld [vmem:[#allocation3 + $0x142] sm:$0xff]
          %v3065 = vld [vmem:[#allocation3 + $0x152] sm:$0xff]
          %v3066 = vld [vmem:[#allocation3 + $0x15a] sm:$0xff]
          %v3067 = vld [vmem:[#allocation3 + $0x16a] sm:$0xff]
          %v3068 = vld [vmem:[#allocation3 + $0x172] sm:$0xff]
          %3101 = vrot.lane.b32.xlu0 %v3037, 8
          %v3102 = vpop.permute.xlu0 %3101
          %3103 = vrot.lane.b32.xlu0 %v3038, 8
          %v3104 = vpop.permute.xlu0 %3103
          %3105 = vrot.lane.b32.xlu0 %v3039, 8
          %v3106 = vpop.permute.xlu0 %3105
          %3107 = vrot.lane.b32.xlu0 %v3040, 8
          %v3108 = vpop.permute.xlu0 %3107
          %3109 = vrot.lane.b32.xlu0 %v3041, 8
          %v3110 = vpop.permute.xlu0 %3109
          %3111 = vrot.lane.b32.xlu0 %v3042, 8
          %v3112 = vpop.permute.xlu0 %3111
          %3113 = vrot.lane.b32.xlu0 %v3043, 8
          %v3114 = vpop.permute.xlu0 %3113
          %3115 = vrot.lane.b32.xlu0 %v3044, 8
          %v3116 = vpop.permute.xlu0 %3115
          %3117 = vrot.lane.b32.xlu0 %v3045, 8
          %v3118 = vpop.permute.xlu0 %3117
          %3119 = vrot.lane.b32.xlu0 %v3046, 8
          %v3120 = vpop.permute.xlu0 %3119
          %3121 = vrot.lane.b32.xlu0 %v3047, 8
          %v3122 = vpop.permute.xlu0 %3121
          %3123 = vrot.lane.b32.xlu0 %v3048, 8
          %v3124 = vpop.permute.xlu0 %3123
          %3125 = vrot.lane.b32.xlu0 %v3049, 8
          %v3126 = vpop.permute.xlu0 %3125
          %3127 = vrot.lane.b32.xlu0 %v3050, 8
          %v3128 = vpop.permute.xlu0 %3127
          %3129 = vrot.lane.b32.xlu0 %v3051, 8
          %v3130 = vpop.permute.xlu0 %3129
          %3131 = vrot.lane.b32.xlu0 %v3052, 8
          %v3132 = vpop.permute.xlu0 %3131
          %3133 = vrot.lane.b32.xlu0 %v3053, 8
          %v3134 = vpop.permute.xlu0 %3133
          %3135 = vrot.lane.b32.xlu0 %v3054, 8
          %v3136 = vpop.permute.xlu0 %3135
          %3137 = vrot.lane.b32.xlu0 %v3055, 8
          %v3138 = vpop.permute.xlu0 %3137
          %3139 = vrot.lane.b32.xlu0 %v3056, 8
          %v3140 = vpop.permute.xlu0 %3139
          %3141 = vrot.lane.b32.xlu0 %v3057, 8
          %v3142 = vpop.permute.xlu0 %3141
          %3143 = vrot.lane.b32.xlu0 %v3058, 8
          %v3144 = vpop.permute.xlu0 %3143
          %3145 = vrot.lane.b32.xlu0 %v3059, 8
          %v3146 = vpop.permute.xlu0 %3145
          %3147 = vrot.lane.b32.xlu0 %v3060, 8
          %v3148 = vpop.permute.xlu0 %3147
          %3149 = vrot.lane.b32.xlu0 %v3061, 8
          %v3150 = vpop.permute.xlu0 %3149
          %3151 = vrot.lane.b32.xlu0 %v3062, 8
          %v3152 = vpop.permute.xlu0 %3151
          %3153 = vrot.lane.b32.xlu0 %v3063, 8
          %v3154 = vpop.permute.xlu0 %3153
          %3155 = vrot.lane.b32.xlu0 %v3064, 8
          %v3156 = vpop.permute.xlu0 %3155
          %3157 = vrot.lane.b32.xlu0 %v3065, 8
          %v3158 = vpop.permute.xlu0 %3157
          %3159 = vrot.lane.b32.xlu0 %v3066, 8
          %v3160 = vpop.permute.xlu0 %3159
          %3161 = vrot.lane.b32.xlu0 %v3067, 8
          %v3162 = vpop.permute.xlu0 %3161
          %3163 = vrot.lane.b32.xlu0 %v3068, 8
          %v3164 = vpop.permute.xlu0 %3163
          %3197 = vst.msk [vmem:[#allocation5] sm:$0xff] %vm1153, %v3102
          %3198 = vst.msk [vmem:[#allocation5 + $0x8] sm:$0xff] %vm1153, %v3104
          %3199 = vst.msk [vmem:[#allocation5 + $0x10] sm:$0xff] %vm1153, %v3106
          %3200 = vst.msk [vmem:[#allocation5 + $0x18] sm:$0xff] %vm1153, %v3108
          %3201 = vst.msk [vmem:[#allocation5 + $0x20] sm:$0xff] %vm1153, %v3110
          %3202 = vst.msk [vmem:[#allocation5 + $0x28] sm:$0xff] %vm1153, %v3112
          %3203 = vst.msk [vmem:[#allocation5 + $0x30] sm:$0xff] %vm1153, %v3114
          %3204 = vst.msk [vmem:[#allocation5 + $0x38] sm:$0xff] %vm1153, %v3116
          %3205 = vst.msk [vmem:[#allocation5 + $0x40] sm:$0xff] %vm1153, %v3118
          %3206 = vst.msk [vmem:[#allocation5 + $0x48] sm:$0xff] %vm1153, %v3120
          %3207 = vst.msk [vmem:[#allocation5 + $0x50] sm:$0xff] %vm1153, %v3122
          %3208 = vst.msk [vmem:[#allocation5 + $0x58] sm:$0xff] %vm1153, %v3124
          %3209 = vst.msk [vmem:[#allocation5 + $0x60] sm:$0xff] %vm1153, %v3126
          %3210 = vst.msk [vmem:[#allocation5 + $0x68] sm:$0xff] %vm1153, %v3128
          %3211 = vst.msk [vmem:[#allocation5 + $0x70] sm:$0xff] %vm1153, %v3130
          %3212 = vst.msk [vmem:[#allocation5 + $0x78] sm:$0xff] %vm1153, %v3132
          %3213 = vst.msk [vmem:[#allocation5 + $0x80] sm:$0xff] %vm1153, %v3134
          %3214 = vst.msk [vmem:[#allocation5 + $0x88] sm:$0xff] %vm1153, %v3136
          %3215 = vst.msk [vmem:[#allocation5 + $0x90] sm:$0xff] %vm1153, %v3138
          %3216 = vst.msk [vmem:[#allocation5 + $0x98] sm:$0xff] %vm1153, %v3140
          %3217 = vst.msk [vmem:[#allocation5 + $0xa0] sm:$0xff] %vm1153, %v3142
          %3218 = vst.msk [vmem:[#allocation5 + $0xa8] sm:$0xff] %vm1153, %v3144
          %3219 = vst.msk [vmem:[#allocation5 + $0xb0] sm:$0xff] %vm1153, %v3146
          %3220 = vst.msk [vmem:[#allocation5 + $0xb8] sm:$0xff] %vm1153, %v3148
          %3221 = vst.msk [vmem:[#allocation5 + $0xc0] sm:$0xff] %vm1153, %v3150
          %3222 = vst.msk [vmem:[#allocation5 + $0xc8] sm:$0xff] %vm1153, %v3152
          %3223 = vst.msk [vmem:[#allocation5 + $0xd0] sm:$0xff] %vm1153, %v3154
          %3224 = vst.msk [vmem:[#allocation5 + $0xd8] sm:$0xff] %vm1153, %v3156
          %3225 = vst.msk [vmem:[#allocation5 + $0xe0] sm:$0xff] %vm1153, %v3158
          %3226 = vst.msk [vmem:[#allocation5 + $0xe8] sm:$0xff] %vm1153, %v3160
          %3227 = vst.msk [vmem:[#allocation5 + $0xf0] sm:$0xff] %vm1153, %v3162
          %3228 = vst.msk [vmem:[#allocation5 + $0xf8] sm:$0xff] %vm1153, %v3164
          %v3229 = vld [vmem:[%s2740] sm:$0xff]
          %v3230 = vld [vmem:[%s2740 + $0x8] sm:$0xff]
          %v3231 = vld [vmem:[%s2740 + $0x18] sm:$0xff]
          %v3232 = vld [vmem:[%s2740 + $0x20] sm:$0xff]
          %v3233 = vld [vmem:[%s2740 + $0x30] sm:$0xff]
          %v3234 = vld [vmem:[%s2740 + $0x38] sm:$0xff]
          %v3235 = vld [vmem:[%s2740 + $0x48] sm:$0xff]
          %v3236 = vld [vmem:[%s2740 + $0x50] sm:$0xff]
          %v3237 = vld [vmem:[%s2740 + $0x60] sm:$0xff]
          %v3238 = vld [vmem:[%s2740 + $0x68] sm:$0xff]
          %v3239 = vld [vmem:[%s2740 + $0x78] sm:$0xff]
          %v3240 = vld [vmem:[%s2740 + $0x80] sm:$0xff]
          %v3241 = vld [vmem:[%s2740 + $0x90] sm:$0xff]
          %v3242 = vld [vmem:[%s2740 + $0x98] sm:$0xff]
          %v3243 = vld [vmem:[%s2740 + $0xa8] sm:$0xff]
          %v3244 = vld [vmem:[%s2740 + $0xb0] sm:$0xff]
          %v3245 = vld [vmem:[%s2740 + $0xc0] sm:$0xff]
          %v3246 = vld [vmem:[%s2740 + $0xc8] sm:$0xff]
          %v3247 = vld [vmem:[%s2740 + $0xd8] sm:$0xff]
          %v3248 = vld [vmem:[%s2740 + $0xe0] sm:$0xff]
          %v3249 = vld [vmem:[%s2740 + $0xf0] sm:$0xff]
          %v3250 = vld [vmem:[%s2740 + $0xf8] sm:$0xff]
          %v3251 = vld [vmem:[%s2740 + $0x108] sm:$0xff]
          %v3252 = vld [vmem:[%s2740 + $0x110] sm:$0xff]
          %v3253 = vld [vmem:[%s2740 + $0x120] sm:$0xff]
          %v3254 = vld [vmem:[%s2740 + $0x128] sm:$0xff]
          %v3255 = vld [vmem:[%s2740 + $0x138] sm:$0xff]
          %v3256 = vld [vmem:[%s2740 + $0x140] sm:$0xff]
          %v3257 = vld [vmem:[%s2740 + $0x150] sm:$0xff]
          %v3258 = vld [vmem:[%s2740 + $0x158] sm:$0xff]
          %v3259 = vld [vmem:[%s2740 + $0x168] sm:$0xff]
          %v3260 = vld [vmem:[%s2740 + $0x170] sm:$0xff]
          %3293 = vrot.lane.b32.xlu0 %v3229, 12
          %v3294 = vpop.permute.xlu0 %3293
          %3295 = vrot.lane.b32.xlu0 %v3230, 12
          %v3296 = vpop.permute.xlu0 %3295
          %3297 = vrot.lane.b32.xlu0 %v3231, 12
          %v3298 = vpop.permute.xlu0 %3297
          %3299 = vrot.lane.b32.xlu0 %v3232, 12
          %v3300 = vpop.permute.xlu0 %3299
          %3301 = vrot.lane.b32.xlu0 %v3233, 12
          %v3302 = vpop.permute.xlu0 %3301
          %3303 = vrot.lane.b32.xlu0 %v3234, 12
          %v3304 = vpop.permute.xlu0 %3303
          %3305 = vrot.lane.b32.xlu0 %v3235, 12
          %v3306 = vpop.permute.xlu0 %3305
          %3307 = vrot.lane.b32.xlu0 %v3236, 12
          %v3308 = vpop.permute.xlu0 %3307
          %3309 = vrot.lane.b32.xlu0 %v3237, 12
          %v3310 = vpop.permute.xlu0 %3309
          %3311 = vrot.lane.b32.xlu0 %v3238, 12
          %v3312 = vpop.permute.xlu0 %3311
          %3313 = vrot.lane.b32.xlu0 %v3239, 12
          %v3314 = vpop.permute.xlu0 %3313
          %3315 = vrot.lane.b32.xlu0 %v3240, 12
          %v3316 = vpop.permute.xlu0 %3315
          %3317 = vrot.lane.b32.xlu0 %v3241, 12
          %v3318 = vpop.permute.xlu0 %3317
          %3319 = vrot.lane.b32.xlu0 %v3242, 12
          %v3320 = vpop.permute.xlu0 %3319
          %3321 = vrot.lane.b32.xlu0 %v3243, 12
          %v3322 = vpop.permute.xlu0 %3321
          %3323 = vrot.lane.b32.xlu0 %v3244, 12
          %v3324 = vpop.permute.xlu0 %3323
          %3325 = vrot.lane.b32.xlu0 %v3245, 12
          %v3326 = vpop.permute.xlu0 %3325
          %3327 = vrot.lane.b32.xlu0 %v3246, 12
          %v3328 = vpop.permute.xlu0 %3327
          %3329 = vrot.lane.b32.xlu0 %v3247, 12
          %v3330 = vpop.permute.xlu0 %3329
          %3331 = vrot.lane.b32.xlu0 %v3248, 12
          %v3332 = vpop.permute.xlu0 %3331
          %3333 = vrot.lane.b32.xlu0 %v3249, 12
          %v3334 = vpop.permute.xlu0 %3333
          %3335 = vrot.lane.b32.xlu0 %v3250, 12
          %v3336 = vpop.permute.xlu0 %3335
          %3337 = vrot.lane.b32.xlu0 %v3251, 12
          %v3338 = vpop.permute.xlu0 %3337
          %3339 = vrot.lane.b32.xlu0 %v3252, 12
          %v3340 = vpop.permute.xlu0 %3339
          %3341 = vrot.lane.b32.xlu0 %v3253, 12
          %v3342 = vpop.permute.xlu0 %3341
          %3343 = vrot.lane.b32.xlu0 %v3254, 12
          %v3344 = vpop.permute.xlu0 %3343
          %3345 = vrot.lane.b32.xlu0 %v3255, 12
          %v3346 = vpop.permute.xlu0 %3345
          %3347 = vrot.lane.b32.xlu0 %v3256, 12
          %v3348 = vpop.permute.xlu0 %3347
          %3349 = vrot.lane.b32.xlu0 %v3257, 12
          %v3350 = vpop.permute.xlu0 %3349
          %3351 = vrot.lane.b32.xlu0 %v3258, 12
          %v3352 = vpop.permute.xlu0 %3351
          %3353 = vrot.lane.b32.xlu0 %v3259, 12
          %v3354 = vpop.permute.xlu0 %3353
          %3355 = vrot.lane.b32.xlu0 %v3260, 12
          %v3356 = vpop.permute.xlu0 %3355
          %3389 = vst.msk [vmem:[#allocation5] sm:$0xff] %vm1347, %v3294
          %3390 = vst.msk [vmem:[#allocation5 + $0x8] sm:$0xff] %vm1347, %v3296
          %3391 = vst.msk [vmem:[#allocation5 + $0x10] sm:$0xff] %vm1347, %v3298
          %3392 = vst.msk [vmem:[#allocation5 + $0x18] sm:$0xff] %vm1347, %v3300
          %3393 = vst.msk [vmem:[#allocation5 + $0x20] sm:$0xff] %vm1347, %v3302
          %3394 = vst.msk [vmem:[#allocation5 + $0x28] sm:$0xff] %vm1347, %v3304
          %3395 = vst.msk [vmem:[#allocation5 + $0x30] sm:$0xff] %vm1347, %v3306
          %3396 = vst.msk [vmem:[#allocation5 + $0x38] sm:$0xff] %vm1347, %v3308
          %3397 = vst.msk [vmem:[#allocation5 + $0x40] sm:$0xff] %vm1347, %v3310
          %3398 = vst.msk [vmem:[#allocation5 + $0x48] sm:$0xff] %vm1347, %v3312
          %3399 = vst.msk [vmem:[#allocation5 + $0x50] sm:$0xff] %vm1347, %v3314
          %3400 = vst.msk [vmem:[#allocation5 + $0x58] sm:$0xff] %vm1347, %v3316
          %3401 = vst.msk [vmem:[#allocation5 + $0x60] sm:$0xff] %vm1347, %v3318
          %3402 = vst.msk [vmem:[#allocation5 + $0x68] sm:$0xff] %vm1347, %v3320
          %3403 = vst.msk [vmem:[#allocation5 + $0x70] sm:$0xff] %vm1347, %v3322
          %3404 = vst.msk [vmem:[#allocation5 + $0x78] sm:$0xff] %vm1347, %v3324
          %3405 = vst.msk [vmem:[#allocation5 + $0x80] sm:$0xff] %vm1347, %v3326
          %3406 = vst.msk [vmem:[#allocation5 + $0x88] sm:$0xff] %vm1347, %v3328
          %3407 = vst.msk [vmem:[#allocation5 + $0x90] sm:$0xff] %vm1347, %v3330
          %3408 = vst.msk [vmem:[#allocation5 + $0x98] sm:$0xff] %vm1347, %v3332
          %3409 = vst.msk [vmem:[#allocation5 + $0xa0] sm:$0xff] %vm1347, %v3334
          %3410 = vst.msk [vmem:[#allocation5 + $0xa8] sm:$0xff] %vm1347, %v3336
          %3411 = vst.msk [vmem:[#allocation5 + $0xb0] sm:$0xff] %vm1347, %v3338
          %3412 = vst.msk [vmem:[#allocation5 + $0xb8] sm:$0xff] %vm1347, %v3340
          %3413 = vst.msk [vmem:[#allocation5 + $0xc0] sm:$0xff] %vm1347, %v3342
          %3414 = vst.msk [vmem:[#allocation5 + $0xc8] sm:$0xff] %vm1347, %v3344
          %3415 = vst.msk [vmem:[#allocation5 + $0xd0] sm:$0xff] %vm1347, %v3346
          %3416 = vst.msk [vmem:[#allocation5 + $0xd8] sm:$0xff] %vm1347, %v3348
          %3417 = vst.msk [vmem:[#allocation5 + $0xe0] sm:$0xff] %vm1347, %v3350
          %3418 = vst.msk [vmem:[#allocation5 + $0xe8] sm:$0xff] %vm1347, %v3352
          %3419 = vst.msk [vmem:[#allocation5 + $0xf0] sm:$0xff] %vm1347, %v3354
          %3420 = vst.msk [vmem:[#allocation5 + $0xf8] sm:$0xff] %vm1347, %v3356
          %v3421 = vld [vmem:[%s2740 + $0x1] sm:$0xff]
          %v3422 = vld [vmem:[%s2740 + $0x9] sm:$0xff]
          %v3423 = vld [vmem:[%s2740 + $0x19] sm:$0xff]
          %v3424 = vld [vmem:[%s2740 + $0x21] sm:$0xff]
          %v3425 = vld [vmem:[%s2740 + $0x31] sm:$0xff]
          %v3426 = vld [vmem:[%s2740 + $0x39] sm:$0xff]
          %v3427 = vld [vmem:[%s2740 + $0x49] sm:$0xff]
          %v3428 = vld [vmem:[%s2740 + $0x51] sm:$0xff]
          %v3429 = vld [vmem:[%s2740 + $0x61] sm:$0xff]
          %v3430 = vld [vmem:[%s2740 + $0x69] sm:$0xff]
          %v3431 = vld [vmem:[%s2740 + $0x79] sm:$0xff]
          %v3432 = vld [vmem:[%s2740 + $0x81] sm:$0xff]
          %v3433 = vld [vmem:[%s2740 + $0x91] sm:$0xff]
          %v3434 = vld [vmem:[%s2740 + $0x99] sm:$0xff]
          %v3435 = vld [vmem:[%s2740 + $0xa9] sm:$0xff]
          %v3436 = vld [vmem:[%s2740 + $0xb1] sm:$0xff]
          %v3437 = vld [vmem:[%s2740 + $0xc1] sm:$0xff]
          %v3438 = vld [vmem:[%s2740 + $0xc9] sm:$0xff]
          %v3439 = vld [vmem:[%s2740 + $0xd9] sm:$0xff]
          %v3440 = vld [vmem:[%s2740 + $0xe1] sm:$0xff]
          %v3441 = vld [vmem:[%s2740 + $0xf1] sm:$0xff]
          %v3442 = vld [vmem:[%s2740 + $0xf9] sm:$0xff]
          %v3443 = vld [vmem:[%s2740 + $0x109] sm:$0xff]
          %v3444 = vld [vmem:[%s2740 + $0x111] sm:$0xff]
          %v3445 = vld [vmem:[%s2740 + $0x121] sm:$0xff]
          %v3446 = vld [vmem:[%s2740 + $0x129] sm:$0xff]
          %v3447 = vld [vmem:[%s2740 + $0x139] sm:$0xff]
          %v3448 = vld [vmem:[%s2740 + $0x141] sm:$0xff]
          %v3449 = vld [vmem:[%s2740 + $0x151] sm:$0xff]
          %v3450 = vld [vmem:[%s2740 + $0x159] sm:$0xff]
          %v3451 = vld [vmem:[%s2740 + $0x169] sm:$0xff]
          %v3452 = vld [vmem:[%s2740 + $0x171] sm:$0xff]
          %3485 = vrot.lane.b32.xlu0 %v3421, 16
          %v3486 = vpop.permute.xlu0 %3485
          %3487 = vrot.lane.b32.xlu0 %v3422, 16
          %v3488 = vpop.permute.xlu0 %3487
          %3489 = vrot.lane.b32.xlu0 %v3423, 16
          %v3490 = vpop.permute.xlu0 %3489
          %3491 = vrot.lane.b32.xlu0 %v3424, 16
          %v3492 = vpop.permute.xlu0 %3491
          %3493 = vrot.lane.b32.xlu0 %v3425, 16
          %v3494 = vpop.permute.xlu0 %3493
          %3495 = vrot.lane.b32.xlu0 %v3426, 16
          %v3496 = vpop.permute.xlu0 %3495
          %3497 = vrot.lane.b32.xlu0 %v3427, 16
          %v3498 = vpop.permute.xlu0 %3497
          %3499 = vrot.lane.b32.xlu0 %v3428, 16
          %v3500 = vpop.permute.xlu0 %3499
          %3501 = vrot.lane.b32.xlu0 %v3429, 16
          %v3502 = vpop.permute.xlu0 %3501
          %3503 = vrot.lane.b32.xlu0 %v3430, 16
          %v3504 = vpop.permute.xlu0 %3503
          %3505 = vrot.lane.b32.xlu0 %v3431, 16
          %v3506 = vpop.permute.xlu0 %3505
          %3507 = vrot.lane.b32.xlu0 %v3432, 16
          %v3508 = vpop.permute.xlu0 %3507
          %3509 = vrot.lane.b32.xlu0 %v3433, 16
          %v3510 = vpop.permute.xlu0 %3509
          %3511 = vrot.lane.b32.xlu0 %v3434, 16
          %v3512 = vpop.permute.xlu0 %3511
          %3513 = vrot.lane.b32.xlu0 %v3435, 16
          %v3514 = vpop.permute.xlu0 %3513
          %3515 = vrot.lane.b32.xlu0 %v3436, 16
          %v3516 = vpop.permute.xlu0 %3515
          %3517 = vrot.lane.b32.xlu0 %v3437, 16
          %v3518 = vpop.permute.xlu0 %3517
          %3519 = vrot.lane.b32.xlu0 %v3438, 16
          %v3520 = vpop.permute.xlu0 %3519
          %3521 = vrot.lane.b32.xlu0 %v3439, 16
          %v3522 = vpop.permute.xlu0 %3521
          %3523 = vrot.lane.b32.xlu0 %v3440, 16
          %v3524 = vpop.permute.xlu0 %3523
          %3525 = vrot.lane.b32.xlu0 %v3441, 16
          %v3526 = vpop.permute.xlu0 %3525
          %3527 = vrot.lane.b32.xlu0 %v3442, 16
          %v3528 = vpop.permute.xlu0 %3527
          %3529 = vrot.lane.b32.xlu0 %v3443, 16
          %v3530 = vpop.permute.xlu0 %3529
          %3531 = vrot.lane.b32.xlu0 %v3444, 16
          %v3532 = vpop.permute.xlu0 %3531
          %3533 = vrot.lane.b32.xlu0 %v3445, 16
          %v3534 = vpop.permute.xlu0 %3533
          %3535 = vrot.lane.b32.xlu0 %v3446, 16
          %v3536 = vpop.permute.xlu0 %3535
          %3537 = vrot.lane.b32.xlu0 %v3447, 16
          %v3538 = vpop.permute.xlu0 %3537
          %3539 = vrot.lane.b32.xlu0 %v3448, 16
          %v3540 = vpop.permute.xlu0 %3539
          %3541 = vrot.lane.b32.xlu0 %v3449, 16
          %v3542 = vpop.permute.xlu0 %3541
          %3543 = vrot.lane.b32.xlu0 %v3450, 16
          %v3544 = vpop.permute.xlu0 %3543
          %3545 = vrot.lane.b32.xlu0 %v3451, 16
          %v3546 = vpop.permute.xlu0 %3545
          %3547 = vrot.lane.b32.xlu0 %v3452, 16
          %v3548 = vpop.permute.xlu0 %3547
          %3581 = vst.msk [vmem:[#allocation5] sm:$0xff] %vm1540, %v3486
          %3582 = vst.msk [vmem:[#allocation5 + $0x8] sm:$0xff] %vm1540, %v3488
          %3583 = vst.msk [vmem:[#allocation5 + $0x10] sm:$0xff] %vm1540, %v3490
          %3584 = vst.msk [vmem:[#allocation5 + $0x18] sm:$0xff] %vm1540, %v3492
          %3585 = vst.msk [vmem:[#allocation5 + $0x20] sm:$0xff] %vm1540, %v3494
          %3586 = vst.msk [vmem:[#allocation5 + $0x28] sm:$0xff] %vm1540, %v3496
          %3587 = vst.msk [vmem:[#allocation5 + $0x30] sm:$0xff] %vm1540, %v3498
          %3588 = vst.msk [vmem:[#allocation5 + $0x38] sm:$0xff] %vm1540, %v3500
          %3589 = vst.msk [vmem:[#allocation5 + $0x40] sm:$0xff] %vm1540, %v3502
          %3590 = vst.msk [vmem:[#allocation5 + $0x48] sm:$0xff] %vm1540, %v3504
          %3591 = vst.msk [vmem:[#allocation5 + $0x50] sm:$0xff] %vm1540, %v3506
          %3592 = vst.msk [vmem:[#allocation5 + $0x58] sm:$0xff] %vm1540, %v3508
          %3593 = vst.msk [vmem:[#allocation5 + $0x60] sm:$0xff] %vm1540, %v3510
          %3594 = vst.msk [vmem:[#allocation5 + $0x68] sm:$0xff] %vm1540, %v3512
          %3595 = vst.msk [vmem:[#allocation5 + $0x70] sm:$0xff] %vm1540, %v3514
          %3596 = vst.msk [vmem:[#allocation5 + $0x78] sm:$0xff] %vm1540, %v3516
          %3597 = vst.msk [vmem:[#allocation5 + $0x80] sm:$0xff] %vm1540, %v3518
          %3598 = vst.msk [vmem:[#allocation5 + $0x88] sm:$0xff] %vm1540, %v3520
          %3599 = vst.msk [vmem:[#allocation5 + $0x90] sm:$0xff] %vm1540, %v3522
          %3600 = vst.msk [vmem:[#allocation5 + $0x98] sm:$0xff] %vm1540, %v3524
          %3601 = vst.msk [vmem:[#allocation5 + $0xa0] sm:$0xff] %vm1540, %v3526
          %3602 = vst.msk [vmem:[#allocation5 + $0xa8] sm:$0xff] %vm1540, %v3528
          %3603 = vst.msk [vmem:[#allocation5 + $0xb0] sm:$0xff] %vm1540, %v3530
          %3604 = vst.msk [vmem:[#allocation5 + $0xb8] sm:$0xff] %vm1540, %v3532
          %3605 = vst.msk [vmem:[#allocation5 + $0xc0] sm:$0xff] %vm1540, %v3534
          %3606 = vst.msk [vmem:[#allocation5 + $0xc8] sm:$0xff] %vm1540, %v3536
          %3607 = vst.msk [vmem:[#allocation5 + $0xd0] sm:$0xff] %vm1540, %v3538
          %3608 = vst.msk [vmem:[#allocation5 + $0xd8] sm:$0xff] %vm1540, %v3540
          %3609 = vst.msk [vmem:[#allocation5 + $0xe0] sm:$0xff] %vm1540, %v3542
          %3610 = vst.msk [vmem:[#allocation5 + $0xe8] sm:$0xff] %vm1540, %v3544
          %3611 = vst.msk [vmem:[#allocation5 + $0xf0] sm:$0xff] %vm1540, %v3546
          %3612 = vst.msk [vmem:[#allocation5 + $0xf8] sm:$0xff] %vm1540, %v3548
          %v3613 = vld [vmem:[%s2740 + $0x2] sm:$0xff]
          %v3614 = vld [vmem:[%s2740 + $0xa] sm:$0xff]
          %v3615 = vld [vmem:[%s2740 + $0x1a] sm:$0xff]
          %v3616 = vld [vmem:[%s2740 + $0x22] sm:$0xff]
          %v3617 = vld [vmem:[%s2740 + $0x32] sm:$0xff]
          %v3618 = vld [vmem:[%s2740 + $0x3a] sm:$0xff]
          %v3619 = vld [vmem:[%s2740 + $0x4a] sm:$0xff]
          %v3620 = vld [vmem:[%s2740 + $0x52] sm:$0xff]
          %v3621 = vld [vmem:[%s2740 + $0x62] sm:$0xff]
          %v3622 = vld [vmem:[%s2740 + $0x6a] sm:$0xff]
          %v3623 = vld [vmem:[%s2740 + $0x7a] sm:$0xff]
          %v3624 = vld [vmem:[%s2740 + $0x82] sm:$0xff]
          %v3625 = vld [vmem:[%s2740 + $0x92] sm:$0xff]
          %v3626 = vld [vmem:[%s2740 + $0x9a] sm:$0xff]
          %v3627 = vld [vmem:[%s2740 + $0xaa] sm:$0xff]
          %v3628 = vld [vmem:[%s2740 + $0xb2] sm:$0xff]
          %v3629 = vld [vmem:[%s2740 + $0xc2] sm:$0xff]
          %v3630 = vld [vmem:[%s2740 + $0xca] sm:$0xff]
          %v3631 = vld [vmem:[%s2740 + $0xda] sm:$0xff]
          %v3632 = vld [vmem:[%s2740 + $0xe2] sm:$0xff]
          %v3633 = vld [vmem:[%s2740 + $0xf2] sm:$0xff]
          %v3634 = vld [vmem:[%s2740 + $0xfa] sm:$0xff]
          %v3635 = vld [vmem:[%s2740 + $0x10a] sm:$0xff]
          %v3636 = vld [vmem:[%s2740 + $0x112] sm:$0xff]
          %v3637 = vld [vmem:[%s2740 + $0x122] sm:$0xff]
          %v3638 = vld [vmem:[%s2740 + $0x12a] sm:$0xff]
          %v3639 = vld [vmem:[%s2740 + $0x13a] sm:$0xff]
          %v3640 = vld [vmem:[%s2740 + $0x142] sm:$0xff]
          %v3641 = vld [vmem:[%s2740 + $0x152] sm:$0xff]
          %v3642 = vld [vmem:[%s2740 + $0x15a] sm:$0xff]
          %v3643 = vld [vmem:[%s2740 + $0x16a] sm:$0xff]
          %v3644 = vld [vmem:[%s2740 + $0x172] sm:$0xff]
          %3677 = vrot.lane.b32.xlu0 %v3613, 20
          %v3678 = vpop.permute.xlu0 %3677
          %3679 = vrot.lane.b32.xlu0 %v3614, 20
          %v3680 = vpop.permute.xlu0 %3679
          %3681 = vrot.lane.b32.xlu0 %v3615, 20
          %v3682 = vpop.permute.xlu0 %3681
          %3683 = vrot.lane.b32.xlu0 %v3616, 20
          %v3684 = vpop.permute.xlu0 %3683
          %3685 = vrot.lane.b32.xlu0 %v3617, 20
          %v3686 = vpop.permute.xlu0 %3685
          %3687 = vrot.lane.b32.xlu0 %v3618, 20
          %v3688 = vpop.permute.xlu0 %3687
          %3689 = vrot.lane.b32.xlu0 %v3619, 20
          %v3690 = vpop.permute.xlu0 %3689
          %3691 = vrot.lane.b32.xlu0 %v3620, 20
          %v3692 = vpop.permute.xlu0 %3691
          %3693 = vrot.lane.b32.xlu0 %v3621, 20
          %v3694 = vpop.permute.xlu0 %3693
          %3695 = vrot.lane.b32.xlu0 %v3622, 20
          %v3696 = vpop.permute.xlu0 %3695
          %3697 = vrot.lane.b32.xlu0 %v3623, 20
          %v3698 = vpop.permute.xlu0 %3697
          %3699 = vrot.lane.b32.xlu0 %v3624, 20
          %v3700 = vpop.permute.xlu0 %3699
          %3701 = vrot.lane.b32.xlu0 %v3625, 20
          %v3702 = vpop.permute.xlu0 %3701
          %3703 = vrot.lane.b32.xlu0 %v3626, 20
          %v3704 = vpop.permute.xlu0 %3703
          %3705 = vrot.lane.b32.xlu0 %v3627, 20
          %v3706 = vpop.permute.xlu0 %3705
          %3707 = vrot.lane.b32.xlu0 %v3628, 20
          %v3708 = vpop.permute.xlu0 %3707
          %3709 = vrot.lane.b32.xlu0 %v3629, 20
          %v3710 = vpop.permute.xlu0 %3709
          %3711 = vrot.lane.b32.xlu0 %v3630, 20
          %v3712 = vpop.permute.xlu0 %3711
          %3713 = vrot.lane.b32.xlu0 %v3631, 20
          %v3714 = vpop.permute.xlu0 %3713
          %3715 = vrot.lane.b32.xlu0 %v3632, 20
          %v3716 = vpop.permute.xlu0 %3715
          %3717 = vrot.lane.b32.xlu0 %v3633, 20
          %v3718 = vpop.permute.xlu0 %3717
          %3719 = vrot.lane.b32.xlu0 %v3634, 20
          %v3720 = vpop.permute.xlu0 %3719
          %3721 = vrot.lane.b32.xlu0 %v3635, 20
          %v3722 = vpop.permute.xlu0 %3721
          %3723 = vrot.lane.b32.xlu0 %v3636, 20
          %v3724 = vpop.permute.xlu0 %3723
          %3725 = vrot.lane.b32.xlu0 %v3637, 20
          %v3726 = vpop.permute.xlu0 %3725
          %3727 = vrot.lane.b32.xlu0 %v3638, 20
          %v3728 = vpop.permute.xlu0 %3727
          %3729 = vrot.lane.b32.xlu0 %v3639, 20
          %v3730 = vpop.permute.xlu0 %3729
          %3731 = vrot.lane.b32.xlu0 %v3640, 20
          %v3732 = vpop.permute.xlu0 %3731
          %3733 = vrot.lane.b32.xlu0 %v3641, 20
          %v3734 = vpop.permute.xlu0 %3733
          %3735 = vrot.lane.b32.xlu0 %v3642, 20
          %v3736 = vpop.permute.xlu0 %3735
          %3737 = vrot.lane.b32.xlu0 %v3643, 20
          %v3738 = vpop.permute.xlu0 %3737
          %3739 = vrot.lane.b32.xlu0 %v3644, 20
          %v3740 = vpop.permute.xlu0 %3739
          %3773 = vst.msk [vmem:[#allocation5] sm:$0xff] %vm1733, %v3678
          %3774 = vst.msk [vmem:[#allocation5 + $0x8] sm:$0xff] %vm1733, %v3680
          %3775 = vst.msk [vmem:[#allocation5 + $0x10] sm:$0xff] %vm1733, %v3682
          %3776 = vst.msk [vmem:[#allocation5 + $0x18] sm:$0xff] %vm1733, %v3684
          %3777 = vst.msk [vmem:[#allocation5 + $0x20] sm:$0xff] %vm1733, %v3686
          %3778 = vst.msk [vmem:[#allocation5 + $0x28] sm:$0xff] %vm1733, %v3688
          %3779 = vst.msk [vmem:[#allocation5 + $0x30] sm:$0xff] %vm1733, %v3690
          %3780 = vst.msk [vmem:[#allocation5 + $0x38] sm:$0xff] %vm1733, %v3692
          %3781 = vst.msk [vmem:[#allocation5 + $0x40] sm:$0xff] %vm1733, %v3694
          %3782 = vst.msk [vmem:[#allocation5 + $0x48] sm:$0xff] %vm1733, %v3696
          %3783 = vst.msk [vmem:[#allocation5 + $0x50] sm:$0xff] %vm1733, %v3698
          %3784 = vst.msk [vmem:[#allocation5 + $0x58] sm:$0xff] %vm1733, %v3700
          %3785 = vst.msk [vmem:[#allocation5 + $0x60] sm:$0xff] %vm1733, %v3702
          %3786 = vst.msk [vmem:[#allocation5 + $0x68] sm:$0xff] %vm1733, %v3704
          %3787 = vst.msk [vmem:[#allocation5 + $0x70] sm:$0xff] %vm1733, %v3706
          %3788 = vst.msk [vmem:[#allocation5 + $0x78] sm:$0xff] %vm1733, %v3708
          %3789 = vst.msk [vmem:[#allocation5 + $0x80] sm:$0xff] %vm1733, %v3710
          %3790 = vst.msk [vmem:[#allocation5 + $0x88] sm:$0xff] %vm1733, %v3712
          %3791 = vst.msk [vmem:[#allocation5 + $0x90] sm:$0xff] %vm1733, %v3714
          %3792 = vst.msk [vmem:[#allocation5 + $0x98] sm:$0xff] %vm1733, %v3716
          %3793 = vst.msk [vmem:[#allocation5 + $0xa0] sm:$0xff] %vm1733, %v3718
          %3794 = vst.msk [vmem:[#allocation5 + $0xa8] sm:$0xff] %vm1733, %v3720
          %3795 = vst.msk [vmem:[#allocation5 + $0xb0] sm:$0xff] %vm1733, %v3722
          %3796 = vst.msk [vmem:[#allocation5 + $0xb8] sm:$0xff] %vm1733, %v3724
          %3797 = vst.msk [vmem:[#allocation5 + $0xc0] sm:$0xff] %vm1733, %v3726
          %3798 = vst.msk [vmem:[#allocation5 + $0xc8] sm:$0xff] %vm1733, %v3728
          %3799 = vst.msk [vmem:[#allocation5 + $0xd0] sm:$0xff] %vm1733, %v3730
          %3800 = vst.msk [vmem:[#allocation5 + $0xd8] sm:$0xff] %vm1733, %v3732
          %3801 = vst.msk [vmem:[#allocation5 + $0xe0] sm:$0xff] %vm1733, %v3734
          %3802 = vst.msk [vmem:[#allocation5 + $0xe8] sm:$0xff] %vm1733, %v3736
          %3803 = vst.msk [vmem:[#allocation5 + $0xf0] sm:$0xff] %vm1733, %v3738
          %3804 = vst.msk [vmem:[#allocation5 + $0xf8] sm:$0xff] %vm1733, %v3740
          %s3805 = scalar_lea.vmem [#allocation3], 48
          %v3806 = vld [vmem:[%s3805] sm:$0xff]
          %v3807 = vld [vmem:[%s3805 + $0x8] sm:$0xff]
          %v3808 = vld [vmem:[%s3805 + $0x18] sm:$0xff]
          %v3809 = vld [vmem:[%s3805 + $0x20] sm:$0xff]
          %v3810 = vld [vmem:[%s3805 + $0x30] sm:$0xff]
          %v3811 = vld [vmem:[%s3805 + $0x38] sm:$0xff]
          %v3812 = vld [vmem:[%s3805 + $0x48] sm:$0xff]
          %v3813 = vld [vmem:[%s3805 + $0x50] sm:$0xff]
          %v3814 = vld [vmem:[%s3805 + $0x60] sm:$0xff]
          %v3815 = vld [vmem:[%s3805 + $0x68] sm:$0xff]
          %v3816 = vld [vmem:[%s3805 + $0x78] sm:$0xff]
          %v3817 = vld [vmem:[%s3805 + $0x80] sm:$0xff]
          %v3818 = vld [vmem:[%s3805 + $0x90] sm:$0xff]
          %v3819 = vld [vmem:[%s3805 + $0x98] sm:$0xff]
          %v3820 = vld [vmem:[%s3805 + $0xa8] sm:$0xff]
          %v3821 = vld [vmem:[%s3805 + $0xb0] sm:$0xff]
          %v3822 = vld [vmem:[%s3805 + $0xc0] sm:$0xff]
          %v3823 = vld [vmem:[%s3805 + $0xc8] sm:$0xff]
          %v3824 = vld [vmem:[%s3805 + $0xd8] sm:$0xff]
          %v3825 = vld [vmem:[%s3805 + $0xe0] sm:$0xff]
          %v3826 = vld [vmem:[%s3805 + $0xf0] sm:$0xff]
          %v3827 = vld [vmem:[%s3805 + $0xf8] sm:$0xff]
          %v3828 = vld [vmem:[%s3805 + $0x108] sm:$0xff]
          %v3829 = vld [vmem:[%s3805 + $0x110] sm:$0xff]
          %v3830 = vld [vmem:[%s3805 + $0x120] sm:$0xff]
          %v3831 = vld [vmem:[%s3805 + $0x128] sm:$0xff]
          %v3832 = vld [vmem:[%s3805 + $0x138] sm:$0xff]
          %v3833 = vld [vmem:[%s3805 + $0x140] sm:$0xff]
          %v3834 = vld [vmem:[%s3805 + $0x150] sm:$0xff]
          %v3835 = vld [vmem:[%s3805 + $0x158] sm:$0xff]
          %v3836 = vld [vmem:[%s3805 + $0x168] sm:$0xff]
          %v3837 = vld [vmem:[%s3805 + $0x170] sm:$0xff]
          %3870 = vrot.lane.b32.xlu0 %v3806, 24
          %v3871 = vpop.permute.xlu0 %3870
          %3872 = vrot.lane.b32.xlu0 %v3807, 24
          %v3873 = vpop.permute.xlu0 %3872
          %3874 = vrot.lane.b32.xlu0 %v3808, 24
          %v3875 = vpop.permute.xlu0 %3874
          %3876 = vrot.lane.b32.xlu0 %v3809, 24
          %v3877 = vpop.permute.xlu0 %3876
          %3878 = vrot.lane.b32.xlu0 %v3810, 24
          %v3879 = vpop.permute.xlu0 %3878
          %3880 = vrot.lane.b32.xlu0 %v3811, 24
          %v3881 = vpop.permute.xlu0 %3880
          %3882 = vrot.lane.b32.xlu0 %v3812, 24
          %v3883 = vpop.permute.xlu0 %3882
          %3884 = vrot.lane.b32.xlu0 %v3813, 24
          %v3885 = vpop.permute.xlu0 %3884
          %3886 = vrot.lane.b32.xlu0 %v3814, 24
          %v3887 = vpop.permute.xlu0 %3886
          %3888 = vrot.lane.b32.xlu0 %v3815, 24
          %v3889 = vpop.permute.xlu0 %3888
          %3890 = vrot.lane.b32.xlu0 %v3816, 24
          %v3891 = vpop.permute.xlu0 %3890
          %3892 = vrot.lane.b32.xlu0 %v3817, 24
          %v3893 = vpop.permute.xlu0 %3892
          %3894 = vrot.lane.b32.xlu0 %v3818, 24
          %v3895 = vpop.permute.xlu0 %3894
          %3896 = vrot.lane.b32.xlu0 %v3819, 24
          %v3897 = vpop.permute.xlu0 %3896
          %3898 = vrot.lane.b32.xlu0 %v3820, 24
          %v3899 = vpop.permute.xlu0 %3898
          %3900 = vrot.lane.b32.xlu0 %v3821, 24
          %v3901 = vpop.permute.xlu0 %3900
          %3902 = vrot.lane.b32.xlu0 %v3822, 24
          %v3903 = vpop.permute.xlu0 %3902
          %3904 = vrot.lane.b32.xlu0 %v3823, 24
          %v3905 = vpop.permute.xlu0 %3904
          %3906 = vrot.lane.b32.xlu0 %v3824, 24
          %v3907 = vpop.permute.xlu0 %3906
          %3908 = vrot.lane.b32.xlu0 %v3825, 24
          %v3909 = vpop.permute.xlu0 %3908
          %3910 = vrot.lane.b32.xlu0 %v3826, 24
          %v3911 = vpop.permute.xlu0 %3910
          %3912 = vrot.lane.b32.xlu0 %v3827, 24
          %v3913 = vpop.permute.xlu0 %3912
          %3914 = vrot.lane.b32.xlu0 %v3828, 24
          %v3915 = vpop.permute.xlu0 %3914
          %3916 = vrot.lane.b32.xlu0 %v3829, 24
          %v3917 = vpop.permute.xlu0 %3916
          %3918 = vrot.lane.b32.xlu0 %v3830, 24
          %v3919 = vpop.permute.xlu0 %3918
          %3920 = vrot.lane.b32.xlu0 %v3831, 24
          %v3921 = vpop.permute.xlu0 %3920
          %3922 = vrot.lane.b32.xlu0 %v3832, 24
          %v3923 = vpop.permute.xlu0 %3922
          %3924 = vrot.lane.b32.xlu0 %v3833, 24
          %v3925 = vpop.permute.xlu0 %3924
          %3926 = vrot.lane.b32.xlu0 %v3834, 24
          %v3927 = vpop.permute.xlu0 %3926
          %3928 = vrot.lane.b32.xlu0 %v3835, 24
          %v3929 = vpop.permute.xlu0 %3928
          %3930 = vrot.lane.b32.xlu0 %v3836, 24
          %v3931 = vpop.permute.xlu0 %3930
          %3932 = vrot.lane.b32.xlu0 %v3837, 24
          %v3933 = vpop.permute.xlu0 %3932
          %3966 = vst.msk [vmem:[#allocation5] sm:$0xff] %vm1927, %v3871
          %3967 = vst.msk [vmem:[#allocation5 + $0x8] sm:$0xff] %vm1927, %v3873
          %3968 = vst.msk [vmem:[#allocation5 + $0x10] sm:$0xff] %vm1927, %v3875
          %3969 = vst.msk [vmem:[#allocation5 + $0x18] sm:$0xff] %vm1927, %v3877
          %3970 = vst.msk [vmem:[#allocation5 + $0x20] sm:$0xff] %vm1927, %v3879
          %3971 = vst.msk [vmem:[#allocation5 + $0x28] sm:$0xff] %vm1927, %v3881
          %3972 = vst.msk [vmem:[#allocation5 + $0x30] sm:$0xff] %vm1927, %v3883
          %3973 = vst.msk [vmem:[#allocation5 + $0x38] sm:$0xff] %vm1927, %v3885
          %3974 = vst.msk [vmem:[#allocation5 + $0x40] sm:$0xff] %vm1927, %v3887
          %3975 = vst.msk [vmem:[#allocation5 + $0x48] sm:$0xff] %vm1927, %v3889
          %3976 = vst.msk [vmem:[#allocation5 + $0x50] sm:$0xff] %vm1927, %v3891
          %3977 = vst.msk [vmem:[#allocation5 + $0x58] sm:$0xff] %vm1927, %v3893
          %3978 = vst.msk [vmem:[#allocation5 + $0x60] sm:$0xff] %vm1927, %v3895
          %3979 = vst.msk [vmem:[#allocation5 + $0x68] sm:$0xff] %vm1927, %v3897
          %3980 = vst.msk [vmem:[#allocation5 + $0x70] sm:$0xff] %vm1927, %v3899
          %3981 = vst.msk [vmem:[#allocation5 + $0x78] sm:$0xff] %vm1927, %v3901
          %3982 = vst.msk [vmem:[#allocation5 + $0x80] sm:$0xff] %vm1927, %v3903
          %3983 = vst.msk [vmem:[#allocation5 + $0x88] sm:$0xff] %vm1927, %v3905
          %3984 = vst.msk [vmem:[#allocation5 + $0x90] sm:$0xff] %vm1927, %v3907
          %3985 = vst.msk [vmem:[#allocation5 + $0x98] sm:$0xff] %vm1927, %v3909
          %3986 = vst.msk [vmem:[#allocation5 + $0xa0] sm:$0xff] %vm1927, %v3911
          %3987 = vst.msk [vmem:[#allocation5 + $0xa8] sm:$0xff] %vm1927, %v3913
          %3988 = vst.msk [vmem:[#allocation5 + $0xb0] sm:$0xff] %vm1927, %v3915
          %3989 = vst.msk [vmem:[#allocation5 + $0xb8] sm:$0xff] %vm1927, %v3917
          %3990 = vst.msk [vmem:[#allocation5 + $0xc0] sm:$0xff] %vm1927, %v3919
          %3991 = vst.msk [vmem:[#allocation5 + $0xc8] sm:$0xff] %vm1927, %v3921
          %3992 = vst.msk [vmem:[#allocation5 + $0xd0] sm:$0xff] %vm1927, %v3923
          %3993 = vst.msk [vmem:[#allocation5 + $0xd8] sm:$0xff] %vm1927, %v3925
          %3994 = vst.msk [vmem:[#allocation5 + $0xe0] sm:$0xff] %vm1927, %v3927
          %3995 = vst.msk [vmem:[#allocation5 + $0xe8] sm:$0xff] %vm1927, %v3929
          %3996 = vst.msk [vmem:[#allocation5 + $0xf0] sm:$0xff] %vm1927, %v3931
          %3997 = vst.msk [vmem:[#allocation5 + $0xf8] sm:$0xff] %vm1927, %v3933
          %v3998 = vld [vmem:[%s3805 + $0x1] sm:$0xff]
          %v3999 = vld [vmem:[%s3805 + $0x9] sm:$0xff]
          %v4000 = vld [vmem:[%s3805 + $0x19] sm:$0xff]
          %v4001 = vld [vmem:[%s3805 + $0x21] sm:$0xff]
          %v4002 = vld [vmem:[%s3805 + $0x31] sm:$0xff]
          %v4003 = vld [vmem:[%s3805 + $0x39] sm:$0xff]
          %v4004 = vld [vmem:[%s3805 + $0x49] sm:$0xff]
          %v4005 = vld [vmem:[%s3805 + $0x51] sm:$0xff]
          %v4006 = vld [vmem:[%s3805 + $0x61] sm:$0xff]
          %v4007 = vld [vmem:[%s3805 + $0x69] sm:$0xff]
          %v4008 = vld [vmem:[%s3805 + $0x79] sm:$0xff]
          %v4009 = vld [vmem:[%s3805 + $0x81] sm:$0xff]
          %v4010 = vld [vmem:[%s3805 + $0x91] sm:$0xff]
          %v4011 = vld [vmem:[%s3805 + $0x99] sm:$0xff]
          %v4012 = vld [vmem:[%s3805 + $0xa9] sm:$0xff]
          %v4013 = vld [vmem:[%s3805 + $0xb1] sm:$0xff]
          %v4014 = vld [vmem:[%s3805 + $0xc1] sm:$0xff]
          %v4015 = vld [vmem:[%s3805 + $0xc9] sm:$0xff]
          %v4016 = vld [vmem:[%s3805 + $0xd9] sm:$0xff]
          %v4017 = vld [vmem:[%s3805 + $0xe1] sm:$0xff]
          %v4018 = vld [vmem:[%s3805 + $0xf1] sm:$0xff]
          %v4019 = vld [vmem:[%s3805 + $0xf9] sm:$0xff]
          %v4020 = vld [vmem:[%s3805 + $0x109] sm:$0xff]
          %v4021 = vld [vmem:[%s3805 + $0x111] sm:$0xff]
          %v4022 = vld [vmem:[%s3805 + $0x121] sm:$0xff]
          %v4023 = vld [vmem:[%s3805 + $0x129] sm:$0xff]
          %v4024 = vld [vmem:[%s3805 + $0x139] sm:$0xff]
          %v4025 = vld [vmem:[%s3805 + $0x141] sm:$0xff]
          %v4026 = vld [vmem:[%s3805 + $0x151] sm:$0xff]
          %v4027 = vld [vmem:[%s3805 + $0x159] sm:$0xff]
          %v4028 = vld [vmem:[%s3805 + $0x169] sm:$0xff]
          %v4029 = vld [vmem:[%s3805 + $0x171] sm:$0xff]
          %4062 = vrot.lane.b32.xlu0 %v3998, 28
          %v4063 = vpop.permute.xlu0 %4062
          %4064 = vrot.lane.b32.xlu0 %v3999, 28
          %v4065 = vpop.permute.xlu0 %4064
          %4066 = vrot.lane.b32.xlu0 %v4000, 28
          %v4067 = vpop.permute.xlu0 %4066
          %4068 = vrot.lane.b32.xlu0 %v4001, 28
          %v4069 = vpop.permute.xlu0 %4068
          %4070 = vrot.lane.b32.xlu0 %v4002, 28
          %v4071 = vpop.permute.xlu0 %4070
          %4072 = vrot.lane.b32.xlu0 %v4003, 28
          %v4073 = vpop.permute.xlu0 %4072
          %4074 = vrot.lane.b32.xlu0 %v4004, 28
          %v4075 = vpop.permute.xlu0 %4074
          %4076 = vrot.lane.b32.xlu0 %v4005, 28
          %v4077 = vpop.permute.xlu0 %4076
          %4078 = vrot.lane.b32.xlu0 %v4006, 28
          %v4079 = vpop.permute.xlu0 %4078
          %4080 = vrot.lane.b32.xlu0 %v4007, 28
          %v4081 = vpop.permute.xlu0 %4080
          %4082 = vrot.lane.b32.xlu0 %v4008, 28
          %v4083 = vpop.permute.xlu0 %4082
          %4084 = vrot.lane.b32.xlu0 %v4009, 28
          %v4085 = vpop.permute.xlu0 %4084
          %4086 = vrot.lane.b32.xlu0 %v4010, 28
          %v4087 = vpop.permute.xlu0 %4086
          %4088 = vrot.lane.b32.xlu0 %v4011, 28
          %v4089 = vpop.permute.xlu0 %4088
          %4090 = vrot.lane.b32.xlu0 %v4012, 28
          %v4091 = vpop.permute.xlu0 %4090
          %4092 = vrot.lane.b32.xlu0 %v4013, 28
          %v4093 = vpop.permute.xlu0 %4092
          %4094 = vrot.lane.b32.xlu0 %v4014, 28
          %v4095 = vpop.permute.xlu0 %4094
          %4096 = vrot.lane.b32.xlu0 %v4015, 28
          %v4097 = vpop.permute.xlu0 %4096
          %4098 = vrot.lane.b32.xlu0 %v4016, 28
          %v4099 = vpop.permute.xlu0 %4098
          %4100 = vrot.lane.b32.xlu0 %v4017, 28
          %v4101 = vpop.permute.xlu0 %4100
          %4102 = vrot.lane.b32.xlu0 %v4018, 28
          %v4103 = vpop.permute.xlu0 %4102
          %4104 = vrot.lane.b32.xlu0 %v4019, 28
          %v4105 = vpop.permute.xlu0 %4104
          %4106 = vrot.lane.b32.xlu0 %v4020, 28
          %v4107 = vpop.permute.xlu0 %4106
          %4108 = vrot.lane.b32.xlu0 %v4021, 28
          %v4109 = vpop.permute.xlu0 %4108
          %4110 = vrot.lane.b32.xlu0 %v4022, 28
          %v4111 = vpop.permute.xlu0 %4110
          %4112 = vrot.lane.b32.xlu0 %v4023, 28
          %v4113 = vpop.permute.xlu0 %4112
          %4114 = vrot.lane.b32.xlu0 %v4024, 28
          %v4115 = vpop.permute.xlu0 %4114
          %4116 = vrot.lane.b32.xlu0 %v4025, 28
          %v4117 = vpop.permute.xlu0 %4116
          %4118 = vrot.lane.b32.xlu0 %v4026, 28
          %v4119 = vpop.permute.xlu0 %4118
          %4120 = vrot.lane.b32.xlu0 %v4027, 28
          %v4121 = vpop.permute.xlu0 %4120
          %4122 = vrot.lane.b32.xlu0 %v4028, 28
          %v4123 = vpop.permute.xlu0 %4122
          %4124 = vrot.lane.b32.xlu0 %v4029, 28
          %v4125 = vpop.permute.xlu0 %4124
          %4158 = vst.msk [vmem:[#allocation5] sm:$0xff] %vm2120, %v4063
          %4159 = vst.msk [vmem:[#allocation5 + $0x8] sm:$0xff] %vm2120, %v4065
          %4160 = vst.msk [vmem:[#allocation5 + $0x10] sm:$0xff] %vm2120, %v4067
          %4161 = vst.msk [vmem:[#allocation5 + $0x18] sm:$0xff] %vm2120, %v4069
          %4162 = vst.msk [vmem:[#allocation5 + $0x20] sm:$0xff] %vm2120, %v4071
          %4163 = vst.msk [vmem:[#allocation5 + $0x28] sm:$0xff] %vm2120, %v4073
          %4164 = vst.msk [vmem:[#allocation5 + $0x30] sm:$0xff] %vm2120, %v4075
          %4165 = vst.msk [vmem:[#allocation5 + $0x38] sm:$0xff] %vm2120, %v4077
          %4166 = vst.msk [vmem:[#allocation5 + $0x40] sm:$0xff] %vm2120, %v4079
          %4167 = vst.msk [vmem:[#allocation5 + $0x48] sm:$0xff] %vm2120, %v4081
          %4168 = vst.msk [vmem:[#allocation5 + $0x50] sm:$0xff] %vm2120, %v4083
          %4169 = vst.msk [vmem:[#allocation5 + $0x58] sm:$0xff] %vm2120, %v4085
          %4170 = vst.msk [vmem:[#allocation5 + $0x60] sm:$0xff] %vm2120, %v4087
          %4171 = vst.msk [vmem:[#allocation5 + $0x68] sm:$0xff] %vm2120, %v4089
          %4172 = vst.msk [vmem:[#allocation5 + $0x70] sm:$0xff] %vm2120, %v4091
          %4173 = vst.msk [vmem:[#allocation5 + $0x78] sm:$0xff] %vm2120, %v4093
          %4174 = vst.msk [vmem:[#allocation5 + $0x80] sm:$0xff] %vm2120, %v4095
          %4175 = vst.msk [vmem:[#allocation5 + $0x88] sm:$0xff] %vm2120, %v4097
          %4176 = vst.msk [vmem:[#allocation5 + $0x90] sm:$0xff] %vm2120, %v4099
          %4177 = vst.msk [vmem:[#allocation5 + $0x98] sm:$0xff] %vm2120, %v4101
          %4178 = vst.msk [vmem:[#allocation5 + $0xa0] sm:$0xff] %vm2120, %v4103
          %4179 = vst.msk [vmem:[#allocation5 + $0xa8] sm:$0xff] %vm2120, %v4105
          %4180 = vst.msk [vmem:[#allocation5 + $0xb0] sm:$0xff] %vm2120, %v4107
          %4181 = vst.msk [vmem:[#allocation5 + $0xb8] sm:$0xff] %vm2120, %v4109
          %4182 = vst.msk [vmem:[#allocation5 + $0xc0] sm:$0xff] %vm2120, %v4111
          %4183 = vst.msk [vmem:[#allocation5 + $0xc8] sm:$0xff] %vm2120, %v4113
          %4184 = vst.msk [vmem:[#allocation5 + $0xd0] sm:$0xff] %vm2120, %v4115
          %4185 = vst.msk [vmem:[#allocation5 + $0xd8] sm:$0xff] %vm2120, %v4117
          %4186 = vst.msk [vmem:[#allocation5 + $0xe0] sm:$0xff] %vm2120, %v4119
          %4187 = vst.msk [vmem:[#allocation5 + $0xe8] sm:$0xff] %vm2120, %v4121
          %4188 = vst.msk [vmem:[#allocation5 + $0xf0] sm:$0xff] %vm2120, %v4123
          %4189 = vst.msk [vmem:[#allocation5 + $0xf8] sm:$0xff] %vm2120, %v4125
          %v4190 = vld [vmem:[%s3805 + $0x2] sm:$0xff]
          %v4191 = vld [vmem:[%s3805 + $0xa] sm:$0xff]
          %v4192 = vld [vmem:[%s3805 + $0x1a] sm:$0xff]
          %v4193 = vld [vmem:[%s3805 + $0x22] sm:$0xff]
          %v4194 = vld [vmem:[%s3805 + $0x32] sm:$0xff]
          %v4195 = vld [vmem:[%s3805 + $0x3a] sm:$0xff]
          %v4196 = vld [vmem:[%s3805 + $0x4a] sm:$0xff]
          %v4197 = vld [vmem:[%s3805 + $0x52] sm:$0xff]
          %v4198 = vld [vmem:[%s3805 + $0x62] sm:$0xff]
          %v4199 = vld [vmem:[%s3805 + $0x6a] sm:$0xff]
          %v4200 = vld [vmem:[%s3805 + $0x7a] sm:$0xff]
          %v4201 = vld [vmem:[%s3805 + $0x82] sm:$0xff]
          %v4202 = vld [vmem:[%s3805 + $0x92] sm:$0xff]
          %v4203 = vld [vmem:[%s3805 + $0x9a] sm:$0xff]
          %v4204 = vld [vmem:[%s3805 + $0xaa] sm:$0xff]
          %v4205 = vld [vmem:[%s3805 + $0xb2] sm:$0xff]
          %v4206 = vld [vmem:[%s3805 + $0xc2] sm:$0xff]
          %v4207 = vld [vmem:[%s3805 + $0xca] sm:$0xff]
          %v4208 = vld [vmem:[%s3805 + $0xda] sm:$0xff]
          %v4209 = vld [vmem:[%s3805 + $0xe2] sm:$0xff]
          %v4210 = vld [vmem:[%s3805 + $0xf2] sm:$0xff]
          %v4211 = vld [vmem:[%s3805 + $0xfa] sm:$0xff]
          %v4212 = vld [vmem:[%s3805 + $0x10a] sm:$0xff]
          %v4213 = vld [vmem:[%s3805 + $0x112] sm:$0xff]
          %v4214 = vld [vmem:[%s3805 + $0x122] sm:$0xff]
          %v4215 = vld [vmem:[%s3805 + $0x12a] sm:$0xff]
          %v4216 = vld [vmem:[%s3805 + $0x13a] sm:$0xff]
          %v4217 = vld [vmem:[%s3805 + $0x142] sm:$0xff]
          %v4218 = vld [vmem:[%s3805 + $0x152] sm:$0xff]
          %v4219 = vld [vmem:[%s3805 + $0x15a] sm:$0xff]
          %v4220 = vld [vmem:[%s3805 + $0x16a] sm:$0xff]
          %v4221 = vld [vmem:[%s3805 + $0x172] sm:$0xff]
          %4254 = vrot.lane.b32.xlu0 %v4190, 32
          %v4255 = vpop.permute.xlu0 %4254
          %4256 = vrot.lane.b32.xlu0 %v4191, 32
          %v4257 = vpop.permute.xlu0 %4256
          %4258 = vrot.lane.b32.xlu0 %v4192, 32
          %v4259 = vpop.permute.xlu0 %4258
          %4260 = vrot.lane.b32.xlu0 %v4193, 32
          %v4261 = vpop.permute.xlu0 %4260
          %4262 = vrot.lane.b32.xlu0 %v4194, 32
          %v4263 = vpop.permute.xlu0 %4262
          %4264 = vrot.lane.b32.xlu0 %v4195, 32
          %v4265 = vpop.permute.xlu0 %4264
          %4266 = vrot.lane.b32.xlu0 %v4196, 32
          %v4267 = vpop.permute.xlu0 %4266
          %4268 = vrot.lane.b32.xlu0 %v4197, 32
          %v4269 = vpop.permute.xlu0 %4268
          %4270 = vrot.lane.b32.xlu0 %v4198, 32
          %v4271 = vpop.permute.xlu0 %4270
          %4272 = vrot.lane.b32.xlu0 %v4199, 32
          %v4273 = vpop.permute.xlu0 %4272
          %4274 = vrot.lane.b32.xlu0 %v4200, 32
          %v4275 = vpop.permute.xlu0 %4274
          %4276 = vrot.lane.b32.xlu0 %v4201, 32
          %v4277 = vpop.permute.xlu0 %4276
          %4278 = vrot.lane.b32.xlu0 %v4202, 32
          %v4279 = vpop.permute.xlu0 %4278
          %4280 = vrot.lane.b32.xlu0 %v4203, 32
          %v4281 = vpop.permute.xlu0 %4280
          %4282 = vrot.lane.b32.xlu0 %v4204, 32
          %v4283 = vpop.permute.xlu0 %4282
          %4284 = vrot.lane.b32.xlu0 %v4205, 32
          %v4285 = vpop.permute.xlu0 %4284
          %4286 = vrot.lane.b32.xlu0 %v4206, 32
          %v4287 = vpop.permute.xlu0 %4286
          %4288 = vrot.lane.b32.xlu0 %v4207, 32
          %v4289 = vpop.permute.xlu0 %4288
          %4290 = vrot.lane.b32.xlu0 %v4208, 32
          %v4291 = vpop.permute.xlu0 %4290
          %4292 = vrot.lane.b32.xlu0 %v4209, 32
          %v4293 = vpop.permute.xlu0 %4292
          %4294 = vrot.lane.b32.xlu0 %v4210, 32
          %v4295 = vpop.permute.xlu0 %4294
          %4296 = vrot.lane.b32.xlu0 %v4211, 32
          %v4297 = vpop.permute.xlu0 %4296
          %4298 = vrot.lane.b32.xlu0 %v4212, 32
          %v4299 = vpop.permute.xlu0 %4298
          %4300 = vrot.lane.b32.xlu0 %v4213, 32
          %v4301 = vpop.permute.xlu0 %4300
          %4302 = vrot.lane.b32.xlu0 %v4214, 32
          %v4303 = vpop.permute.xlu0 %4302
          %4304 = vrot.lane.b32.xlu0 %v4215, 32
          %v4305 = vpop.permute.xlu0 %4304
          %4306 = vrot.lane.b32.xlu0 %v4216, 32
          %v4307 = vpop.permute.xlu0 %4306
          %4308 = vrot.lane.b32.xlu0 %v4217, 32
          %v4309 = vpop.permute.xlu0 %4308
          %4310 = vrot.lane.b32.xlu0 %v4218, 32
          %v4311 = vpop.permute.xlu0 %4310
          %4312 = vrot.lane.b32.xlu0 %v4219, 32
          %v4313 = vpop.permute.xlu0 %4312
          %4314 = vrot.lane.b32.xlu0 %v4220, 32
          %v4315 = vpop.permute.xlu0 %4314
          %4316 = vrot.lane.b32.xlu0 %v4221, 32
          %v4317 = vpop.permute.xlu0 %4316
          %4350 = vst.msk [vmem:[#allocation5] sm:$0xff] %vm2313, %v4255
          %4351 = vst.msk [vmem:[#allocation5 + $0x8] sm:$0xff] %vm2313, %v4257
          %4352 = vst.msk [vmem:[#allocation5 + $0x10] sm:$0xff] %vm2313, %v4259
          %4353 = vst.msk [vmem:[#allocation5 + $0x18] sm:$0xff] %vm2313, %v4261
          %4354 = vst.msk [vmem:[#allocation5 + $0x20] sm:$0xff] %vm2313, %v4263
          %4355 = vst.msk [vmem:[#allocation5 + $0x28] sm:$0xff] %vm2313, %v4265
          %4356 = vst.msk [vmem:[#allocation5 + $0x30] sm:$0xff] %vm2313, %v4267
          %4357 = vst.msk [vmem:[#allocation5 + $0x38] sm:$0xff] %vm2313, %v4269
          %4358 = vst.msk [vmem:[#allocation5 + $0x40] sm:$0xff] %vm2313, %v4271
          %4359 = vst.msk [vmem:[#allocation5 + $0x48] sm:$0xff] %vm2313, %v4273
          %4360 = vst.msk [vmem:[#allocation5 + $0x50] sm:$0xff] %vm2313, %v4275
          %4361 = vst.msk [vmem:[#allocation5 + $0x58] sm:$0xff] %vm2313, %v4277
          %4362 = vst.msk [vmem:[#allocation5 + $0x60] sm:$0xff] %vm2313, %v4279
          %4363 = vst.msk [vmem:[#allocation5 + $0x68] sm:$0xff] %vm2313, %v4281
          %4364 = vst.msk [vmem:[#allocation5 + $0x70] sm:$0xff] %vm2313, %v4283
          %4365 = vst.msk [vmem:[#allocation5 + $0x78] sm:$0xff] %vm2313, %v4285
          %4366 = vst.msk [vmem:[#allocation5 + $0x80] sm:$0xff] %vm2313, %v4287
          %4367 = vst.msk [vmem:[#allocation5 + $0x88] sm:$0xff] %vm2313, %v4289
          %4368 = vst.msk [vmem:[#allocation5 + $0x90] sm:$0xff] %vm2313, %v4291
          %4369 = vst.msk [vmem:[#allocation5 + $0x98] sm:$0xff] %vm2313, %v4293
          %4370 = vst.msk [vmem:[#allocation5 + $0xa0] sm:$0xff] %vm2313, %v4295
          %4371 = vst.msk [vmem:[#allocation5 + $0xa8] sm:$0xff] %vm2313, %v4297
          %4372 = vst.msk [vmem:[#allocation5 + $0xb0] sm:$0xff] %vm2313, %v4299
          %4373 = vst.msk [vmem:[#allocation5 + $0xb8] sm:$0xff] %vm2313, %v4301
          %4374 = vst.msk [vmem:[#allocation5 + $0xc0] sm:$0xff] %vm2313, %v4303
          %4375 = vst.msk [vmem:[#allocation5 + $0xc8] sm:$0xff] %vm2313, %v4305
          %4376 = vst.msk [vmem:[#allocation5 + $0xd0] sm:$0xff] %vm2313, %v4307
          %4377 = vst.msk [vmem:[#allocation5 + $0xd8] sm:$0xff] %vm2313, %v4309
          %4378 = vst.msk [vmem:[#allocation5 + $0xe0] sm:$0xff] %vm2313, %v4311
          %4379 = vst.msk [vmem:[#allocation5 + $0xe8] sm:$0xff] %vm2313, %v4313
          %4380 = vst.msk [vmem:[#allocation5 + $0xf0] sm:$0xff] %vm2313, %v4315
          %4381 = vst.msk [vmem:[#allocation5 + $0xf8] sm:$0xff] %vm2313, %v4317
          %v4382 = vld [vmem:[#allocation5] sm:$0xff]
          %v4383 = vld [vmem:[#allocation5 + $0x8] sm:$0xff]
          %v4384 = vld [vmem:[#allocation5 + $0x10] sm:$0xff]
          %v4385 = vld [vmem:[#allocation5 + $0x18] sm:$0xff]
          %v4386 = vld [vmem:[#allocation5 + $0x20] sm:$0xff]
          %v4387 = vld [vmem:[#allocation5 + $0x28] sm:$0xff]
          %v4388 = vld [vmem:[#allocation5 + $0x30] sm:$0xff]
          %v4389 = vld [vmem:[#allocation5 + $0x38] sm:$0xff]
          %v4390 = vld [vmem:[#allocation5 + $0x40] sm:$0xff]
          %v4391 = vld [vmem:[#allocation5 + $0x48] sm:$0xff]
          %v4392 = vld [vmem:[#allocation5 + $0x50] sm:$0xff]
          %v4393 = vld [vmem:[#allocation5 + $0x58] sm:$0xff]
          %v4394 = vld [vmem:[#allocation5 + $0x60] sm:$0xff]
          %v4395 = vld [vmem:[#allocation5 + $0x68] sm:$0xff]
          %v4396 = vld [vmem:[#allocation5 + $0x70] sm:$0xff]
          %v4397 = vld [vmem:[#allocation5 + $0x78] sm:$0xff]
          %v4398 = vld [vmem:[#allocation5 + $0x80] sm:$0xff]
          %v4399 = vld [vmem:[#allocation5 + $0x88] sm:$0xff]
          %v4400 = vld [vmem:[#allocation5 + $0x90] sm:$0xff]
          %v4401 = vld [vmem:[#allocation5 + $0x98] sm:$0xff]
          %v4402 = vld [vmem:[#allocation5 + $0xa0] sm:$0xff]
          %v4403 = vld [vmem:[#allocation5 + $0xa8] sm:$0xff]
          %v4404 = vld [vmem:[#allocation5 + $0xb0] sm:$0xff]
          %v4405 = vld [vmem:[#allocation5 + $0xb8] sm:$0xff]
          %v4406 = vld [vmem:[#allocation5 + $0xc0] sm:$0xff]
          %v4407 = vld [vmem:[#allocation5 + $0xc8] sm:$0xff]
          %v4408 = vld [vmem:[#allocation5 + $0xd0] sm:$0xff]
          %v4409 = vld [vmem:[#allocation5 + $0xd8] sm:$0xff]
          %v4410 = vld [vmem:[#allocation5 + $0xe0] sm:$0xff]
          %v4411 = vld [vmem:[#allocation5 + $0xe8] sm:$0xff]
          %v4412 = vld [vmem:[#allocation5 + $0xf0] sm:$0xff]
          %v4413 = vld [vmem:[#allocation5 + $0xf8] sm:$0xff]
          %v4414 = vlaneseq
          %v4415 = vshrl.u32 %v4414, 7
          %v4416 = vsub.s32 0, %v4415
          %v4417 = vrot.slane %v2780, %v4416
          %v4419 = vsel %vm2382, %v4382, 0
          %v4422 = vsel %vm2382, %v4383, 0
          %v4425 = vsel %vm2382, %v4384, 0
          %v4428 = vsel %vm2382, %v4385, 0
          %v4431 = vsel %vm2382, %v4386, 0
          %v4434 = vsel %vm2382, %v4387, 0
          %v4437 = vsel %vm2382, %v4388, 0
          %v4440 = vsel %vm2382, %v4389, 0
          %v4443 = vsel %vm2382, %v4390, 0
          %v4446 = vsel %vm2382, %v4391, 0
          %v4449 = vsel %vm2382, %v4392, 0
          %v4452 = vsel %vm2382, %v4393, 0
          %v4455 = vsel %vm2382, %v4394, 0
          %v4458 = vsel %vm2382, %v4395, 0
          %v4461 = vsel %vm2382, %v4396, 0
          %v4464 = vsel %vm2382, %v4397, 0
          %v4467 = vsel %vm2382, %v4398, 0
          %v4470 = vsel %vm2382, %v4399, 0
          %v4473 = vsel %vm2382, %v4400, 0
          %v4476 = vsel %vm2382, %v4401, 0
          %v4479 = vsel %vm2382, %v4402, 0
          %v4482 = vsel %vm2382, %v4403, 0
          %v4485 = vsel %vm2382, %v4404, 0
          %v4488 = vsel %vm2382, %v4405, 0
          %v4491 = vsel %vm2382, %v4406, 0
          %v4494 = vsel %vm2382, %v4407, 0
          %v4497 = vsel %vm2382, %v4408, 0
          %v4500 = vsel %vm2382, %v4409, 0
          %v4503 = vsel %vm2382, %v4410, 0
          %v4506 = vsel %vm2382, %v4411, 0
          %v4509 = vsel %vm2382, %v4412, 0
          %v4512 = vsel %vm2382, %v4413, 0
          %v4515 = vsel %vm2479, %v2778, 0
          %4517 = vmatprep.subr.mxu0 0.0
          %4518 = vmatpush1.msra.mxu0 0.0
          %4519 = vmatprep.subr.mxu0 0.0
          %4520 = vmatpush1.msra.mxu0 0.0
          %4521 = vmatprep.subr.mxu0 0.0
          %4522 = vmatpush1.msra.mxu0 0.0
          %4523 = vmatprep.subr.mxu0 0.0
          %4524 = vmatpush1.msra.mxu0 0.0
          %4525 = vmatprep.subr.mxu0 0.0
          %4526 = vmatpush1.msra.mxu0 0.0
          %4527 = vmatprep.subr.mxu0 0.0
          %4528 = vmatpush1.msra.mxu0 0.0
          %4529 = vmatprep.subr.mxu0 0.0
          %4530 = vmatpush1.msra.mxu0 0.0
          %4531 = vmatprep.subr.mxu0 0.0
          %4532 = vmatpush1.msra.mxu0 0.0
          %4533 = vmatprep.subr.mxu0 0.0
          %4534 = vmatpush1.msra.mxu0 0.0
          %4535 = vmatprep.subr.mxu0 0.0
          %4536 = vmatpush1.msra.mxu0 0.0
          %4537 = vmatprep.subr.mxu0 0.0
          %4538 = vmatpush1.msra.mxu0 0.0
          %4539 = vmatprep.subr.mxu0 0.0
          %4540 = vmatpush1.msra.mxu0 %v4515
          %4541 = vmatprep.subr.mxu0 0.0
          %4542 = vmatpush1.msra.mxu0 %v2777
          %4543 = vmatprep.subr.mxu0 0.0
          %4544 = vmatpush1.msra.mxu0 %v2776
          %4545 = vmatprep.subr.mxu0 0.0
          %4546 = vmatpush1.msra.mxu0 %v2775
          %4547 = vmatprep.subr.mxu0 0.0
          %4548 = vmatpush1.msra.mxu0 %v2774
          %4549 = vmatprep.subr.mxu0 0.0
          %4550 = vmatpush2.msra.mxu0 0.0
          %4551 = vmatprep.subr.mxu0 0.0
          %4552 = vmatpush2.msra.mxu0 0.0
          %4553 = vmatprep.subr.mxu0 0.0
          %4554 = vmatpush2.msra.mxu0 0.0
          %4555 = vmatprep.subr.mxu0 0.0
          %4556 = vmatpush2.msra.mxu0 0.0
          %4557 = vmatprep.subr.mxu0 0.0
          %4558 = vmatpush2.msra.mxu0 0.0
          %4559 = vmatprep.subr.mxu0 0.0
          %4560 = vmatpush2.msra.mxu0 0.0
          %4561 = vmatprep.subr.mxu0 0.0
          %4562 = vmatpush2.msra.mxu0 0.0
          %4563 = vmatprep.subr.mxu0 0.0
          %4564 = vmatpush2.msra.mxu0 0.0
          %4565 = vmatprep.subr.mxu0 0.0
          %4566 = vmatpush2.msra.mxu0 0.0
          %4567 = vmatprep.subr.mxu0 0.0
          %4568 = vmatpush2.msra.mxu0 0.0
          %4569 = vmatprep.subr.mxu0 0.0
          %4570 = vmatpush2.msra.mxu0 0.0
          %4571 = vmatprep.subr.mxu0 0.0
          %4572 = vmatpush2.msra.mxu0 0.0
          %4573 = vmatprep.subr.mxu0 0.0
          %4574 = vmatpush2.msra.mxu0 0.0
          %4575 = vmatprep.subr.mxu0 0.0
          %4576 = vmatpush2.msra.mxu0 0.0
          %4577 = vmatprep.subr.mxu0 0.0
          %4578 = vmatpush2.msra.mxu0 0.0
          %4579 = vmatprep.subr.mxu0 0.0
          %4580 = vmatpush2.msra.mxu0 0.0
          %4581 = vmatprep.mubr.f32.mxu0 0.0
          %4582 = vmatmul.mubr.f32.gmra.mxu0 %v4419
          %v4583 = vpop.f32.mrf.mxu0
          %v4584 = vadd.f32 %v4417, %v4583
          %v4585 = vpop.f32.mrf.mxu0
          %4586 = vmatprep.mubr.f32.mxu0 0.0
          %4587 = vmatmul.mubr.f32.gmra.mxu0 %v4422
          %v4588 = vpop.f32.mrf.mxu0
          %v4589 = vadd.f32 %v4417, %v4588
          %v4590 = vpop.f32.mrf.mxu0
          %4591 = vmatprep.mubr.f32.mxu0 0.0
          %4592 = vmatmul.mubr.f32.gmra.mxu0 %v4425
          %v4593 = vpop.f32.mrf.mxu0
          %v4594 = vadd.f32 %v4417, %v4593
          %v4595 = vpop.f32.mrf.mxu0
          %4596 = vmatprep.mubr.f32.mxu0 0.0
          %4597 = vmatmul.mubr.f32.gmra.mxu0 %v4428
          %v4598 = vpop.f32.mrf.mxu0
          %v4599 = vadd.f32 %v4417, %v4598
          %v4600 = vpop.f32.mrf.mxu0
          %4601 = vmatprep.mubr.f32.mxu0 0.0
          %4602 = vmatmul.mubr.f32.gmra.mxu0 %v4431
          %v4603 = vpop.f32.mrf.mxu0
          %v4604 = vadd.f32 %v4417, %v4603
          %v4605 = vpop.f32.mrf.mxu0
          %4606 = vmatprep.mubr.f32.mxu0 0.0
          %4607 = vmatmul.mubr.f32.gmra.mxu0 %v4434
          %v4608 = vpop.f32.mrf.mxu0
          %v4609 = vadd.f32 %v4417, %v4608
          %v4610 = vpop.f32.mrf.mxu0
          %4611 = vmatprep.mubr.f32.mxu0 0.0
          %4612 = vmatmul.mubr.f32.gmra.mxu0 %v4437
          %v4613 = vpop.f32.mrf.mxu0
          %v4614 = vadd.f32 %v4417, %v4613
          %v4615 = vpop.f32.mrf.mxu0
          %4616 = vmatprep.mubr.f32.mxu0 0.0
          %4617 = vmatmul.mubr.f32.gmra.mxu0 %v4440
          %v4618 = vpop.f32.mrf.mxu0
          %v4619 = vadd.f32 %v4417, %v4618
          %v4620 = vpop.f32.mrf.mxu0
          %4621 = vmatprep.mubr.f32.mxu0 0.0
          %4622 = vmatmul.mubr.f32.gmra.mxu0 %v4443
          %v4623 = vpop.f32.mrf.mxu0
          %v4624 = vadd.f32 %v4417, %v4623
          %v4625 = vpop.f32.mrf.mxu0
          %4626 = vmatprep.mubr.f32.mxu0 0.0
          %4627 = vmatmul.mubr.f32.gmra.mxu0 %v4446
          %v4628 = vpop.f32.mrf.mxu0
          %v4629 = vadd.f32 %v4417, %v4628
          %v4630 = vpop.f32.mrf.mxu0
          %4631 = vmatprep.mubr.f32.mxu0 0.0
          %4632 = vmatmul.mubr.f32.gmra.mxu0 %v4449
          %v4633 = vpop.f32.mrf.mxu0
          %v4634 = vadd.f32 %v4417, %v4633
          %v4635 = vpop.f32.mrf.mxu0
          %4636 = vmatprep.mubr.f32.mxu0 0.0
          %4637 = vmatmul.mubr.f32.gmra.mxu0 %v4452
          %v4638 = vpop.f32.mrf.mxu0
          %v4639 = vadd.f32 %v4417, %v4638
          %v4640 = vpop.f32.mrf.mxu0
          %4641 = vmatprep.mubr.f32.mxu0 0.0
          %4642 = vmatmul.mubr.f32.gmra.mxu0 %v4455
          %v4643 = vpop.f32.mrf.mxu0
          %v4644 = vadd.f32 %v4417, %v4643
          %v4645 = vpop.f32.mrf.mxu0
          %4646 = vmatprep.mubr.f32.mxu0 0.0
          %4647 = vmatmul.mubr.f32.gmra.mxu0 %v4458
          %v4648 = vpop.f32.mrf.mxu0
          %v4649 = vadd.f32 %v4417, %v4648
          %v4650 = vpop.f32.mrf.mxu0
          %4651 = vmatprep.mubr.f32.mxu0 0.0
          %4652 = vmatmul.mubr.f32.gmra.mxu0 %v4461
          %v4653 = vpop.f32.mrf.mxu0
          %v4654 = vadd.f32 %v4417, %v4653
          %v4655 = vpop.f32.mrf.mxu0
          %4656 = vmatprep.mubr.f32.mxu0 0.0
          %4657 = vmatmul.mubr.f32.gmra.mxu0 %v4464
          %v4658 = vpop.f32.mrf.mxu0
          %v4659 = vadd.f32 %v4417, %v4658
          %v4660 = vpop.f32.mrf.mxu0
          %4661 = vmatprep.mubr.f32.mxu0 0.0
          %4662 = vmatmul.mubr.f32.gmra.mxu0 %v4467
          %v4663 = vpop.f32.mrf.mxu0
          %v4664 = vadd.f32 %v4417, %v4663
          %v4665 = vpop.f32.mrf.mxu0
          %4666 = vmatprep.mubr.f32.mxu0 0.0
          %4667 = vmatmul.mubr.f32.gmra.mxu0 %v4470
          %v4668 = vpop.f32.mrf.mxu0
          %v4669 = vadd.f32 %v4417, %v4668
          %v4670 = vpop.f32.mrf.mxu0
          %4671 = vmatprep.mubr.f32.mxu0 0.0
          %4672 = vmatmul.mubr.f32.gmra.mxu0 %v4473
          %v4673 = vpop.f32.mrf.mxu0
          %v4674 = vadd.f32 %v4417, %v4673
          %v4675 = vpop.f32.mrf.mxu0
          %4676 = vmatprep.mubr.f32.mxu0 0.0
          %4677 = vmatmul.mubr.f32.gmra.mxu0 %v4476
          %v4678 = vpop.f32.mrf.mxu0
          %v4679 = vadd.f32 %v4417, %v4678
          %v4680 = vpop.f32.mrf.mxu0
          %4681 = vmatprep.mubr.f32.mxu0 0.0
          %4682 = vmatmul.mubr.f32.gmra.mxu0 %v4479
          %v4683 = vpop.f32.mrf.mxu0
          %v4684 = vadd.f32 %v4417, %v4683
          %v4685 = vpop.f32.mrf.mxu0
          %4686 = vmatprep.mubr.f32.mxu0 0.0
          %4687 = vmatmul.mubr.f32.gmra.mxu0 %v4482
          %v4688 = vpop.f32.mrf.mxu0
          %v4689 = vadd.f32 %v4417, %v4688
          %v4690 = vpop.f32.mrf.mxu0
          %4691 = vmatprep.mubr.f32.mxu0 0.0
          %4692 = vmatmul.mubr.f32.gmra.mxu0 %v4485
          %v4693 = vpop.f32.mrf.mxu0
          %v4694 = vadd.f32 %v4417, %v4693
          %v4695 = vpop.f32.mrf.mxu0
          %4696 = vmatprep.mubr.f32.mxu0 0.0
          %4697 = vmatmul.mubr.f32.gmra.mxu0 %v4488
          %v4698 = vpop.f32.mrf.mxu0
          %v4699 = vadd.f32 %v4417, %v4698
          %v4700 = vpop.f32.mrf.mxu0
          %4701 = vmatprep.mubr.f32.mxu0 0.0
          %4702 = vmatmul.mubr.f32.gmra.mxu0 %v4491
          %v4703 = vpop.f32.mrf.mxu0
          %v4704 = vadd.f32 %v4417, %v4703
          %v4705 = vpop.f32.mrf.mxu0
          %4706 = vmatprep.mubr.f32.mxu0 0.0
          %4707 = vmatmul.mubr.f32.gmra.mxu0 %v4494
          %v4708 = vpop.f32.mrf.mxu0
          %v4709 = vadd.f32 %v4417, %v4708
          %v4710 = vpop.f32.mrf.mxu0
          %4711 = vmatprep.mubr.f32.mxu0 0.0
          %4712 = vmatmul.mubr.f32.gmra.mxu0 %v4497
          %v4713 = vpop.f32.mrf.mxu0
          %v4714 = vadd.f32 %v4417, %v4713
          %v4715 = vpop.f32.mrf.mxu0
          %4716 = vmatprep.mubr.f32.mxu0 0.0
          %4717 = vmatmul.mubr.f32.gmra.mxu0 %v4500
          %v4718 = vpop.f32.mrf.mxu0
          %v4719 = vadd.f32 %v4417, %v4718
          %v4720 = vpop.f32.mrf.mxu0
          %4721 = vmatprep.mubr.f32.mxu0 0.0
          %4722 = vmatmul.mubr.f32.gmra.mxu0 %v4503
          %v4723 = vpop.f32.mrf.mxu0
          %v4724 = vadd.f32 %v4417, %v4723
          %v4725 = vpop.f32.mrf.mxu0
          %4726 = vmatprep.mubr.f32.mxu0 0.0
          %4727 = vmatmul.mubr.f32.gmra.mxu0 %v4506
          %v4728 = vpop.f32.mrf.mxu0
          %v4729 = vadd.f32 %v4417, %v4728
          %v4730 = vpop.f32.mrf.mxu0
          %4731 = vmatprep.mubr.f32.mxu0 0.0
          %4732 = vmatmul.mubr.f32.gmra.mxu0 %v4509
          %v4733 = vpop.f32.mrf.mxu0
          %v4734 = vadd.f32 %v4417, %v4733
          %v4735 = vpop.f32.mrf.mxu0
          %4736 = vmatprep.mubr.f32.mxu0 0.0
          %4737 = vmatmul.mubr.f32.gmra.mxu0 %v4512
          %v4738 = vpop.f32.mrf.mxu0
          %v4739 = vadd.f32 %v4417, %v4738
          %v4740 = vpop.f32.mrf.mxu0
          %4741 = vdwg.mxu0
          %v4742 = vsel %vm495, %v4584, 0.0
          %v4743 = vsel %vm495, %v4589, 0.0
          %v4744 = vadd.f32 %v4742, %v4743
          %v4745 = vsel %vm495, %v4594, 0.0
          %v4746 = vadd.f32 %v4744, %v4745
          %v4747 = vsel %vm495, %v4599, 0.0
          %v4748 = vadd.f32 %v4746, %v4747
          %v4749 = vsel %vm495, %v4604, 0.0
          %v4750 = vadd.f32 %v4748, %v4749
          %v4751 = vsel %vm495, %v4609, 0.0
          %v4752 = vadd.f32 %v4750, %v4751
          %v4753 = vsel %vm495, %v4614, 0.0
          %v4754 = vadd.f32 %v4752, %v4753
          %v4755 = vsel %vm495, %v4619, 0.0
          %v4756 = vadd.f32 %v4754, %v4755
          %v4757 = vsel %vm495, %v4624, 0.0
          %v4758 = vadd.f32 %v4756, %v4757
          %v4759 = vsel %vm495, %v4629, 0.0
          %v4760 = vadd.f32 %v4758, %v4759
          %v4761 = vsel %vm495, %v4634, 0.0
          %v4762 = vadd.f32 %v4760, %v4761
          %v4763 = vsel %vm495, %v4639, 0.0
          %v4764 = vadd.f32 %v4762, %v4763
          %v4765 = vsel %vm495, %v4644, 0.0
          %v4766 = vadd.f32 %v4764, %v4765
          %v4767 = vsel %vm495, %v4649, 0.0
          %v4768 = vadd.f32 %v4766, %v4767
          %v4769 = vsel %vm495, %v4654, 0.0
          %v4770 = vadd.f32 %v4768, %v4769
          %v4771 = vsel %vm495, %v4659, 0.0
          %v4772 = vadd.f32 %v4770, %v4771
          %v4773 = vsel %vm495, %v4664, 0.0
          %v4774 = vadd.f32 %v4772, %v4773
          %v4775 = vsel %vm495, %v4669, 0.0
          %v4776 = vadd.f32 %v4774, %v4775
          %v4777 = vsel %vm495, %v4674, 0.0
          %v4778 = vadd.f32 %v4776, %v4777
          %v4779 = vsel %vm495, %v4679, 0.0
          %v4780 = vadd.f32 %v4778, %v4779
          %v4781 = vsel %vm495, %v4684, 0.0
          %v4782 = vadd.f32 %v4780, %v4781
          %v4783 = vsel %vm495, %v4689, 0.0
          %v4784 = vadd.f32 %v4782, %v4783
          %v4785 = vsel %vm495, %v4694, 0.0
          %v4786 = vadd.f32 %v4784, %v4785
          %v4787 = vsel %vm495, %v4699, 0.0
          %v4788 = vadd.f32 %v4786, %v4787
          %v4789 = vsel %vm495, %v4704, 0.0
          %v4790 = vadd.f32 %v4788, %v4789
          %v4791 = vsel %vm495, %v4709, 0.0
          %v4792 = vadd.f32 %v4790, %v4791
          %v4793 = vsel %vm495, %v4714, 0.0
          %v4794 = vadd.f32 %v4792, %v4793
          %v4795 = vsel %vm495, %v4719, 0.0
          %v4796 = vadd.f32 %v4794, %v4795
          %v4797 = vsel %vm495, %v4724, 0.0
          %v4798 = vadd.f32 %v4796, %v4797
          %v4799 = vsel %vm495, %v4729, 0.0
          %v4800 = vadd.f32 %v4798, %v4799
          %v4801 = vsel %vm495, %v4734, 0.0
          %v4802 = vadd.f32 %v4800, %v4801
          %v4803 = vsel %vm495, %v4739, 0.0
          %v4804 = vadd.f32 %v4802, %v4803
          %v4805 = vrot.slane %v4804, 4
          %v4806 = vadd.f32 %v4804, %v4805
          %v4807 = vrot.slane %v4806, 2
          %v4808 = vadd.f32 %v4806, %v4807
          %v4809 = vrot.slane %v4808, 1
          %v4810 = vadd.f32 %v4808, %v4809
          %v4811 = vrcp.pop 256.0
          %v4812 = vmul.f32 %v4810, %v4811
          %s4813 = smul.u32 %s726, 4
          %s4814 = scalar_lea.vmem %s5, %s4813
          %v4815 = vld [vmem:[%s4814] sm:$0xf]
          %s4816 = scalar_lea.vmem %s6, %s726
          %v4817 = vld [vmem:[%s4816] sm:$0x1]
          %v4819 = vsel %vm495, %v4812, 0
          %v4822 = vsel %vm2479, %v4815, 0
          %4824 = vmatprep.subr.mxu0 0.0
          %4825 = vmatpush1.msra.mxu0 0.0
          %4826 = vmatprep.subr.mxu0 0.0
          %4827 = vmatpush1.msra.mxu0 0.0
          %4828 = vmatprep.subr.mxu0 0.0
          %4829 = vmatpush1.msra.mxu0 0.0
          %4830 = vmatprep.subr.mxu0 0.0
          %4831 = vmatpush1.msra.mxu0 0.0
          %4832 = vmatprep.subr.mxu0 0.0
          %4833 = vmatpush1.msra.mxu0 0.0
          %4834 = vmatprep.subr.mxu0 0.0
          %4835 = vmatpush1.msra.mxu0 0.0
          %4836 = vmatprep.subr.mxu0 0.0
          %4837 = vmatpush1.msra.mxu0 0.0
          %4838 = vmatprep.subr.mxu0 0.0
          %4839 = vmatpush1.msra.mxu0 0.0
          %4840 = vmatprep.subr.mxu0 0.0
          %4841 = vmatpush1.msra.mxu0 0.0
          %4842 = vmatprep.subr.mxu0 0.0
          %4843 = vmatpush1.msra.mxu0 0.0
          %4844 = vmatprep.subr.mxu0 0.0
          %4845 = vmatpush1.msra.mxu0 0.0
          %4846 = vmatprep.subr.mxu0 0.0
          %4847 = vmatpush1.msra.mxu0 0.0
          %4848 = vmatprep.subr.mxu0 0.0
          %4849 = vmatpush1.msra.mxu0 0.0
          %4850 = vmatprep.subr.mxu0 0.0
          %4851 = vmatpush1.msra.mxu0 0.0
          %4852 = vmatprep.subr.mxu0 0.0
          %4853 = vmatpush1.msra.mxu0 0.0
          %4854 = vmatprep.subr.mxu0 0.0
          %4855 = vmatpush1.msra.mxu0 %v4822
          %4856 = vmatprep.subr.mxu0 0.0
          %4857 = vmatpush2.msra.mxu0 0.0
          %4858 = vmatprep.subr.mxu0 0.0
          %4859 = vmatpush2.msra.mxu0 0.0
          %4860 = vmatprep.subr.mxu0 0.0
          %4861 = vmatpush2.msra.mxu0 0.0
          %4862 = vmatprep.subr.mxu0 0.0
          %4863 = vmatpush2.msra.mxu0 0.0
          %4864 = vmatprep.subr.mxu0 0.0
          %4865 = vmatpush2.msra.mxu0 0.0
          %4866 = vmatprep.subr.mxu0 0.0
          %4867 = vmatpush2.msra.mxu0 0.0
          %4868 = vmatprep.subr.mxu0 0.0
          %4869 = vmatpush2.msra.mxu0 0.0
          %4870 = vmatprep.subr.mxu0 0.0
          %4871 = vmatpush2.msra.mxu0 0.0
          %4872 = vmatprep.subr.mxu0 0.0
          %4873 = vmatpush2.msra.mxu0 0.0
          %4874 = vmatprep.subr.mxu0 0.0
          %4875 = vmatpush2.msra.mxu0 0.0
          %4876 = vmatprep.subr.mxu0 0.0
          %4877 = vmatpush2.msra.mxu0 0.0
          %4878 = vmatprep.subr.mxu0 0.0
          %4879 = vmatpush2.msra.mxu0 0.0
          %4880 = vmatprep.subr.mxu0 0.0
          %4881 = vmatpush2.msra.mxu0 0.0
          %4882 = vmatprep.subr.mxu0 0.0
          %4883 = vmatpush2.msra.mxu0 0.0
          %4884 = vmatprep.subr.mxu0 0.0
          %4885 = vmatpush2.msra.mxu0 0.0
          %4886 = vmatprep.subr.mxu0 0.0
          %4887 = vmatpush2.msra.mxu0 0.0
          %4888 = vmatprep.mubr.f32.mxu0 0.0
          %4889 = vmatmul.mubr.f32.gmra.mxu0 %v4819
          %v4890 = vpop.f32.mrf.mxu0
          %v4891 = vadd.f32 %v4817, %v4890
          %v4892 = vpop.f32.mrf.mxu0
          %4893 = vdwg.mxu0
          %v4894 = vsub.f32 0.0, %v4891
          %v4895 = vmul.f32 %v4894, 1.442695
          %v4896 = vpow.pop %v4895
          %v4897 = vadd.f32 %v4896, 1.0
          %v4898 = vrcp.pop %v4897
          %v4899 = vmul.f32 1.0, %v4898
          %s4900 = smul.u32 %s726, 2
          %s4901 = scalar_lea.vmem %s7, %s4900
          %v4902 = vld [vmem:[%s4901] sm:$0x3]
          %s4903 = scalar_lea.vmem %s8, %s726
          %v4904 = vld [vmem:[%s4903] sm:$0x1]
          %vm4905 = vcmask 15360
          %v4907 = vsel %vm4905, %v4899, 0
          %vm4909 = vcmask 1041408
          %v4911 = vsel %vm4909, %v4902, 0
          %4913 = vmatprep.subr.mxu0 0.0
          %4914 = vmatpush1.msra.mxu0 0.0
          %4915 = vmatprep.subr.mxu0 0.0
          %4916 = vmatpush1.msra.mxu0 0.0
          %4917 = vmatprep.subr.mxu0 0.0
          %4918 = vmatpush1.msra.mxu0 0.0
          %4919 = vmatprep.subr.mxu0 0.0
          %4920 = vmatpush1.msra.mxu0 0.0
          %4921 = vmatprep.subr.mxu0 0.0
          %4922 = vmatpush1.msra.mxu0 0.0
          %4923 = vmatprep.subr.mxu0 0.0
          %4924 = vmatpush1.msra.mxu0 0.0
          %4925 = vmatprep.subr.mxu0 0.0
          %4926 = vmatpush1.msra.mxu0 0.0
          %4927 = vmatprep.subr.mxu0 0.0
          %4928 = vmatpush1.msra.mxu0 0.0
          %4929 = vmatprep.subr.mxu0 0.0
          %4930 = vmatpush1.msra.mxu0 0.0
          %4931 = vmatprep.subr.mxu0 0.0
          %4932 = vmatpush1.msra.mxu0 0.0
          %4933 = vmatprep.subr.mxu0 0.0
          %4934 = vmatpush1.msra.mxu0 0.0
          %4935 = vmatprep.subr.mxu0 0.0
          %4936 = vmatpush1.msra.mxu0 0.0
          %4937 = vmatprep.subr.mxu0 0.0
          %4938 = vmatpush1.msra.mxu0 0.0
          %4939 = vmatprep.subr.mxu0 0.0
          %4940 = vmatpush1.msra.mxu0 0.0
          %4941 = vmatprep.subr.mxu0 0.0
          %4942 = vmatpush1.msra.mxu0 0.0
          %4943 = vmatprep.subr.mxu0 0.0
          %4944 = vmatpush1.msra.mxu0 %v4911
          %4945 = vmatprep.subr.mxu0 0.0
          %4946 = vmatpush2.msra.mxu0 0.0
          %4947 = vmatprep.subr.mxu0 0.0
          %4948 = vmatpush2.msra.mxu0 0.0
          %4949 = vmatprep.subr.mxu0 0.0
          %4950 = vmatpush2.msra.mxu0 0.0
          %4951 = vmatprep.subr.mxu0 0.0
          %4952 = vmatpush2.msra.mxu0 0.0
          %4953 = vmatprep.subr.mxu0 0.0
          %4954 = vmatpush2.msra.mxu0 0.0
          %4955 = vmatprep.subr.mxu0 0.0
          %4956 = vmatpush2.msra.mxu0 0.0
          %4957 = vmatprep.subr.mxu0 0.0
          %4958 = vmatpush2.msra.mxu0 0.0
          %4959 = vmatprep.subr.mxu0 0.0
          %4960 = vmatpush2.msra.mxu0 0.0
          %4961 = vmatprep.subr.mxu0 0.0
          %4962 = vmatpush2.msra.mxu0 0.0
          %4963 = vmatprep.subr.mxu0 0.0
          %4964 = vmatpush2.msra.mxu0 0.0
          %4965 = vmatprep.subr.mxu0 0.0
          %4966 = vmatpush2.msra.mxu0 0.0
          %4967 = vmatprep.subr.mxu0 0.0
          %4968 = vmatpush2.msra.mxu0 0.0
          %4969 = vmatprep.subr.mxu0 0.0
          %4970 = vmatpush2.msra.mxu0 0.0
          %4971 = vmatprep.subr.mxu0 0.0
          %4972 = vmatpush2.msra.mxu0 0.0
          %4973 = vmatprep.subr.mxu0 0.0
          %4974 = vmatpush2.msra.mxu0 0.0
          %4975 = vmatprep.subr.mxu0 0.0
          %4976 = vmatpush2.msra.mxu0 0.0
          %4977 = vmatprep.mubr.f32.mxu0 0.0
          %4978 = vmatmul.mubr.f32.gmra.mxu0 %v4907
          %v4979 = vpop.f32.mrf.mxu0
          %v4980 = vadd.f32 %v4904, %v4979
          %v4981 = vpop.f32.mrf.mxu0
          %4982 = vdwg.mxu0
          %v4983 = vmax.f32 %v4980, 0.0
          %v4984 = vlaneseq
          %v4985 = vshrl.u32 %v4984, 7
          %v4986 = vsub.s32 0, %v4985
          %v4987 = vrot.slane %v4983, %v4986
          %v4988 = vmul.f32 %v4584, %v4987
          %v4989 = vmul.f32 %v4589, %v4987
          %v4990 = vmul.f32 %v4594, %v4987
          %v4991 = vmul.f32 %v4599, %v4987
          %v4992 = vmul.f32 %v4604, %v4987
          %v4993 = vmul.f32 %v4609, %v4987
          %v4994 = vmul.f32 %v4614, %v4987
          %v4995 = vmul.f32 %v4619, %v4987
          %v4996 = vmul.f32 %v4624, %v4987
          %v4997 = vmul.f32 %v4629, %v4987
          %v4998 = vmul.f32 %v4634, %v4987
          %v4999 = vmul.f32 %v4639, %v4987
          %v5000 = vmul.f32 %v4644, %v4987
          %v5001 = vmul.f32 %v4649, %v4987
          %v5002 = vmul.f32 %v4654, %v4987
          %v5003 = vmul.f32 %v4659, %v4987
          %v5004 = vmul.f32 %v4664, %v4987
          %v5005 = vmul.f32 %v4669, %v4987
          %v5006 = vmul.f32 %v4674, %v4987
          %v5007 = vmul.f32 %v4679, %v4987
          %v5008 = vmul.f32 %v4684, %v4987
          %v5009 = vmul.f32 %v4689, %v4987
          %v5010 = vmul.f32 %v4694, %v4987
          %v5011 = vmul.f32 %v4699, %v4987
          %v5012 = vmul.f32 %v4704, %v4987
          %v5013 = vmul.f32 %v4709, %v4987
          %v5014 = vmul.f32 %v4714, %v4987
          %v5015 = vmul.f32 %v4719, %v4987
          %v5016 = vmul.f32 %v4724, %v4987
          %v5017 = vmul.f32 %v4729, %v4987
          %v5018 = vmul.f32 %v4734, %v4987
          %v5019 = vmul.f32 %v4739, %v4987
          %5020 = vst.msk [vmem:[%s1186 + $0x1] sm:$0xff] %vm495, %v4988
          %5021 = vst.msk [vmem:[%s1186 + $0x9] sm:$0xff] %vm495, %v4989
          %5022 = vst.msk [vmem:[%s1186 + $0x19] sm:$0xff] %vm495, %v4990
          %5023 = vst.msk [vmem:[%s1186 + $0x21] sm:$0xff] %vm495, %v4991
          %5024 = vst.msk [vmem:[%s1186 + $0x31] sm:$0xff] %vm495, %v4992
          %5025 = vst.msk [vmem:[%s1186 + $0x39] sm:$0xff] %vm495, %v4993
          %5026 = vst.msk [vmem:[%s1186 + $0x49] sm:$0xff] %vm495, %v4994
          %5027 = vst.msk [vmem:[%s1186 + $0x51] sm:$0xff] %vm495, %v4995
          %5028 = vst.msk [vmem:[%s1186 + $0x61] sm:$0xff] %vm495, %v4996
          %5029 = vst.msk [vmem:[%s1186 + $0x69] sm:$0xff] %vm495, %v4997
          %5030 = vst.msk [vmem:[%s1186 + $0x79] sm:$0xff] %vm495, %v4998
          %5031 = vst.msk [vmem:[%s1186 + $0x81] sm:$0xff] %vm495, %v4999
          %5032 = vst.msk [vmem:[%s1186 + $0x91] sm:$0xff] %vm495, %v5000
          %5033 = vst.msk [vmem:[%s1186 + $0x99] sm:$0xff] %vm495, %v5001
          %5034 = vst.msk [vmem:[%s1186 + $0xa9] sm:$0xff] %vm495, %v5002
          %5035 = vst.msk [vmem:[%s1186 + $0xb1] sm:$0xff] %vm495, %v5003
          %5036 = vst.msk [vmem:[%s1186 + $0xc1] sm:$0xff] %vm495, %v5004
          %5037 = vst.msk [vmem:[%s1186 + $0xc9] sm:$0xff] %vm495, %v5005
          %5038 = vst.msk [vmem:[%s1186 + $0xd9] sm:$0xff] %vm495, %v5006
          %5039 = vst.msk [vmem:[%s1186 + $0xe1] sm:$0xff] %vm495, %v5007
          %5040 = vst.msk [vmem:[%s1186 + $0xf1] sm:$0xff] %vm495, %v5008
          %5041 = vst.msk [vmem:[%s1186 + $0xf9] sm:$0xff] %vm495, %v5009
          %5042 = vst.msk [vmem:[%s1186 + $0x109] sm:$0xff] %vm495, %v5010
          %5043 = vst.msk [vmem:[%s1186 + $0x111] sm:$0xff] %vm495, %v5011
          %5044 = vst.msk [vmem:[%s1186 + $0x121] sm:$0xff] %vm495, %v5012
          %5045 = vst.msk [vmem:[%s1186 + $0x129] sm:$0xff] %vm495, %v5013
          %5046 = vst.msk [vmem:[%s1186 + $0x139] sm:$0xff] %vm495, %v5014
          %5047 = vst.msk [vmem:[%s1186 + $0x141] sm:$0xff] %vm495, %v5015
          %5048 = vst.msk [vmem:[%s1186 + $0x151] sm:$0xff] %vm495, %v5016
          %5049 = vst.msk [vmem:[%s1186 + $0x159] sm:$0xff] %vm495, %v5017
          %5050 = vst.msk [vmem:[%s1186 + $0x169] sm:$0xff] %vm495, %v5018
          %5051 = vst.msk [vmem:[%s1186 + $0x171] sm:$0xff] %vm495, %v5019
        $region84: #{rir_forward.1} parent=76 // loop_footer
          %s724 = sadd.s32 1, %s720
        $region85: #{rir_forward.1} parent=76 // loop_footer_branch
          %719 = sbr.rel target = $region81
        $region86: #{rir_forward.1} parent=76 // loop_exit
          _
        %s5052 = smul.u32 %s606, 40
        %s5053 = scalar_lea.vmem %s9, %s5052
        %v5054 = vld [vmem:[%s5053] sm:$0xff]
        %v5055 = vld [vmem:[%s5053 + $0x8] sm:$0xff]
        %v5056 = vld [vmem:[%s5053 + $0x10] sm:$0xff]
        %v5057 = vld [vmem:[%s5053 + $0x18] sm:$0xff]
        %v5058 = vld [vmem:[%s5053 + $0x20] sm:$0xf]
        %s5059 = scalar_lea.vmem %s10, %s606
        %v5060 = vld [vmem:[%s5059] sm:$0x1]
        %v5061 = vld [vmem:[#allocation2] sm:$0xff]
        %v5062 = vld [vmem:[#allocation2 + $0x8] sm:$0xff]
        %v5063 = vld [vmem:[#allocation2 + $0x18] sm:$0xff]
        %v5064 = vld [vmem:[#allocation2 + $0x20] sm:$0xff]
        %v5065 = vld [vmem:[#allocation2 + $0x30] sm:$0xff]
        %v5066 = vld [vmem:[#allocation2 + $0x38] sm:$0xff]
        %v5067 = vld [vmem:[#allocation2 + $0x48] sm:$0xff]
        %v5068 = vld [vmem:[#allocation2 + $0x50] sm:$0xff]
        %v5069 = vld [vmem:[#allocation2 + $0x60] sm:$0xff]
        %v5070 = vld [vmem:[#allocation2 + $0x68] sm:$0xff]
        %v5071 = vld [vmem:[#allocation2 + $0x78] sm:$0xff]
        %v5072 = vld [vmem:[#allocation2 + $0x80] sm:$0xff]
        %v5073 = vld [vmem:[#allocation2 + $0x90] sm:$0xff]
        %v5074 = vld [vmem:[#allocation2 + $0x98] sm:$0xff]
        %v5075 = vld [vmem:[#allocation2 + $0xa8] sm:$0xff]
        %v5076 = vld [vmem:[#allocation2 + $0xb0] sm:$0xff]
        %v5077 = vld [vmem:[#allocation2 + $0xc0] sm:$0xff]
        %v5078 = vld [vmem:[#allocation2 + $0xc8] sm:$0xff]
        %v5079 = vld [vmem:[#allocation2 + $0xd8] sm:$0xff]
        %v5080 = vld [vmem:[#allocation2 + $0xe0] sm:$0xff]
        %v5081 = vld [vmem:[#allocation2 + $0xf0] sm:$0xff]
        %v5082 = vld [vmem:[#allocation2 + $0xf8] sm:$0xff]
        %v5083 = vld [vmem:[#allocation2 + $0x108] sm:$0xff]
        %v5084 = vld [vmem:[#allocation2 + $0x110] sm:$0xff]
        %v5085 = vld [vmem:[#allocation2 + $0x120] sm:$0xff]
        %v5086 = vld [vmem:[#allocation2 + $0x128] sm:$0xff]
        %v5087 = vld [vmem:[#allocation2 + $0x138] sm:$0xff]
        %v5088 = vld [vmem:[#allocation2 + $0x140] sm:$0xff]
        %v5089 = vld [vmem:[#allocation2 + $0x150] sm:$0xff]
        %v5090 = vld [vmem:[#allocation2 + $0x158] sm:$0xff]
        %v5091 = vld [vmem:[#allocation2 + $0x168] sm:$0xff]
        %v5092 = vld [vmem:[#allocation2 + $0x170] sm:$0xff]
        %5093 = vst.msk [vmem:[#allocation5] sm:$0xff] %vm495, %v5061
        %5094 = vst.msk [vmem:[#allocation5 + $0x8] sm:$0xff] %vm495, %v5062
        %5095 = vst.msk [vmem:[#allocation5 + $0x10] sm:$0xff] %vm495, %v5063
        %5096 = vst.msk [vmem:[#allocation5 + $0x18] sm:$0xff] %vm495, %v5064
        %5097 = vst.msk [vmem:[#allocation5 + $0x20] sm:$0xff] %vm495, %v5065
        %5098 = vst.msk [vmem:[#allocation5 + $0x28] sm:$0xff] %vm495, %v5066
        %5099 = vst.msk [vmem:[#allocation5 + $0x30] sm:$0xff] %vm495, %v5067
        %5100 = vst.msk [vmem:[#allocation5 + $0x38] sm:$0xff] %vm495, %v5068
        %5101 = vst.msk [vmem:[#allocation5 + $0x40] sm:$0xff] %vm495, %v5069
        %5102 = vst.msk [vmem:[#allocation5 + $0x48] sm:$0xff] %vm495, %v5070
        %5103 = vst.msk [vmem:[#allocation5 + $0x50] sm:$0xff] %vm495, %v5071
        %5104 = vst.msk [vmem:[#allocation5 + $0x58] sm:$0xff] %vm495, %v5072
        %5105 = vst.msk [vmem:[#allocation5 + $0x60] sm:$0xff] %vm495, %v5073
        %5106 = vst.msk [vmem:[#allocation5 + $0x68] sm:$0xff] %vm495, %v5074
        %5107 = vst.msk [vmem:[#allocation5 + $0x70] sm:$0xff] %vm495, %v5075
        %5108 = vst.msk [vmem:[#allocation5 + $0x78] sm:$0xff] %vm495, %v5076
        %5109 = vst.msk [vmem:[#allocation5 + $0x80] sm:$0xff] %vm495, %v5077
        %5110 = vst.msk [vmem:[#allocation5 + $0x88] sm:$0xff] %vm495, %v5078
        %5111 = vst.msk [vmem:[#allocation5 + $0x90] sm:$0xff] %vm495, %v5079
        %5112 = vst.msk [vmem:[#allocation5 + $0x98] sm:$0xff] %vm495, %v5080
        %5113 = vst.msk [vmem:[#allocation5 + $0xa0] sm:$0xff] %vm495, %v5081
        %5114 = vst.msk [vmem:[#allocation5 + $0xa8] sm:$0xff] %vm495, %v5082
        %5115 = vst.msk [vmem:[#allocation5 + $0xb0] sm:$0xff] %vm495, %v5083
        %5116 = vst.msk [vmem:[#allocation5 + $0xb8] sm:$0xff] %vm495, %v5084
        %5117 = vst.msk [vmem:[#allocation5 + $0xc0] sm:$0xff] %vm495, %v5085
        %5118 = vst.msk [vmem:[#allocation5 + $0xc8] sm:$0xff] %vm495, %v5086
        %5119 = vst.msk [vmem:[#allocation5 + $0xd0] sm:$0xff] %vm495, %v5087
        %5120 = vst.msk [vmem:[#allocation5 + $0xd8] sm:$0xff] %vm495, %v5088
        %5121 = vst.msk [vmem:[#allocation5 + $0xe0] sm:$0xff] %vm495, %v5089
        %5122 = vst.msk [vmem:[#allocation5 + $0xe8] sm:$0xff] %vm495, %v5090
        %5123 = vst.msk [vmem:[#allocation5 + $0xf0] sm:$0xff] %vm495, %v5091
        %5124 = vst.msk [vmem:[#allocation5 + $0xf8] sm:$0xff] %vm495, %v5092
        %v5125 = vld [vmem:[#allocation2 + $0x1] sm:$0xff]
        %v5126 = vld [vmem:[#allocation2 + $0x9] sm:$0xff]
        %v5127 = vld [vmem:[#allocation2 + $0x19] sm:$0xff]
        %v5128 = vld [vmem:[#allocation2 + $0x21] sm:$0xff]
        %v5129 = vld [vmem:[#allocation2 + $0x31] sm:$0xff]
        %v5130 = vld [vmem:[#allocation2 + $0x39] sm:$0xff]
        %v5131 = vld [vmem:[#allocation2 + $0x49] sm:$0xff]
        %v5132 = vld [vmem:[#allocation2 + $0x51] sm:$0xff]
        %v5133 = vld [vmem:[#allocation2 + $0x61] sm:$0xff]
        %v5134 = vld [vmem:[#allocation2 + $0x69] sm:$0xff]
        %v5135 = vld [vmem:[#allocation2 + $0x79] sm:$0xff]
        %v5136 = vld [vmem:[#allocation2 + $0x81] sm:$0xff]
        %v5137 = vld [vmem:[#allocation2 + $0x91] sm:$0xff]
        %v5138 = vld [vmem:[#allocation2 + $0x99] sm:$0xff]
        %v5139 = vld [vmem:[#allocation2 + $0xa9] sm:$0xff]
        %v5140 = vld [vmem:[#allocation2 + $0xb1] sm:$0xff]
        %v5141 = vld [vmem:[#allocation2 + $0xc1] sm:$0xff]
        %v5142 = vld [vmem:[#allocation2 + $0xc9] sm:$0xff]
        %v5143 = vld [vmem:[#allocation2 + $0xd9] sm:$0xff]
        %v5144 = vld [vmem:[#allocation2 + $0xe1] sm:$0xff]
        %v5145 = vld [vmem:[#allocation2 + $0xf1] sm:$0xff]
        %v5146 = vld [vmem:[#allocation2 + $0xf9] sm:$0xff]
        %v5147 = vld [vmem:[#allocation2 + $0x109] sm:$0xff]
        %v5148 = vld [vmem:[#allocation2 + $0x111] sm:$0xff]
        %v5149 = vld [vmem:[#allocation2 + $0x121] sm:$0xff]
        %v5150 = vld [vmem:[#allocation2 + $0x129] sm:$0xff]
        %v5151 = vld [vmem:[#allocation2 + $0x139] sm:$0xff]
        %v5152 = vld [vmem:[#allocation2 + $0x141] sm:$0xff]
        %v5153 = vld [vmem:[#allocation2 + $0x151] sm:$0xff]
        %v5154 = vld [vmem:[#allocation2 + $0x159] sm:$0xff]
        %v5155 = vld [vmem:[#allocation2 + $0x169] sm:$0xff]
        %v5156 = vld [vmem:[#allocation2 + $0x171] sm:$0xff]
        %5189 = vrot.lane.b32.xlu0 %v5125, 4
        %v5190 = vpop.permute.xlu0 %5189
        %5191 = vrot.lane.b32.xlu0 %v5126, 4
        %v5192 = vpop.permute.xlu0 %5191
        %5193 = vrot.lane.b32.xlu0 %v5127, 4
        %v5194 = vpop.permute.xlu0 %5193
        %5195 = vrot.lane.b32.xlu0 %v5128, 4
        %v5196 = vpop.permute.xlu0 %5195
        %5197 = vrot.lane.b32.xlu0 %v5129, 4
        %v5198 = vpop.permute.xlu0 %5197
        %5199 = vrot.lane.b32.xlu0 %v5130, 4
        %v5200 = vpop.permute.xlu0 %5199
        %5201 = vrot.lane.b32.xlu0 %v5131, 4
        %v5202 = vpop.permute.xlu0 %5201
        %5203 = vrot.lane.b32.xlu0 %v5132, 4
        %v5204 = vpop.permute.xlu0 %5203
        %5205 = vrot.lane.b32.xlu0 %v5133, 4
        %v5206 = vpop.permute.xlu0 %5205
        %5207 = vrot.lane.b32.xlu0 %v5134, 4
        %v5208 = vpop.permute.xlu0 %5207
        %5209 = vrot.lane.b32.xlu0 %v5135, 4
        %v5210 = vpop.permute.xlu0 %5209
        %5211 = vrot.lane.b32.xlu0 %v5136, 4
        %v5212 = vpop.permute.xlu0 %5211
        %5213 = vrot.lane.b32.xlu0 %v5137, 4
        %v5214 = vpop.permute.xlu0 %5213
        %5215 = vrot.lane.b32.xlu0 %v5138, 4
        %v5216 = vpop.permute.xlu0 %5215
        %5217 = vrot.lane.b32.xlu0 %v5139, 4
        %v5218 = vpop.permute.xlu0 %5217
        %5219 = vrot.lane.b32.xlu0 %v5140, 4
        %v5220 = vpop.permute.xlu0 %5219
        %5221 = vrot.lane.b32.xlu0 %v5141, 4
        %v5222 = vpop.permute.xlu0 %5221
        %5223 = vrot.lane.b32.xlu0 %v5142, 4
        %v5224 = vpop.permute.xlu0 %5223
        %5225 = vrot.lane.b32.xlu0 %v5143, 4
        %v5226 = vpop.permute.xlu0 %5225
        %5227 = vrot.lane.b32.xlu0 %v5144, 4
        %v5228 = vpop.permute.xlu0 %5227
        %5229 = vrot.lane.b32.xlu0 %v5145, 4
        %v5230 = vpop.permute.xlu0 %5229
        %5231 = vrot.lane.b32.xlu0 %v5146, 4
        %v5232 = vpop.permute.xlu0 %5231
        %5233 = vrot.lane.b32.xlu0 %v5147, 4
        %v5234 = vpop.permute.xlu0 %5233
        %5235 = vrot.lane.b32.xlu0 %v5148, 4
        %v5236 = vpop.permute.xlu0 %5235
        %5237 = vrot.lane.b32.xlu0 %v5149, 4
        %v5238 = vpop.permute.xlu0 %5237
        %5239 = vrot.lane.b32.xlu0 %v5150, 4
        %v5240 = vpop.permute.xlu0 %5239
        %5241 = vrot.lane.b32.xlu0 %v5151, 4
        %v5242 = vpop.permute.xlu0 %5241
        %5243 = vrot.lane.b32.xlu0 %v5152, 4
        %v5244 = vpop.permute.xlu0 %5243
        %5245 = vrot.lane.b32.xlu0 %v5153, 4
        %v5246 = vpop.permute.xlu0 %5245
        %5247 = vrot.lane.b32.xlu0 %v5154, 4
        %v5248 = vpop.permute.xlu0 %5247
        %5249 = vrot.lane.b32.xlu0 %v5155, 4
        %v5250 = vpop.permute.xlu0 %5249
        %5251 = vrot.lane.b32.xlu0 %v5156, 4
        %v5252 = vpop.permute.xlu0 %5251
        %vm5285 = vcmask 64544
        %5286 = vst.msk [vmem:[#allocation5] sm:$0xff] %vm5285, %v5190
        %5287 = vst.msk [vmem:[#allocation5 + $0x8] sm:$0xff] %vm5285, %v5192
        %5288 = vst.msk [vmem:[#allocation5 + $0x10] sm:$0xff] %vm5285, %v5194
        %5289 = vst.msk [vmem:[#allocation5 + $0x18] sm:$0xff] %vm5285, %v5196
        %5290 = vst.msk [vmem:[#allocation5 + $0x20] sm:$0xff] %vm5285, %v5198
        %5291 = vst.msk [vmem:[#allocation5 + $0x28] sm:$0xff] %vm5285, %v5200
        %5292 = vst.msk [vmem:[#allocation5 + $0x30] sm:$0xff] %vm5285, %v5202
        %5293 = vst.msk [vmem:[#allocation5 + $0x38] sm:$0xff] %vm5285, %v5204
        %5294 = vst.msk [vmem:[#allocation5 + $0x40] sm:$0xff] %vm5285, %v5206
        %5295 = vst.msk [vmem:[#allocation5 + $0x48] sm:$0xff] %vm5285, %v5208
        %5296 = vst.msk [vmem:[#allocation5 + $0x50] sm:$0xff] %vm5285, %v5210
        %5297 = vst.msk [vmem:[#allocation5 + $0x58] sm:$0xff] %vm5285, %v5212
        %5298 = vst.msk [vmem:[#allocation5 + $0x60] sm:$0xff] %vm5285, %v5214
        %5299 = vst.msk [vmem:[#allocation5 + $0x68] sm:$0xff] %vm5285, %v5216
        %5300 = vst.msk [vmem:[#allocation5 + $0x70] sm:$0xff] %vm5285, %v5218
        %5301 = vst.msk [vmem:[#allocation5 + $0x78] sm:$0xff] %vm5285, %v5220
        %5302 = vst.msk [vmem:[#allocation5 + $0x80] sm:$0xff] %vm5285, %v5222
        %5303 = vst.msk [vmem:[#allocation5 + $0x88] sm:$0xff] %vm5285, %v5224
        %5304 = vst.msk [vmem:[#allocation5 + $0x90] sm:$0xff] %vm5285, %v5226
        %5305 = vst.msk [vmem:[#allocation5 + $0x98] sm:$0xff] %vm5285, %v5228
        %5306 = vst.msk [vmem:[#allocation5 + $0xa0] sm:$0xff] %vm5285, %v5230
        %5307 = vst.msk [vmem:[#allocation5 + $0xa8] sm:$0xff] %vm5285, %v5232
        %5308 = vst.msk [vmem:[#allocation5 + $0xb0] sm:$0xff] %vm5285, %v5234
        %5309 = vst.msk [vmem:[#allocation5 + $0xb8] sm:$0xff] %vm5285, %v5236
        %5310 = vst.msk [vmem:[#allocation5 + $0xc0] sm:$0xff] %vm5285, %v5238
        %5311 = vst.msk [vmem:[#allocation5 + $0xc8] sm:$0xff] %vm5285, %v5240
        %5312 = vst.msk [vmem:[#allocation5 + $0xd0] sm:$0xff] %vm5285, %v5242
        %5313 = vst.msk [vmem:[#allocation5 + $0xd8] sm:$0xff] %vm5285, %v5244
        %5314 = vst.msk [vmem:[#allocation5 + $0xe0] sm:$0xff] %vm5285, %v5246
        %5315 = vst.msk [vmem:[#allocation5 + $0xe8] sm:$0xff] %vm5285, %v5248
        %5316 = vst.msk [vmem:[#allocation5 + $0xf0] sm:$0xff] %vm5285, %v5250
        %5317 = vst.msk [vmem:[#allocation5 + $0xf8] sm:$0xff] %vm5285, %v5252
        %v5318 = vld [vmem:[#allocation2 + $0x2] sm:$0xff]
        %v5319 = vld [vmem:[#allocation2 + $0xa] sm:$0xff]
        %v5320 = vld [vmem:[#allocation2 + $0x1a] sm:$0xff]
        %v5321 = vld [vmem:[#allocation2 + $0x22] sm:$0xff]
        %v5322 = vld [vmem:[#allocation2 + $0x32] sm:$0xff]
        %v5323 = vld [vmem:[#allocation2 + $0x3a] sm:$0xff]
        %v5324 = vld [vmem:[#allocation2 + $0x4a] sm:$0xff]
        %v5325 = vld [vmem:[#allocation2 + $0x52] sm:$0xff]
        %v5326 = vld [vmem:[#allocation2 + $0x62] sm:$0xff]
        %v5327 = vld [vmem:[#allocation2 + $0x6a] sm:$0xff]
        %v5328 = vld [vmem:[#allocation2 + $0x7a] sm:$0xff]
        %v5329 = vld [vmem:[#allocation2 + $0x82] sm:$0xff]
        %v5330 = vld [vmem:[#allocation2 + $0x92] sm:$0xff]
        %v5331 = vld [vmem:[#allocation2 + $0x9a] sm:$0xff]
        %v5332 = vld [vmem:[#allocation2 + $0xaa] sm:$0xff]
        %v5333 = vld [vmem:[#allocation2 + $0xb2] sm:$0xff]
        %v5334 = vld [vmem:[#allocation2 + $0xc2] sm:$0xff]
        %v5335 = vld [vmem:[#allocation2 + $0xca] sm:$0xff]
        %v5336 = vld [vmem:[#allocation2 + $0xda] sm:$0xff]
        %v5337 = vld [vmem:[#allocation2 + $0xe2] sm:$0xff]
        %v5338 = vld [vmem:[#allocation2 + $0xf2] sm:$0xff]
        %v5339 = vld [vmem:[#allocation2 + $0xfa] sm:$0xff]
        %v5340 = vld [vmem:[#allocation2 + $0x10a] sm:$0xff]
        %v5341 = vld [vmem:[#allocation2 + $0x112] sm:$0xff]
        %v5342 = vld [vmem:[#allocation2 + $0x122] sm:$0xff]
        %v5343 = vld [vmem:[#allocation2 + $0x12a] sm:$0xff]
        %v5344 = vld [vmem:[#allocation2 + $0x13a] sm:$0xff]
        %v5345 = vld [vmem:[#allocation2 + $0x142] sm:$0xff]
        %v5346 = vld [vmem:[#allocation2 + $0x152] sm:$0xff]
        %v5347 = vld [vmem:[#allocation2 + $0x15a] sm:$0xff]
        %v5348 = vld [vmem:[#allocation2 + $0x16a] sm:$0xff]
        %v5349 = vld [vmem:[#allocation2 + $0x172] sm:$0xff]
        %5382 = vrot.lane.b32.xlu0 %v5318, 8
        %v5383 = vpop.permute.xlu0 %5382
        %5384 = vrot.lane.b32.xlu0 %v5319, 8
        %v5385 = vpop.permute.xlu0 %5384
        %5386 = vrot.lane.b32.xlu0 %v5320, 8
        %v5387 = vpop.permute.xlu0 %5386
        %5388 = vrot.lane.b32.xlu0 %v5321, 8
        %v5389 = vpop.permute.xlu0 %5388
        %5390 = vrot.lane.b32.xlu0 %v5322, 8
        %v5391 = vpop.permute.xlu0 %5390
        %5392 = vrot.lane.b32.xlu0 %v5323, 8
        %v5393 = vpop.permute.xlu0 %5392
        %5394 = vrot.lane.b32.xlu0 %v5324, 8
        %v5395 = vpop.permute.xlu0 %5394
        %5396 = vrot.lane.b32.xlu0 %v5325, 8
        %v5397 = vpop.permute.xlu0 %5396
        %5398 = vrot.lane.b32.xlu0 %v5326, 8
        %v5399 = vpop.permute.xlu0 %5398
        %5400 = vrot.lane.b32.xlu0 %v5327, 8
        %v5401 = vpop.permute.xlu0 %5400
        %5402 = vrot.lane.b32.xlu0 %v5328, 8
        %v5403 = vpop.permute.xlu0 %5402
        %5404 = vrot.lane.b32.xlu0 %v5329, 8
        %v5405 = vpop.permute.xlu0 %5404
        %5406 = vrot.lane.b32.xlu0 %v5330, 8
        %v5407 = vpop.permute.xlu0 %5406
        %5408 = vrot.lane.b32.xlu0 %v5331, 8
        %v5409 = vpop.permute.xlu0 %5408
        %5410 = vrot.lane.b32.xlu0 %v5332, 8
        %v5411 = vpop.permute.xlu0 %5410
        %5412 = vrot.lane.b32.xlu0 %v5333, 8
        %v5413 = vpop.permute.xlu0 %5412
        %5414 = vrot.lane.b32.xlu0 %v5334, 8
        %v5415 = vpop.permute.xlu0 %5414
        %5416 = vrot.lane.b32.xlu0 %v5335, 8
        %v5417 = vpop.permute.xlu0 %5416
        %5418 = vrot.lane.b32.xlu0 %v5336, 8
        %v5419 = vpop.permute.xlu0 %5418
        %5420 = vrot.lane.b32.xlu0 %v5337, 8
        %v5421 = vpop.permute.xlu0 %5420
        %5422 = vrot.lane.b32.xlu0 %v5338, 8
        %v5423 = vpop.permute.xlu0 %5422
        %5424 = vrot.lane.b32.xlu0 %v5339, 8
        %v5425 = vpop.permute.xlu0 %5424
        %5426 = vrot.lane.b32.xlu0 %v5340, 8
        %v5427 = vpop.permute.xlu0 %5426
        %5428 = vrot.lane.b32.xlu0 %v5341, 8
        %v5429 = vpop.permute.xlu0 %5428
        %5430 = vrot.lane.b32.xlu0 %v5342, 8
        %v5431 = vpop.permute.xlu0 %5430
        %5432 = vrot.lane.b32.xlu0 %v5343, 8
        %v5433 = vpop.permute.xlu0 %5432
        %5434 = vrot.lane.b32.xlu0 %v5344, 8
        %v5435 = vpop.permute.xlu0 %5434
        %5436 = vrot.lane.b32.xlu0 %v5345, 8
        %v5437 = vpop.permute.xlu0 %5436
        %5438 = vrot.lane.b32.xlu0 %v5346, 8
        %v5439 = vpop.permute.xlu0 %5438
        %5440 = vrot.lane.b32.xlu0 %v5347, 8
        %v5441 = vpop.permute.xlu0 %5440
        %5442 = vrot.lane.b32.xlu0 %v5348, 8
        %v5443 = vpop.permute.xlu0 %5442
        %5444 = vrot.lane.b32.xlu0 %v5349, 8
        %v5445 = vpop.permute.xlu0 %5444
        %vm5478 = vcmask 97344
        %5479 = vst.msk [vmem:[#allocation5] sm:$0xff] %vm5478, %v5383
        %5480 = vst.msk [vmem:[#allocation5 + $0x8] sm:$0xff] %vm5478, %v5385
        %5481 = vst.msk [vmem:[#allocation5 + $0x10] sm:$0xff] %vm5478, %v5387
        %5482 = vst.msk [vmem:[#allocation5 + $0x18] sm:$0xff] %vm5478, %v5389
        %5483 = vst.msk [vmem:[#allocation5 + $0x20] sm:$0xff] %vm5478, %v5391
        %5484 = vst.msk [vmem:[#allocation5 + $0x28] sm:$0xff] %vm5478, %v5393
        %5485 = vst.msk [vmem:[#allocation5 + $0x30] sm:$0xff] %vm5478, %v5395
        %5486 = vst.msk [vmem:[#allocation5 + $0x38] sm:$0xff] %vm5478, %v5397
        %5487 = vst.msk [vmem:[#allocation5 + $0x40] sm:$0xff] %vm5478, %v5399
        %5488 = vst.msk [vmem:[#allocation5 + $0x48] sm:$0xff] %vm5478, %v5401
        %5489 = vst.msk [vmem:[#allocation5 + $0x50] sm:$0xff] %vm5478, %v5403
        %5490 = vst.msk [vmem:[#allocation5 + $0x58] sm:$0xff] %vm5478, %v5405
        %5491 = vst.msk [vmem:[#allocation5 + $0x60] sm:$0xff] %vm5478, %v5407
        %5492 = vst.msk [vmem:[#allocation5 + $0x68] sm:$0xff] %vm5478, %v5409
        %5493 = vst.msk [vmem:[#allocation5 + $0x70] sm:$0xff] %vm5478, %v5411
        %5494 = vst.msk [vmem:[#allocation5 + $0x78] sm:$0xff] %vm5478, %v5413
        %5495 = vst.msk [vmem:[#allocation5 + $0x80] sm:$0xff] %vm5478, %v5415
        %5496 = vst.msk [vmem:[#allocation5 + $0x88] sm:$0xff] %vm5478, %v5417
        %5497 = vst.msk [vmem:[#allocation5 + $0x90] sm:$0xff] %vm5478, %v5419
        %5498 = vst.msk [vmem:[#allocation5 + $0x98] sm:$0xff] %vm5478, %v5421
        %5499 = vst.msk [vmem:[#allocation5 + $0xa0] sm:$0xff] %vm5478, %v5423
        %5500 = vst.msk [vmem:[#allocation5 + $0xa8] sm:$0xff] %vm5478, %v5425
        %5501 = vst.msk [vmem:[#allocation5 + $0xb0] sm:$0xff] %vm5478, %v5427
        %5502 = vst.msk [vmem:[#allocation5 + $0xb8] sm:$0xff] %vm5478, %v5429
        %5503 = vst.msk [vmem:[#allocation5 + $0xc0] sm:$0xff] %vm5478, %v5431
        %5504 = vst.msk [vmem:[#allocation5 + $0xc8] sm:$0xff] %vm5478, %v5433
        %5505 = vst.msk [vmem:[#allocation5 + $0xd0] sm:$0xff] %vm5478, %v5435
        %5506 = vst.msk [vmem:[#allocation5 + $0xd8] sm:$0xff] %vm5478, %v5437
        %5507 = vst.msk [vmem:[#allocation5 + $0xe0] sm:$0xff] %vm5478, %v5439
        %5508 = vst.msk [vmem:[#allocation5 + $0xe8] sm:$0xff] %vm5478, %v5441
        %5509 = vst.msk [vmem:[#allocation5 + $0xf0] sm:$0xff] %vm5478, %v5443
        %5510 = vst.msk [vmem:[#allocation5 + $0xf8] sm:$0xff] %vm5478, %v5445
        %s5511 = scalar_lea.vmem [#allocation2], 24
        %v5512 = vld [vmem:[%s5511] sm:$0xff]
        %v5513 = vld [vmem:[%s5511 + $0x8] sm:$0xff]
        %v5514 = vld [vmem:[%s5511 + $0x18] sm:$0xff]
        %v5515 = vld [vmem:[%s5511 + $0x20] sm:$0xff]
        %v5516 = vld [vmem:[%s5511 + $0x30] sm:$0xff]
        %v5517 = vld [vmem:[%s5511 + $0x38] sm:$0xff]
        %v5518 = vld [vmem:[%s5511 + $0x48] sm:$0xff]
        %v5519 = vld [vmem:[%s5511 + $0x50] sm:$0xff]
        %v5520 = vld [vmem:[%s5511 + $0x60] sm:$0xff]
        %v5521 = vld [vmem:[%s5511 + $0x68] sm:$0xff]
        %v5522 = vld [vmem:[%s5511 + $0x78] sm:$0xff]
        %v5523 = vld [vmem:[%s5511 + $0x80] sm:$0xff]
        %v5524 = vld [vmem:[%s5511 + $0x90] sm:$0xff]
        %v5525 = vld [vmem:[%s5511 + $0x98] sm:$0xff]
        %v5526 = vld [vmem:[%s5511 + $0xa8] sm:$0xff]
        %v5527 = vld [vmem:[%s5511 + $0xb0] sm:$0xff]
        %v5528 = vld [vmem:[%s5511 + $0xc0] sm:$0xff]
        %v5529 = vld [vmem:[%s5511 + $0xc8] sm:$0xff]
        %v5530 = vld [vmem:[%s5511 + $0xd8] sm:$0xff]
        %v5531 = vld [vmem:[%s5511 + $0xe0] sm:$0xff]
        %v5532 = vld [vmem:[%s5511 + $0xf0] sm:$0xff]
        %v5533 = vld [vmem:[%s5511 + $0xf8] sm:$0xff]
        %v5534 = vld [vmem:[%s5511 + $0x108] sm:$0xff]
        %v5535 = vld [vmem:[%s5511 + $0x110] sm:$0xff]
        %v5536 = vld [vmem:[%s5511 + $0x120] sm:$0xff]
        %v5537 = vld [vmem:[%s5511 + $0x128] sm:$0xff]
        %v5538 = vld [vmem:[%s5511 + $0x138] sm:$0xff]
        %v5539 = vld [vmem:[%s5511 + $0x140] sm:$0xff]
        %v5540 = vld [vmem:[%s5511 + $0x150] sm:$0xff]
        %v5541 = vld [vmem:[%s5511 + $0x158] sm:$0xff]
        %v5542 = vld [vmem:[%s5511 + $0x168] sm:$0xff]
        %v5543 = vld [vmem:[%s5511 + $0x170] sm:$0xff]
        %5576 = vrot.lane.b32.xlu0 %v5512, 12
        %v5577 = vpop.permute.xlu0 %5576
        %5578 = vrot.lane.b32.xlu0 %v5513, 12
        %v5579 = vpop.permute.xlu0 %5578
        %5580 = vrot.lane.b32.xlu0 %v5514, 12
        %v5581 = vpop.permute.xlu0 %5580
        %5582 = vrot.lane.b32.xlu0 %v5515, 12
        %v5583 = vpop.permute.xlu0 %5582
        %5584 = vrot.lane.b32.xlu0 %v5516, 12
        %v5585 = vpop.permute.xlu0 %5584
        %5586 = vrot.lane.b32.xlu0 %v5517, 12
        %v5587 = vpop.permute.xlu0 %5586
        %5588 = vrot.lane.b32.xlu0 %v5518, 12
        %v5589 = vpop.permute.xlu0 %5588
        %5590 = vrot.lane.b32.xlu0 %v5519, 12
        %v5591 = vpop.permute.xlu0 %5590
        %5592 = vrot.lane.b32.xlu0 %v5520, 12
        %v5593 = vpop.permute.xlu0 %5592
        %5594 = vrot.lane.b32.xlu0 %v5521, 12
        %v5595 = vpop.permute.xlu0 %5594
        %5596 = vrot.lane.b32.xlu0 %v5522, 12
        %v5597 = vpop.permute.xlu0 %5596
        %5598 = vrot.lane.b32.xlu0 %v5523, 12
        %v5599 = vpop.permute.xlu0 %5598
        %5600 = vrot.lane.b32.xlu0 %v5524, 12
        %v5601 = vpop.permute.xlu0 %5600
        %5602 = vrot.lane.b32.xlu0 %v5525, 12
        %v5603 = vpop.permute.xlu0 %5602
        %5604 = vrot.lane.b32.xlu0 %v5526, 12
        %v5605 = vpop.permute.xlu0 %5604
        %5606 = vrot.lane.b32.xlu0 %v5527, 12
        %v5607 = vpop.permute.xlu0 %5606
        %5608 = vrot.lane.b32.xlu0 %v5528, 12
        %v5609 = vpop.permute.xlu0 %5608
        %5610 = vrot.lane.b32.xlu0 %v5529, 12
        %v5611 = vpop.permute.xlu0 %5610
        %5612 = vrot.lane.b32.xlu0 %v5530, 12
        %v5613 = vpop.permute.xlu0 %5612
        %5614 = vrot.lane.b32.xlu0 %v5531, 12
        %v5615 = vpop.permute.xlu0 %5614
        %5616 = vrot.lane.b32.xlu0 %v5532, 12
        %v5617 = vpop.permute.xlu0 %5616
        %5618 = vrot.lane.b32.xlu0 %v5533, 12
        %v5619 = vpop.permute.xlu0 %5618
        %5620 = vrot.lane.b32.xlu0 %v5534, 12
        %v5621 = vpop.permute.xlu0 %5620
        %5622 = vrot.lane.b32.xlu0 %v5535, 12
        %v5623 = vpop.permute.xlu0 %5622
        %5624 = vrot.lane.b32.xlu0 %v5536, 12
        %v5625 = vpop.permute.xlu0 %5624
        %5626 = vrot.lane.b32.xlu0 %v5537, 12
        %v5627 = vpop.permute.xlu0 %5626
        %5628 = vrot.lane.b32.xlu0 %v5538, 12
        %v5629 = vpop.permute.xlu0 %5628
        %5630 = vrot.lane.b32.xlu0 %v5539, 12
        %v5631 = vpop.permute.xlu0 %5630
        %5632 = vrot.lane.b32.xlu0 %v5540, 12
        %v5633 = vpop.permute.xlu0 %5632
        %5634 = vrot.lane.b32.xlu0 %v5541, 12
        %v5635 = vpop.permute.xlu0 %5634
        %5636 = vrot.lane.b32.xlu0 %v5542, 12
        %v5637 = vpop.permute.xlu0 %5636
        %5638 = vrot.lane.b32.xlu0 %v5543, 12
        %v5639 = vpop.permute.xlu0 %5638
        %vm5672 = vcmask 130144
        %5673 = vst.msk [vmem:[#allocation5] sm:$0xff] %vm5672, %v5577
        %5674 = vst.msk [vmem:[#allocation5 + $0x8] sm:$0xff] %vm5672, %v5579
        %5675 = vst.msk [vmem:[#allocation5 + $0x10] sm:$0xff] %vm5672, %v5581
        %5676 = vst.msk [vmem:[#allocation5 + $0x18] sm:$0xff] %vm5672, %v5583
        %5677 = vst.msk [vmem:[#allocation5 + $0x20] sm:$0xff] %vm5672, %v5585
        %5678 = vst.msk [vmem:[#allocation5 + $0x28] sm:$0xff] %vm5672, %v5587
        %5679 = vst.msk [vmem:[#allocation5 + $0x30] sm:$0xff] %vm5672, %v5589
        %5680 = vst.msk [vmem:[#allocation5 + $0x38] sm:$0xff] %vm5672, %v5591
        %5681 = vst.msk [vmem:[#allocation5 + $0x40] sm:$0xff] %vm5672, %v5593
        %5682 = vst.msk [vmem:[#allocation5 + $0x48] sm:$0xff] %vm5672, %v5595
        %5683 = vst.msk [vmem:[#allocation5 + $0x50] sm:$0xff] %vm5672, %v5597
        %5684 = vst.msk [vmem:[#allocation5 + $0x58] sm:$0xff] %vm5672, %v5599
        %5685 = vst.msk [vmem:[#allocation5 + $0x60] sm:$0xff] %vm5672, %v5601
        %5686 = vst.msk [vmem:[#allocation5 + $0x68] sm:$0xff] %vm5672, %v5603
        %5687 = vst.msk [vmem:[#allocation5 + $0x70] sm:$0xff] %vm5672, %v5605
        %5688 = vst.msk [vmem:[#allocation5 + $0x78] sm:$0xff] %vm5672, %v5607
        %5689 = vst.msk [vmem:[#allocation5 + $0x80] sm:$0xff] %vm5672, %v5609
        %5690 = vst.msk [vmem:[#allocation5 + $0x88] sm:$0xff] %vm5672, %v5611
        %5691 = vst.msk [vmem:[#allocation5 + $0x90] sm:$0xff] %vm5672, %v5613
        %5692 = vst.msk [vmem:[#allocation5 + $0x98] sm:$0xff] %vm5672, %v5615
        %5693 = vst.msk [vmem:[#allocation5 + $0xa0] sm:$0xff] %vm5672, %v5617
        %5694 = vst.msk [vmem:[#allocation5 + $0xa8] sm:$0xff] %vm5672, %v5619
        %5695 = vst.msk [vmem:[#allocation5 + $0xb0] sm:$0xff] %vm5672, %v5621
        %5696 = vst.msk [vmem:[#allocation5 + $0xb8] sm:$0xff] %vm5672, %v5623
        %5697 = vst.msk [vmem:[#allocation5 + $0xc0] sm:$0xff] %vm5672, %v5625
        %5698 = vst.msk [vmem:[#allocation5 + $0xc8] sm:$0xff] %vm5672, %v5627
        %5699 = vst.msk [vmem:[#allocation5 + $0xd0] sm:$0xff] %vm5672, %v5629
        %5700 = vst.msk [vmem:[#allocation5 + $0xd8] sm:$0xff] %vm5672, %v5631
        %5701 = vst.msk [vmem:[#allocation5 + $0xe0] sm:$0xff] %vm5672, %v5633
        %5702 = vst.msk [vmem:[#allocation5 + $0xe8] sm:$0xff] %vm5672, %v5635
        %5703 = vst.msk [vmem:[#allocation5 + $0xf0] sm:$0xff] %vm5672, %v5637
        %5704 = vst.msk [vmem:[#allocation5 + $0xf8] sm:$0xff] %vm5672, %v5639
        %v5705 = vld [vmem:[%s5511 + $0x1] sm:$0xff]
        %v5706 = vld [vmem:[%s5511 + $0x9] sm:$0xff]
        %v5707 = vld [vmem:[%s5511 + $0x19] sm:$0xff]
        %v5708 = vld [vmem:[%s5511 + $0x21] sm:$0xff]
        %v5709 = vld [vmem:[%s5511 + $0x31] sm:$0xff]
        %v5710 = vld [vmem:[%s5511 + $0x39] sm:$0xff]
        %v5711 = vld [vmem:[%s5511 + $0x49] sm:$0xff]
        %v5712 = vld [vmem:[%s5511 + $0x51] sm:$0xff]
        %v5713 = vld [vmem:[%s5511 + $0x61] sm:$0xff]
        %v5714 = vld [vmem:[%s5511 + $0x69] sm:$0xff]
        %v5715 = vld [vmem:[%s5511 + $0x79] sm:$0xff]
        %v5716 = vld [vmem:[%s5511 + $0x81] sm:$0xff]
        %v5717 = vld [vmem:[%s5511 + $0x91] sm:$0xff]
        %v5718 = vld [vmem:[%s5511 + $0x99] sm:$0xff]
        %v5719 = vld [vmem:[%s5511 + $0xa9] sm:$0xff]
        %v5720 = vld [vmem:[%s5511 + $0xb1] sm:$0xff]
        %v5721 = vld [vmem:[%s5511 + $0xc1] sm:$0xff]
        %v5722 = vld [vmem:[%s5511 + $0xc9] sm:$0xff]
        %v5723 = vld [vmem:[%s5511 + $0xd9] sm:$0xff]
        %v5724 = vld [vmem:[%s5511 + $0xe1] sm:$0xff]
        %v5725 = vld [vmem:[%s5511 + $0xf1] sm:$0xff]
        %v5726 = vld [vmem:[%s5511 + $0xf9] sm:$0xff]
        %v5727 = vld [vmem:[%s5511 + $0x109] sm:$0xff]
        %v5728 = vld [vmem:[%s5511 + $0x111] sm:$0xff]
        %v5729 = vld [vmem:[%s5511 + $0x121] sm:$0xff]
        %v5730 = vld [vmem:[%s5511 + $0x129] sm:$0xff]
        %v5731 = vld [vmem:[%s5511 + $0x139] sm:$0xff]
        %v5732 = vld [vmem:[%s5511 + $0x141] sm:$0xff]
        %v5733 = vld [vmem:[%s5511 + $0x151] sm:$0xff]
        %v5734 = vld [vmem:[%s5511 + $0x159] sm:$0xff]
        %v5735 = vld [vmem:[%s5511 + $0x169] sm:$0xff]
        %v5736 = vld [vmem:[%s5511 + $0x171] sm:$0xff]
        %5769 = vrot.lane.b32.xlu0 %v5705, 16
        %v5770 = vpop.permute.xlu0 %5769
        %5771 = vrot.lane.b32.xlu0 %v5706, 16
        %v5772 = vpop.permute.xlu0 %5771
        %5773 = vrot.lane.b32.xlu0 %v5707, 16
        %v5774 = vpop.permute.xlu0 %5773
        %5775 = vrot.lane.b32.xlu0 %v5708, 16
        %v5776 = vpop.permute.xlu0 %5775
        %5777 = vrot.lane.b32.xlu0 %v5709, 16
        %v5778 = vpop.permute.xlu0 %5777
        %5779 = vrot.lane.b32.xlu0 %v5710, 16
        %v5780 = vpop.permute.xlu0 %5779
        %5781 = vrot.lane.b32.xlu0 %v5711, 16
        %v5782 = vpop.permute.xlu0 %5781
        %5783 = vrot.lane.b32.xlu0 %v5712, 16
        %v5784 = vpop.permute.xlu0 %5783
        %5785 = vrot.lane.b32.xlu0 %v5713, 16
        %v5786 = vpop.permute.xlu0 %5785
        %5787 = vrot.lane.b32.xlu0 %v5714, 16
        %v5788 = vpop.permute.xlu0 %5787
        %5789 = vrot.lane.b32.xlu0 %v5715, 16
        %v5790 = vpop.permute.xlu0 %5789
        %5791 = vrot.lane.b32.xlu0 %v5716, 16
        %v5792 = vpop.permute.xlu0 %5791
        %5793 = vrot.lane.b32.xlu0 %v5717, 16
        %v5794 = vpop.permute.xlu0 %5793
        %5795 = vrot.lane.b32.xlu0 %v5718, 16
        %v5796 = vpop.permute.xlu0 %5795
        %5797 = vrot.lane.b32.xlu0 %v5719, 16
        %v5798 = vpop.permute.xlu0 %5797
        %5799 = vrot.lane.b32.xlu0 %v5720, 16
        %v5800 = vpop.permute.xlu0 %5799
        %5801 = vrot.lane.b32.xlu0 %v5721, 16
        %v5802 = vpop.permute.xlu0 %5801
        %5803 = vrot.lane.b32.xlu0 %v5722, 16
        %v5804 = vpop.permute.xlu0 %5803
        %5805 = vrot.lane.b32.xlu0 %v5723, 16
        %v5806 = vpop.permute.xlu0 %5805
        %5807 = vrot.lane.b32.xlu0 %v5724, 16
        %v5808 = vpop.permute.xlu0 %5807
        %5809 = vrot.lane.b32.xlu0 %v5725, 16
        %v5810 = vpop.permute.xlu0 %5809
        %5811 = vrot.lane.b32.xlu0 %v5726, 16
        %v5812 = vpop.permute.xlu0 %5811
        %5813 = vrot.lane.b32.xlu0 %v5727, 16
        %v5814 = vpop.permute.xlu0 %5813
        %5815 = vrot.lane.b32.xlu0 %v5728, 16
        %v5816 = vpop.permute.xlu0 %5815
        %5817 = vrot.lane.b32.xlu0 %v5729, 16
        %v5818 = vpop.permute.xlu0 %5817
        %5819 = vrot.lane.b32.xlu0 %v5730, 16
        %v5820 = vpop.permute.xlu0 %5819
        %5821 = vrot.lane.b32.xlu0 %v5731, 16
        %v5822 = vpop.permute.xlu0 %5821
        %5823 = vrot.lane.b32.xlu0 %v5732, 16
        %v5824 = vpop.permute.xlu0 %5823
        %5825 = vrot.lane.b32.xlu0 %v5733, 16
        %v5826 = vpop.permute.xlu0 %5825
        %5827 = vrot.lane.b32.xlu0 %v5734, 16
        %v5828 = vpop.permute.xlu0 %5827
        %5829 = vrot.lane.b32.xlu0 %v5735, 16
        %v5830 = vpop.permute.xlu0 %5829
        %5831 = vrot.lane.b32.xlu0 %v5736, 16
        %v5832 = vpop.permute.xlu0 %5831
        %vm5865 = vcmask 162944
        %5866 = vst.msk [vmem:[#allocation5] sm:$0xff] %vm5865, %v5770
        %5867 = vst.msk [vmem:[#allocation5 + $0x8] sm:$0xff] %vm5865, %v5772
        %5868 = vst.msk [vmem:[#allocation5 + $0x10] sm:$0xff] %vm5865, %v5774
        %5869 = vst.msk [vmem:[#allocation5 + $0x18] sm:$0xff] %vm5865, %v5776
        %5870 = vst.msk [vmem:[#allocation5 + $0x20] sm:$0xff] %vm5865, %v5778
        %5871 = vst.msk [vmem:[#allocation5 + $0x28] sm:$0xff] %vm5865, %v5780
        %5872 = vst.msk [vmem:[#allocation5 + $0x30] sm:$0xff] %vm5865, %v5782
        %5873 = vst.msk [vmem:[#allocation5 + $0x38] sm:$0xff] %vm5865, %v5784
        %5874 = vst.msk [vmem:[#allocation5 + $0x40] sm:$0xff] %vm5865, %v5786
        %5875 = vst.msk [vmem:[#allocation5 + $0x48] sm:$0xff] %vm5865, %v5788
        %5876 = vst.msk [vmem:[#allocation5 + $0x50] sm:$0xff] %vm5865, %v5790
        %5877 = vst.msk [vmem:[#allocation5 + $0x58] sm:$0xff] %vm5865, %v5792
        %5878 = vst.msk [vmem:[#allocation5 + $0x60] sm:$0xff] %vm5865, %v5794
        %5879 = vst.msk [vmem:[#allocation5 + $0x68] sm:$0xff] %vm5865, %v5796
        %5880 = vst.msk [vmem:[#allocation5 + $0x70] sm:$0xff] %vm5865, %v5798
        %5881 = vst.msk [vmem:[#allocation5 + $0x78] sm:$0xff] %vm5865, %v5800
        %5882 = vst.msk [vmem:[#allocation5 + $0x80] sm:$0xff] %vm5865, %v5802
        %5883 = vst.msk [vmem:[#allocation5 + $0x88] sm:$0xff] %vm5865, %v5804
        %5884 = vst.msk [vmem:[#allocation5 + $0x90] sm:$0xff] %vm5865, %v5806
        %5885 = vst.msk [vmem:[#allocation5 + $0x98] sm:$0xff] %vm5865, %v5808
        %5886 = vst.msk [vmem:[#allocation5 + $0xa0] sm:$0xff] %vm5865, %v5810
        %5887 = vst.msk [vmem:[#allocation5 + $0xa8] sm:$0xff] %vm5865, %v5812
        %5888 = vst.msk [vmem:[#allocation5 + $0xb0] sm:$0xff] %vm5865, %v5814
        %5889 = vst.msk [vmem:[#allocation5 + $0xb8] sm:$0xff] %vm5865, %v5816
        %5890 = vst.msk [vmem:[#allocation5 + $0xc0] sm:$0xff] %vm5865, %v5818
        %5891 = vst.msk [vmem:[#allocation5 + $0xc8] sm:$0xff] %vm5865, %v5820
        %5892 = vst.msk [vmem:[#allocation5 + $0xd0] sm:$0xff] %vm5865, %v5822
        %5893 = vst.msk [vmem:[#allocation5 + $0xd8] sm:$0xff] %vm5865, %v5824
        %5894 = vst.msk [vmem:[#allocation5 + $0xe0] sm:$0xff] %vm5865, %v5826
        %5895 = vst.msk [vmem:[#allocation5 + $0xe8] sm:$0xff] %vm5865, %v5828
        %5896 = vst.msk [vmem:[#allocation5 + $0xf0] sm:$0xff] %vm5865, %v5830
        %5897 = vst.msk [vmem:[#allocation5 + $0xf8] sm:$0xff] %vm5865, %v5832
        %v5898 = vld [vmem:[%s5511 + $0x2] sm:$0xff]
        %v5899 = vld [vmem:[%s5511 + $0xa] sm:$0xff]
        %v5900 = vld [vmem:[%s5511 + $0x1a] sm:$0xff]
        %v5901 = vld [vmem:[%s5511 + $0x22] sm:$0xff]
        %v5902 = vld [vmem:[%s5511 + $0x32] sm:$0xff]
        %v5903 = vld [vmem:[%s5511 + $0x3a] sm:$0xff]
        %v5904 = vld [vmem:[%s5511 + $0x4a] sm:$0xff]
        %v5905 = vld [vmem:[%s5511 + $0x52] sm:$0xff]
        %v5906 = vld [vmem:[%s5511 + $0x62] sm:$0xff]
        %v5907 = vld [vmem:[%s5511 + $0x6a] sm:$0xff]
        %v5908 = vld [vmem:[%s5511 + $0x7a] sm:$0xff]
        %v5909 = vld [vmem:[%s5511 + $0x82] sm:$0xff]
        %v5910 = vld [vmem:[%s5511 + $0x92] sm:$0xff]
        %v5911 = vld [vmem:[%s5511 + $0x9a] sm:$0xff]
        %v5912 = vld [vmem:[%s5511 + $0xaa] sm:$0xff]
        %v5913 = vld [vmem:[%s5511 + $0xb2] sm:$0xff]
        %v5914 = vld [vmem:[%s5511 + $0xc2] sm:$0xff]
        %v5915 = vld [vmem:[%s5511 + $0xca] sm:$0xff]
        %v5916 = vld [vmem:[%s5511 + $0xda] sm:$0xff]
        %v5917 = vld [vmem:[%s5511 + $0xe2] sm:$0xff]
        %v5918 = vld [vmem:[%s5511 + $0xf2] sm:$0xff]
        %v5919 = vld [vmem:[%s5511 + $0xfa] sm:$0xff]
        %v5920 = vld [vmem:[%s5511 + $0x10a] sm:$0xff]
        %v5921 = vld [vmem:[%s5511 + $0x112] sm:$0xff]
        %v5922 = vld [vmem:[%s5511 + $0x122] sm:$0xff]
        %v5923 = vld [vmem:[%s5511 + $0x12a] sm:$0xff]
        %v5924 = vld [vmem:[%s5511 + $0x13a] sm:$0xff]
        %v5925 = vld [vmem:[%s5511 + $0x142] sm:$0xff]
        %v5926 = vld [vmem:[%s5511 + $0x152] sm:$0xff]
        %v5927 = vld [vmem:[%s5511 + $0x15a] sm:$0xff]
        %v5928 = vld [vmem:[%s5511 + $0x16a] sm:$0xff]
        %v5929 = vld [vmem:[%s5511 + $0x172] sm:$0xff]
        %5962 = vrot.lane.b32.xlu0 %v5898, 20
        %v5963 = vpop.permute.xlu0 %5962
        %5964 = vrot.lane.b32.xlu0 %v5899, 20
        %v5965 = vpop.permute.xlu0 %5964
        %5966 = vrot.lane.b32.xlu0 %v5900, 20
        %v5967 = vpop.permute.xlu0 %5966
        %5968 = vrot.lane.b32.xlu0 %v5901, 20
        %v5969 = vpop.permute.xlu0 %5968
        %5970 = vrot.lane.b32.xlu0 %v5902, 20
        %v5971 = vpop.permute.xlu0 %5970
        %5972 = vrot.lane.b32.xlu0 %v5903, 20
        %v5973 = vpop.permute.xlu0 %5972
        %5974 = vrot.lane.b32.xlu0 %v5904, 20
        %v5975 = vpop.permute.xlu0 %5974
        %5976 = vrot.lane.b32.xlu0 %v5905, 20
        %v5977 = vpop.permute.xlu0 %5976
        %5978 = vrot.lane.b32.xlu0 %v5906, 20
        %v5979 = vpop.permute.xlu0 %5978
        %5980 = vrot.lane.b32.xlu0 %v5907, 20
        %v5981 = vpop.permute.xlu0 %5980
        %5982 = vrot.lane.b32.xlu0 %v5908, 20
        %v5983 = vpop.permute.xlu0 %5982
        %5984 = vrot.lane.b32.xlu0 %v5909, 20
        %v5985 = vpop.permute.xlu0 %5984
        %5986 = vrot.lane.b32.xlu0 %v5910, 20
        %v5987 = vpop.permute.xlu0 %5986
        %5988 = vrot.lane.b32.xlu0 %v5911, 20
        %v5989 = vpop.permute.xlu0 %5988
        %5990 = vrot.lane.b32.xlu0 %v5912, 20
        %v5991 = vpop.permute.xlu0 %5990
        %5992 = vrot.lane.b32.xlu0 %v5913, 20
        %v5993 = vpop.permute.xlu0 %5992
        %5994 = vrot.lane.b32.xlu0 %v5914, 20
        %v5995 = vpop.permute.xlu0 %5994
        %5996 = vrot.lane.b32.xlu0 %v5915, 20
        %v5997 = vpop.permute.xlu0 %5996
        %5998 = vrot.lane.b32.xlu0 %v5916, 20
        %v5999 = vpop.permute.xlu0 %5998
        %6000 = vrot.lane.b32.xlu0 %v5917, 20
        %v6001 = vpop.permute.xlu0 %6000
        %6002 = vrot.lane.b32.xlu0 %v5918, 20
        %v6003 = vpop.permute.xlu0 %6002
        %6004 = vrot.lane.b32.xlu0 %v5919, 20
        %v6005 = vpop.permute.xlu0 %6004
        %6006 = vrot.lane.b32.xlu0 %v5920, 20
        %v6007 = vpop.permute.xlu0 %6006
        %6008 = vrot.lane.b32.xlu0 %v5921, 20
        %v6009 = vpop.permute.xlu0 %6008
        %6010 = vrot.lane.b32.xlu0 %v5922, 20
        %v6011 = vpop.permute.xlu0 %6010
        %6012 = vrot.lane.b32.xlu0 %v5923, 20
        %v6013 = vpop.permute.xlu0 %6012
        %6014 = vrot.lane.b32.xlu0 %v5924, 20
        %v6015 = vpop.permute.xlu0 %6014
        %6016 = vrot.lane.b32.xlu0 %v5925, 20
        %v6017 = vpop.permute.xlu0 %6016
        %6018 = vrot.lane.b32.xlu0 %v5926, 20
        %v6019 = vpop.permute.xlu0 %6018
        %6020 = vrot.lane.b32.xlu0 %v5927, 20
        %v6021 = vpop.permute.xlu0 %6020
        %6022 = vrot.lane.b32.xlu0 %v5928, 20
        %v6023 = vpop.permute.xlu0 %6022
        %6024 = vrot.lane.b32.xlu0 %v5929, 20
        %v6025 = vpop.permute.xlu0 %6024
        %vm6058 = vcmask 195744
        %6059 = vst.msk [vmem:[#allocation5] sm:$0xff] %vm6058, %v5963
        %6060 = vst.msk [vmem:[#allocation5 + $0x8] sm:$0xff] %vm6058, %v5965
        %6061 = vst.msk [vmem:[#allocation5 + $0x10] sm:$0xff] %vm6058, %v5967
        %6062 = vst.msk [vmem:[#allocation5 + $0x18] sm:$0xff] %vm6058, %v5969
        %6063 = vst.msk [vmem:[#allocation5 + $0x20] sm:$0xff] %vm6058, %v5971
        %6064 = vst.msk [vmem:[#allocation5 + $0x28] sm:$0xff] %vm6058, %v5973
        %6065 = vst.msk [vmem:[#allocation5 + $0x30] sm:$0xff] %vm6058, %v5975
        %6066 = vst.msk [vmem:[#allocation5 + $0x38] sm:$0xff] %vm6058, %v5977
        %6067 = vst.msk [vmem:[#allocation5 + $0x40] sm:$0xff] %vm6058, %v5979
        %6068 = vst.msk [vmem:[#allocation5 + $0x48] sm:$0xff] %vm6058, %v5981
        %6069 = vst.msk [vmem:[#allocation5 + $0x50] sm:$0xff] %vm6058, %v5983
        %6070 = vst.msk [vmem:[#allocation5 + $0x58] sm:$0xff] %vm6058, %v5985
        %6071 = vst.msk [vmem:[#allocation5 + $0x60] sm:$0xff] %vm6058, %v5987
        %6072 = vst.msk [vmem:[#allocation5 + $0x68] sm:$0xff] %vm6058, %v5989
        %6073 = vst.msk [vmem:[#allocation5 + $0x70] sm:$0xff] %vm6058, %v5991
        %6074 = vst.msk [vmem:[#allocation5 + $0x78] sm:$0xff] %vm6058, %v5993
        %6075 = vst.msk [vmem:[#allocation5 + $0x80] sm:$0xff] %vm6058, %v5995
        %6076 = vst.msk [vmem:[#allocation5 + $0x88] sm:$0xff] %vm6058, %v5997
        %6077 = vst.msk [vmem:[#allocation5 + $0x90] sm:$0xff] %vm6058, %v5999
        %6078 = vst.msk [vmem:[#allocation5 + $0x98] sm:$0xff] %vm6058, %v6001
        %6079 = vst.msk [vmem:[#allocation5 + $0xa0] sm:$0xff] %vm6058, %v6003
        %6080 = vst.msk [vmem:[#allocation5 + $0xa8] sm:$0xff] %vm6058, %v6005
        %6081 = vst.msk [vmem:[#allocation5 + $0xb0] sm:$0xff] %vm6058, %v6007
        %6082 = vst.msk [vmem:[#allocation5 + $0xb8] sm:$0xff] %vm6058, %v6009
        %6083 = vst.msk [vmem:[#allocation5 + $0xc0] sm:$0xff] %vm6058, %v6011
        %6084 = vst.msk [vmem:[#allocation5 + $0xc8] sm:$0xff] %vm6058, %v6013
        %6085 = vst.msk [vmem:[#allocation5 + $0xd0] sm:$0xff] %vm6058, %v6015
        %6086 = vst.msk [vmem:[#allocation5 + $0xd8] sm:$0xff] %vm6058, %v6017
        %6087 = vst.msk [vmem:[#allocation5 + $0xe0] sm:$0xff] %vm6058, %v6019
        %6088 = vst.msk [vmem:[#allocation5 + $0xe8] sm:$0xff] %vm6058, %v6021
        %6089 = vst.msk [vmem:[#allocation5 + $0xf0] sm:$0xff] %vm6058, %v6023
        %6090 = vst.msk [vmem:[#allocation5 + $0xf8] sm:$0xff] %vm6058, %v6025
        %s6091 = scalar_lea.vmem [#allocation2], 48
        %v6092 = vld [vmem:[%s6091] sm:$0xff]
        %v6093 = vld [vmem:[%s6091 + $0x8] sm:$0xff]
        %v6094 = vld [vmem:[%s6091 + $0x18] sm:$0xff]
        %v6095 = vld [vmem:[%s6091 + $0x20] sm:$0xff]
        %v6096 = vld [vmem:[%s6091 + $0x30] sm:$0xff]
        %v6097 = vld [vmem:[%s6091 + $0x38] sm:$0xff]
        %v6098 = vld [vmem:[%s6091 + $0x48] sm:$0xff]
        %v6099 = vld [vmem:[%s6091 + $0x50] sm:$0xff]
        %v6100 = vld [vmem:[%s6091 + $0x60] sm:$0xff]
        %v6101 = vld [vmem:[%s6091 + $0x68] sm:$0xff]
        %v6102 = vld [vmem:[%s6091 + $0x78] sm:$0xff]
        %v6103 = vld [vmem:[%s6091 + $0x80] sm:$0xff]
        %v6104 = vld [vmem:[%s6091 + $0x90] sm:$0xff]
        %v6105 = vld [vmem:[%s6091 + $0x98] sm:$0xff]
        %v6106 = vld [vmem:[%s6091 + $0xa8] sm:$0xff]
        %v6107 = vld [vmem:[%s6091 + $0xb0] sm:$0xff]
        %v6108 = vld [vmem:[%s6091 + $0xc0] sm:$0xff]
        %v6109 = vld [vmem:[%s6091 + $0xc8] sm:$0xff]
        %v6110 = vld [vmem:[%s6091 + $0xd8] sm:$0xff]
        %v6111 = vld [vmem:[%s6091 + $0xe0] sm:$0xff]
        %v6112 = vld [vmem:[%s6091 + $0xf0] sm:$0xff]
        %v6113 = vld [vmem:[%s6091 + $0xf8] sm:$0xff]
        %v6114 = vld [vmem:[%s6091 + $0x108] sm:$0xff]
        %v6115 = vld [vmem:[%s6091 + $0x110] sm:$0xff]
        %v6116 = vld [vmem:[%s6091 + $0x120] sm:$0xff]
        %v6117 = vld [vmem:[%s6091 + $0x128] sm:$0xff]
        %v6118 = vld [vmem:[%s6091 + $0x138] sm:$0xff]
        %v6119 = vld [vmem:[%s6091 + $0x140] sm:$0xff]
        %v6120 = vld [vmem:[%s6091 + $0x150] sm:$0xff]
        %v6121 = vld [vmem:[%s6091 + $0x158] sm:$0xff]
        %v6122 = vld [vmem:[%s6091 + $0x168] sm:$0xff]
        %v6123 = vld [vmem:[%s6091 + $0x170] sm:$0xff]
        %6156 = vrot.lane.b32.xlu0 %v6092, 24
        %v6157 = vpop.permute.xlu0 %6156
        %6158 = vrot.lane.b32.xlu0 %v6093, 24
        %v6159 = vpop.permute.xlu0 %6158
        %6160 = vrot.lane.b32.xlu0 %v6094, 24
        %v6161 = vpop.permute.xlu0 %6160
        %6162 = vrot.lane.b32.xlu0 %v6095, 24
        %v6163 = vpop.permute.xlu0 %6162
        %6164 = vrot.lane.b32.xlu0 %v6096, 24
        %v6165 = vpop.permute.xlu0 %6164
        %6166 = vrot.lane.b32.xlu0 %v6097, 24
        %v6167 = vpop.permute.xlu0 %6166
        %6168 = vrot.lane.b32.xlu0 %v6098, 24
        %v6169 = vpop.permute.xlu0 %6168
        %6170 = vrot.lane.b32.xlu0 %v6099, 24
        %v6171 = vpop.permute.xlu0 %6170
        %6172 = vrot.lane.b32.xlu0 %v6100, 24
        %v6173 = vpop.permute.xlu0 %6172
        %6174 = vrot.lane.b32.xlu0 %v6101, 24
        %v6175 = vpop.permute.xlu0 %6174
        %6176 = vrot.lane.b32.xlu0 %v6102, 24
        %v6177 = vpop.permute.xlu0 %6176
        %6178 = vrot.lane.b32.xlu0 %v6103, 24
        %v6179 = vpop.permute.xlu0 %6178
        %6180 = vrot.lane.b32.xlu0 %v6104, 24
        %v6181 = vpop.permute.xlu0 %6180
        %6182 = vrot.lane.b32.xlu0 %v6105, 24
        %v6183 = vpop.permute.xlu0 %6182
        %6184 = vrot.lane.b32.xlu0 %v6106, 24
        %v6185 = vpop.permute.xlu0 %6184
        %6186 = vrot.lane.b32.xlu0 %v6107, 24
        %v6187 = vpop.permute.xlu0 %6186
        %6188 = vrot.lane.b32.xlu0 %v6108, 24
        %v6189 = vpop.permute.xlu0 %6188
        %6190 = vrot.lane.b32.xlu0 %v6109, 24
        %v6191 = vpop.permute.xlu0 %6190
        %6192 = vrot.lane.b32.xlu0 %v6110, 24
        %v6193 = vpop.permute.xlu0 %6192
        %6194 = vrot.lane.b32.xlu0 %v6111, 24
        %v6195 = vpop.permute.xlu0 %6194
        %6196 = vrot.lane.b32.xlu0 %v6112, 24
        %v6197 = vpop.permute.xlu0 %6196
        %6198 = vrot.lane.b32.xlu0 %v6113, 24
        %v6199 = vpop.permute.xlu0 %6198
        %6200 = vrot.lane.b32.xlu0 %v6114, 24
        %v6201 = vpop.permute.xlu0 %6200
        %6202 = vrot.lane.b32.xlu0 %v6115, 24
        %v6203 = vpop.permute.xlu0 %6202
        %6204 = vrot.lane.b32.xlu0 %v6116, 24
        %v6205 = vpop.permute.xlu0 %6204
        %6206 = vrot.lane.b32.xlu0 %v6117, 24
        %v6207 = vpop.permute.xlu0 %6206
        %6208 = vrot.lane.b32.xlu0 %v6118, 24
        %v6209 = vpop.permute.xlu0 %6208
        %6210 = vrot.lane.b32.xlu0 %v6119, 24
        %v6211 = vpop.permute.xlu0 %6210
        %6212 = vrot.lane.b32.xlu0 %v6120, 24
        %v6213 = vpop.permute.xlu0 %6212
        %6214 = vrot.lane.b32.xlu0 %v6121, 24
        %v6215 = vpop.permute.xlu0 %6214
        %6216 = vrot.lane.b32.xlu0 %v6122, 24
        %v6217 = vpop.permute.xlu0 %6216
        %6218 = vrot.lane.b32.xlu0 %v6123, 24
        %v6219 = vpop.permute.xlu0 %6218
        %vm6252 = vcmask 228544
        %6253 = vst.msk [vmem:[#allocation5] sm:$0xff] %vm6252, %v6157
        %6254 = vst.msk [vmem:[#allocation5 + $0x8] sm:$0xff] %vm6252, %v6159
        %6255 = vst.msk [vmem:[#allocation5 + $0x10] sm:$0xff] %vm6252, %v6161
        %6256 = vst.msk [vmem:[#allocation5 + $0x18] sm:$0xff] %vm6252, %v6163
        %6257 = vst.msk [vmem:[#allocation5 + $0x20] sm:$0xff] %vm6252, %v6165
        %6258 = vst.msk [vmem:[#allocation5 + $0x28] sm:$0xff] %vm6252, %v6167
        %6259 = vst.msk [vmem:[#allocation5 + $0x30] sm:$0xff] %vm6252, %v6169
        %6260 = vst.msk [vmem:[#allocation5 + $0x38] sm:$0xff] %vm6252, %v6171
        %6261 = vst.msk [vmem:[#allocation5 + $0x40] sm:$0xff] %vm6252, %v6173
        %6262 = vst.msk [vmem:[#allocation5 + $0x48] sm:$0xff] %vm6252, %v6175
        %6263 = vst.msk [vmem:[#allocation5 + $0x50] sm:$0xff] %vm6252, %v6177
        %6264 = vst.msk [vmem:[#allocation5 + $0x58] sm:$0xff] %vm6252, %v6179
        %6265 = vst.msk [vmem:[#allocation5 + $0x60] sm:$0xff] %vm6252, %v6181
        %6266 = vst.msk [vmem:[#allocation5 + $0x68] sm:$0xff] %vm6252, %v6183
        %6267 = vst.msk [vmem:[#allocation5 + $0x70] sm:$0xff] %vm6252, %v6185
        %6268 = vst.msk [vmem:[#allocation5 + $0x78] sm:$0xff] %vm6252, %v6187
        %6269 = vst.msk [vmem:[#allocation5 + $0x80] sm:$0xff] %vm6252, %v6189
        %6270 = vst.msk [vmem:[#allocation5 + $0x88] sm:$0xff] %vm6252, %v6191
        %6271 = vst.msk [vmem:[#allocation5 + $0x90] sm:$0xff] %vm6252, %v6193
        %6272 = vst.msk [vmem:[#allocation5 + $0x98] sm:$0xff] %vm6252, %v6195
        %6273 = vst.msk [vmem:[#allocation5 + $0xa0] sm:$0xff] %vm6252, %v6197
        %6274 = vst.msk [vmem:[#allocation5 + $0xa8] sm:$0xff] %vm6252, %v6199
        %6275 = vst.msk [vmem:[#allocation5 + $0xb0] sm:$0xff] %vm6252, %v6201
        %6276 = vst.msk [vmem:[#allocation5 + $0xb8] sm:$0xff] %vm6252, %v6203
        %6277 = vst.msk [vmem:[#allocation5 + $0xc0] sm:$0xff] %vm6252, %v6205
        %6278 = vst.msk [vmem:[#allocation5 + $0xc8] sm:$0xff] %vm6252, %v6207
        %6279 = vst.msk [vmem:[#allocation5 + $0xd0] sm:$0xff] %vm6252, %v6209
        %6280 = vst.msk [vmem:[#allocation5 + $0xd8] sm:$0xff] %vm6252, %v6211
        %6281 = vst.msk [vmem:[#allocation5 + $0xe0] sm:$0xff] %vm6252, %v6213
        %6282 = vst.msk [vmem:[#allocation5 + $0xe8] sm:$0xff] %vm6252, %v6215
        %6283 = vst.msk [vmem:[#allocation5 + $0xf0] sm:$0xff] %vm6252, %v6217
        %6284 = vst.msk [vmem:[#allocation5 + $0xf8] sm:$0xff] %vm6252, %v6219
        %v6285 = vld [vmem:[%s6091 + $0x1] sm:$0xff]
        %v6286 = vld [vmem:[%s6091 + $0x9] sm:$0xff]
        %v6287 = vld [vmem:[%s6091 + $0x19] sm:$0xff]
        %v6288 = vld [vmem:[%s6091 + $0x21] sm:$0xff]
        %v6289 = vld [vmem:[%s6091 + $0x31] sm:$0xff]
        %v6290 = vld [vmem:[%s6091 + $0x39] sm:$0xff]
        %v6291 = vld [vmem:[%s6091 + $0x49] sm:$0xff]
        %v6292 = vld [vmem:[%s6091 + $0x51] sm:$0xff]
        %v6293 = vld [vmem:[%s6091 + $0x61] sm:$0xff]
        %v6294 = vld [vmem:[%s6091 + $0x69] sm:$0xff]
        %v6295 = vld [vmem:[%s6091 + $0x79] sm:$0xff]
        %v6296 = vld [vmem:[%s6091 + $0x81] sm:$0xff]
        %v6297 = vld [vmem:[%s6091 + $0x91] sm:$0xff]
        %v6298 = vld [vmem:[%s6091 + $0x99] sm:$0xff]
        %v6299 = vld [vmem:[%s6091 + $0xa9] sm:$0xff]
        %v6300 = vld [vmem:[%s6091 + $0xb1] sm:$0xff]
        %v6301 = vld [vmem:[%s6091 + $0xc1] sm:$0xff]
        %v6302 = vld [vmem:[%s6091 + $0xc9] sm:$0xff]
        %v6303 = vld [vmem:[%s6091 + $0xd9] sm:$0xff]
        %v6304 = vld [vmem:[%s6091 + $0xe1] sm:$0xff]
        %v6305 = vld [vmem:[%s6091 + $0xf1] sm:$0xff]
        %v6306 = vld [vmem:[%s6091 + $0xf9] sm:$0xff]
        %v6307 = vld [vmem:[%s6091 + $0x109] sm:$0xff]
        %v6308 = vld [vmem:[%s6091 + $0x111] sm:$0xff]
        %v6309 = vld [vmem:[%s6091 + $0x121] sm:$0xff]
        %v6310 = vld [vmem:[%s6091 + $0x129] sm:$0xff]
        %v6311 = vld [vmem:[%s6091 + $0x139] sm:$0xff]
        %v6312 = vld [vmem:[%s6091 + $0x141] sm:$0xff]
        %v6313 = vld [vmem:[%s6091 + $0x151] sm:$0xff]
        %v6314 = vld [vmem:[%s6091 + $0x159] sm:$0xff]
        %v6315 = vld [vmem:[%s6091 + $0x169] sm:$0xff]
        %v6316 = vld [vmem:[%s6091 + $0x171] sm:$0xff]
        %6349 = vrot.lane.b32.xlu0 %v6285, 28
        %v6350 = vpop.permute.xlu0 %6349
        %6351 = vrot.lane.b32.xlu0 %v6286, 28
        %v6352 = vpop.permute.xlu0 %6351
        %6353 = vrot.lane.b32.xlu0 %v6287, 28
        %v6354 = vpop.permute.xlu0 %6353
        %6355 = vrot.lane.b32.xlu0 %v6288, 28
        %v6356 = vpop.permute.xlu0 %6355
        %6357 = vrot.lane.b32.xlu0 %v6289, 28
        %v6358 = vpop.permute.xlu0 %6357
        %6359 = vrot.lane.b32.xlu0 %v6290, 28
        %v6360 = vpop.permute.xlu0 %6359
        %6361 = vrot.lane.b32.xlu0 %v6291, 28
        %v6362 = vpop.permute.xlu0 %6361
        %6363 = vrot.lane.b32.xlu0 %v6292, 28
        %v6364 = vpop.permute.xlu0 %6363
        %6365 = vrot.lane.b32.xlu0 %v6293, 28
        %v6366 = vpop.permute.xlu0 %6365
        %6367 = vrot.lane.b32.xlu0 %v6294, 28
        %v6368 = vpop.permute.xlu0 %6367
        %6369 = vrot.lane.b32.xlu0 %v6295, 28
        %v6370 = vpop.permute.xlu0 %6369
        %6371 = vrot.lane.b32.xlu0 %v6296, 28
        %v6372 = vpop.permute.xlu0 %6371
        %6373 = vrot.lane.b32.xlu0 %v6297, 28
        %v6374 = vpop.permute.xlu0 %6373
        %6375 = vrot.lane.b32.xlu0 %v6298, 28
        %v6376 = vpop.permute.xlu0 %6375
        %6377 = vrot.lane.b32.xlu0 %v6299, 28
        %v6378 = vpop.permute.xlu0 %6377
        %6379 = vrot.lane.b32.xlu0 %v6300, 28
        %v6380 = vpop.permute.xlu0 %6379
        %6381 = vrot.lane.b32.xlu0 %v6301, 28
        %v6382 = vpop.permute.xlu0 %6381
        %6383 = vrot.lane.b32.xlu0 %v6302, 28
        %v6384 = vpop.permute.xlu0 %6383
        %6385 = vrot.lane.b32.xlu0 %v6303, 28
        %v6386 = vpop.permute.xlu0 %6385
        %6387 = vrot.lane.b32.xlu0 %v6304, 28
        %v6388 = vpop.permute.xlu0 %6387
        %6389 = vrot.lane.b32.xlu0 %v6305, 28
        %v6390 = vpop.permute.xlu0 %6389
        %6391 = vrot.lane.b32.xlu0 %v6306, 28
        %v6392 = vpop.permute.xlu0 %6391
        %6393 = vrot.lane.b32.xlu0 %v6307, 28
        %v6394 = vpop.permute.xlu0 %6393
        %6395 = vrot.lane.b32.xlu0 %v6308, 28
        %v6396 = vpop.permute.xlu0 %6395
        %6397 = vrot.lane.b32.xlu0 %v6309, 28
        %v6398 = vpop.permute.xlu0 %6397
        %6399 = vrot.lane.b32.xlu0 %v6310, 28
        %v6400 = vpop.permute.xlu0 %6399
        %6401 = vrot.lane.b32.xlu0 %v6311, 28
        %v6402 = vpop.permute.xlu0 %6401
        %6403 = vrot.lane.b32.xlu0 %v6312, 28
        %v6404 = vpop.permute.xlu0 %6403
        %6405 = vrot.lane.b32.xlu0 %v6313, 28
        %v6406 = vpop.permute.xlu0 %6405
        %6407 = vrot.lane.b32.xlu0 %v6314, 28
        %v6408 = vpop.permute.xlu0 %6407
        %6409 = vrot.lane.b32.xlu0 %v6315, 28
        %v6410 = vpop.permute.xlu0 %6409
        %6411 = vrot.lane.b32.xlu0 %v6316, 28
        %v6412 = vpop.permute.xlu0 %6411
        %vm6445 = vcmask 261344
        %6446 = vst.msk [vmem:[#allocation5] sm:$0xff] %vm6445, %v6350
        %6447 = vst.msk [vmem:[#allocation5 + $0x8] sm:$0xff] %vm6445, %v6352
        %6448 = vst.msk [vmem:[#allocation5 + $0x10] sm:$0xff] %vm6445, %v6354
        %6449 = vst.msk [vmem:[#allocation5 + $0x18] sm:$0xff] %vm6445, %v6356
        %6450 = vst.msk [vmem:[#allocation5 + $0x20] sm:$0xff] %vm6445, %v6358
        %6451 = vst.msk [vmem:[#allocation5 + $0x28] sm:$0xff] %vm6445, %v6360
        %6452 = vst.msk [vmem:[#allocation5 + $0x30] sm:$0xff] %vm6445, %v6362
        %6453 = vst.msk [vmem:[#allocation5 + $0x38] sm:$0xff] %vm6445, %v6364
        %6454 = vst.msk [vmem:[#allocation5 + $0x40] sm:$0xff] %vm6445, %v6366
        %6455 = vst.msk [vmem:[#allocation5 + $0x48] sm:$0xff] %vm6445, %v6368
        %6456 = vst.msk [vmem:[#allocation5 + $0x50] sm:$0xff] %vm6445, %v6370
        %6457 = vst.msk [vmem:[#allocation5 + $0x58] sm:$0xff] %vm6445, %v6372
        %6458 = vst.msk [vmem:[#allocation5 + $0x60] sm:$0xff] %vm6445, %v6374
        %6459 = vst.msk [vmem:[#allocation5 + $0x68] sm:$0xff] %vm6445, %v6376
        %6460 = vst.msk [vmem:[#allocation5 + $0x70] sm:$0xff] %vm6445, %v6378
        %6461 = vst.msk [vmem:[#allocation5 + $0x78] sm:$0xff] %vm6445, %v6380
        %6462 = vst.msk [vmem:[#allocation5 + $0x80] sm:$0xff] %vm6445, %v6382
        %6463 = vst.msk [vmem:[#allocation5 + $0x88] sm:$0xff] %vm6445, %v6384
        %6464 = vst.msk [vmem:[#allocation5 + $0x90] sm:$0xff] %vm6445, %v6386
        %6465 = vst.msk [vmem:[#allocation5 + $0x98] sm:$0xff] %vm6445, %v6388
        %6466 = vst.msk [vmem:[#allocation5 + $0xa0] sm:$0xff] %vm6445, %v6390
        %6467 = vst.msk [vmem:[#allocation5 + $0xa8] sm:$0xff] %vm6445, %v6392
        %6468 = vst.msk [vmem:[#allocation5 + $0xb0] sm:$0xff] %vm6445, %v6394
        %6469 = vst.msk [vmem:[#allocation5 + $0xb8] sm:$0xff] %vm6445, %v6396
        %6470 = vst.msk [vmem:[#allocation5 + $0xc0] sm:$0xff] %vm6445, %v6398
        %6471 = vst.msk [vmem:[#allocation5 + $0xc8] sm:$0xff] %vm6445, %v6400
        %6472 = vst.msk [vmem:[#allocation5 + $0xd0] sm:$0xff] %vm6445, %v6402
        %6473 = vst.msk [vmem:[#allocation5 + $0xd8] sm:$0xff] %vm6445, %v6404
        %6474 = vst.msk [vmem:[#allocation5 + $0xe0] sm:$0xff] %vm6445, %v6406
        %6475 = vst.msk [vmem:[#allocation5 + $0xe8] sm:$0xff] %vm6445, %v6408
        %6476 = vst.msk [vmem:[#allocation5 + $0xf0] sm:$0xff] %vm6445, %v6410
        %6477 = vst.msk [vmem:[#allocation5 + $0xf8] sm:$0xff] %vm6445, %v6412
        %v6478 = vld [vmem:[%s6091 + $0x2] sm:$0xff]
        %v6479 = vld [vmem:[%s6091 + $0xa] sm:$0xff]
        %v6480 = vld [vmem:[%s6091 + $0x1a] sm:$0xff]
        %v6481 = vld [vmem:[%s6091 + $0x22] sm:$0xff]
        %v6482 = vld [vmem:[%s6091 + $0x32] sm:$0xff]
        %v6483 = vld [vmem:[%s6091 + $0x3a] sm:$0xff]
        %v6484 = vld [vmem:[%s6091 + $0x4a] sm:$0xff]
        %v6485 = vld [vmem:[%s6091 + $0x52] sm:$0xff]
        %v6486 = vld [vmem:[%s6091 + $0x62] sm:$0xff]
        %v6487 = vld [vmem:[%s6091 + $0x6a] sm:$0xff]
        %v6488 = vld [vmem:[%s6091 + $0x7a] sm:$0xff]
        %v6489 = vld [vmem:[%s6091 + $0x82] sm:$0xff]
        %v6490 = vld [vmem:[%s6091 + $0x92] sm:$0xff]
        %v6491 = vld [vmem:[%s6091 + $0x9a] sm:$0xff]
        %v6492 = vld [vmem:[%s6091 + $0xaa] sm:$0xff]
        %v6493 = vld [vmem:[%s6091 + $0xb2] sm:$0xff]
        %v6494 = vld [vmem:[%s6091 + $0xc2] sm:$0xff]
        %v6495 = vld [vmem:[%s6091 + $0xca] sm:$0xff]
        %v6496 = vld [vmem:[%s6091 + $0xda] sm:$0xff]
        %v6497 = vld [vmem:[%s6091 + $0xe2] sm:$0xff]
        %v6498 = vld [vmem:[%s6091 + $0xf2] sm:$0xff]
        %v6499 = vld [vmem:[%s6091 + $0xfa] sm:$0xff]
        %v6500 = vld [vmem:[%s6091 + $0x10a] sm:$0xff]
        %v6501 = vld [vmem:[%s6091 + $0x112] sm:$0xff]
        %v6502 = vld [vmem:[%s6091 + $0x122] sm:$0xff]
        %v6503 = vld [vmem:[%s6091 + $0x12a] sm:$0xff]
        %v6504 = vld [vmem:[%s6091 + $0x13a] sm:$0xff]
        %v6505 = vld [vmem:[%s6091 + $0x142] sm:$0xff]
        %v6506 = vld [vmem:[%s6091 + $0x152] sm:$0xff]
        %v6507 = vld [vmem:[%s6091 + $0x15a] sm:$0xff]
        %v6508 = vld [vmem:[%s6091 + $0x16a] sm:$0xff]
        %v6509 = vld [vmem:[%s6091 + $0x172] sm:$0xff]
        %6542 = vrot.lane.b32.xlu0 %v6478, 32
        %v6543 = vpop.permute.xlu0 %6542
        %6544 = vrot.lane.b32.xlu0 %v6479, 32
        %v6545 = vpop.permute.xlu0 %6544
        %6546 = vrot.lane.b32.xlu0 %v6480, 32
        %v6547 = vpop.permute.xlu0 %6546
        %6548 = vrot.lane.b32.xlu0 %v6481, 32
        %v6549 = vpop.permute.xlu0 %6548
        %6550 = vrot.lane.b32.xlu0 %v6482, 32
        %v6551 = vpop.permute.xlu0 %6550
        %6552 = vrot.lane.b32.xlu0 %v6483, 32
        %v6553 = vpop.permute.xlu0 %6552
        %6554 = vrot.lane.b32.xlu0 %v6484, 32
        %v6555 = vpop.permute.xlu0 %6554
        %6556 = vrot.lane.b32.xlu0 %v6485, 32
        %v6557 = vpop.permute.xlu0 %6556
        %6558 = vrot.lane.b32.xlu0 %v6486, 32
        %v6559 = vpop.permute.xlu0 %6558
        %6560 = vrot.lane.b32.xlu0 %v6487, 32
        %v6561 = vpop.permute.xlu0 %6560
        %6562 = vrot.lane.b32.xlu0 %v6488, 32
        %v6563 = vpop.permute.xlu0 %6562
        %6564 = vrot.lane.b32.xlu0 %v6489, 32
        %v6565 = vpop.permute.xlu0 %6564
        %6566 = vrot.lane.b32.xlu0 %v6490, 32
        %v6567 = vpop.permute.xlu0 %6566
        %6568 = vrot.lane.b32.xlu0 %v6491, 32
        %v6569 = vpop.permute.xlu0 %6568
        %6570 = vrot.lane.b32.xlu0 %v6492, 32
        %v6571 = vpop.permute.xlu0 %6570
        %6572 = vrot.lane.b32.xlu0 %v6493, 32
        %v6573 = vpop.permute.xlu0 %6572
        %6574 = vrot.lane.b32.xlu0 %v6494, 32
        %v6575 = vpop.permute.xlu0 %6574
        %6576 = vrot.lane.b32.xlu0 %v6495, 32
        %v6577 = vpop.permute.xlu0 %6576
        %6578 = vrot.lane.b32.xlu0 %v6496, 32
        %v6579 = vpop.permute.xlu0 %6578
        %6580 = vrot.lane.b32.xlu0 %v6497, 32
        %v6581 = vpop.permute.xlu0 %6580
        %6582 = vrot.lane.b32.xlu0 %v6498, 32
        %v6583 = vpop.permute.xlu0 %6582
        %6584 = vrot.lane.b32.xlu0 %v6499, 32
        %v6585 = vpop.permute.xlu0 %6584
        %6586 = vrot.lane.b32.xlu0 %v6500, 32
        %v6587 = vpop.permute.xlu0 %6586
        %6588 = vrot.lane.b32.xlu0 %v6501, 32
        %v6589 = vpop.permute.xlu0 %6588
        %6590 = vrot.lane.b32.xlu0 %v6502, 32
        %v6591 = vpop.permute.xlu0 %6590
        %6592 = vrot.lane.b32.xlu0 %v6503, 32
        %v6593 = vpop.permute.xlu0 %6592
        %6594 = vrot.lane.b32.xlu0 %v6504, 32
        %v6595 = vpop.permute.xlu0 %6594
        %6596 = vrot.lane.b32.xlu0 %v6505, 32
        %v6597 = vpop.permute.xlu0 %6596
        %6598 = vrot.lane.b32.xlu0 %v6506, 32
        %v6599 = vpop.permute.xlu0 %6598
        %6600 = vrot.lane.b32.xlu0 %v6507, 32
        %v6601 = vpop.permute.xlu0 %6600
        %6602 = vrot.lane.b32.xlu0 %v6508, 32
        %v6603 = vpop.permute.xlu0 %6602
        %6604 = vrot.lane.b32.xlu0 %v6509, 32
        %v6605 = vpop.permute.xlu0 %6604
        %vm6638 = vcmask 294144
        %6639 = vst.msk [vmem:[#allocation5] sm:$0xff] %vm6638, %v6543
        %6640 = vst.msk [vmem:[#allocation5 + $0x8] sm:$0xff] %vm6638, %v6545
        %6641 = vst.msk [vmem:[#allocation5 + $0x10] sm:$0xff] %vm6638, %v6547
        %6642 = vst.msk [vmem:[#allocation5 + $0x18] sm:$0xff] %vm6638, %v6549
        %6643 = vst.msk [vmem:[#allocation5 + $0x20] sm:$0xff] %vm6638, %v6551
        %6644 = vst.msk [vmem:[#allocation5 + $0x28] sm:$0xff] %vm6638, %v6553
        %6645 = vst.msk [vmem:[#allocation5 + $0x30] sm:$0xff] %vm6638, %v6555
        %6646 = vst.msk [vmem:[#allocation5 + $0x38] sm:$0xff] %vm6638, %v6557
        %6647 = vst.msk [vmem:[#allocation5 + $0x40] sm:$0xff] %vm6638, %v6559
        %6648 = vst.msk [vmem:[#allocation5 + $0x48] sm:$0xff] %vm6638, %v6561
        %6649 = vst.msk [vmem:[#allocation5 + $0x50] sm:$0xff] %vm6638, %v6563
        %6650 = vst.msk [vmem:[#allocation5 + $0x58] sm:$0xff] %vm6638, %v6565
        %6651 = vst.msk [vmem:[#allocation5 + $0x60] sm:$0xff] %vm6638, %v6567
        %6652 = vst.msk [vmem:[#allocation5 + $0x68] sm:$0xff] %vm6638, %v6569
        %6653 = vst.msk [vmem:[#allocation5 + $0x70] sm:$0xff] %vm6638, %v6571
        %6654 = vst.msk [vmem:[#allocation5 + $0x78] sm:$0xff] %vm6638, %v6573
        %6655 = vst.msk [vmem:[#allocation5 + $0x80] sm:$0xff] %vm6638, %v6575
        %6656 = vst.msk [vmem:[#allocation5 + $0x88] sm:$0xff] %vm6638, %v6577
        %6657 = vst.msk [vmem:[#allocation5 + $0x90] sm:$0xff] %vm6638, %v6579
        %6658 = vst.msk [vmem:[#allocation5 + $0x98] sm:$0xff] %vm6638, %v6581
        %6659 = vst.msk [vmem:[#allocation5 + $0xa0] sm:$0xff] %vm6638, %v6583
        %6660 = vst.msk [vmem:[#allocation5 + $0xa8] sm:$0xff] %vm6638, %v6585
        %6661 = vst.msk [vmem:[#allocation5 + $0xb0] sm:$0xff] %vm6638, %v6587
        %6662 = vst.msk [vmem:[#allocation5 + $0xb8] sm:$0xff] %vm6638, %v6589
        %6663 = vst.msk [vmem:[#allocation5 + $0xc0] sm:$0xff] %vm6638, %v6591
        %6664 = vst.msk [vmem:[#allocation5 + $0xc8] sm:$0xff] %vm6638, %v6593
        %6665 = vst.msk [vmem:[#allocation5 + $0xd0] sm:$0xff] %vm6638, %v6595
        %6666 = vst.msk [vmem:[#allocation5 + $0xd8] sm:$0xff] %vm6638, %v6597
        %6667 = vst.msk [vmem:[#allocation5 + $0xe0] sm:$0xff] %vm6638, %v6599
        %6668 = vst.msk [vmem:[#allocation5 + $0xe8] sm:$0xff] %vm6638, %v6601
        %6669 = vst.msk [vmem:[#allocation5 + $0xf0] sm:$0xff] %vm6638, %v6603
        %6670 = vst.msk [vmem:[#allocation5 + $0xf8] sm:$0xff] %vm6638, %v6605
        %v6671 = vld [vmem:[#allocation5] sm:$0xff]
        %v6672 = vld [vmem:[#allocation5 + $0x8] sm:$0xff]
        %v6673 = vld [vmem:[#allocation5 + $0x10] sm:$0xff]
        %v6674 = vld [vmem:[#allocation5 + $0x18] sm:$0xff]
        %v6675 = vld [vmem:[#allocation5 + $0x20] sm:$0xff]
        %v6676 = vld [vmem:[#allocation5 + $0x28] sm:$0xff]
        %v6677 = vld [vmem:[#allocation5 + $0x30] sm:$0xff]
        %v6678 = vld [vmem:[#allocation5 + $0x38] sm:$0xff]
        %v6679 = vld [vmem:[#allocation5 + $0x40] sm:$0xff]
        %v6680 = vld [vmem:[#allocation5 + $0x48] sm:$0xff]
        %v6681 = vld [vmem:[#allocation5 + $0x50] sm:$0xff]
        %v6682 = vld [vmem:[#allocation5 + $0x58] sm:$0xff]
        %v6683 = vld [vmem:[#allocation5 + $0x60] sm:$0xff]
        %v6684 = vld [vmem:[#allocation5 + $0x68] sm:$0xff]
        %v6685 = vld [vmem:[#allocation5 + $0x70] sm:$0xff]
        %v6686 = vld [vmem:[#allocation5 + $0x78] sm:$0xff]
        %v6687 = vld [vmem:[#allocation5 + $0x80] sm:$0xff]
        %v6688 = vld [vmem:[#allocation5 + $0x88] sm:$0xff]
        %v6689 = vld [vmem:[#allocation5 + $0x90] sm:$0xff]
        %v6690 = vld [vmem:[#allocation5 + $0x98] sm:$0xff]
        %v6691 = vld [vmem:[#allocation5 + $0xa0] sm:$0xff]
        %v6692 = vld [vmem:[#allocation5 + $0xa8] sm:$0xff]
        %v6693 = vld [vmem:[#allocation5 + $0xb0] sm:$0xff]
        %v6694 = vld [vmem:[#allocation5 + $0xb8] sm:$0xff]
        %v6695 = vld [vmem:[#allocation5 + $0xc0] sm:$0xff]
        %v6696 = vld [vmem:[#allocation5 + $0xc8] sm:$0xff]
        %v6697 = vld [vmem:[#allocation5 + $0xd0] sm:$0xff]
        %v6698 = vld [vmem:[#allocation5 + $0xd8] sm:$0xff]
        %v6699 = vld [vmem:[#allocation5 + $0xe0] sm:$0xff]
        %v6700 = vld [vmem:[#allocation5 + $0xe8] sm:$0xff]
        %v6701 = vld [vmem:[#allocation5 + $0xf0] sm:$0xff]
        %v6702 = vld [vmem:[#allocation5 + $0xf8] sm:$0xff]
        %v6703 = vlaneseq
        %v6704 = vshrl.u32 %v6703, 7
        %v6705 = vsub.s32 0, %v6704
        %v6706 = vrot.slane %v5060, %v6705
        %vm6707 = vcmask 293888
        %v6709 = vsel %vm6707, %v6671, 0
        %v6712 = vsel %vm6707, %v6672, 0
        %v6715 = vsel %vm6707, %v6673, 0
        %v6718 = vsel %vm6707, %v6674, 0
        %v6721 = vsel %vm6707, %v6675, 0
        %v6724 = vsel %vm6707, %v6676, 0
        %v6727 = vsel %vm6707, %v6677, 0
        %v6730 = vsel %vm6707, %v6678, 0
        %v6733 = vsel %vm6707, %v6679, 0
        %v6736 = vsel %vm6707, %v6680, 0
        %v6739 = vsel %vm6707, %v6681, 0
        %v6742 = vsel %vm6707, %v6682, 0
        %v6745 = vsel %vm6707, %v6683, 0
        %v6748 = vsel %vm6707, %v6684, 0
        %v6751 = vsel %vm6707, %v6685, 0
        %v6754 = vsel %vm6707, %v6686, 0
        %v6757 = vsel %vm6707, %v6687, 0
        %v6760 = vsel %vm6707, %v6688, 0
        %v6763 = vsel %vm6707, %v6689, 0
        %v6766 = vsel %vm6707, %v6690, 0
        %v6769 = vsel %vm6707, %v6691, 0
        %v6772 = vsel %vm6707, %v6692, 0
        %v6775 = vsel %vm6707, %v6693, 0
        %v6778 = vsel %vm6707, %v6694, 0
        %v6781 = vsel %vm6707, %v6695, 0
        %v6784 = vsel %vm6707, %v6696, 0
        %v6787 = vsel %vm6707, %v6697, 0
        %v6790 = vsel %vm6707, %v6698, 0
        %v6793 = vsel %vm6707, %v6699, 0
        %v6796 = vsel %vm6707, %v6700, 0
        %v6799 = vsel %vm6707, %v6701, 0
        %v6802 = vsel %vm6707, %v6702, 0
        %vm6804 = vcmask 1043456
        %v6806 = vsel %vm6804, %v5058, 0
        %6808 = vmatprep.subr.mxu0 0.0
        %6809 = vmatpush1.msra.mxu0 0.0
        %6810 = vmatprep.subr.mxu0 0.0
        %6811 = vmatpush1.msra.mxu0 0.0
        %6812 = vmatprep.subr.mxu0 0.0
        %6813 = vmatpush1.msra.mxu0 0.0
        %6814 = vmatprep.subr.mxu0 0.0
        %6815 = vmatpush1.msra.mxu0 0.0
        %6816 = vmatprep.subr.mxu0 0.0
        %6817 = vmatpush1.msra.mxu0 0.0
        %6818 = vmatprep.subr.mxu0 0.0
        %6819 = vmatpush1.msra.mxu0 0.0
        %6820 = vmatprep.subr.mxu0 0.0
        %6821 = vmatpush1.msra.mxu0 0.0
        %6822 = vmatprep.subr.mxu0 0.0
        %6823 = vmatpush1.msra.mxu0 0.0
        %6824 = vmatprep.subr.mxu0 0.0
        %6825 = vmatpush1.msra.mxu0 0.0
        %6826 = vmatprep.subr.mxu0 0.0
        %6827 = vmatpush1.msra.mxu0 0.0
        %6828 = vmatprep.subr.mxu0 0.0
        %6829 = vmatpush1.msra.mxu0 0.0
        %6830 = vmatprep.subr.mxu0 0.0
        %6831 = vmatpush1.msra.mxu0 %v6806
        %6832 = vmatprep.subr.mxu0 0.0
        %6833 = vmatpush1.msra.mxu0 %v5057
        %6834 = vmatprep.subr.mxu0 0.0
        %6835 = vmatpush1.msra.mxu0 %v5056
        %6836 = vmatprep.subr.mxu0 0.0
        %6837 = vmatpush1.msra.mxu0 %v5055
        %6838 = vmatprep.subr.mxu0 0.0
        %6839 = vmatpush1.msra.mxu0 %v5054
        %6840 = vmatprep.subr.mxu0 0.0
        %6841 = vmatpush2.msra.mxu0 0.0
        %6842 = vmatprep.subr.mxu0 0.0
        %6843 = vmatpush2.msra.mxu0 0.0
        %6844 = vmatprep.subr.mxu0 0.0
        %6845 = vmatpush2.msra.mxu0 0.0
        %6846 = vmatprep.subr.mxu0 0.0
        %6847 = vmatpush2.msra.mxu0 0.0
        %6848 = vmatprep.subr.mxu0 0.0
        %6849 = vmatpush2.msra.mxu0 0.0
        %6850 = vmatprep.subr.mxu0 0.0
        %6851 = vmatpush2.msra.mxu0 0.0
        %6852 = vmatprep.subr.mxu0 0.0
        %6853 = vmatpush2.msra.mxu0 0.0
        %6854 = vmatprep.subr.mxu0 0.0
        %6855 = vmatpush2.msra.mxu0 0.0
        %6856 = vmatprep.subr.mxu0 0.0
        %6857 = vmatpush2.msra.mxu0 0.0
        %6858 = vmatprep.subr.mxu0 0.0
        %6859 = vmatpush2.msra.mxu0 0.0
        %6860 = vmatprep.subr.mxu0 0.0
        %6861 = vmatpush2.msra.mxu0 0.0
        %6862 = vmatprep.subr.mxu0 0.0
        %6863 = vmatpush2.msra.mxu0 0.0
        %6864 = vmatprep.subr.mxu0 0.0
        %6865 = vmatpush2.msra.mxu0 0.0
        %6866 = vmatprep.subr.mxu0 0.0
        %6867 = vmatpush2.msra.mxu0 0.0
        %6868 = vmatprep.subr.mxu0 0.0
        %6869 = vmatpush2.msra.mxu0 0.0
        %6870 = vmatprep.subr.mxu0 0.0
        %6871 = vmatpush2.msra.mxu0 0.0
        %6872 = vmatprep.mubr.f32.mxu0 0.0
        %6873 = vmatmul.mubr.f32.gmra.mxu0 %v6709
        %v6874 = vpop.f32.mrf.mxu0
        %v6875 = vadd.f32 %v6706, %v6874
        %v6876 = vpop.f32.mrf.mxu0
        %6877 = vmatprep.mubr.f32.mxu0 0.0
        %6878 = vmatmul.mubr.f32.gmra.mxu0 %v6712
        %v6879 = vpop.f32.mrf.mxu0
        %v6880 = vadd.f32 %v6706, %v6879
        %v6881 = vpop.f32.mrf.mxu0
        %6882 = vmatprep.mubr.f32.mxu0 0.0
        %6883 = vmatmul.mubr.f32.gmra.mxu0 %v6715
        %v6884 = vpop.f32.mrf.mxu0
        %v6885 = vadd.f32 %v6706, %v6884
        %v6886 = vpop.f32.mrf.mxu0
        %6887 = vmatprep.mubr.f32.mxu0 0.0
        %6888 = vmatmul.mubr.f32.gmra.mxu0 %v6718
        %v6889 = vpop.f32.mrf.mxu0
        %v6890 = vadd.f32 %v6706, %v6889
        %v6891 = vpop.f32.mrf.mxu0
        %6892 = vmatprep.mubr.f32.mxu0 0.0
        %6893 = vmatmul.mubr.f32.gmra.mxu0 %v6721
        %v6894 = vpop.f32.mrf.mxu0
        %v6895 = vadd.f32 %v6706, %v6894
        %v6896 = vpop.f32.mrf.mxu0
        %6897 = vmatprep.mubr.f32.mxu0 0.0
        %6898 = vmatmul.mubr.f32.gmra.mxu0 %v6724
        %v6899 = vpop.f32.mrf.mxu0
        %v6900 = vadd.f32 %v6706, %v6899
        %v6901 = vpop.f32.mrf.mxu0
        %6902 = vmatprep.mubr.f32.mxu0 0.0
        %6903 = vmatmul.mubr.f32.gmra.mxu0 %v6727
        %v6904 = vpop.f32.mrf.mxu0
        %v6905 = vadd.f32 %v6706, %v6904
        %v6906 = vpop.f32.mrf.mxu0
        %6907 = vmatprep.mubr.f32.mxu0 0.0
        %6908 = vmatmul.mubr.f32.gmra.mxu0 %v6730
        %v6909 = vpop.f32.mrf.mxu0
        %v6910 = vadd.f32 %v6706, %v6909
        %v6911 = vpop.f32.mrf.mxu0
        %6912 = vmatprep.mubr.f32.mxu0 0.0
        %6913 = vmatmul.mubr.f32.gmra.mxu0 %v6733
        %v6914 = vpop.f32.mrf.mxu0
        %v6915 = vadd.f32 %v6706, %v6914
        %v6916 = vpop.f32.mrf.mxu0
        %6917 = vmatprep.mubr.f32.mxu0 0.0
        %6918 = vmatmul.mubr.f32.gmra.mxu0 %v6736
        %v6919 = vpop.f32.mrf.mxu0
        %v6920 = vadd.f32 %v6706, %v6919
        %v6921 = vpop.f32.mrf.mxu0
        %6922 = vmatprep.mubr.f32.mxu0 0.0
        %6923 = vmatmul.mubr.f32.gmra.mxu0 %v6739
        %v6924 = vpop.f32.mrf.mxu0
        %v6925 = vadd.f32 %v6706, %v6924
        %v6926 = vpop.f32.mrf.mxu0
        %6927 = vmatprep.mubr.f32.mxu0 0.0
        %6928 = vmatmul.mubr.f32.gmra.mxu0 %v6742
        %v6929 = vpop.f32.mrf.mxu0
        %v6930 = vadd.f32 %v6706, %v6929
        %v6931 = vpop.f32.mrf.mxu0
        %6932 = vmatprep.mubr.f32.mxu0 0.0
        %6933 = vmatmul.mubr.f32.gmra.mxu0 %v6745
        %v6934 = vpop.f32.mrf.mxu0
        %v6935 = vadd.f32 %v6706, %v6934
        %v6936 = vpop.f32.mrf.mxu0
        %6937 = vmatprep.mubr.f32.mxu0 0.0
        %6938 = vmatmul.mubr.f32.gmra.mxu0 %v6748
        %v6939 = vpop.f32.mrf.mxu0
        %v6940 = vadd.f32 %v6706, %v6939
        %v6941 = vpop.f32.mrf.mxu0
        %6942 = vmatprep.mubr.f32.mxu0 0.0
        %6943 = vmatmul.mubr.f32.gmra.mxu0 %v6751
        %v6944 = vpop.f32.mrf.mxu0
        %v6945 = vadd.f32 %v6706, %v6944
        %v6946 = vpop.f32.mrf.mxu0
        %6947 = vmatprep.mubr.f32.mxu0 0.0
        %6948 = vmatmul.mubr.f32.gmra.mxu0 %v6754
        %v6949 = vpop.f32.mrf.mxu0
        %v6950 = vadd.f32 %v6706, %v6949
        %v6951 = vpop.f32.mrf.mxu0
        %6952 = vmatprep.mubr.f32.mxu0 0.0
        %6953 = vmatmul.mubr.f32.gmra.mxu0 %v6757
        %v6954 = vpop.f32.mrf.mxu0
        %v6955 = vadd.f32 %v6706, %v6954
        %v6956 = vpop.f32.mrf.mxu0
        %6957 = vmatprep.mubr.f32.mxu0 0.0
        %6958 = vmatmul.mubr.f32.gmra.mxu0 %v6760
        %v6959 = vpop.f32.mrf.mxu0
        %v6960 = vadd.f32 %v6706, %v6959
        %v6961 = vpop.f32.mrf.mxu0
        %6962 = vmatprep.mubr.f32.mxu0 0.0
        %6963 = vmatmul.mubr.f32.gmra.mxu0 %v6763
        %v6964 = vpop.f32.mrf.mxu0
        %v6965 = vadd.f32 %v6706, %v6964
        %v6966 = vpop.f32.mrf.mxu0
        %6967 = vmatprep.mubr.f32.mxu0 0.0
        %6968 = vmatmul.mubr.f32.gmra.mxu0 %v6766
        %v6969 = vpop.f32.mrf.mxu0
        %v6970 = vadd.f32 %v6706, %v6969
        %v6971 = vpop.f32.mrf.mxu0
        %6972 = vmatprep.mubr.f32.mxu0 0.0
        %6973 = vmatmul.mubr.f32.gmra.mxu0 %v6769
        %v6974 = vpop.f32.mrf.mxu0
        %v6975 = vadd.f32 %v6706, %v6974
        %v6976 = vpop.f32.mrf.mxu0
        %6977 = vmatprep.mubr.f32.mxu0 0.0
        %6978 = vmatmul.mubr.f32.gmra.mxu0 %v6772
        %v6979 = vpop.f32.mrf.mxu0
        %v6980 = vadd.f32 %v6706, %v6979
        %v6981 = vpop.f32.mrf.mxu0
        %6982 = vmatprep.mubr.f32.mxu0 0.0
        %6983 = vmatmul.mubr.f32.gmra.mxu0 %v6775
        %v6984 = vpop.f32.mrf.mxu0
        %v6985 = vadd.f32 %v6706, %v6984
        %v6986 = vpop.f32.mrf.mxu0
        %6987 = vmatprep.mubr.f32.mxu0 0.0
        %6988 = vmatmul.mubr.f32.gmra.mxu0 %v6778
        %v6989 = vpop.f32.mrf.mxu0
        %v6990 = vadd.f32 %v6706, %v6989
        %v6991 = vpop.f32.mrf.mxu0
        %6992 = vmatprep.mubr.f32.mxu0 0.0
        %6993 = vmatmul.mubr.f32.gmra.mxu0 %v6781
        %v6994 = vpop.f32.mrf.mxu0
        %v6995 = vadd.f32 %v6706, %v6994
        %v6996 = vpop.f32.mrf.mxu0
        %6997 = vmatprep.mubr.f32.mxu0 0.0
        %6998 = vmatmul.mubr.f32.gmra.mxu0 %v6784
        %v6999 = vpop.f32.mrf.mxu0
        %v7000 = vadd.f32 %v6706, %v6999
        %v7001 = vpop.f32.mrf.mxu0
        %7002 = vmatprep.mubr.f32.mxu0 0.0
        %7003 = vmatmul.mubr.f32.gmra.mxu0 %v6787
        %v7004 = vpop.f32.mrf.mxu0
        %v7005 = vadd.f32 %v6706, %v7004
        %v7006 = vpop.f32.mrf.mxu0
        %7007 = vmatprep.mubr.f32.mxu0 0.0
        %7008 = vmatmul.mubr.f32.gmra.mxu0 %v6790
        %v7009 = vpop.f32.mrf.mxu0
        %v7010 = vadd.f32 %v6706, %v7009
        %v7011 = vpop.f32.mrf.mxu0
        %7012 = vmatprep.mubr.f32.mxu0 0.0
        %7013 = vmatmul.mubr.f32.gmra.mxu0 %v6793
        %v7014 = vpop.f32.mrf.mxu0
        %v7015 = vadd.f32 %v6706, %v7014
        %v7016 = vpop.f32.mrf.mxu0
        %7017 = vmatprep.mubr.f32.mxu0 0.0
        %7018 = vmatmul.mubr.f32.gmra.mxu0 %v6796
        %v7019 = vpop.f32.mrf.mxu0
        %v7020 = vadd.f32 %v6706, %v7019
        %v7021 = vpop.f32.mrf.mxu0
        %7022 = vmatprep.mubr.f32.mxu0 0.0
        %7023 = vmatmul.mubr.f32.gmra.mxu0 %v6799
        %v7024 = vpop.f32.mrf.mxu0
        %v7025 = vadd.f32 %v6706, %v7024
        %v7026 = vpop.f32.mrf.mxu0
        %7027 = vmatprep.mubr.f32.mxu0 0.0
        %7028 = vmatmul.mubr.f32.gmra.mxu0 %v6802
        %v7029 = vpop.f32.mrf.mxu0
        %v7030 = vadd.f32 %v6706, %v7029
        %v7031 = vpop.f32.mrf.mxu0
        %7032 = vdwg.mxu0
        %s7033 = scalar_lea.vmem [#allocation4], 24
        %v7034 = vld [vmem:[%s7033 + $0x1] sm:$0xff]
        %v7035 = vld [vmem:[%s7033 + $0x9] sm:$0xff]
        %v7036 = vld [vmem:[%s7033 + $0x19] sm:$0xff]
        %v7037 = vld [vmem:[%s7033 + $0x21] sm:$0xff]
        %v7038 = vld [vmem:[%s7033 + $0x31] sm:$0xff]
        %v7039 = vld [vmem:[%s7033 + $0x39] sm:$0xff]
        %v7040 = vld [vmem:[%s7033 + $0x49] sm:$0xff]
        %v7041 = vld [vmem:[%s7033 + $0x51] sm:$0xff]
        %v7042 = vld [vmem:[%s7033 + $0x61] sm:$0xff]
        %v7043 = vld [vmem:[%s7033 + $0x69] sm:$0xff]
        %v7044 = vld [vmem:[%s7033 + $0x79] sm:$0xff]
        %v7045 = vld [vmem:[%s7033 + $0x81] sm:$0xff]
        %v7046 = vld [vmem:[%s7033 + $0x91] sm:$0xff]
        %v7047 = vld [vmem:[%s7033 + $0x99] sm:$0xff]
        %v7048 = vld [vmem:[%s7033 + $0xa9] sm:$0xff]
        %v7049 = vld [vmem:[%s7033 + $0xb1] sm:$0xff]
        %v7050 = vld [vmem:[%s7033 + $0xc1] sm:$0xff]
        %v7051 = vld [vmem:[%s7033 + $0xc9] sm:$0xff]
        %v7052 = vld [vmem:[%s7033 + $0xd9] sm:$0xff]
        %v7053 = vld [vmem:[%s7033 + $0xe1] sm:$0xff]
        %v7054 = vld [vmem:[%s7033 + $0xf1] sm:$0xff]
        %v7055 = vld [vmem:[%s7033 + $0xf9] sm:$0xff]
        %v7056 = vld [vmem:[%s7033 + $0x109] sm:$0xff]
        %v7057 = vld [vmem:[%s7033 + $0x111] sm:$0xff]
        %v7058 = vld [vmem:[%s7033 + $0x121] sm:$0xff]
        %v7059 = vld [vmem:[%s7033 + $0x129] sm:$0xff]
        %v7060 = vld [vmem:[%s7033 + $0x139] sm:$0xff]
        %v7061 = vld [vmem:[%s7033 + $0x141] sm:$0xff]
        %v7062 = vld [vmem:[%s7033 + $0x151] sm:$0xff]
        %v7063 = vld [vmem:[%s7033 + $0x159] sm:$0xff]
        %v7064 = vld [vmem:[%s7033 + $0x169] sm:$0xff]
        %v7065 = vld [vmem:[%s7033 + $0x171] sm:$0xff]
        %v7066 = vadd.f32 %v6875, %v7034
        %v7067 = vadd.f32 %v6880, %v7035
        %v7068 = vadd.f32 %v6885, %v7036
        %v7069 = vadd.f32 %v6890, %v7037
        %v7070 = vadd.f32 %v6895, %v7038
        %v7071 = vadd.f32 %v6900, %v7039
        %v7072 = vadd.f32 %v6905, %v7040
        %v7073 = vadd.f32 %v6910, %v7041
        %v7074 = vadd.f32 %v6915, %v7042
        %v7075 = vadd.f32 %v6920, %v7043
        %v7076 = vadd.f32 %v6925, %v7044
        %v7077 = vadd.f32 %v6930, %v7045
        %v7078 = vadd.f32 %v6935, %v7046
        %v7079 = vadd.f32 %v6940, %v7047
        %v7080 = vadd.f32 %v6945, %v7048
        %v7081 = vadd.f32 %v6950, %v7049
        %v7082 = vadd.f32 %v6955, %v7050
        %v7083 = vadd.f32 %v6960, %v7051
        %v7084 = vadd.f32 %v6965, %v7052
        %v7085 = vadd.f32 %v6970, %v7053
        %v7086 = vadd.f32 %v6975, %v7054
        %v7087 = vadd.f32 %v6980, %v7055
        %v7088 = vadd.f32 %v6985, %v7056
        %v7089 = vadd.f32 %v6990, %v7057
        %v7090 = vadd.f32 %v6995, %v7058
        %v7091 = vadd.f32 %v7000, %v7059
        %v7092 = vadd.f32 %v7005, %v7060
        %v7093 = vadd.f32 %v7010, %v7061
        %v7094 = vadd.f32 %v7015, %v7062
        %v7095 = vadd.f32 %v7020, %v7063
        %v7096 = vadd.f32 %v7025, %v7064
        %v7097 = vadd.f32 %v7030, %v7065
        %7098 = vst.msk [vmem:[%s5511 + $0x1] sm:$0xff] %vm495, %v7066
        %7099 = vst.msk [vmem:[%s5511 + $0x9] sm:$0xff] %vm495, %v7067
        %7100 = vst.msk [vmem:[%s5511 + $0x19] sm:$0xff] %vm495, %v7068
        %7101 = vst.msk [vmem:[%s5511 + $0x21] sm:$0xff] %vm495, %v7069
        %7102 = vst.msk [vmem:[%s5511 + $0x31] sm:$0xff] %vm495, %v7070
        %7103 = vst.msk [vmem:[%s5511 + $0x39] sm:$0xff] %vm495, %v7071
        %7104 = vst.msk [vmem:[%s5511 + $0x49] sm:$0xff] %vm495, %v7072
        %7105 = vst.msk [vmem:[%s5511 + $0x51] sm:$0xff] %vm495, %v7073
        %7106 = vst.msk [vmem:[%s5511 + $0x61] sm:$0xff] %vm495, %v7074
        %7107 = vst.msk [vmem:[%s5511 + $0x69] sm:$0xff] %vm495, %v7075
        %7108 = vst.msk [vmem:[%s5511 + $0x79] sm:$0xff] %vm495, %v7076
        %7109 = vst.msk [vmem:[%s5511 + $0x81] sm:$0xff] %vm495, %v7077
        %7110 = vst.msk [vmem:[%s5511 + $0x91] sm:$0xff] %vm495, %v7078
        %7111 = vst.msk [vmem:[%s5511 + $0x99] sm:$0xff] %vm495, %v7079
        %7112 = vst.msk [vmem:[%s5511 + $0xa9] sm:$0xff] %vm495, %v7080
        %7113 = vst.msk [vmem:[%s5511 + $0xb1] sm:$0xff] %vm495, %v7081
        %7114 = vst.msk [vmem:[%s5511 + $0xc1] sm:$0xff] %vm495, %v7082
        %7115 = vst.msk [vmem:[%s5511 + $0xc9] sm:$0xff] %vm495, %v7083
        %7116 = vst.msk [vmem:[%s5511 + $0xd9] sm:$0xff] %vm495, %v7084
        %7117 = vst.msk [vmem:[%s5511 + $0xe1] sm:$0xff] %vm495, %v7085
        %7118 = vst.msk [vmem:[%s5511 + $0xf1] sm:$0xff] %vm495, %v7086
        %7119 = vst.msk [vmem:[%s5511 + $0xf9] sm:$0xff] %vm495, %v7087
        %7120 = vst.msk [vmem:[%s5511 + $0x109] sm:$0xff] %vm495, %v7088
        %7121 = vst.msk [vmem:[%s5511 + $0x111] sm:$0xff] %vm495, %v7089
        %7122 = vst.msk [vmem:[%s5511 + $0x121] sm:$0xff] %vm495, %v7090
        %7123 = vst.msk [vmem:[%s5511 + $0x129] sm:$0xff] %vm495, %v7091
        %7124 = vst.msk [vmem:[%s5511 + $0x139] sm:$0xff] %vm495, %v7092
        %7125 = vst.msk [vmem:[%s5511 + $0x141] sm:$0xff] %vm495, %v7093
        %7126 = vst.msk [vmem:[%s5511 + $0x151] sm:$0xff] %vm495, %v7094
        %7127 = vst.msk [vmem:[%s5511 + $0x159] sm:$0xff] %vm495, %v7095
        %7128 = vst.msk [vmem:[%s5511 + $0x169] sm:$0xff] %vm495, %v7096
        %7129 = vst.msk [vmem:[%s5511 + $0x171] sm:$0xff] %vm495, %v7097
      $region77: #{rir_forward.1} parent=71 // loop_footer
        %s610 = sadd.s32 1, %s606
      $region78: #{rir_forward.1} parent=71 // loop_footer_branch
        %605 = sbr.rel target = $region74
      $region79: #{rir_forward.1} parent=71 // loop_exit
        _
      %v7130 = vld [vmem:[%s11] sm:$0xff]
      %v7131 = vld [vmem:[%s11 + $0x8] sm:$0xff]
      %v7132 = vld [vmem:[%s11 + $0x10] sm:$0xff]
      %v7133 = vld [vmem:[%s11 + $0x18] sm:$0xff]
      %v7134 = vld [vmem:[%s11 + $0x20] sm:$0xf]
      %v7135 = vld [vmem:[%s12] sm:$0x1]
      %v7136 = vld [vmem:[#allocation2] sm:$0xff]
      %v7137 = vld [vmem:[#allocation2 + $0x8] sm:$0xff]
      %v7138 = vld [vmem:[#allocation2 + $0x18] sm:$0xff]
      %v7139 = vld [vmem:[#allocation2 + $0x20] sm:$0xff]
      %v7140 = vld [vmem:[#allocation2 + $0x30] sm:$0xff]
      %v7141 = vld [vmem:[#allocation2 + $0x38] sm:$0xff]
      %v7142 = vld [vmem:[#allocation2 + $0x48] sm:$0xff]
      %v7143 = vld [vmem:[#allocation2 + $0x50] sm:$0xff]
      %v7144 = vld [vmem:[#allocation2 + $0x60] sm:$0xff]
      %v7145 = vld [vmem:[#allocation2 + $0x68] sm:$0xff]
      %v7146 = vld [vmem:[#allocation2 + $0x78] sm:$0xff]
      %v7147 = vld [vmem:[#allocation2 + $0x80] sm:$0xff]
      %v7148 = vld [vmem:[#allocation2 + $0x90] sm:$0xff]
      %v7149 = vld [vmem:[#allocation2 + $0x98] sm:$0xff]
      %v7150 = vld [vmem:[#allocation2 + $0xa8] sm:$0xff]
      %v7151 = vld [vmem:[#allocation2 + $0xb0] sm:$0xff]
      %v7152 = vld [vmem:[#allocation2 + $0xc0] sm:$0xff]
      %v7153 = vld [vmem:[#allocation2 + $0xc8] sm:$0xff]
      %v7154 = vld [vmem:[#allocation2 + $0xd8] sm:$0xff]
      %v7155 = vld [vmem:[#allocation2 + $0xe0] sm:$0xff]
      %v7156 = vld [vmem:[#allocation2 + $0xf0] sm:$0xff]
      %v7157 = vld [vmem:[#allocation2 + $0xf8] sm:$0xff]
      %v7158 = vld [vmem:[#allocation2 + $0x108] sm:$0xff]
      %v7159 = vld [vmem:[#allocation2 + $0x110] sm:$0xff]
      %v7160 = vld [vmem:[#allocation2 + $0x120] sm:$0xff]
      %v7161 = vld [vmem:[#allocation2 + $0x128] sm:$0xff]
      %v7162 = vld [vmem:[#allocation2 + $0x138] sm:$0xff]
      %v7163 = vld [vmem:[#allocation2 + $0x140] sm:$0xff]
      %v7164 = vld [vmem:[#allocation2 + $0x150] sm:$0xff]
      %v7165 = vld [vmem:[#allocation2 + $0x158] sm:$0xff]
      %v7166 = vld [vmem:[#allocation2 + $0x168] sm:$0xff]
      %v7167 = vld [vmem:[#allocation2 + $0x170] sm:$0xff]
      %7168 = vst.msk [vmem:[#allocation5] sm:$0xff] %vm495, %v7136
      %7169 = vst.msk [vmem:[#allocation5 + $0x8] sm:$0xff] %vm495, %v7137
      %7170 = vst.msk [vmem:[#allocation5 + $0x10] sm:$0xff] %vm495, %v7138
      %7171 = vst.msk [vmem:[#allocation5 + $0x18] sm:$0xff] %vm495, %v7139
      %7172 = vst.msk [vmem:[#allocation5 + $0x20] sm:$0xff] %vm495, %v7140
      %7173 = vst.msk [vmem:[#allocation5 + $0x28] sm:$0xff] %vm495, %v7141
      %7174 = vst.msk [vmem:[#allocation5 + $0x30] sm:$0xff] %vm495, %v7142
      %7175 = vst.msk [vmem:[#allocation5 + $0x38] sm:$0xff] %vm495, %v7143
      %7176 = vst.msk [vmem:[#allocation5 + $0x40] sm:$0xff] %vm495, %v7144
      %7177 = vst.msk [vmem:[#allocation5 + $0x48] sm:$0xff] %vm495, %v7145
      %7178 = vst.msk [vmem:[#allocation5 + $0x50] sm:$0xff] %vm495, %v7146
      %7179 = vst.msk [vmem:[#allocation5 + $0x58] sm:$0xff] %vm495, %v7147
      %7180 = vst.msk [vmem:[#allocation5 + $0x60] sm:$0xff] %vm495, %v7148
      %7181 = vst.msk [vmem:[#allocation5 + $0x68] sm:$0xff] %vm495, %v7149
      %7182 = vst.msk [vmem:[#allocation5 + $0x70] sm:$0xff] %vm495, %v7150
      %7183 = vst.msk [vmem:[#allocation5 + $0x78] sm:$0xff] %vm495, %v7151
      %7184 = vst.msk [vmem:[#allocation5 + $0x80] sm:$0xff] %vm495, %v7152
      %7185 = vst.msk [vmem:[#allocation5 + $0x88] sm:$0xff] %vm495, %v7153
      %7186 = vst.msk [vmem:[#allocation5 + $0x90] sm:$0xff] %vm495, %v7154
      %7187 = vst.msk [vmem:[#allocation5 + $0x98] sm:$0xff] %vm495, %v7155
      %7188 = vst.msk [vmem:[#allocation5 + $0xa0] sm:$0xff] %vm495, %v7156
      %7189 = vst.msk [vmem:[#allocation5 + $0xa8] sm:$0xff] %vm495, %v7157
      %7190 = vst.msk [vmem:[#allocation5 + $0xb0] sm:$0xff] %vm495, %v7158
      %7191 = vst.msk [vmem:[#allocation5 + $0xb8] sm:$0xff] %vm495, %v7159
      %7192 = vst.msk [vmem:[#allocation5 + $0xc0] sm:$0xff] %vm495, %v7160
      %7193 = vst.msk [vmem:[#allocation5 + $0xc8] sm:$0xff] %vm495, %v7161
      %7194 = vst.msk [vmem:[#allocation5 + $0xd0] sm:$0xff] %vm495, %v7162
      %7195 = vst.msk [vmem:[#allocation5 + $0xd8] sm:$0xff] %vm495, %v7163
      %7196 = vst.msk [vmem:[#allocation5 + $0xe0] sm:$0xff] %vm495, %v7164
      %7197 = vst.msk [vmem:[#allocation5 + $0xe8] sm:$0xff] %vm495, %v7165
      %7198 = vst.msk [vmem:[#allocation5 + $0xf0] sm:$0xff] %vm495, %v7166
      %7199 = vst.msk [vmem:[#allocation5 + $0xf8] sm:$0xff] %vm495, %v7167
      %v7200 = vld [vmem:[#allocation2 + $0x1] sm:$0xff]
      %v7201 = vld [vmem:[#allocation2 + $0x9] sm:$0xff]
      %v7202 = vld [vmem:[#allocation2 + $0x19] sm:$0xff]
      %v7203 = vld [vmem:[#allocation2 + $0x21] sm:$0xff]
      %v7204 = vld [vmem:[#allocation2 + $0x31] sm:$0xff]
      %v7205 = vld [vmem:[#allocation2 + $0x39] sm:$0xff]
      %v7206 = vld [vmem:[#allocation2 + $0x49] sm:$0xff]
      %v7207 = vld [vmem:[#allocation2 + $0x51] sm:$0xff]
      %v7208 = vld [vmem:[#allocation2 + $0x61] sm:$0xff]
      %v7209 = vld [vmem:[#allocation2 + $0x69] sm:$0xff]
      %v7210 = vld [vmem:[#allocation2 + $0x79] sm:$0xff]
      %v7211 = vld [vmem:[#allocation2 + $0x81] sm:$0xff]
      %v7212 = vld [vmem:[#allocation2 + $0x91] sm:$0xff]
      %v7213 = vld [vmem:[#allocation2 + $0x99] sm:$0xff]
      %v7214 = vld [vmem:[#allocation2 + $0xa9] sm:$0xff]
      %v7215 = vld [vmem:[#allocation2 + $0xb1] sm:$0xff]
      %v7216 = vld [vmem:[#allocation2 + $0xc1] sm:$0xff]
      %v7217 = vld [vmem:[#allocation2 + $0xc9] sm:$0xff]
      %v7218 = vld [vmem:[#allocation2 + $0xd9] sm:$0xff]
      %v7219 = vld [vmem:[#allocation2 + $0xe1] sm:$0xff]
      %v7220 = vld [vmem:[#allocation2 + $0xf1] sm:$0xff]
      %v7221 = vld [vmem:[#allocation2 + $0xf9] sm:$0xff]
      %v7222 = vld [vmem:[#allocation2 + $0x109] sm:$0xff]
      %v7223 = vld [vmem:[#allocation2 + $0x111] sm:$0xff]
      %v7224 = vld [vmem:[#allocation2 + $0x121] sm:$0xff]
      %v7225 = vld [vmem:[#allocation2 + $0x129] sm:$0xff]
      %v7226 = vld [vmem:[#allocation2 + $0x139] sm:$0xff]
      %v7227 = vld [vmem:[#allocation2 + $0x141] sm:$0xff]
      %v7228 = vld [vmem:[#allocation2 + $0x151] sm:$0xff]
      %v7229 = vld [vmem:[#allocation2 + $0x159] sm:$0xff]
      %v7230 = vld [vmem:[#allocation2 + $0x169] sm:$0xff]
      %v7231 = vld [vmem:[#allocation2 + $0x171] sm:$0xff]
      %7264 = vrot.lane.b32.xlu0 %v7200, 4
      %v7265 = vpop.permute.xlu0 %7264
      %7266 = vrot.lane.b32.xlu0 %v7201, 4
      %v7267 = vpop.permute.xlu0 %7266
      %7268 = vrot.lane.b32.xlu0 %v7202, 4
      %v7269 = vpop.permute.xlu0 %7268
      %7270 = vrot.lane.b32.xlu0 %v7203, 4
      %v7271 = vpop.permute.xlu0 %7270
      %7272 = vrot.lane.b32.xlu0 %v7204, 4
      %v7273 = vpop.permute.xlu0 %7272
      %7274 = vrot.lane.b32.xlu0 %v7205, 4
      %v7275 = vpop.permute.xlu0 %7274
      %7276 = vrot.lane.b32.xlu0 %v7206, 4
      %v7277 = vpop.permute.xlu0 %7276
      %7278 = vrot.lane.b32.xlu0 %v7207, 4
      %v7279 = vpop.permute.xlu0 %7278
      %7280 = vrot.lane.b32.xlu0 %v7208, 4
      %v7281 = vpop.permute.xlu0 %7280
      %7282 = vrot.lane.b32.xlu0 %v7209, 4
      %v7283 = vpop.permute.xlu0 %7282
      %7284 = vrot.lane.b32.xlu0 %v7210, 4
      %v7285 = vpop.permute.xlu0 %7284
      %7286 = vrot.lane.b32.xlu0 %v7211, 4
      %v7287 = vpop.permute.xlu0 %7286
      %7288 = vrot.lane.b32.xlu0 %v7212, 4
      %v7289 = vpop.permute.xlu0 %7288
      %7290 = vrot.lane.b32.xlu0 %v7213, 4
      %v7291 = vpop.permute.xlu0 %7290
      %7292 = vrot.lane.b32.xlu0 %v7214, 4
      %v7293 = vpop.permute.xlu0 %7292
      %7294 = vrot.lane.b32.xlu0 %v7215, 4
      %v7295 = vpop.permute.xlu0 %7294
      %7296 = vrot.lane.b32.xlu0 %v7216, 4
      %v7297 = vpop.permute.xlu0 %7296
      %7298 = vrot.lane.b32.xlu0 %v7217, 4
      %v7299 = vpop.permute.xlu0 %7298
      %7300 = vrot.lane.b32.xlu0 %v7218, 4
      %v7301 = vpop.permute.xlu0 %7300
      %7302 = vrot.lane.b32.xlu0 %v7219, 4
      %v7303 = vpop.permute.xlu0 %7302
      %7304 = vrot.lane.b32.xlu0 %v7220, 4
      %v7305 = vpop.permute.xlu0 %7304
      %7306 = vrot.lane.b32.xlu0 %v7221, 4
      %v7307 = vpop.permute.xlu0 %7306
      %7308 = vrot.lane.b32.xlu0 %v7222, 4
      %v7309 = vpop.permute.xlu0 %7308
      %7310 = vrot.lane.b32.xlu0 %v7223, 4
      %v7311 = vpop.permute.xlu0 %7310
      %7312 = vrot.lane.b32.xlu0 %v7224, 4
      %v7313 = vpop.permute.xlu0 %7312
      %7314 = vrot.lane.b32.xlu0 %v7225, 4
      %v7315 = vpop.permute.xlu0 %7314
      %7316 = vrot.lane.b32.xlu0 %v7226, 4
      %v7317 = vpop.permute.xlu0 %7316
      %7318 = vrot.lane.b32.xlu0 %v7227, 4
      %v7319 = vpop.permute.xlu0 %7318
      %7320 = vrot.lane.b32.xlu0 %v7228, 4
      %v7321 = vpop.permute.xlu0 %7320
      %7322 = vrot.lane.b32.xlu0 %v7229, 4
      %v7323 = vpop.permute.xlu0 %7322
      %7324 = vrot.lane.b32.xlu0 %v7230, 4
      %v7325 = vpop.permute.xlu0 %7324
      %7326 = vrot.lane.b32.xlu0 %v7231, 4
      %v7327 = vpop.permute.xlu0 %7326
      %vm7360 = vcmask 64544
      %7361 = vst.msk [vmem:[#allocation5] sm:$0xff] %vm7360, %v7265
      %7362 = vst.msk [vmem:[#allocation5 + $0x8] sm:$0xff] %vm7360, %v7267
      %7363 = vst.msk [vmem:[#allocation5 + $0x10] sm:$0xff] %vm7360, %v7269
      %7364 = vst.msk [vmem:[#allocation5 + $0x18] sm:$0xff] %vm7360, %v7271
      %7365 = vst.msk [vmem:[#allocation5 + $0x20] sm:$0xff] %vm7360, %v7273
      %7366 = vst.msk [vmem:[#allocation5 + $0x28] sm:$0xff] %vm7360, %v7275
      %7367 = vst.msk [vmem:[#allocation5 + $0x30] sm:$0xff] %vm7360, %v7277
      %7368 = vst.msk [vmem:[#allocation5 + $0x38] sm:$0xff] %vm7360, %v7279
      %7369 = vst.msk [vmem:[#allocation5 + $0x40] sm:$0xff] %vm7360, %v7281
      %7370 = vst.msk [vmem:[#allocation5 + $0x48] sm:$0xff] %vm7360, %v7283
      %7371 = vst.msk [vmem:[#allocation5 + $0x50] sm:$0xff] %vm7360, %v7285
      %7372 = vst.msk [vmem:[#allocation5 + $0x58] sm:$0xff] %vm7360, %v7287
      %7373 = vst.msk [vmem:[#allocation5 + $0x60] sm:$0xff] %vm7360, %v7289
      %7374 = vst.msk [vmem:[#allocation5 + $0x68] sm:$0xff] %vm7360, %v7291
      %7375 = vst.msk [vmem:[#allocation5 + $0x70] sm:$0xff] %vm7360, %v7293
      %7376 = vst.msk [vmem:[#allocation5 + $0x78] sm:$0xff] %vm7360, %v7295
      %7377 = vst.msk [vmem:[#allocation5 + $0x80] sm:$0xff] %vm7360, %v7297
      %7378 = vst.msk [vmem:[#allocation5 + $0x88] sm:$0xff] %vm7360, %v7299
      %7379 = vst.msk [vmem:[#allocation5 + $0x90] sm:$0xff] %vm7360, %v7301
      %7380 = vst.msk [vmem:[#allocation5 + $0x98] sm:$0xff] %vm7360, %v7303
      %7381 = vst.msk [vmem:[#allocation5 + $0xa0] sm:$0xff] %vm7360, %v7305
      %7382 = vst.msk [vmem:[#allocation5 + $0xa8] sm:$0xff] %vm7360, %v7307
      %7383 = vst.msk [vmem:[#allocation5 + $0xb0] sm:$0xff] %vm7360, %v7309
      %7384 = vst.msk [vmem:[#allocation5 + $0xb8] sm:$0xff] %vm7360, %v7311
      %7385 = vst.msk [vmem:[#allocation5 + $0xc0] sm:$0xff] %vm7360, %v7313
      %7386 = vst.msk [vmem:[#allocation5 + $0xc8] sm:$0xff] %vm7360, %v7315
      %7387 = vst.msk [vmem:[#allocation5 + $0xd0] sm:$0xff] %vm7360, %v7317
      %7388 = vst.msk [vmem:[#allocation5 + $0xd8] sm:$0xff] %vm7360, %v7319
      %7389 = vst.msk [vmem:[#allocation5 + $0xe0] sm:$0xff] %vm7360, %v7321
      %7390 = vst.msk [vmem:[#allocation5 + $0xe8] sm:$0xff] %vm7360, %v7323
      %7391 = vst.msk [vmem:[#allocation5 + $0xf0] sm:$0xff] %vm7360, %v7325
      %7392 = vst.msk [vmem:[#allocation5 + $0xf8] sm:$0xff] %vm7360, %v7327
      %v7393 = vld [vmem:[#allocation2 + $0x2] sm:$0xff]
      %v7394 = vld [vmem:[#allocation2 + $0xa] sm:$0xff]
      %v7395 = vld [vmem:[#allocation2 + $0x1a] sm:$0xff]
      %v7396 = vld [vmem:[#allocation2 + $0x22] sm:$0xff]
      %v7397 = vld [vmem:[#allocation2 + $0x32] sm:$0xff]
      %v7398 = vld [vmem:[#allocation2 + $0x3a] sm:$0xff]
      %v7399 = vld [vmem:[#allocation2 + $0x4a] sm:$0xff]
      %v7400 = vld [vmem:[#allocation2 + $0x52] sm:$0xff]
      %v7401 = vld [vmem:[#allocation2 + $0x62] sm:$0xff]
      %v7402 = vld [vmem:[#allocation2 + $0x6a] sm:$0xff]
      %v7403 = vld [vmem:[#allocation2 + $0x7a] sm:$0xff]
      %v7404 = vld [vmem:[#allocation2 + $0x82] sm:$0xff]
      %v7405 = vld [vmem:[#allocation2 + $0x92] sm:$0xff]
      %v7406 = vld [vmem:[#allocation2 + $0x9a] sm:$0xff]
      %v7407 = vld [vmem:[#allocation2 + $0xaa] sm:$0xff]
      %v7408 = vld [vmem:[#allocation2 + $0xb2] sm:$0xff]
      %v7409 = vld [vmem:[#allocation2 + $0xc2] sm:$0xff]
      %v7410 = vld [vmem:[#allocation2 + $0xca] sm:$0xff]
      %v7411 = vld [vmem:[#allocation2 + $0xda] sm:$0xff]
      %v7412 = vld [vmem:[#allocation2 + $0xe2] sm:$0xff]
      %v7413 = vld [vmem:[#allocation2 + $0xf2] sm:$0xff]
      %v7414 = vld [vmem:[#allocation2 + $0xfa] sm:$0xff]
      %v7415 = vld [vmem:[#allocation2 + $0x10a] sm:$0xff]
      %v7416 = vld [vmem:[#allocation2 + $0x112] sm:$0xff]
      %v7417 = vld [vmem:[#allocation2 + $0x122] sm:$0xff]
      %v7418 = vld [vmem:[#allocation2 + $0x12a] sm:$0xff]
      %v7419 = vld [vmem:[#allocation2 + $0x13a] sm:$0xff]
      %v7420 = vld [vmem:[#allocation2 + $0x142] sm:$0xff]
      %v7421 = vld [vmem:[#allocation2 + $0x152] sm:$0xff]
      %v7422 = vld [vmem:[#allocation2 + $0x15a] sm:$0xff]
      %v7423 = vld [vmem:[#allocation2 + $0x16a] sm:$0xff]
      %v7424 = vld [vmem:[#allocation2 + $0x172] sm:$0xff]
      %7457 = vrot.lane.b32.xlu0 %v7393, 8
      %v7458 = vpop.permute.xlu0 %7457
      %7459 = vrot.lane.b32.xlu0 %v7394, 8
      %v7460 = vpop.permute.xlu0 %7459
      %7461 = vrot.lane.b32.xlu0 %v7395, 8
      %v7462 = vpop.permute.xlu0 %7461
      %7463 = vrot.lane.b32.xlu0 %v7396, 8
      %v7464 = vpop.permute.xlu0 %7463
      %7465 = vrot.lane.b32.xlu0 %v7397, 8
      %v7466 = vpop.permute.xlu0 %7465
      %7467 = vrot.lane.b32.xlu0 %v7398, 8
      %v7468 = vpop.permute.xlu0 %7467
      %7469 = vrot.lane.b32.xlu0 %v7399, 8
      %v7470 = vpop.permute.xlu0 %7469
      %7471 = vrot.lane.b32.xlu0 %v7400, 8
      %v7472 = vpop.permute.xlu0 %7471
      %7473 = vrot.lane.b32.xlu0 %v7401, 8
      %v7474 = vpop.permute.xlu0 %7473
      %7475 = vrot.lane.b32.xlu0 %v7402, 8
      %v7476 = vpop.permute.xlu0 %7475
      %7477 = vrot.lane.b32.xlu0 %v7403, 8
      %v7478 = vpop.permute.xlu0 %7477
      %7479 = vrot.lane.b32.xlu0 %v7404, 8
      %v7480 = vpop.permute.xlu0 %7479
      %7481 = vrot.lane.b32.xlu0 %v7405, 8
      %v7482 = vpop.permute.xlu0 %7481
      %7483 = vrot.lane.b32.xlu0 %v7406, 8
      %v7484 = vpop.permute.xlu0 %7483
      %7485 = vrot.lane.b32.xlu0 %v7407, 8
      %v7486 = vpop.permute.xlu0 %7485
      %7487 = vrot.lane.b32.xlu0 %v7408, 8
      %v7488 = vpop.permute.xlu0 %7487
      %7489 = vrot.lane.b32.xlu0 %v7409, 8
      %v7490 = vpop.permute.xlu0 %7489
      %7491 = vrot.lane.b32.xlu0 %v7410, 8
      %v7492 = vpop.permute.xlu0 %7491
      %7493 = vrot.lane.b32.xlu0 %v7411, 8
      %v7494 = vpop.permute.xlu0 %7493
      %7495 = vrot.lane.b32.xlu0 %v7412, 8
      %v7496 = vpop.permute.xlu0 %7495
      %7497 = vrot.lane.b32.xlu0 %v7413, 8
      %v7498 = vpop.permute.xlu0 %7497
      %7499 = vrot.lane.b32.xlu0 %v7414, 8
      %v7500 = vpop.permute.xlu0 %7499
      %7501 = vrot.lane.b32.xlu0 %v7415, 8
      %v7502 = vpop.permute.xlu0 %7501
      %7503 = vrot.lane.b32.xlu0 %v7416, 8
      %v7504 = vpop.permute.xlu0 %7503
      %7505 = vrot.lane.b32.xlu0 %v7417, 8
      %v7506 = vpop.permute.xlu0 %7505
      %7507 = vrot.lane.b32.xlu0 %v7418, 8
      %v7508 = vpop.permute.xlu0 %7507
      %7509 = vrot.lane.b32.xlu0 %v7419, 8
      %v7510 = vpop.permute.xlu0 %7509
      %7511 = vrot.lane.b32.xlu0 %v7420, 8
      %v7512 = vpop.permute.xlu0 %7511
      %7513 = vrot.lane.b32.xlu0 %v7421, 8
      %v7514 = vpop.permute.xlu0 %7513
      %7515 = vrot.lane.b32.xlu0 %v7422, 8
      %v7516 = vpop.permute.xlu0 %7515
      %7517 = vrot.lane.b32.xlu0 %v7423, 8
      %v7518 = vpop.permute.xlu0 %7517
      %7519 = vrot.lane.b32.xlu0 %v7424, 8
      %v7520 = vpop.permute.xlu0 %7519
      %vm7553 = vcmask 97344
      %7554 = vst.msk [vmem:[#allocation5] sm:$0xff] %vm7553, %v7458
      %7555 = vst.msk [vmem:[#allocation5 + $0x8] sm:$0xff] %vm7553, %v7460
      %7556 = vst.msk [vmem:[#allocation5 + $0x10] sm:$0xff] %vm7553, %v7462
      %7557 = vst.msk [vmem:[#allocation5 + $0x18] sm:$0xff] %vm7553, %v7464
      %7558 = vst.msk [vmem:[#allocation5 + $0x20] sm:$0xff] %vm7553, %v7466
      %7559 = vst.msk [vmem:[#allocation5 + $0x28] sm:$0xff] %vm7553, %v7468
      %7560 = vst.msk [vmem:[#allocation5 + $0x30] sm:$0xff] %vm7553, %v7470
      %7561 = vst.msk [vmem:[#allocation5 + $0x38] sm:$0xff] %vm7553, %v7472
      %7562 = vst.msk [vmem:[#allocation5 + $0x40] sm:$0xff] %vm7553, %v7474
      %7563 = vst.msk [vmem:[#allocation5 + $0x48] sm:$0xff] %vm7553, %v7476
      %7564 = vst.msk [vmem:[#allocation5 + $0x50] sm:$0xff] %vm7553, %v7478
      %7565 = vst.msk [vmem:[#allocation5 + $0x58] sm:$0xff] %vm7553, %v7480
      %7566 = vst.msk [vmem:[#allocation5 + $0x60] sm:$0xff] %vm7553, %v7482
      %7567 = vst.msk [vmem:[#allocation5 + $0x68] sm:$0xff] %vm7553, %v7484
      %7568 = vst.msk [vmem:[#allocation5 + $0x70] sm:$0xff] %vm7553, %v7486
      %7569 = vst.msk [vmem:[#allocation5 + $0x78] sm:$0xff] %vm7553, %v7488
      %7570 = vst.msk [vmem:[#allocation5 + $0x80] sm:$0xff] %vm7553, %v7490
      %7571 = vst.msk [vmem:[#allocation5 + $0x88] sm:$0xff] %vm7553, %v7492
      %7572 = vst.msk [vmem:[#allocation5 + $0x90] sm:$0xff] %vm7553, %v7494
      %7573 = vst.msk [vmem:[#allocation5 + $0x98] sm:$0xff] %vm7553, %v7496
      %7574 = vst.msk [vmem:[#allocation5 + $0xa0] sm:$0xff] %vm7553, %v7498
      %7575 = vst.msk [vmem:[#allocation5 + $0xa8] sm:$0xff] %vm7553, %v7500
      %7576 = vst.msk [vmem:[#allocation5 + $0xb0] sm:$0xff] %vm7553, %v7502
      %7577 = vst.msk [vmem:[#allocation5 + $0xb8] sm:$0xff] %vm7553, %v7504
      %7578 = vst.msk [vmem:[#allocation5 + $0xc0] sm:$0xff] %vm7553, %v7506
      %7579 = vst.msk [vmem:[#allocation5 + $0xc8] sm:$0xff] %vm7553, %v7508
      %7580 = vst.msk [vmem:[#allocation5 + $0xd0] sm:$0xff] %vm7553, %v7510
      %7581 = vst.msk [vmem:[#allocation5 + $0xd8] sm:$0xff] %vm7553, %v7512
      %7582 = vst.msk [vmem:[#allocation5 + $0xe0] sm:$0xff] %vm7553, %v7514
      %7583 = vst.msk [vmem:[#allocation5 + $0xe8] sm:$0xff] %vm7553, %v7516
      %7584 = vst.msk [vmem:[#allocation5 + $0xf0] sm:$0xff] %vm7553, %v7518
      %7585 = vst.msk [vmem:[#allocation5 + $0xf8] sm:$0xff] %vm7553, %v7520
      %s7586 = scalar_lea.vmem [#allocation2], 24
      %v7587 = vld [vmem:[%s7586] sm:$0xff]
      %v7588 = vld [vmem:[%s7586 + $0x8] sm:$0xff]
      %v7589 = vld [vmem:[%s7586 + $0x18] sm:$0xff]
      %v7590 = vld [vmem:[%s7586 + $0x20] sm:$0xff]
      %v7591 = vld [vmem:[%s7586 + $0x30] sm:$0xff]
      %v7592 = vld [vmem:[%s7586 + $0x38] sm:$0xff]
      %v7593 = vld [vmem:[%s7586 + $0x48] sm:$0xff]
      %v7594 = vld [vmem:[%s7586 + $0x50] sm:$0xff]
      %v7595 = vld [vmem:[%s7586 + $0x60] sm:$0xff]
      %v7596 = vld [vmem:[%s7586 + $0x68] sm:$0xff]
      %v7597 = vld [vmem:[%s7586 + $0x78] sm:$0xff]
      %v7598 = vld [vmem:[%s7586 + $0x80] sm:$0xff]
      %v7599 = vld [vmem:[%s7586 + $0x90] sm:$0xff]
      %v7600 = vld [vmem:[%s7586 + $0x98] sm:$0xff]
      %v7601 = vld [vmem:[%s7586 + $0xa8] sm:$0xff]
      %v7602 = vld [vmem:[%s7586 + $0xb0] sm:$0xff]
      %v7603 = vld [vmem:[%s7586 + $0xc0] sm:$0xff]
      %v7604 = vld [vmem:[%s7586 + $0xc8] sm:$0xff]
      %v7605 = vld [vmem:[%s7586 + $0xd8] sm:$0xff]
      %v7606 = vld [vmem:[%s7586 + $0xe0] sm:$0xff]
      %v7607 = vld [vmem:[%s7586 + $0xf0] sm:$0xff]
      %v7608 = vld [vmem:[%s7586 + $0xf8] sm:$0xff]
      %v7609 = vld [vmem:[%s7586 + $0x108] sm:$0xff]
      %v7610 = vld [vmem:[%s7586 + $0x110] sm:$0xff]
      %v7611 = vld [vmem:[%s7586 + $0x120] sm:$0xff]
      %v7612 = vld [vmem:[%s7586 + $0x128] sm:$0xff]
      %v7613 = vld [vmem:[%s7586 + $0x138] sm:$0xff]
      %v7614 = vld [vmem:[%s7586 + $0x140] sm:$0xff]
      %v7615 = vld [vmem:[%s7586 + $0x150] sm:$0xff]
      %v7616 = vld [vmem:[%s7586 + $0x158] sm:$0xff]
      %v7617 = vld [vmem:[%s7586 + $0x168] sm:$0xff]
      %v7618 = vld [vmem:[%s7586 + $0x170] sm:$0xff]
      %7651 = vrot.lane.b32.xlu0 %v7587, 12
      %v7652 = vpop.permute.xlu0 %7651
      %7653 = vrot.lane.b32.xlu0 %v7588, 12
      %v7654 = vpop.permute.xlu0 %7653
      %7655 = vrot.lane.b32.xlu0 %v7589, 12
      %v7656 = vpop.permute.xlu0 %7655
      %7657 = vrot.lane.b32.xlu0 %v7590, 12
      %v7658 = vpop.permute.xlu0 %7657
      %7659 = vrot.lane.b32.xlu0 %v7591, 12
      %v7660 = vpop.permute.xlu0 %7659
      %7661 = vrot.lane.b32.xlu0 %v7592, 12
      %v7662 = vpop.permute.xlu0 %7661
      %7663 = vrot.lane.b32.xlu0 %v7593, 12
      %v7664 = vpop.permute.xlu0 %7663
      %7665 = vrot.lane.b32.xlu0 %v7594, 12
      %v7666 = vpop.permute.xlu0 %7665
      %7667 = vrot.lane.b32.xlu0 %v7595, 12
      %v7668 = vpop.permute.xlu0 %7667
      %7669 = vrot.lane.b32.xlu0 %v7596, 12
      %v7670 = vpop.permute.xlu0 %7669
      %7671 = vrot.lane.b32.xlu0 %v7597, 12
      %v7672 = vpop.permute.xlu0 %7671
      %7673 = vrot.lane.b32.xlu0 %v7598, 12
      %v7674 = vpop.permute.xlu0 %7673
      %7675 = vrot.lane.b32.xlu0 %v7599, 12
      %v7676 = vpop.permute.xlu0 %7675
      %7677 = vrot.lane.b32.xlu0 %v7600, 12
      %v7678 = vpop.permute.xlu0 %7677
      %7679 = vrot.lane.b32.xlu0 %v7601, 12
      %v7680 = vpop.permute.xlu0 %7679
      %7681 = vrot.lane.b32.xlu0 %v7602, 12
      %v7682 = vpop.permute.xlu0 %7681
      %7683 = vrot.lane.b32.xlu0 %v7603, 12
      %v7684 = vpop.permute.xlu0 %7683
      %7685 = vrot.lane.b32.xlu0 %v7604, 12
      %v7686 = vpop.permute.xlu0 %7685
      %7687 = vrot.lane.b32.xlu0 %v7605, 12
      %v7688 = vpop.permute.xlu0 %7687
      %7689 = vrot.lane.b32.xlu0 %v7606, 12
      %v7690 = vpop.permute.xlu0 %7689
      %7691 = vrot.lane.b32.xlu0 %v7607, 12
      %v7692 = vpop.permute.xlu0 %7691
      %7693 = vrot.lane.b32.xlu0 %v7608, 12
      %v7694 = vpop.permute.xlu0 %7693
      %7695 = vrot.lane.b32.xlu0 %v7609, 12
      %v7696 = vpop.permute.xlu0 %7695
      %7697 = vrot.lane.b32.xlu0 %v7610, 12
      %v7698 = vpop.permute.xlu0 %7697
      %7699 = vrot.lane.b32.xlu0 %v7611, 12
      %v7700 = vpop.permute.xlu0 %7699
      %7701 = vrot.lane.b32.xlu0 %v7612, 12
      %v7702 = vpop.permute.xlu0 %7701
      %7703 = vrot.lane.b32.xlu0 %v7613, 12
      %v7704 = vpop.permute.xlu0 %7703
      %7705 = vrot.lane.b32.xlu0 %v7614, 12
      %v7706 = vpop.permute.xlu0 %7705
      %7707 = vrot.lane.b32.xlu0 %v7615, 12
      %v7708 = vpop.permute.xlu0 %7707
      %7709 = vrot.lane.b32.xlu0 %v7616, 12
      %v7710 = vpop.permute.xlu0 %7709
      %7711 = vrot.lane.b32.xlu0 %v7617, 12
      %v7712 = vpop.permute.xlu0 %7711
      %7713 = vrot.lane.b32.xlu0 %v7618, 12
      %v7714 = vpop.permute.xlu0 %7713
      %vm7747 = vcmask 130144
      %7748 = vst.msk [vmem:[#allocation5] sm:$0xff] %vm7747, %v7652
      %7749 = vst.msk [vmem:[#allocation5 + $0x8] sm:$0xff] %vm7747, %v7654
      %7750 = vst.msk [vmem:[#allocation5 + $0x10] sm:$0xff] %vm7747, %v7656
      %7751 = vst.msk [vmem:[#allocation5 + $0x18] sm:$0xff] %vm7747, %v7658
      %7752 = vst.msk [vmem:[#allocation5 + $0x20] sm:$0xff] %vm7747, %v7660
      %7753 = vst.msk [vmem:[#allocation5 + $0x28] sm:$0xff] %vm7747, %v7662
      %7754 = vst.msk [vmem:[#allocation5 + $0x30] sm:$0xff] %vm7747, %v7664
      %7755 = vst.msk [vmem:[#allocation5 + $0x38] sm:$0xff] %vm7747, %v7666
      %7756 = vst.msk [vmem:[#allocation5 + $0x40] sm:$0xff] %vm7747, %v7668
      %7757 = vst.msk [vmem:[#allocation5 + $0x48] sm:$0xff] %vm7747, %v7670
      %7758 = vst.msk [vmem:[#allocation5 + $0x50] sm:$0xff] %vm7747, %v7672
      %7759 = vst.msk [vmem:[#allocation5 + $0x58] sm:$0xff] %vm7747, %v7674
      %7760 = vst.msk [vmem:[#allocation5 + $0x60] sm:$0xff] %vm7747, %v7676
      %7761 = vst.msk [vmem:[#allocation5 + $0x68] sm:$0xff] %vm7747, %v7678
      %7762 = vst.msk [vmem:[#allocation5 + $0x70] sm:$0xff] %vm7747, %v7680
      %7763 = vst.msk [vmem:[#allocation5 + $0x78] sm:$0xff] %vm7747, %v7682
      %7764 = vst.msk [vmem:[#allocation5 + $0x80] sm:$0xff] %vm7747, %v7684
      %7765 = vst.msk [vmem:[#allocation5 + $0x88] sm:$0xff] %vm7747, %v7686
      %7766 = vst.msk [vmem:[#allocation5 + $0x90] sm:$0xff] %vm7747, %v7688
      %7767 = vst.msk [vmem:[#allocation5 + $0x98] sm:$0xff] %vm7747, %v7690
      %7768 = vst.msk [vmem:[#allocation5 + $0xa0] sm:$0xff] %vm7747, %v7692
      %7769 = vst.msk [vmem:[#allocation5 + $0xa8] sm:$0xff] %vm7747, %v7694
      %7770 = vst.msk [vmem:[#allocation5 + $0xb0] sm:$0xff] %vm7747, %v7696
      %7771 = vst.msk [vmem:[#allocation5 + $0xb8] sm:$0xff] %vm7747, %v7698
      %7772 = vst.msk [vmem:[#allocation5 + $0xc0] sm:$0xff] %vm7747, %v7700
      %7773 = vst.msk [vmem:[#allocation5 + $0xc8] sm:$0xff] %vm7747, %v7702
      %7774 = vst.msk [vmem:[#allocation5 + $0xd0] sm:$0xff] %vm7747, %v7704
      %7775 = vst.msk [vmem:[#allocation5 + $0xd8] sm:$0xff] %vm7747, %v7706
      %7776 = vst.msk [vmem:[#allocation5 + $0xe0] sm:$0xff] %vm7747, %v7708
      %7777 = vst.msk [vmem:[#allocation5 + $0xe8] sm:$0xff] %vm7747, %v7710
      %7778 = vst.msk [vmem:[#allocation5 + $0xf0] sm:$0xff] %vm7747, %v7712
      %7779 = vst.msk [vmem:[#allocation5 + $0xf8] sm:$0xff] %vm7747, %v7714
      %v7780 = vld [vmem:[%s7586 + $0x1] sm:$0xff]
      %v7781 = vld [vmem:[%s7586 + $0x9] sm:$0xff]
      %v7782 = vld [vmem:[%s7586 + $0x19] sm:$0xff]
      %v7783 = vld [vmem:[%s7586 + $0x21] sm:$0xff]
      %v7784 = vld [vmem:[%s7586 + $0x31] sm:$0xff]
      %v7785 = vld [vmem:[%s7586 + $0x39] sm:$0xff]
      %v7786 = vld [vmem:[%s7586 + $0x49] sm:$0xff]
      %v7787 = vld [vmem:[%s7586 + $0x51] sm:$0xff]
      %v7788 = vld [vmem:[%s7586 + $0x61] sm:$0xff]
      %v7789 = vld [vmem:[%s7586 + $0x69] sm:$0xff]
      %v7790 = vld [vmem:[%s7586 + $0x79] sm:$0xff]
      %v7791 = vld [vmem:[%s7586 + $0x81] sm:$0xff]
      %v7792 = vld [vmem:[%s7586 + $0x91] sm:$0xff]
      %v7793 = vld [vmem:[%s7586 + $0x99] sm:$0xff]
      %v7794 = vld [vmem:[%s7586 + $0xa9] sm:$0xff]
      %v7795 = vld [vmem:[%s7586 + $0xb1] sm:$0xff]
      %v7796 = vld [vmem:[%s7586 + $0xc1] sm:$0xff]
      %v7797 = vld [vmem:[%s7586 + $0xc9] sm:$0xff]
      %v7798 = vld [vmem:[%s7586 + $0xd9] sm:$0xff]
      %v7799 = vld [vmem:[%s7586 + $0xe1] sm:$0xff]
      %v7800 = vld [vmem:[%s7586 + $0xf1] sm:$0xff]
      %v7801 = vld [vmem:[%s7586 + $0xf9] sm:$0xff]
      %v7802 = vld [vmem:[%s7586 + $0x109] sm:$0xff]
      %v7803 = vld [vmem:[%s7586 + $0x111] sm:$0xff]
      %v7804 = vld [vmem:[%s7586 + $0x121] sm:$0xff]
      %v7805 = vld [vmem:[%s7586 + $0x129] sm:$0xff]
      %v7806 = vld [vmem:[%s7586 + $0x139] sm:$0xff]
      %v7807 = vld [vmem:[%s7586 + $0x141] sm:$0xff]
      %v7808 = vld [vmem:[%s7586 + $0x151] sm:$0xff]
      %v7809 = vld [vmem:[%s7586 + $0x159] sm:$0xff]
      %v7810 = vld [vmem:[%s7586 + $0x169] sm:$0xff]
      %v7811 = vld [vmem:[%s7586 + $0x171] sm:$0xff]
      %7844 = vrot.lane.b32.xlu0 %v7780, 16
      %v7845 = vpop.permute.xlu0 %7844
      %7846 = vrot.lane.b32.xlu0 %v7781, 16
      %v7847 = vpop.permute.xlu0 %7846
      %7848 = vrot.lane.b32.xlu0 %v7782, 16
      %v7849 = vpop.permute.xlu0 %7848
      %7850 = vrot.lane.b32.xlu0 %v7783, 16
      %v7851 = vpop.permute.xlu0 %7850
      %7852 = vrot.lane.b32.xlu0 %v7784, 16
      %v7853 = vpop.permute.xlu0 %7852
      %7854 = vrot.lane.b32.xlu0 %v7785, 16
      %v7855 = vpop.permute.xlu0 %7854
      %7856 = vrot.lane.b32.xlu0 %v7786, 16
      %v7857 = vpop.permute.xlu0 %7856
      %7858 = vrot.lane.b32.xlu0 %v7787, 16
      %v7859 = vpop.permute.xlu0 %7858
      %7860 = vrot.lane.b32.xlu0 %v7788, 16
      %v7861 = vpop.permute.xlu0 %7860
      %7862 = vrot.lane.b32.xlu0 %v7789, 16
      %v7863 = vpop.permute.xlu0 %7862
      %7864 = vrot.lane.b32.xlu0 %v7790, 16
      %v7865 = vpop.permute.xlu0 %7864
      %7866 = vrot.lane.b32.xlu0 %v7791, 16
      %v7867 = vpop.permute.xlu0 %7866
      %7868 = vrot.lane.b32.xlu0 %v7792, 16
      %v7869 = vpop.permute.xlu0 %7868
      %7870 = vrot.lane.b32.xlu0 %v7793, 16
      %v7871 = vpop.permute.xlu0 %7870
      %7872 = vrot.lane.b32.xlu0 %v7794, 16
      %v7873 = vpop.permute.xlu0 %7872
      %7874 = vrot.lane.b32.xlu0 %v7795, 16
      %v7875 = vpop.permute.xlu0 %7874
      %7876 = vrot.lane.b32.xlu0 %v7796, 16
      %v7877 = vpop.permute.xlu0 %7876
      %7878 = vrot.lane.b32.xlu0 %v7797, 16
      %v7879 = vpop.permute.xlu0 %7878
      %7880 = vrot.lane.b32.xlu0 %v7798, 16
      %v7881 = vpop.permute.xlu0 %7880
      %7882 = vrot.lane.b32.xlu0 %v7799, 16
      %v7883 = vpop.permute.xlu0 %7882
      %7884 = vrot.lane.b32.xlu0 %v7800, 16
      %v7885 = vpop.permute.xlu0 %7884
      %7886 = vrot.lane.b32.xlu0 %v7801, 16
      %v7887 = vpop.permute.xlu0 %7886
      %7888 = vrot.lane.b32.xlu0 %v7802, 16
      %v7889 = vpop.permute.xlu0 %7888
      %7890 = vrot.lane.b32.xlu0 %v7803, 16
      %v7891 = vpop.permute.xlu0 %7890
      %7892 = vrot.lane.b32.xlu0 %v7804, 16
      %v7893 = vpop.permute.xlu0 %7892
      %7894 = vrot.lane.b32.xlu0 %v7805, 16
      %v7895 = vpop.permute.xlu0 %7894
      %7896 = vrot.lane.b32.xlu0 %v7806, 16
      %v7897 = vpop.permute.xlu0 %7896
      %7898 = vrot.lane.b32.xlu0 %v7807, 16
      %v7899 = vpop.permute.xlu0 %7898
      %7900 = vrot.lane.b32.xlu0 %v7808, 16
      %v7901 = vpop.permute.xlu0 %7900
      %7902 = vrot.lane.b32.xlu0 %v7809, 16
      %v7903 = vpop.permute.xlu0 %7902
      %7904 = vrot.lane.b32.xlu0 %v7810, 16
      %v7905 = vpop.permute.xlu0 %7904
      %7906 = vrot.lane.b32.xlu0 %v7811, 16
      %v7907 = vpop.permute.xlu0 %7906
      %vm7940 = vcmask 162944
      %7941 = vst.msk [vmem:[#allocation5] sm:$0xff] %vm7940, %v7845
      %7942 = vst.msk [vmem:[#allocation5 + $0x8] sm:$0xff] %vm7940, %v7847
      %7943 = vst.msk [vmem:[#allocation5 + $0x10] sm:$0xff] %vm7940, %v7849
      %7944 = vst.msk [vmem:[#allocation5 + $0x18] sm:$0xff] %vm7940, %v7851
      %7945 = vst.msk [vmem:[#allocation5 + $0x20] sm:$0xff] %vm7940, %v7853
      %7946 = vst.msk [vmem:[#allocation5 + $0x28] sm:$0xff] %vm7940, %v7855
      %7947 = vst.msk [vmem:[#allocation5 + $0x30] sm:$0xff] %vm7940, %v7857
      %7948 = vst.msk [vmem:[#allocation5 + $0x38] sm:$0xff] %vm7940, %v7859
      %7949 = vst.msk [vmem:[#allocation5 + $0x40] sm:$0xff] %vm7940, %v7861
      %7950 = vst.msk [vmem:[#allocation5 + $0x48] sm:$0xff] %vm7940, %v7863
      %7951 = vst.msk [vmem:[#allocation5 + $0x50] sm:$0xff] %vm7940, %v7865
      %7952 = vst.msk [vmem:[#allocation5 + $0x58] sm:$0xff] %vm7940, %v7867
      %7953 = vst.msk [vmem:[#allocation5 + $0x60] sm:$0xff] %vm7940, %v7869
      %7954 = vst.msk [vmem:[#allocation5 + $0x68] sm:$0xff] %vm7940, %v7871
      %7955 = vst.msk [vmem:[#allocation5 + $0x70] sm:$0xff] %vm7940, %v7873
      %7956 = vst.msk [vmem:[#allocation5 + $0x78] sm:$0xff] %vm7940, %v7875
      %7957 = vst.msk [vmem:[#allocation5 + $0x80] sm:$0xff] %vm7940, %v7877
      %7958 = vst.msk [vmem:[#allocation5 + $0x88] sm:$0xff] %vm7940, %v7879
      %7959 = vst.msk [vmem:[#allocation5 + $0x90] sm:$0xff] %vm7940, %v7881
      %7960 = vst.msk [vmem:[#allocation5 + $0x98] sm:$0xff] %vm7940, %v7883
      %7961 = vst.msk [vmem:[#allocation5 + $0xa0] sm:$0xff] %vm7940, %v7885
      %7962 = vst.msk [vmem:[#allocation5 + $0xa8] sm:$0xff] %vm7940, %v7887
      %7963 = vst.msk [vmem:[#allocation5 + $0xb0] sm:$0xff] %vm7940, %v7889
      %7964 = vst.msk [vmem:[#allocation5 + $0xb8] sm:$0xff] %vm7940, %v7891
      %7965 = vst.msk [vmem:[#allocation5 + $0xc0] sm:$0xff] %vm7940, %v7893
      %7966 = vst.msk [vmem:[#allocation5 + $0xc8] sm:$0xff] %vm7940, %v7895
      %7967 = vst.msk [vmem:[#allocation5 + $0xd0] sm:$0xff] %vm7940, %v7897
      %7968 = vst.msk [vmem:[#allocation5 + $0xd8] sm:$0xff] %vm7940, %v7899
      %7969 = vst.msk [vmem:[#allocation5 + $0xe0] sm:$0xff] %vm7940, %v7901
      %7970 = vst.msk [vmem:[#allocation5 + $0xe8] sm:$0xff] %vm7940, %v7903
      %7971 = vst.msk [vmem:[#allocation5 + $0xf0] sm:$0xff] %vm7940, %v7905
      %7972 = vst.msk [vmem:[#allocation5 + $0xf8] sm:$0xff] %vm7940, %v7907
      %v7973 = vld [vmem:[%s7586 + $0x2] sm:$0xff]
      %v7974 = vld [vmem:[%s7586 + $0xa] sm:$0xff]
      %v7975 = vld [vmem:[%s7586 + $0x1a] sm:$0xff]
      %v7976 = vld [vmem:[%s7586 + $0x22] sm:$0xff]
      %v7977 = vld [vmem:[%s7586 + $0x32] sm:$0xff]
      %v7978 = vld [vmem:[%s7586 + $0x3a] sm:$0xff]
      %v7979 = vld [vmem:[%s7586 + $0x4a] sm:$0xff]
      %v7980 = vld [vmem:[%s7586 + $0x52] sm:$0xff]
      %v7981 = vld [vmem:[%s7586 + $0x62] sm:$0xff]
      %v7982 = vld [vmem:[%s7586 + $0x6a] sm:$0xff]
      %v7983 = vld [vmem:[%s7586 + $0x7a] sm:$0xff]
      %v7984 = vld [vmem:[%s7586 + $0x82] sm:$0xff]
      %v7985 = vld [vmem:[%s7586 + $0x92] sm:$0xff]
      %v7986 = vld [vmem:[%s7586 + $0x9a] sm:$0xff]
      %v7987 = vld [vmem:[%s7586 + $0xaa] sm:$0xff]
      %v7988 = vld [vmem:[%s7586 + $0xb2] sm:$0xff]
      %v7989 = vld [vmem:[%s7586 + $0xc2] sm:$0xff]
      %v7990 = vld [vmem:[%s7586 + $0xca] sm:$0xff]
      %v7991 = vld [vmem:[%s7586 + $0xda] sm:$0xff]
      %v7992 = vld [vmem:[%s7586 + $0xe2] sm:$0xff]
      %v7993 = vld [vmem:[%s7586 + $0xf2] sm:$0xff]
      %v7994 = vld [vmem:[%s7586 + $0xfa] sm:$0xff]
      %v7995 = vld [vmem:[%s7586 + $0x10a] sm:$0xff]
      %v7996 = vld [vmem:[%s7586 + $0x112] sm:$0xff]
      %v7997 = vld [vmem:[%s7586 + $0x122] sm:$0xff]
      %v7998 = vld [vmem:[%s7586 + $0x12a] sm:$0xff]
      %v7999 = vld [vmem:[%s7586 + $0x13a] sm:$0xff]
      %v8000 = vld [vmem:[%s7586 + $0x142] sm:$0xff]
      %v8001 = vld [vmem:[%s7586 + $0x152] sm:$0xff]
      %v8002 = vld [vmem:[%s7586 + $0x15a] sm:$0xff]
      %v8003 = vld [vmem:[%s7586 + $0x16a] sm:$0xff]
      %v8004 = vld [vmem:[%s7586 + $0x172] sm:$0xff]
      %8037 = vrot.lane.b32.xlu0 %v7973, 20
      %v8038 = vpop.permute.xlu0 %8037
      %8039 = vrot.lane.b32.xlu0 %v7974, 20
      %v8040 = vpop.permute.xlu0 %8039
      %8041 = vrot.lane.b32.xlu0 %v7975, 20
      %v8042 = vpop.permute.xlu0 %8041
      %8043 = vrot.lane.b32.xlu0 %v7976, 20
      %v8044 = vpop.permute.xlu0 %8043
      %8045 = vrot.lane.b32.xlu0 %v7977, 20
      %v8046 = vpop.permute.xlu0 %8045
      %8047 = vrot.lane.b32.xlu0 %v7978, 20
      %v8048 = vpop.permute.xlu0 %8047
      %8049 = vrot.lane.b32.xlu0 %v7979, 20
      %v8050 = vpop.permute.xlu0 %8049
      %8051 = vrot.lane.b32.xlu0 %v7980, 20
      %v8052 = vpop.permute.xlu0 %8051
      %8053 = vrot.lane.b32.xlu0 %v7981, 20
      %v8054 = vpop.permute.xlu0 %8053
      %8055 = vrot.lane.b32.xlu0 %v7982, 20
      %v8056 = vpop.permute.xlu0 %8055
      %8057 = vrot.lane.b32.xlu0 %v7983, 20
      %v8058 = vpop.permute.xlu0 %8057
      %8059 = vrot.lane.b32.xlu0 %v7984, 20
      %v8060 = vpop.permute.xlu0 %8059
      %8061 = vrot.lane.b32.xlu0 %v7985, 20
      %v8062 = vpop.permute.xlu0 %8061
      %8063 = vrot.lane.b32.xlu0 %v7986, 20
      %v8064 = vpop.permute.xlu0 %8063
      %8065 = vrot.lane.b32.xlu0 %v7987, 20
      %v8066 = vpop.permute.xlu0 %8065
      %8067 = vrot.lane.b32.xlu0 %v7988, 20
      %v8068 = vpop.permute.xlu0 %8067
      %8069 = vrot.lane.b32.xlu0 %v7989, 20
      %v8070 = vpop.permute.xlu0 %8069
      %8071 = vrot.lane.b32.xlu0 %v7990, 20
      %v8072 = vpop.permute.xlu0 %8071
      %8073 = vrot.lane.b32.xlu0 %v7991, 20
      %v8074 = vpop.permute.xlu0 %8073
      %8075 = vrot.lane.b32.xlu0 %v7992, 20
      %v8076 = vpop.permute.xlu0 %8075
      %8077 = vrot.lane.b32.xlu0 %v7993, 20
      %v8078 = vpop.permute.xlu0 %8077
      %8079 = vrot.lane.b32.xlu0 %v7994, 20
      %v8080 = vpop.permute.xlu0 %8079
      %8081 = vrot.lane.b32.xlu0 %v7995, 20
      %v8082 = vpop.permute.xlu0 %8081
      %8083 = vrot.lane.b32.xlu0 %v7996, 20
      %v8084 = vpop.permute.xlu0 %8083
      %8085 = vrot.lane.b32.xlu0 %v7997, 20
      %v8086 = vpop.permute.xlu0 %8085
      %8087 = vrot.lane.b32.xlu0 %v7998, 20
      %v8088 = vpop.permute.xlu0 %8087
      %8089 = vrot.lane.b32.xlu0 %v7999, 20
      %v8090 = vpop.permute.xlu0 %8089
      %8091 = vrot.lane.b32.xlu0 %v8000, 20
      %v8092 = vpop.permute.xlu0 %8091
      %8093 = vrot.lane.b32.xlu0 %v8001, 20
      %v8094 = vpop.permute.xlu0 %8093
      %8095 = vrot.lane.b32.xlu0 %v8002, 20
      %v8096 = vpop.permute.xlu0 %8095
      %8097 = vrot.lane.b32.xlu0 %v8003, 20
      %v8098 = vpop.permute.xlu0 %8097
      %8099 = vrot.lane.b32.xlu0 %v8004, 20
      %v8100 = vpop.permute.xlu0 %8099
      %vm8133 = vcmask 195744
      %8134 = vst.msk [vmem:[#allocation5] sm:$0xff] %vm8133, %v8038
      %8135 = vst.msk [vmem:[#allocation5 + $0x8] sm:$0xff] %vm8133, %v8040
      %8136 = vst.msk [vmem:[#allocation5 + $0x10] sm:$0xff] %vm8133, %v8042
      %8137 = vst.msk [vmem:[#allocation5 + $0x18] sm:$0xff] %vm8133, %v8044
      %8138 = vst.msk [vmem:[#allocation5 + $0x20] sm:$0xff] %vm8133, %v8046
      %8139 = vst.msk [vmem:[#allocation5 + $0x28] sm:$0xff] %vm8133, %v8048
      %8140 = vst.msk [vmem:[#allocation5 + $0x30] sm:$0xff] %vm8133, %v8050
      %8141 = vst.msk [vmem:[#allocation5 + $0x38] sm:$0xff] %vm8133, %v8052
      %8142 = vst.msk [vmem:[#allocation5 + $0x40] sm:$0xff] %vm8133, %v8054
      %8143 = vst.msk [vmem:[#allocation5 + $0x48] sm:$0xff] %vm8133, %v8056
      %8144 = vst.msk [vmem:[#allocation5 + $0x50] sm:$0xff] %vm8133, %v8058
      %8145 = vst.msk [vmem:[#allocation5 + $0x58] sm:$0xff] %vm8133, %v8060
      %8146 = vst.msk [vmem:[#allocation5 + $0x60] sm:$0xff] %vm8133, %v8062
      %8147 = vst.msk [vmem:[#allocation5 + $0x68] sm:$0xff] %vm8133, %v8064
      %8148 = vst.msk [vmem:[#allocation5 + $0x70] sm:$0xff] %vm8133, %v8066
      %8149 = vst.msk [vmem:[#allocation5 + $0x78] sm:$0xff] %vm8133, %v8068
      %8150 = vst.msk [vmem:[#allocation5 + $0x80] sm:$0xff] %vm8133, %v8070
      %8151 = vst.msk [vmem:[#allocation5 + $0x88] sm:$0xff] %vm8133, %v8072
      %8152 = vst.msk [vmem:[#allocation5 + $0x90] sm:$0xff] %vm8133, %v8074
      %8153 = vst.msk [vmem:[#allocation5 + $0x98] sm:$0xff] %vm8133, %v8076
      %8154 = vst.msk [vmem:[#allocation5 + $0xa0] sm:$0xff] %vm8133, %v8078
      %8155 = vst.msk [vmem:[#allocation5 + $0xa8] sm:$0xff] %vm8133, %v8080
      %8156 = vst.msk [vmem:[#allocation5 + $0xb0] sm:$0xff] %vm8133, %v8082
      %8157 = vst.msk [vmem:[#allocation5 + $0xb8] sm:$0xff] %vm8133, %v8084
      %8158 = vst.msk [vmem:[#allocation5 + $0xc0] sm:$0xff] %vm8133, %v8086
      %8159 = vst.msk [vmem:[#allocation5 + $0xc8] sm:$0xff] %vm8133, %v8088
      %8160 = vst.msk [vmem:[#allocation5 + $0xd0] sm:$0xff] %vm8133, %v8090
      %8161 = vst.msk [vmem:[#allocation5 + $0xd8] sm:$0xff] %vm8133, %v8092
      %8162 = vst.msk [vmem:[#allocation5 + $0xe0] sm:$0xff] %vm8133, %v8094
      %8163 = vst.msk [vmem:[#allocation5 + $0xe8] sm:$0xff] %vm8133, %v8096
      %8164 = vst.msk [vmem:[#allocation5 + $0xf0] sm:$0xff] %vm8133, %v8098
      %8165 = vst.msk [vmem:[#allocation5 + $0xf8] sm:$0xff] %vm8133, %v8100
      %s8166 = scalar_lea.vmem [#allocation2], 48
      %v8167 = vld [vmem:[%s8166] sm:$0xff]
      %v8168 = vld [vmem:[%s8166 + $0x8] sm:$0xff]
      %v8169 = vld [vmem:[%s8166 + $0x18] sm:$0xff]
      %v8170 = vld [vmem:[%s8166 + $0x20] sm:$0xff]
      %v8171 = vld [vmem:[%s8166 + $0x30] sm:$0xff]
      %v8172 = vld [vmem:[%s8166 + $0x38] sm:$0xff]
      %v8173 = vld [vmem:[%s8166 + $0x48] sm:$0xff]
      %v8174 = vld [vmem:[%s8166 + $0x50] sm:$0xff]
      %v8175 = vld [vmem:[%s8166 + $0x60] sm:$0xff]
      %v8176 = vld [vmem:[%s8166 + $0x68] sm:$0xff]
      %v8177 = vld [vmem:[%s8166 + $0x78] sm:$0xff]
      %v8178 = vld [vmem:[%s8166 + $0x80] sm:$0xff]
      %v8179 = vld [vmem:[%s8166 + $0x90] sm:$0xff]
      %v8180 = vld [vmem:[%s8166 + $0x98] sm:$0xff]
      %v8181 = vld [vmem:[%s8166 + $0xa8] sm:$0xff]
      %v8182 = vld [vmem:[%s8166 + $0xb0] sm:$0xff]
      %v8183 = vld [vmem:[%s8166 + $0xc0] sm:$0xff]
      %v8184 = vld [vmem:[%s8166 + $0xc8] sm:$0xff]
      %v8185 = vld [vmem:[%s8166 + $0xd8] sm:$0xff]
      %v8186 = vld [vmem:[%s8166 + $0xe0] sm:$0xff]
      %v8187 = vld [vmem:[%s8166 + $0xf0] sm:$0xff]
      %v8188 = vld [vmem:[%s8166 + $0xf8] sm:$0xff]
      %v8189 = vld [vmem:[%s8166 + $0x108] sm:$0xff]
      %v8190 = vld [vmem:[%s8166 + $0x110] sm:$0xff]
      %v8191 = vld [vmem:[%s8166 + $0x120] sm:$0xff]
      %v8192 = vld [vmem:[%s8166 + $0x128] sm:$0xff]
      %v8193 = vld [vmem:[%s8166 + $0x138] sm:$0xff]
      %v8194 = vld [vmem:[%s8166 + $0x140] sm:$0xff]
      %v8195 = vld [vmem:[%s8166 + $0x150] sm:$0xff]
      %v8196 = vld [vmem:[%s8166 + $0x158] sm:$0xff]
      %v8197 = vld [vmem:[%s8166 + $0x168] sm:$0xff]
      %v8198 = vld [vmem:[%s8166 + $0x170] sm:$0xff]
      %8231 = vrot.lane.b32.xlu0 %v8167, 24
      %v8232 = vpop.permute.xlu0 %8231
      %8233 = vrot.lane.b32.xlu0 %v8168, 24
      %v8234 = vpop.permute.xlu0 %8233
      %8235 = vrot.lane.b32.xlu0 %v8169, 24
      %v8236 = vpop.permute.xlu0 %8235
      %8237 = vrot.lane.b32.xlu0 %v8170, 24
      %v8238 = vpop.permute.xlu0 %8237
      %8239 = vrot.lane.b32.xlu0 %v8171, 24
      %v8240 = vpop.permute.xlu0 %8239
      %8241 = vrot.lane.b32.xlu0 %v8172, 24
      %v8242 = vpop.permute.xlu0 %8241
      %8243 = vrot.lane.b32.xlu0 %v8173, 24
      %v8244 = vpop.permute.xlu0 %8243
      %8245 = vrot.lane.b32.xlu0 %v8174, 24
      %v8246 = vpop.permute.xlu0 %8245
      %8247 = vrot.lane.b32.xlu0 %v8175, 24
      %v8248 = vpop.permute.xlu0 %8247
      %8249 = vrot.lane.b32.xlu0 %v8176, 24
      %v8250 = vpop.permute.xlu0 %8249
      %8251 = vrot.lane.b32.xlu0 %v8177, 24
      %v8252 = vpop.permute.xlu0 %8251
      %8253 = vrot.lane.b32.xlu0 %v8178, 24
      %v8254 = vpop.permute.xlu0 %8253
      %8255 = vrot.lane.b32.xlu0 %v8179, 24
      %v8256 = vpop.permute.xlu0 %8255
      %8257 = vrot.lane.b32.xlu0 %v8180, 24
      %v8258 = vpop.permute.xlu0 %8257
      %8259 = vrot.lane.b32.xlu0 %v8181, 24
      %v8260 = vpop.permute.xlu0 %8259
      %8261 = vrot.lane.b32.xlu0 %v8182, 24
      %v8262 = vpop.permute.xlu0 %8261
      %8263 = vrot.lane.b32.xlu0 %v8183, 24
      %v8264 = vpop.permute.xlu0 %8263
      %8265 = vrot.lane.b32.xlu0 %v8184, 24
      %v8266 = vpop.permute.xlu0 %8265
      %8267 = vrot.lane.b32.xlu0 %v8185, 24
      %v8268 = vpop.permute.xlu0 %8267
      %8269 = vrot.lane.b32.xlu0 %v8186, 24
      %v8270 = vpop.permute.xlu0 %8269
      %8271 = vrot.lane.b32.xlu0 %v8187, 24
      %v8272 = vpop.permute.xlu0 %8271
      %8273 = vrot.lane.b32.xlu0 %v8188, 24
      %v8274 = vpop.permute.xlu0 %8273
      %8275 = vrot.lane.b32.xlu0 %v8189, 24
      %v8276 = vpop.permute.xlu0 %8275
      %8277 = vrot.lane.b32.xlu0 %v8190, 24
      %v8278 = vpop.permute.xlu0 %8277
      %8279 = vrot.lane.b32.xlu0 %v8191, 24
      %v8280 = vpop.permute.xlu0 %8279
      %8281 = vrot.lane.b32.xlu0 %v8192, 24
      %v8282 = vpop.permute.xlu0 %8281
      %8283 = vrot.lane.b32.xlu0 %v8193, 24
      %v8284 = vpop.permute.xlu0 %8283
      %8285 = vrot.lane.b32.xlu0 %v8194, 24
      %v8286 = vpop.permute.xlu0 %8285
      %8287 = vrot.lane.b32.xlu0 %v8195, 24
      %v8288 = vpop.permute.xlu0 %8287
      %8289 = vrot.lane.b32.xlu0 %v8196, 24
      %v8290 = vpop.permute.xlu0 %8289
      %8291 = vrot.lane.b32.xlu0 %v8197, 24
      %v8292 = vpop.permute.xlu0 %8291
      %8293 = vrot.lane.b32.xlu0 %v8198, 24
      %v8294 = vpop.permute.xlu0 %8293
      %vm8327 = vcmask 228544
      %8328 = vst.msk [vmem:[#allocation5] sm:$0xff] %vm8327, %v8232
      %8329 = vst.msk [vmem:[#allocation5 + $0x8] sm:$0xff] %vm8327, %v8234
      %8330 = vst.msk [vmem:[#allocation5 + $0x10] sm:$0xff] %vm8327, %v8236
      %8331 = vst.msk [vmem:[#allocation5 + $0x18] sm:$0xff] %vm8327, %v8238
      %8332 = vst.msk [vmem:[#allocation5 + $0x20] sm:$0xff] %vm8327, %v8240
      %8333 = vst.msk [vmem:[#allocation5 + $0x28] sm:$0xff] %vm8327, %v8242
      %8334 = vst.msk [vmem:[#allocation5 + $0x30] sm:$0xff] %vm8327, %v8244
      %8335 = vst.msk [vmem:[#allocation5 + $0x38] sm:$0xff] %vm8327, %v8246
      %8336 = vst.msk [vmem:[#allocation5 + $0x40] sm:$0xff] %vm8327, %v8248
      %8337 = vst.msk [vmem:[#allocation5 + $0x48] sm:$0xff] %vm8327, %v8250
      %8338 = vst.msk [vmem:[#allocation5 + $0x50] sm:$0xff] %vm8327, %v8252
      %8339 = vst.msk [vmem:[#allocation5 + $0x58] sm:$0xff] %vm8327, %v8254
      %8340 = vst.msk [vmem:[#allocation5 + $0x60] sm:$0xff] %vm8327, %v8256
      %8341 = vst.msk [vmem:[#allocation5 + $0x68] sm:$0xff] %vm8327, %v8258
      %8342 = vst.msk [vmem:[#allocation5 + $0x70] sm:$0xff] %vm8327, %v8260
      %8343 = vst.msk [vmem:[#allocation5 + $0x78] sm:$0xff] %vm8327, %v8262
      %8344 = vst.msk [vmem:[#allocation5 + $0x80] sm:$0xff] %vm8327, %v8264
      %8345 = vst.msk [vmem:[#allocation5 + $0x88] sm:$0xff] %vm8327, %v8266
      %8346 = vst.msk [vmem:[#allocation5 + $0x90] sm:$0xff] %vm8327, %v8268
      %8347 = vst.msk [vmem:[#allocation5 + $0x98] sm:$0xff] %vm8327, %v8270
      %8348 = vst.msk [vmem:[#allocation5 + $0xa0] sm:$0xff] %vm8327, %v8272
      %8349 = vst.msk [vmem:[#allocation5 + $0xa8] sm:$0xff] %vm8327, %v8274
      %8350 = vst.msk [vmem:[#allocation5 + $0xb0] sm:$0xff] %vm8327, %v8276
      %8351 = vst.msk [vmem:[#allocation5 + $0xb8] sm:$0xff] %vm8327, %v8278
      %8352 = vst.msk [vmem:[#allocation5 + $0xc0] sm:$0xff] %vm8327, %v8280
      %8353 = vst.msk [vmem:[#allocation5 + $0xc8] sm:$0xff] %vm8327, %v8282
      %8354 = vst.msk [vmem:[#allocation5 + $0xd0] sm:$0xff] %vm8327, %v8284
      %8355 = vst.msk [vmem:[#allocation5 + $0xd8] sm:$0xff] %vm8327, %v8286
      %8356 = vst.msk [vmem:[#allocation5 + $0xe0] sm:$0xff] %vm8327, %v8288
      %8357 = vst.msk [vmem:[#allocation5 + $0xe8] sm:$0xff] %vm8327, %v8290
      %8358 = vst.msk [vmem:[#allocation5 + $0xf0] sm:$0xff] %vm8327, %v8292
      %8359 = vst.msk [vmem:[#allocation5 + $0xf8] sm:$0xff] %vm8327, %v8294
      %v8360 = vld [vmem:[%s8166 + $0x1] sm:$0xff]
      %v8361 = vld [vmem:[%s8166 + $0x9] sm:$0xff]
      %v8362 = vld [vmem:[%s8166 + $0x19] sm:$0xff]
      %v8363 = vld [vmem:[%s8166 + $0x21] sm:$0xff]
      %v8364 = vld [vmem:[%s8166 + $0x31] sm:$0xff]
      %v8365 = vld [vmem:[%s8166 + $0x39] sm:$0xff]
      %v8366 = vld [vmem:[%s8166 + $0x49] sm:$0xff]
      %v8367 = vld [vmem:[%s8166 + $0x51] sm:$0xff]
      %v8368 = vld [vmem:[%s8166 + $0x61] sm:$0xff]
      %v8369 = vld [vmem:[%s8166 + $0x69] sm:$0xff]
      %v8370 = vld [vmem:[%s8166 + $0x79] sm:$0xff]
      %v8371 = vld [vmem:[%s8166 + $0x81] sm:$0xff]
      %v8372 = vld [vmem:[%s8166 + $0x91] sm:$0xff]
      %v8373 = vld [vmem:[%s8166 + $0x99] sm:$0xff]
      %v8374 = vld [vmem:[%s8166 + $0xa9] sm:$0xff]
      %v8375 = vld [vmem:[%s8166 + $0xb1] sm:$0xff]
      %v8376 = vld [vmem:[%s8166 + $0xc1] sm:$0xff]
      %v8377 = vld [vmem:[%s8166 + $0xc9] sm:$0xff]
      %v8378 = vld [vmem:[%s8166 + $0xd9] sm:$0xff]
      %v8379 = vld [vmem:[%s8166 + $0xe1] sm:$0xff]
      %v8380 = vld [vmem:[%s8166 + $0xf1] sm:$0xff]
      %v8381 = vld [vmem:[%s8166 + $0xf9] sm:$0xff]
      %v8382 = vld [vmem:[%s8166 + $0x109] sm:$0xff]
      %v8383 = vld [vmem:[%s8166 + $0x111] sm:$0xff]
      %v8384 = vld [vmem:[%s8166 + $0x121] sm:$0xff]
      %v8385 = vld [vmem:[%s8166 + $0x129] sm:$0xff]
      %v8386 = vld [vmem:[%s8166 + $0x139] sm:$0xff]
      %v8387 = vld [vmem:[%s8166 + $0x141] sm:$0xff]
      %v8388 = vld [vmem:[%s8166 + $0x151] sm:$0xff]
      %v8389 = vld [vmem:[%s8166 + $0x159] sm:$0xff]
      %v8390 = vld [vmem:[%s8166 + $0x169] sm:$0xff]
      %v8391 = vld [vmem:[%s8166 + $0x171] sm:$0xff]
      %8424 = vrot.lane.b32.xlu0 %v8360, 28
      %v8425 = vpop.permute.xlu0 %8424
      %8426 = vrot.lane.b32.xlu0 %v8361, 28
      %v8427 = vpop.permute.xlu0 %8426
      %8428 = vrot.lane.b32.xlu0 %v8362, 28
      %v8429 = vpop.permute.xlu0 %8428
      %8430 = vrot.lane.b32.xlu0 %v8363, 28
      %v8431 = vpop.permute.xlu0 %8430
      %8432 = vrot.lane.b32.xlu0 %v8364, 28
      %v8433 = vpop.permute.xlu0 %8432
      %8434 = vrot.lane.b32.xlu0 %v8365, 28
      %v8435 = vpop.permute.xlu0 %8434
      %8436 = vrot.lane.b32.xlu0 %v8366, 28
      %v8437 = vpop.permute.xlu0 %8436
      %8438 = vrot.lane.b32.xlu0 %v8367, 28
      %v8439 = vpop.permute.xlu0 %8438
      %8440 = vrot.lane.b32.xlu0 %v8368, 28
      %v8441 = vpop.permute.xlu0 %8440
      %8442 = vrot.lane.b32.xlu0 %v8369, 28
      %v8443 = vpop.permute.xlu0 %8442
      %8444 = vrot.lane.b32.xlu0 %v8370, 28
      %v8445 = vpop.permute.xlu0 %8444
      %8446 = vrot.lane.b32.xlu0 %v8371, 28
      %v8447 = vpop.permute.xlu0 %8446
      %8448 = vrot.lane.b32.xlu0 %v8372, 28
      %v8449 = vpop.permute.xlu0 %8448
      %8450 = vrot.lane.b32.xlu0 %v8373, 28
      %v8451 = vpop.permute.xlu0 %8450
      %8452 = vrot.lane.b32.xlu0 %v8374, 28
      %v8453 = vpop.permute.xlu0 %8452
      %8454 = vrot.lane.b32.xlu0 %v8375, 28
      %v8455 = vpop.permute.xlu0 %8454
      %8456 = vrot.lane.b32.xlu0 %v8376, 28
      %v8457 = vpop.permute.xlu0 %8456
      %8458 = vrot.lane.b32.xlu0 %v8377, 28
      %v8459 = vpop.permute.xlu0 %8458
      %8460 = vrot.lane.b32.xlu0 %v8378, 28
      %v8461 = vpop.permute.xlu0 %8460
      %8462 = vrot.lane.b32.xlu0 %v8379, 28
      %v8463 = vpop.permute.xlu0 %8462
      %8464 = vrot.lane.b32.xlu0 %v8380, 28
      %v8465 = vpop.permute.xlu0 %8464
      %8466 = vrot.lane.b32.xlu0 %v8381, 28
      %v8467 = vpop.permute.xlu0 %8466
      %8468 = vrot.lane.b32.xlu0 %v8382, 28
      %v8469 = vpop.permute.xlu0 %8468
      %8470 = vrot.lane.b32.xlu0 %v8383, 28
      %v8471 = vpop.permute.xlu0 %8470
      %8472 = vrot.lane.b32.xlu0 %v8384, 28
      %v8473 = vpop.permute.xlu0 %8472
      %8474 = vrot.lane.b32.xlu0 %v8385, 28
      %v8475 = vpop.permute.xlu0 %8474
      %8476 = vrot.lane.b32.xlu0 %v8386, 28
      %v8477 = vpop.permute.xlu0 %8476
      %8478 = vrot.lane.b32.xlu0 %v8387, 28
      %v8479 = vpop.permute.xlu0 %8478
      %8480 = vrot.lane.b32.xlu0 %v8388, 28
      %v8481 = vpop.permute.xlu0 %8480
      %8482 = vrot.lane.b32.xlu0 %v8389, 28
      %v8483 = vpop.permute.xlu0 %8482
      %8484 = vrot.lane.b32.xlu0 %v8390, 28
      %v8485 = vpop.permute.xlu0 %8484
      %8486 = vrot.lane.b32.xlu0 %v8391, 28
      %v8487 = vpop.permute.xlu0 %8486
      %vm8520 = vcmask 261344
      %8521 = vst.msk [vmem:[#allocation5] sm:$0xff] %vm8520, %v8425
      %8522 = vst.msk [vmem:[#allocation5 + $0x8] sm:$0xff] %vm8520, %v8427
      %8523 = vst.msk [vmem:[#allocation5 + $0x10] sm:$0xff] %vm8520, %v8429
      %8524 = vst.msk [vmem:[#allocation5 + $0x18] sm:$0xff] %vm8520, %v8431
      %8525 = vst.msk [vmem:[#allocation5 + $0x20] sm:$0xff] %vm8520, %v8433
      %8526 = vst.msk [vmem:[#allocation5 + $0x28] sm:$0xff] %vm8520, %v8435
      %8527 = vst.msk [vmem:[#allocation5 + $0x30] sm:$0xff] %vm8520, %v8437
      %8528 = vst.msk [vmem:[#allocation5 + $0x38] sm:$0xff] %vm8520, %v8439
      %8529 = vst.msk [vmem:[#allocation5 + $0x40] sm:$0xff] %vm8520, %v8441
      %8530 = vst.msk [vmem:[#allocation5 + $0x48] sm:$0xff] %vm8520, %v8443
      %8531 = vst.msk [vmem:[#allocation5 + $0x50] sm:$0xff] %vm8520, %v8445
      %8532 = vst.msk [vmem:[#allocation5 + $0x58] sm:$0xff] %vm8520, %v8447
      %8533 = vst.msk [vmem:[#allocation5 + $0x60] sm:$0xff] %vm8520, %v8449
      %8534 = vst.msk [vmem:[#allocation5 + $0x68] sm:$0xff] %vm8520, %v8451
      %8535 = vst.msk [vmem:[#allocation5 + $0x70] sm:$0xff] %vm8520, %v8453
      %8536 = vst.msk [vmem:[#allocation5 + $0x78] sm:$0xff] %vm8520, %v8455
      %8537 = vst.msk [vmem:[#allocation5 + $0x80] sm:$0xff] %vm8520, %v8457
      %8538 = vst.msk [vmem:[#allocation5 + $0x88] sm:$0xff] %vm8520, %v8459
      %8539 = vst.msk [vmem:[#allocation5 + $0x90] sm:$0xff] %vm8520, %v8461
      %8540 = vst.msk [vmem:[#allocation5 + $0x98] sm:$0xff] %vm8520, %v8463
      %8541 = vst.msk [vmem:[#allocation5 + $0xa0] sm:$0xff] %vm8520, %v8465
      %8542 = vst.msk [vmem:[#allocation5 + $0xa8] sm:$0xff] %vm8520, %v8467
      %8543 = vst.msk [vmem:[#allocation5 + $0xb0] sm:$0xff] %vm8520, %v8469
      %8544 = vst.msk [vmem:[#allocation5 + $0xb8] sm:$0xff] %vm8520, %v8471
      %8545 = vst.msk [vmem:[#allocation5 + $0xc0] sm:$0xff] %vm8520, %v8473
      %8546 = vst.msk [vmem:[#allocation5 + $0xc8] sm:$0xff] %vm8520, %v8475
      %8547 = vst.msk [vmem:[#allocation5 + $0xd0] sm:$0xff] %vm8520, %v8477
      %8548 = vst.msk [vmem:[#allocation5 + $0xd8] sm:$0xff] %vm8520, %v8479
      %8549 = vst.msk [vmem:[#allocation5 + $0xe0] sm:$0xff] %vm8520, %v8481
      %8550 = vst.msk [vmem:[#allocation5 + $0xe8] sm:$0xff] %vm8520, %v8483
      %8551 = vst.msk [vmem:[#allocation5 + $0xf0] sm:$0xff] %vm8520, %v8485
      %8552 = vst.msk [vmem:[#allocation5 + $0xf8] sm:$0xff] %vm8520, %v8487
      %v8553 = vld [vmem:[%s8166 + $0x2] sm:$0xff]
      %v8554 = vld [vmem:[%s8166 + $0xa] sm:$0xff]
      %v8555 = vld [vmem:[%s8166 + $0x1a] sm:$0xff]
      %v8556 = vld [vmem:[%s8166 + $0x22] sm:$0xff]
      %v8557 = vld [vmem:[%s8166 + $0x32] sm:$0xff]
      %v8558 = vld [vmem:[%s8166 + $0x3a] sm:$0xff]
      %v8559 = vld [vmem:[%s8166 + $0x4a] sm:$0xff]
      %v8560 = vld [vmem:[%s8166 + $0x52] sm:$0xff]
      %v8561 = vld [vmem:[%s8166 + $0x62] sm:$0xff]
      %v8562 = vld [vmem:[%s8166 + $0x6a] sm:$0xff]
      %v8563 = vld [vmem:[%s8166 + $0x7a] sm:$0xff]
      %v8564 = vld [vmem:[%s8166 + $0x82] sm:$0xff]
      %v8565 = vld [vmem:[%s8166 + $0x92] sm:$0xff]
      %v8566 = vld [vmem:[%s8166 + $0x9a] sm:$0xff]
      %v8567 = vld [vmem:[%s8166 + $0xaa] sm:$0xff]
      %v8568 = vld [vmem:[%s8166 + $0xb2] sm:$0xff]
      %v8569 = vld [vmem:[%s8166 + $0xc2] sm:$0xff]
      %v8570 = vld [vmem:[%s8166 + $0xca] sm:$0xff]
      %v8571 = vld [vmem:[%s8166 + $0xda] sm:$0xff]
      %v8572 = vld [vmem:[%s8166 + $0xe2] sm:$0xff]
      %v8573 = vld [vmem:[%s8166 + $0xf2] sm:$0xff]
      %v8574 = vld [vmem:[%s8166 + $0xfa] sm:$0xff]
      %v8575 = vld [vmem:[%s8166 + $0x10a] sm:$0xff]
      %v8576 = vld [vmem:[%s8166 + $0x112] sm:$0xff]
      %v8577 = vld [vmem:[%s8166 + $0x122] sm:$0xff]
      %v8578 = vld [vmem:[%s8166 + $0x12a] sm:$0xff]
      %v8579 = vld [vmem:[%s8166 + $0x13a] sm:$0xff]
      %v8580 = vld [vmem:[%s8166 + $0x142] sm:$0xff]
      %v8581 = vld [vmem:[%s8166 + $0x152] sm:$0xff]
      %v8582 = vld [vmem:[%s8166 + $0x15a] sm:$0xff]
      %v8583 = vld [vmem:[%s8166 + $0x16a] sm:$0xff]
      %v8584 = vld [vmem:[%s8166 + $0x172] sm:$0xff]
      %8617 = vrot.lane.b32.xlu0 %v8553, 32
      %v8618 = vpop.permute.xlu0 %8617
      %8619 = vrot.lane.b32.xlu0 %v8554, 32
      %v8620 = vpop.permute.xlu0 %8619
      %8621 = vrot.lane.b32.xlu0 %v8555, 32
      %v8622 = vpop.permute.xlu0 %8621
      %8623 = vrot.lane.b32.xlu0 %v8556, 32
      %v8624 = vpop.permute.xlu0 %8623
      %8625 = vrot.lane.b32.xlu0 %v8557, 32
      %v8626 = vpop.permute.xlu0 %8625
      %8627 = vrot.lane.b32.xlu0 %v8558, 32
      %v8628 = vpop.permute.xlu0 %8627
      %8629 = vrot.lane.b32.xlu0 %v8559, 32
      %v8630 = vpop.permute.xlu0 %8629
      %8631 = vrot.lane.b32.xlu0 %v8560, 32
      %v8632 = vpop.permute.xlu0 %8631
      %8633 = vrot.lane.b32.xlu0 %v8561, 32
      %v8634 = vpop.permute.xlu0 %8633
      %8635 = vrot.lane.b32.xlu0 %v8562, 32
      %v8636 = vpop.permute.xlu0 %8635
      %8637 = vrot.lane.b32.xlu0 %v8563, 32
      %v8638 = vpop.permute.xlu0 %8637
      %8639 = vrot.lane.b32.xlu0 %v8564, 32
      %v8640 = vpop.permute.xlu0 %8639
      %8641 = vrot.lane.b32.xlu0 %v8565, 32
      %v8642 = vpop.permute.xlu0 %8641
      %8643 = vrot.lane.b32.xlu0 %v8566, 32
      %v8644 = vpop.permute.xlu0 %8643
      %8645 = vrot.lane.b32.xlu0 %v8567, 32
      %v8646 = vpop.permute.xlu0 %8645
      %8647 = vrot.lane.b32.xlu0 %v8568, 32
      %v8648 = vpop.permute.xlu0 %8647
      %8649 = vrot.lane.b32.xlu0 %v8569, 32
      %v8650 = vpop.permute.xlu0 %8649
      %8651 = vrot.lane.b32.xlu0 %v8570, 32
      %v8652 = vpop.permute.xlu0 %8651
      %8653 = vrot.lane.b32.xlu0 %v8571, 32
      %v8654 = vpop.permute.xlu0 %8653
      %8655 = vrot.lane.b32.xlu0 %v8572, 32
      %v8656 = vpop.permute.xlu0 %8655
      %8657 = vrot.lane.b32.xlu0 %v8573, 32
      %v8658 = vpop.permute.xlu0 %8657
      %8659 = vrot.lane.b32.xlu0 %v8574, 32
      %v8660 = vpop.permute.xlu0 %8659
      %8661 = vrot.lane.b32.xlu0 %v8575, 32
      %v8662 = vpop.permute.xlu0 %8661
      %8663 = vrot.lane.b32.xlu0 %v8576, 32
      %v8664 = vpop.permute.xlu0 %8663
      %8665 = vrot.lane.b32.xlu0 %v8577, 32
      %v8666 = vpop.permute.xlu0 %8665
      %8667 = vrot.lane.b32.xlu0 %v8578, 32
      %v8668 = vpop.permute.xlu0 %8667
      %8669 = vrot.lane.b32.xlu0 %v8579, 32
      %v8670 = vpop.permute.xlu0 %8669
      %8671 = vrot.lane.b32.xlu0 %v8580, 32
      %v8672 = vpop.permute.xlu0 %8671
      %8673 = vrot.lane.b32.xlu0 %v8581, 32
      %v8674 = vpop.permute.xlu0 %8673
      %8675 = vrot.lane.b32.xlu0 %v8582, 32
      %v8676 = vpop.permute.xlu0 %8675
      %8677 = vrot.lane.b32.xlu0 %v8583, 32
      %v8678 = vpop.permute.xlu0 %8677
      %8679 = vrot.lane.b32.xlu0 %v8584, 32
      %v8680 = vpop.permute.xlu0 %8679
      %vm8713 = vcmask 294144
      %8714 = vst.msk [vmem:[#allocation5] sm:$0xff] %vm8713, %v8618
      %8715 = vst.msk [vmem:[#allocation5 + $0x8] sm:$0xff] %vm8713, %v8620
      %8716 = vst.msk [vmem:[#allocation5 + $0x10] sm:$0xff] %vm8713, %v8622
      %8717 = vst.msk [vmem:[#allocation5 + $0x18] sm:$0xff] %vm8713, %v8624
      %8718 = vst.msk [vmem:[#allocation5 + $0x20] sm:$0xff] %vm8713, %v8626
      %8719 = vst.msk [vmem:[#allocation5 + $0x28] sm:$0xff] %vm8713, %v8628
      %8720 = vst.msk [vmem:[#allocation5 + $0x30] sm:$0xff] %vm8713, %v8630
      %8721 = vst.msk [vmem:[#allocation5 + $0x38] sm:$0xff] %vm8713, %v8632
      %8722 = vst.msk [vmem:[#allocation5 + $0x40] sm:$0xff] %vm8713, %v8634
      %8723 = vst.msk [vmem:[#allocation5 + $0x48] sm:$0xff] %vm8713, %v8636
      %8724 = vst.msk [vmem:[#allocation5 + $0x50] sm:$0xff] %vm8713, %v8638
      %8725 = vst.msk [vmem:[#allocation5 + $0x58] sm:$0xff] %vm8713, %v8640
      %8726 = vst.msk [vmem:[#allocation5 + $0x60] sm:$0xff] %vm8713, %v8642
      %8727 = vst.msk [vmem:[#allocation5 + $0x68] sm:$0xff] %vm8713, %v8644
      %8728 = vst.msk [vmem:[#allocation5 + $0x70] sm:$0xff] %vm8713, %v8646
      %8729 = vst.msk [vmem:[#allocation5 + $0x78] sm:$0xff] %vm8713, %v8648
      %8730 = vst.msk [vmem:[#allocation5 + $0x80] sm:$0xff] %vm8713, %v8650
      %8731 = vst.msk [vmem:[#allocation5 + $0x88] sm:$0xff] %vm8713, %v8652
      %8732 = vst.msk [vmem:[#allocation5 + $0x90] sm:$0xff] %vm8713, %v8654
      %8733 = vst.msk [vmem:[#allocation5 + $0x98] sm:$0xff] %vm8713, %v8656
      %8734 = vst.msk [vmem:[#allocation5 + $0xa0] sm:$0xff] %vm8713, %v8658
      %8735 = vst.msk [vmem:[#allocation5 + $0xa8] sm:$0xff] %vm8713, %v8660
      %8736 = vst.msk [vmem:[#allocation5 + $0xb0] sm:$0xff] %vm8713, %v8662
      %8737 = vst.msk [vmem:[#allocation5 + $0xb8] sm:$0xff] %vm8713, %v8664
      %8738 = vst.msk [vmem:[#allocation5 + $0xc0] sm:$0xff] %vm8713, %v8666
      %8739 = vst.msk [vmem:[#allocation5 + $0xc8] sm:$0xff] %vm8713, %v8668
      %8740 = vst.msk [vmem:[#allocation5 + $0xd0] sm:$0xff] %vm8713, %v8670
      %8741 = vst.msk [vmem:[#allocation5 + $0xd8] sm:$0xff] %vm8713, %v8672
      %8742 = vst.msk [vmem:[#allocation5 + $0xe0] sm:$0xff] %vm8713, %v8674
      %8743 = vst.msk [vmem:[#allocation5 + $0xe8] sm:$0xff] %vm8713, %v8676
      %8744 = vst.msk [vmem:[#allocation5 + $0xf0] sm:$0xff] %vm8713, %v8678
      %8745 = vst.msk [vmem:[#allocation5 + $0xf8] sm:$0xff] %vm8713, %v8680
      %v8746 = vld [vmem:[#allocation5] sm:$0xff]
      %v8747 = vld [vmem:[#allocation5 + $0x8] sm:$0xff]
      %v8748 = vld [vmem:[#allocation5 + $0x10] sm:$0xff]
      %v8749 = vld [vmem:[#allocation5 + $0x18] sm:$0xff]
      %v8750 = vld [vmem:[#allocation5 + $0x20] sm:$0xff]
      %v8751 = vld [vmem:[#allocation5 + $0x28] sm:$0xff]
      %v8752 = vld [vmem:[#allocation5 + $0x30] sm:$0xff]
      %v8753 = vld [vmem:[#allocation5 + $0x38] sm:$0xff]
      %v8754 = vld [vmem:[#allocation5 + $0x40] sm:$0xff]
      %v8755 = vld [vmem:[#allocation5 + $0x48] sm:$0xff]
      %v8756 = vld [vmem:[#allocation5 + $0x50] sm:$0xff]
      %v8757 = vld [vmem:[#allocation5 + $0x58] sm:$0xff]
      %v8758 = vld [vmem:[#allocation5 + $0x60] sm:$0xff]
      %v8759 = vld [vmem:[#allocation5 + $0x68] sm:$0xff]
      %v8760 = vld [vmem:[#allocation5 + $0x70] sm:$0xff]
      %v8761 = vld [vmem:[#allocation5 + $0x78] sm:$0xff]
      %v8762 = vld [vmem:[#allocation5 + $0x80] sm:$0xff]
      %v8763 = vld [vmem:[#allocation5 + $0x88] sm:$0xff]
      %v8764 = vld [vmem:[#allocation5 + $0x90] sm:$0xff]
      %v8765 = vld [vmem:[#allocation5 + $0x98] sm:$0xff]
      %v8766 = vld [vmem:[#allocation5 + $0xa0] sm:$0xff]
      %v8767 = vld [vmem:[#allocation5 + $0xa8] sm:$0xff]
      %v8768 = vld [vmem:[#allocation5 + $0xb0] sm:$0xff]
      %v8769 = vld [vmem:[#allocation5 + $0xb8] sm:$0xff]
      %v8770 = vld [vmem:[#allocation5 + $0xc0] sm:$0xff]
      %v8771 = vld [vmem:[#allocation5 + $0xc8] sm:$0xff]
      %v8772 = vld [vmem:[#allocation5 + $0xd0] sm:$0xff]
      %v8773 = vld [vmem:[#allocation5 + $0xd8] sm:$0xff]
      %v8774 = vld [vmem:[#allocation5 + $0xe0] sm:$0xff]
      %v8775 = vld [vmem:[#allocation5 + $0xe8] sm:$0xff]
      %v8776 = vld [vmem:[#allocation5 + $0xf0] sm:$0xff]
      %v8777 = vld [vmem:[#allocation5 + $0xf8] sm:$0xff]
      %v8779 = vlaneseq
      %v8780 = vshrl.u32 %v8779, 7
      %v8781 = vsub.s32 0, %v8780
      %v8782 = vrot.slane %v7135, %v8781
      %vm8784 = vcmask 293888
      %v8786 = vsel %vm8784, %v8746, 0
      %v8789 = vsel %vm8784, %v8747, 0
      %v8792 = vsel %vm8784, %v8748, 0
      %v8795 = vsel %vm8784, %v8749, 0
      %v8798 = vsel %vm8784, %v8750, 0
      %v8801 = vsel %vm8784, %v8751, 0
      %v8804 = vsel %vm8784, %v8752, 0
      %v8807 = vsel %vm8784, %v8753, 0
      %v8810 = vsel %vm8784, %v8754, 0
      %v8813 = vsel %vm8784, %v8755, 0
      %v8816 = vsel %vm8784, %v8756, 0
      %v8819 = vsel %vm8784, %v8757, 0
      %v8822 = vsel %vm8784, %v8758, 0
      %v8825 = vsel %vm8784, %v8759, 0
      %v8828 = vsel %vm8784, %v8760, 0
      %v8831 = vsel %vm8784, %v8761, 0
      %v8834 = vsel %vm8784, %v8762, 0
      %v8837 = vsel %vm8784, %v8763, 0
      %v8840 = vsel %vm8784, %v8764, 0
      %v8843 = vsel %vm8784, %v8765, 0
      %v8846 = vsel %vm8784, %v8766, 0
      %v8849 = vsel %vm8784, %v8767, 0
      %v8852 = vsel %vm8784, %v8768, 0
      %v8855 = vsel %vm8784, %v8769, 0
      %v8858 = vsel %vm8784, %v8770, 0
      %v8861 = vsel %vm8784, %v8771, 0
      %v8864 = vsel %vm8784, %v8772, 0
      %v8867 = vsel %vm8784, %v8773, 0
      %v8870 = vsel %vm8784, %v8774, 0
      %v8873 = vsel %vm8784, %v8775, 0
      %v8876 = vsel %vm8784, %v8776, 0
      %v8879 = vsel %vm8784, %v8777, 0
      %vm8881 = vcmask 1043456
      %v8883 = vsel %vm8881, %v7134, 0
      %8885 = vmatprep.subr.mxu0 0.0
      %8886 = vmatpush1.msra.mxu0 0.0
      %8887 = vmatprep.subr.mxu0 0.0
      %8888 = vmatpush1.msra.mxu0 0.0
      %8889 = vmatprep.subr.mxu0 0.0
      %8890 = vmatpush1.msra.mxu0 0.0
      %8891 = vmatprep.subr.mxu0 0.0
      %8892 = vmatpush1.msra.mxu0 0.0
      %8893 = vmatprep.subr.mxu0 0.0
      %8894 = vmatpush1.msra.mxu0 0.0
      %8895 = vmatprep.subr.mxu0 0.0
      %8896 = vmatpush1.msra.mxu0 0.0
      %8897 = vmatprep.subr.mxu0 0.0
      %8898 = vmatpush1.msra.mxu0 0.0
      %8899 = vmatprep.subr.mxu0 0.0
      %8900 = vmatpush1.msra.mxu0 0.0
      %8901 = vmatprep.subr.mxu0 0.0
      %8902 = vmatpush1.msra.mxu0 0.0
      %8903 = vmatprep.subr.mxu0 0.0
      %8904 = vmatpush1.msra.mxu0 0.0
      %8905 = vmatprep.subr.mxu0 0.0
      %8906 = vmatpush1.msra.mxu0 0.0
      %8907 = vmatprep.subr.mxu0 0.0
      %8908 = vmatpush1.msra.mxu0 %v8883
      %8909 = vmatprep.subr.mxu0 0.0
      %8910 = vmatpush1.msra.mxu0 %v7133
      %8911 = vmatprep.subr.mxu0 0.0
      %8912 = vmatpush1.msra.mxu0 %v7132
      %8913 = vmatprep.subr.mxu0 0.0
      %8914 = vmatpush1.msra.mxu0 %v7131
      %8915 = vmatprep.subr.mxu0 0.0
      %8916 = vmatpush1.msra.mxu0 %v7130
      %8917 = vmatprep.subr.mxu0 0.0
      %8918 = vmatpush2.msra.mxu0 0.0
      %8919 = vmatprep.subr.mxu0 0.0
      %8920 = vmatpush2.msra.mxu0 0.0
      %8921 = vmatprep.subr.mxu0 0.0
      %8922 = vmatpush2.msra.mxu0 0.0
      %8923 = vmatprep.subr.mxu0 0.0
      %8924 = vmatpush2.msra.mxu0 0.0
      %8925 = vmatprep.subr.mxu0 0.0
      %8926 = vmatpush2.msra.mxu0 0.0
      %8927 = vmatprep.subr.mxu0 0.0
      %8928 = vmatpush2.msra.mxu0 0.0
      %8929 = vmatprep.subr.mxu0 0.0
      %8930 = vmatpush2.msra.mxu0 0.0
      %8931 = vmatprep.subr.mxu0 0.0
      %8932 = vmatpush2.msra.mxu0 0.0
      %8933 = vmatprep.subr.mxu0 0.0
      %8934 = vmatpush2.msra.mxu0 0.0
      %8935 = vmatprep.subr.mxu0 0.0
      %8936 = vmatpush2.msra.mxu0 0.0
      %8937 = vmatprep.subr.mxu0 0.0
      %8938 = vmatpush2.msra.mxu0 0.0
      %8939 = vmatprep.subr.mxu0 0.0
      %8940 = vmatpush2.msra.mxu0 0.0
      %8941 = vmatprep.subr.mxu0 0.0
      %8942 = vmatpush2.msra.mxu0 0.0
      %8943 = vmatprep.subr.mxu0 0.0
      %8944 = vmatpush2.msra.mxu0 0.0
      %8945 = vmatprep.subr.mxu0 0.0
      %8946 = vmatpush2.msra.mxu0 0.0
      %8947 = vmatprep.subr.mxu0 0.0
      %8948 = vmatpush2.msra.mxu0 0.0
      %8949 = vmatprep.mubr.f32.mxu0 0.0
      %8950 = vmatmul.mubr.f32.gmra.mxu0 %v8786
      %v8951 = vpop.f32.mrf.mxu0
      %v8952 = vadd.f32 %v8782, %v8951
      %v8953 = vpop.f32.mrf.mxu0
      %8954 = vmatprep.mubr.f32.mxu0 0.0
      %8955 = vmatmul.mubr.f32.gmra.mxu0 %v8789
      %v8956 = vpop.f32.mrf.mxu0
      %v8957 = vadd.f32 %v8782, %v8956
      %v8958 = vpop.f32.mrf.mxu0
      %8959 = vmatprep.mubr.f32.mxu0 0.0
      %8960 = vmatmul.mubr.f32.gmra.mxu0 %v8792
      %v8961 = vpop.f32.mrf.mxu0
      %v8962 = vadd.f32 %v8782, %v8961
      %v8963 = vpop.f32.mrf.mxu0
      %8964 = vmatprep.mubr.f32.mxu0 0.0
      %8965 = vmatmul.mubr.f32.gmra.mxu0 %v8795
      %v8966 = vpop.f32.mrf.mxu0
      %v8967 = vadd.f32 %v8782, %v8966
      %v8968 = vpop.f32.mrf.mxu0
      %8969 = vmatprep.mubr.f32.mxu0 0.0
      %8970 = vmatmul.mubr.f32.gmra.mxu0 %v8798
      %v8971 = vpop.f32.mrf.mxu0
      %v8972 = vadd.f32 %v8782, %v8971
      %v8973 = vpop.f32.mrf.mxu0
      %8974 = vmatprep.mubr.f32.mxu0 0.0
      %8975 = vmatmul.mubr.f32.gmra.mxu0 %v8801
      %v8976 = vpop.f32.mrf.mxu0
      %v8977 = vadd.f32 %v8782, %v8976
      %v8978 = vpop.f32.mrf.mxu0
      %8979 = vmatprep.mubr.f32.mxu0 0.0
      %8980 = vmatmul.mubr.f32.gmra.mxu0 %v8804
      %v8981 = vpop.f32.mrf.mxu0
      %v8982 = vadd.f32 %v8782, %v8981
      %v8983 = vpop.f32.mrf.mxu0
      %8984 = vmatprep.mubr.f32.mxu0 0.0
      %8985 = vmatmul.mubr.f32.gmra.mxu0 %v8807
      %v8986 = vpop.f32.mrf.mxu0
      %v8987 = vadd.f32 %v8782, %v8986
      %v8988 = vpop.f32.mrf.mxu0
      %8989 = vmatprep.mubr.f32.mxu0 0.0
      %8990 = vmatmul.mubr.f32.gmra.mxu0 %v8810
      %v8991 = vpop.f32.mrf.mxu0
      %v8992 = vadd.f32 %v8782, %v8991
      %v8993 = vpop.f32.mrf.mxu0
      %8994 = vmatprep.mubr.f32.mxu0 0.0
      %8995 = vmatmul.mubr.f32.gmra.mxu0 %v8813
      %v8996 = vpop.f32.mrf.mxu0
      %v8997 = vadd.f32 %v8782, %v8996
      %v8998 = vpop.f32.mrf.mxu0
      %8999 = vmatprep.mubr.f32.mxu0 0.0
      %9000 = vmatmul.mubr.f32.gmra.mxu0 %v8816
      %v9001 = vpop.f32.mrf.mxu0
      %v9002 = vadd.f32 %v8782, %v9001
      %v9003 = vpop.f32.mrf.mxu0
      %9004 = vmatprep.mubr.f32.mxu0 0.0
      %9005 = vmatmul.mubr.f32.gmra.mxu0 %v8819
      %v9006 = vpop.f32.mrf.mxu0
      %v9007 = vadd.f32 %v8782, %v9006
      %v9008 = vpop.f32.mrf.mxu0
      %9009 = vmatprep.mubr.f32.mxu0 0.0
      %9010 = vmatmul.mubr.f32.gmra.mxu0 %v8822
      %v9011 = vpop.f32.mrf.mxu0
      %v9012 = vadd.f32 %v8782, %v9011
      %v9013 = vpop.f32.mrf.mxu0
      %9014 = vmatprep.mubr.f32.mxu0 0.0
      %9015 = vmatmul.mubr.f32.gmra.mxu0 %v8825
      %v9016 = vpop.f32.mrf.mxu0
      %v9017 = vadd.f32 %v8782, %v9016
      %v9018 = vpop.f32.mrf.mxu0
      %9019 = vmatprep.mubr.f32.mxu0 0.0
      %9020 = vmatmul.mubr.f32.gmra.mxu0 %v8828
      %v9021 = vpop.f32.mrf.mxu0
      %v9022 = vadd.f32 %v8782, %v9021
      %v9023 = vpop.f32.mrf.mxu0
      %9024 = vmatprep.mubr.f32.mxu0 0.0
      %9025 = vmatmul.mubr.f32.gmra.mxu0 %v8831
      %v9026 = vpop.f32.mrf.mxu0
      %v9027 = vadd.f32 %v8782, %v9026
      %v9028 = vpop.f32.mrf.mxu0
      %9029 = vmatprep.mubr.f32.mxu0 0.0
      %9030 = vmatmul.mubr.f32.gmra.mxu0 %v8834
      %v9031 = vpop.f32.mrf.mxu0
      %v9032 = vadd.f32 %v8782, %v9031
      %v9033 = vpop.f32.mrf.mxu0
      %9034 = vmatprep.mubr.f32.mxu0 0.0
      %9035 = vmatmul.mubr.f32.gmra.mxu0 %v8837
      %v9036 = vpop.f32.mrf.mxu0
      %v9037 = vadd.f32 %v8782, %v9036
      %v9038 = vpop.f32.mrf.mxu0
      %9039 = vmatprep.mubr.f32.mxu0 0.0
      %9040 = vmatmul.mubr.f32.gmra.mxu0 %v8840
      %v9041 = vpop.f32.mrf.mxu0
      %v9042 = vadd.f32 %v8782, %v9041
      %v9043 = vpop.f32.mrf.mxu0
      %9044 = vmatprep.mubr.f32.mxu0 0.0
      %9045 = vmatmul.mubr.f32.gmra.mxu0 %v8843
      %v9046 = vpop.f32.mrf.mxu0
      %v9047 = vadd.f32 %v8782, %v9046
      %v9048 = vpop.f32.mrf.mxu0
      %9049 = vmatprep.mubr.f32.mxu0 0.0
      %9050 = vmatmul.mubr.f32.gmra.mxu0 %v8846
      %v9051 = vpop.f32.mrf.mxu0
      %v9052 = vadd.f32 %v8782, %v9051
      %v9053 = vpop.f32.mrf.mxu0
      %9054 = vmatprep.mubr.f32.mxu0 0.0
      %9055 = vmatmul.mubr.f32.gmra.mxu0 %v8849
      %v9056 = vpop.f32.mrf.mxu0
      %v9057 = vadd.f32 %v8782, %v9056
      %v9058 = vpop.f32.mrf.mxu0
      %9059 = vmatprep.mubr.f32.mxu0 0.0
      %9060 = vmatmul.mubr.f32.gmra.mxu0 %v8852
      %v9061 = vpop.f32.mrf.mxu0
      %v9062 = vadd.f32 %v8782, %v9061
      %v9063 = vpop.f32.mrf.mxu0
      %9064 = vmatprep.mubr.f32.mxu0 0.0
      %9065 = vmatmul.mubr.f32.gmra.mxu0 %v8855
      %v9066 = vpop.f32.mrf.mxu0
      %v9067 = vadd.f32 %v8782, %v9066
      %v9068 = vpop.f32.mrf.mxu0
      %9069 = vmatprep.mubr.f32.mxu0 0.0
      %9070 = vmatmul.mubr.f32.gmra.mxu0 %v8858
      %v9071 = vpop.f32.mrf.mxu0
      %v9072 = vadd.f32 %v8782, %v9071
      %v9073 = vpop.f32.mrf.mxu0
      %9074 = vmatprep.mubr.f32.mxu0 0.0
      %9075 = vmatmul.mubr.f32.gmra.mxu0 %v8861
      %v9076 = vpop.f32.mrf.mxu0
      %v9077 = vadd.f32 %v8782, %v9076
      %v9078 = vpop.f32.mrf.mxu0
      %9079 = vmatprep.mubr.f32.mxu0 0.0
      %9080 = vmatmul.mubr.f32.gmra.mxu0 %v8864
      %v9081 = vpop.f32.mrf.mxu0
      %v9082 = vadd.f32 %v8782, %v9081
      %v9083 = vpop.f32.mrf.mxu0
      %9084 = vmatprep.mubr.f32.mxu0 0.0
      %9085 = vmatmul.mubr.f32.gmra.mxu0 %v8867
      %v9086 = vpop.f32.mrf.mxu0
      %v9087 = vadd.f32 %v8782, %v9086
      %v9088 = vpop.f32.mrf.mxu0
      %9089 = vmatprep.mubr.f32.mxu0 0.0
      %9090 = vmatmul.mubr.f32.gmra.mxu0 %v8870
      %v9091 = vpop.f32.mrf.mxu0
      %v9092 = vadd.f32 %v8782, %v9091
      %v9093 = vpop.f32.mrf.mxu0
      %9094 = vmatprep.mubr.f32.mxu0 0.0
      %9095 = vmatmul.mubr.f32.gmra.mxu0 %v8873
      %v9096 = vpop.f32.mrf.mxu0
      %v9097 = vadd.f32 %v8782, %v9096
      %v9098 = vpop.f32.mrf.mxu0
      %9099 = vmatprep.mubr.f32.mxu0 0.0
      %9100 = vmatmul.mubr.f32.gmra.mxu0 %v8876
      %v9101 = vpop.f32.mrf.mxu0
      %v9102 = vadd.f32 %v8782, %v9101
      %v9103 = vpop.f32.mrf.mxu0
      %9104 = vmatprep.mubr.f32.mxu0 0.0
      %9105 = vmatmul.mubr.f32.gmra.mxu0 %v8879
      %v9106 = vpop.f32.mrf.mxu0
      %v9107 = vadd.f32 %v8782, %v9106
      %v9108 = vpop.f32.mrf.mxu0
      %9109 = vdwg.mxu0
      %s9110 = scalar_lea.vmem %s435, 24
      %v9111 = vld [vmem:[%s9110 + $0x1] sm:$0xff]
      %v9112 = vld [vmem:[%s9110 + $0x9] sm:$0xff]
      %v9113 = vld [vmem:[%s9110 + $0x19] sm:$0xff]
      %v9114 = vld [vmem:[%s9110 + $0x21] sm:$0xff]
      %v9115 = vld [vmem:[%s9110 + $0x31] sm:$0xff]
      %v9116 = vld [vmem:[%s9110 + $0x39] sm:$0xff]
      %v9117 = vld [vmem:[%s9110 + $0x49] sm:$0xff]
      %v9118 = vld [vmem:[%s9110 + $0x51] sm:$0xff]
      %v9119 = vld [vmem:[%s9110 + $0x61] sm:$0xff]
      %v9120 = vld [vmem:[%s9110 + $0x69] sm:$0xff]
      %v9121 = vld [vmem:[%s9110 + $0x79] sm:$0xff]
      %v9122 = vld [vmem:[%s9110 + $0x81] sm:$0xff]
      %v9123 = vld [vmem:[%s9110 + $0x91] sm:$0xff]
      %v9124 = vld [vmem:[%s9110 + $0x99] sm:$0xff]
      %v9125 = vld [vmem:[%s9110 + $0xa9] sm:$0xff]
      %v9126 = vld [vmem:[%s9110 + $0xb1] sm:$0xff]
      %v9127 = vld [vmem:[%s9110 + $0xc1] sm:$0xff]
      %v9128 = vld [vmem:[%s9110 + $0xc9] sm:$0xff]
      %v9129 = vld [vmem:[%s9110 + $0xd9] sm:$0xff]
      %v9130 = vld [vmem:[%s9110 + $0xe1] sm:$0xff]
      %v9131 = vld [vmem:[%s9110 + $0xf1] sm:$0xff]
      %v9132 = vld [vmem:[%s9110 + $0xf9] sm:$0xff]
      %v9133 = vld [vmem:[%s9110 + $0x109] sm:$0xff]
      %v9134 = vld [vmem:[%s9110 + $0x111] sm:$0xff]
      %v9135 = vld [vmem:[%s9110 + $0x121] sm:$0xff]
      %v9136 = vld [vmem:[%s9110 + $0x129] sm:$0xff]
      %v9137 = vld [vmem:[%s9110 + $0x139] sm:$0xff]
      %v9138 = vld [vmem:[%s9110 + $0x141] sm:$0xff]
      %v9139 = vld [vmem:[%s9110 + $0x151] sm:$0xff]
      %v9140 = vld [vmem:[%s9110 + $0x159] sm:$0xff]
      %v9141 = vld [vmem:[%s9110 + $0x169] sm:$0xff]
      %v9142 = vld [vmem:[%s9110 + $0x171] sm:$0xff]
      %v9143 = vadd.f32 %v8952, %v9111
      %v9144 = vadd.f32 %v8957, %v9112
      %v9145 = vadd.f32 %v8962, %v9113
      %v9146 = vadd.f32 %v8967, %v9114
      %v9147 = vadd.f32 %v8972, %v9115
      %v9148 = vadd.f32 %v8977, %v9116
      %v9149 = vadd.f32 %v8982, %v9117
      %v9150 = vadd.f32 %v8987, %v9118
      %v9151 = vadd.f32 %v8992, %v9119
      %v9152 = vadd.f32 %v8997, %v9120
      %v9153 = vadd.f32 %v9002, %v9121
      %v9154 = vadd.f32 %v9007, %v9122
      %v9155 = vadd.f32 %v9012, %v9123
      %v9156 = vadd.f32 %v9017, %v9124
      %v9157 = vadd.f32 %v9022, %v9125
      %v9158 = vadd.f32 %v9027, %v9126
      %v9159 = vadd.f32 %v9032, %v9127
      %v9160 = vadd.f32 %v9037, %v9128
      %v9161 = vadd.f32 %v9042, %v9129
      %v9162 = vadd.f32 %v9047, %v9130
      %v9163 = vadd.f32 %v9052, %v9131
      %v9164 = vadd.f32 %v9057, %v9132
      %v9165 = vadd.f32 %v9062, %v9133
      %v9166 = vadd.f32 %v9067, %v9134
      %v9167 = vadd.f32 %v9072, %v9135
      %v9168 = vadd.f32 %v9077, %v9136
      %v9169 = vadd.f32 %v9082, %v9137
      %v9170 = vadd.f32 %v9087, %v9138
      %v9171 = vadd.f32 %v9092, %v9139
      %v9172 = vadd.f32 %v9097, %v9140
      %v9173 = vadd.f32 %v9102, %v9141
      %v9174 = vadd.f32 %v9107, %v9142
      %9175 = vst.msk [vmem:[%s440] sm:$0xff] %vm495, %v9143
      %9176 = vst.msk [vmem:[%s440 + $0x8] sm:$0xff] %vm495, %v9144
      %9177 = vst.msk [vmem:[%s440 + $0x10] sm:$0xff] %vm495, %v9145
      %9178 = vst.msk [vmem:[%s440 + $0x18] sm:$0xff] %vm495, %v9146
      %9179 = vst.msk [vmem:[%s440 + $0x20] sm:$0xff] %vm495, %v9147
      %9180 = vst.msk [vmem:[%s440 + $0x28] sm:$0xff] %vm495, %v9148
      %9181 = vst.msk [vmem:[%s440 + $0x30] sm:$0xff] %vm495, %v9149
      %9182 = vst.msk [vmem:[%s440 + $0x38] sm:$0xff] %vm495, %v9150
      %9183 = vst.msk [vmem:[%s440 + $0x40] sm:$0xff] %vm495, %v9151
      %9184 = vst.msk [vmem:[%s440 + $0x48] sm:$0xff] %vm495, %v9152
      %9185 = vst.msk [vmem:[%s440 + $0x50] sm:$0xff] %vm495, %v9153
      %9186 = vst.msk [vmem:[%s440 + $0x58] sm:$0xff] %vm495, %v9154
      %9187 = vst.msk [vmem:[%s440 + $0x60] sm:$0xff] %vm495, %v9155
      %9188 = vst.msk [vmem:[%s440 + $0x68] sm:$0xff] %vm495, %v9156
      %9189 = vst.msk [vmem:[%s440 + $0x70] sm:$0xff] %vm495, %v9157
      %9190 = vst.msk [vmem:[%s440 + $0x78] sm:$0xff] %vm495, %v9158
      %9191 = vst.msk [vmem:[%s440 + $0x80] sm:$0xff] %vm495, %v9159
      %9192 = vst.msk [vmem:[%s440 + $0x88] sm:$0xff] %vm495, %v9160
      %9193 = vst.msk [vmem:[%s440 + $0x90] sm:$0xff] %vm495, %v9161
      %9194 = vst.msk [vmem:[%s440 + $0x98] sm:$0xff] %vm495, %v9162
      %9195 = vst.msk [vmem:[%s440 + $0xa0] sm:$0xff] %vm495, %v9163
      %9196 = vst.msk [vmem:[%s440 + $0xa8] sm:$0xff] %vm495, %v9164
      %9197 = vst.msk [vmem:[%s440 + $0xb0] sm:$0xff] %vm495, %v9165
      %9198 = vst.msk [vmem:[%s440 + $0xb8] sm:$0xff] %vm495, %v9166
      %9199 = vst.msk [vmem:[%s440 + $0xc0] sm:$0xff] %vm495, %v9167
      %9200 = vst.msk [vmem:[%s440 + $0xc8] sm:$0xff] %vm495, %v9168
      %9201 = vst.msk [vmem:[%s440 + $0xd0] sm:$0xff] %vm495, %v9169
      %9202 = vst.msk [vmem:[%s440 + $0xd8] sm:$0xff] %vm495, %v9170
      %9203 = vst.msk [vmem:[%s440 + $0xe0] sm:$0xff] %vm495, %v9171
      %9204 = vst.msk [vmem:[%s440 + $0xe8] sm:$0xff] %vm495, %v9172
      %9205 = vst.msk [vmem:[%s440 + $0xf0] sm:$0xff] %vm495, %v9173
      %9206 = vst.msk [vmem:[%s440 + $0xf8] sm:$0xff] %vm495, %v9174
      %p9207 = scmp.lt.s32.totalorder %s24, 1
      %s9208 = scalar_select %p9207, %s24, 1
      %s9209 = smul.addr %s9208, 32
      %s9210 = smul.addr %s9209, 8
      %s9211 = scalar_lea.vmem %s13, %s9210
      // Predicated region
      $region87: #{rir_forward.1} parent=71 // pred_check
        %p9212 = pneg %p320
      $region88: #{rir_forward.1} parent=71 // pred_check_branch
        %9214 = sbr.rel (%p9212) target = $region90
      $region89: #{rir_forward.1} parent=71 // pred_region
        _
      $region90: #{rir_forward.1} parent=71 // pred_fallthru
        _
    $region72: #{rir_forward.1} parent=5 // pred_fallthru
      _
    %p9215 = scmp.le.s32.totalorder 2, %s19
    // Predicated region
    $region91: #{rir_forward.1} parent=5 // pred_check
      %p9216 = pneg %p9215
    $region92: #{rir_forward.1} parent=5 // pred_check_branch
      %9218 = sbr.rel (%p9216) target = $region94
    $region93: #{rir_forward.1} parent=5 // pred_region
      %s9219 = ssub.s32 %s19, 2
      // Predicated region
      $region95: #{rir_forward.1} parent=93 // pred_check
        %p9220 = pneg %p326
      $region96: #{rir_forward.1} parent=93 // pred_check_branch
        %9222 = sbr.rel (%p9220) target = $region98
      $region97: #{rir_forward.1} parent=93 // pred_region
        %p9223 = scmp.lt.s32.totalorder %s25, 1
        %s9224 = scalar_select %p9223, %s25, 1
        %s9225 = smul.addr %s9224, 32
        %s9226 = smul.addr %s9225, 8
        %s9227 = scalar_lea.vmem %s13, %s9226
      $region98: #{rir_forward.1} parent=93 // pred_fallthru
        _
    $region94: #{rir_forward.1} parent=5 // pred_fallthru
      _
  $region6: #{rir_forward.1} parent=0 // loop_footer
    %s23 = sadd.s32 1, %s19
  $region7: #{rir_forward.1} parent=0 // loop_footer_branch
    %18 = sbr.rel target = $region3
  $region8: #{rir_forward.1} parent=0 // loop_exit
    _

</llo_original>
